<compile_context>
chip_gen: v6e
topology: v6e:2x2x1
jax: 0.10.0
libtpu: 0.0.40
codegen_flags: <defaults>
</compile_context>

<pallas_src>
import functools

import jax
import jax.numpy as jnp
from jax.experimental import pallas as pl
from jax.experimental.pallas import tpu as pltpu

LEN = 16          # hash code length ("len" constructor arg of DCMH)
LEN_PAD = 128     # lane-dense padded hash width (sliced to LEN outside kernels)
HIDDEN = 128      # GRU hidden size (reference uses 1024, see TODO above)
EMB = 128         # embedding dim (stands in for EmbeddingWeight.npy columns)
VOCAB = 50        # vocabulary size
NUM_LAYERS = 2
NUM_DIRS = 2
PAD_L = 8         # sublane-aligned interior offset inside padded conv scratch

VMEM_SPEC = pl.BlockSpec(memory_space=pltpu.MemorySpace.VMEM)


# ------------------------------------------------------------ image network

def _imgnet_kernel(img_ref, w1_ref, b1_ref, w2_ref, b2_ref, fcw_ref, fcb_ref,
                   o_ref, pad1, pad2, *, bn, h, w):
    """Fused conv1+relu -> conv2+relu -> global-avg-pool -> FC -> tanh.

    Each conv is a single im2col matmul: the 9 shifted taps of a zero-padded
    bf16 VMEM scratch are concatenated along K and multiplied once on the MXU.
    """
    cin = img_ref.shape[3]
    c1 = b1_ref.shape[1]
    c2 = b2_ref.shape[1]

    def conv3x3_relu(pad_ref, x_val, w_ref, b_ref, c_in):
        pad_ref[...] = jnp.zeros_like(pad_ref)
        # single interior store, kept sublane-aligned at offset PAD_L
        pad_ref[:, 1:h + 1, PAD_L:PAD_L + w, :] = x_val
        taps = [pad_ref[:, di:di + h, PAD_L - 1 + dj:PAD_L - 1 + dj + w, :]
                .reshape(bn * h * w, c_in)
                for di in range(3) for dj in range(3)]
        col = jnp.concatenate(taps, axis=-1)            # (bn*h*w, 9*c_in) bf16
        y = jnp.dot(col, w_ref[...], preferred_element_type=jnp.float32)
        return jnp.maximum(y + b_ref[...], 0.0)         # (bn*h*w, c_out) f32

    h1 = conv3x3_relu(pad1, img_ref[...], w1_ref, b1_ref, cin)
    h1_bf = h1.reshape(bn, h, w, c1).astype(jnp.bfloat16)      # single cast
    h2 = conv3x3_relu(pad2, h1_bf, w2_ref, b2_ref, c1)
    pooled = jnp.mean(h2.reshape(bn, h * w, c2), axis=1)       # (bn, c2)
    y = jnp.dot(pooled.astype(jnp.bfloat16), fcw_ref[...],
                preferred_element_type=jnp.float32)
    o_ref[...] = jnp.tanh(y + fcb_ref[...])                    # (bn, LEN_PAD)


def imgnet_forward(p, img):
    n, _, h, w = img.shape
    x = jnp.transpose(img, (0, 2, 3, 1)).astype(jnp.bfloat16)  # NCHW->NHWC, bf16 once
    cin = x.shape[3]
    c1 = p["b1"].shape[1]
    bn = n if n <= 8 else 8
    assert n % bn == 0  # TODO(synk): handle ragged batch remainder at real sizes
    out = pl.pallas_call(
        functools.partial(_imgnet_kernel, bn=bn, h=h, w=w),
        grid=(n // bn,),
        out_shape=jax.ShapeDtypeStruct((n, LEN_PAD), jnp.float32),
        in_specs=[
            pl.BlockSpec((bn, h, w, cin), lambda i: (i, 0, 0, 0)),
            pl.BlockSpec(p["w1"].shape, lambda i: (0, 0)),
            pl.BlockSpec(p["b1"].shape, lambda i: (0, 0)),
            pl.BlockSpec(p["w2"].shape, lambda i: (0, 0)),
            pl.BlockSpec(p["b2"].shape, lambda i: (0, 0)),
            pl.BlockSpec(p["fc_w"].shape, lambda i: (0, 0)),
            pl.BlockSpec(p["fc_b"].shape, lambda i: (0, 0)),
        ],
        out_specs=pl.BlockSpec((bn, LEN_PAD), lambda i: (i, 0)),
        scratch_shapes=[
            pltpu.VMEM((bn, h + 2, w + PAD_L + 1, cin), jnp.bfloat16),
            pltpu.VMEM((bn, h + 2, w + PAD_L + 1, c1), jnp.bfloat16),
        ],
        compiler_params=pltpu.CompilerParams(
            dimension_semantics=("parallel",)),
    )(x, p["w1"], p["b1"], p["w2"], p["b2"], p["fc_w"], p["fc_b"])
    return out[:, :LEN]


# ------------------------------------------------------------- text network

def _bigru_layer_kernel(*refs, seq_len, hidden, with_hash):
    """One bidirectional GRU layer, both directions fused in one invocation.

    Gate/lane layout (H = hidden):
      hidden state  h  : (B, 2H)  = [h_fwd | h_bwd]
      gate columns 6H  : [r_f, r_b, z_f, z_b, n_f, n_b]
    PyTorch gate math: r,z = sigmoid(gx+gh); n = tanh(gx_n + r*gh_n);
    h' = (1-z)*n + z*h.  Updates masked with t < length (packed-seq parity).
    """
    if with_hash:
        (x_ref, lens_ref, wih_ref, whh_ref, bih_ref, bhh_ref, h0_ref,
         fcw_ref, fcb_ref, out_ref, hash_ref, gx_scr, h_scr) = refs
    else:
        (x_ref, lens_ref, wih_ref, whh_ref, bih_ref, bhh_ref, h0_ref,
         out_ref, gx_scr, h_scr) = refs

    H = hidden
    T = seq_len
    Bsz = x_ref.shape[1]
    Din = x_ref.shape[2]

    # ---- input projection for BOTH directions, off the critical path -------
    # TODO(synk): time-tile this precompute at H=1024 / long T (VMEM budget).
    x_flat = x_ref[...].reshape(T * Bsz, Din)                    # bf16
    gx_all = jnp.dot(x_flat, wih_ref[...],
                     preferred_element_type=jnp.float32)
    gx_scr[...] = (gx_all + bih_ref[...]).reshape(T, Bsz, 6 * H)

    # ---- loop-invariant values (hoisted out of the recurrence) -------------
    whh = whh_ref[...]                                           # (2H, 6H) bf16
    bhh = bhh_ref[...]                                           # (1, 6H) f32
    lens = lens_ref[...]                                         # (B, 1) int32
    h_scr[...] = h0_ref[...]                                     # (B, 2H) f32
    lane6 = jax.lax.broadcasted_iota(jnp.int32, (1, 6 * H), 1)
    fwd_cols6 = (lane6 // H) % 2 == 0                            # fwd gate lanes
    lane2 = jax.lax.broadcasted_iota(jnp.int32, (1, 2 * H), 1)
    fwd_cols2 = lane2 < H                                        # fwd state lanes

    def step(i, carry):
        t_f = i                       # forward direction time index
        t_b = T - 1 - i               # backward direction time index
        h_prev = h_scr[...]                                      # (B, 2H) f32
        gx_f = gx_scr[t_f]                                       # (B, 6H)
        gx_b = gx_scr[t_b]
        gx_t = jnp.where(fwd_cols6, gx_f, gx_b)                  # per-dir select
        gh = jnp.dot(h_prev.astype(jnp.bfloat16), whh,
                     preferred_element_type=jnp.float32) + bhh   # (B, 6H)
        r = jax.nn.sigmoid(gx_t[:, :2 * H] + gh[:, :2 * H])
        z = jax.nn.sigmoid(gx_t[:, 2 * H:4 * H] + gh[:, 2 * H:4 * H])
        n_gate = jnp.tanh(gx_t[:, 4 * H:] + r * gh[:, 4 * H:])
        h_new = (1.0 - z) * n_gate + z * h_prev                  # (B, 2H)
        valid_f = t_f < lens                                     # (B, 1) bool
        valid_b = t_b < lens
        valid2 = jnp.where(fwd_cols2, valid_f, valid_b)          # (B, 2H) bool
        h_scr[...] = jnp.where(valid2, h_new, h_prev)
        out_ref[t_f, :, 0:H] = jnp.where(valid_f, h_new[:, :H],
                                         0.0).astype(out_ref.dtype)
        out_ref[t_b, :, H:2 * H] = jnp.where(valid_b, h_new[:, H:],
                                             0.0).astype(out_ref.dtype)
        return carry

    jax.lax.fori_loop(0, T, step, 0, unroll=2)

    if with_hash:
        # fused hash head: tanh([h_fwd | h_bwd] @ W + b), lane-dense 128 slab.
        y = jnp.dot(h_scr[...].astype(jnp.bfloat16), fcw_ref[...],
                    preferred_element_type=jnp.float32)
        hash_ref[...] = jnp.tanh(y + fcb_ref[...])


def bigru_layer(x, lens, lp, h0_cat, fc=None):
    """x: (T, B, Din) bf16.  Returns (T, B, 2H) bf16 [, (B, LEN_PAD) f32]."""
    T, B, _ = x.shape
    H = HIDDEN
    with_hash = fc is not None
    kernel = functools.partial(_bigru_layer_kernel, seq_len=T, hidden=H,
                               with_hash=with_hash)
    inputs = [x, lens, lp["w_ih"], lp["w_hh"], lp["b_ih"], lp["b_hh"], h0_cat]
    if with_hash:
        inputs += [fc[0], fc[1]]
        out_shape = (jax.ShapeDtypeStruct((T, B, 2 * H), jnp.bfloat16),
                     jax.ShapeDtypeStruct((B, LEN_PAD), jnp.float32))
        out_specs = (VMEM_SPEC, VMEM_SPEC)
    else:
        out_shape = jax.ShapeDtypeStruct((T, B, 2 * H), jnp.bfloat16)
        out_specs = VMEM_SPEC
    return pl.pallas_call(
        kernel,
        out_shape=out_shape,
        in_specs=[VMEM_SPEC] * len(inputs),
        out_specs=out_specs,
        scratch_shapes=[pltpu.VMEM((T, B, 6 * H), jnp.float32),   # gx precompute
                        pltpu.VMEM((B, 2 * H), jnp.float32)],     # hidden state
    )(*inputs)


def txtnet_forward(p, txt, h0, data_length, flag):
    del flag  # lengths are always honoured via masking (see TODO at top)
    B, _ = txt.shape
    emb = jnp.take(p["embedding"], txt, axis=0)                  # (B, T, E)
    x = jnp.transpose(emb, (1, 0, 2)).astype(jnp.bfloat16)       # (T, B, E)
    lens = jnp.asarray(data_length, jnp.int32).reshape(B, 1)
    g_pad = None
    for layer in range(NUM_LAYERS):
        h0_cat = jnp.concatenate([h0[NUM_DIRS * layer],
                                  h0[NUM_DIRS * layer + 1]], axis=-1)  # (B, 2H)
        is_last = layer == NUM_LAYERS - 1
        fc = (p["fc_w"], p["fc_b"]) if is_last else None
        res = bigru_layer(x, lens, p["gru"][layer], h0_cat, fc=fc)
        if is_last:
            x, g_pad = res
        else:
            x = res
    return g_pad[:, :LEN]


# ------------------------------------------------------------------- module

def init_params(key):
    """PyTorch-layout parameters (conv: (Cout,Cin,kh,kw); GRU: (3H,Din))."""
    ks = iter(jax.random.split(key, 32))

    def nrm(shape, scale=0.1):
        return scale * jax.random.normal(next(ks), shape, dtype=jnp.float32)

    img = dict(
        conv1_w=nrm((8, 4, 3, 3)), conv1_b=jnp.zeros((8,), jnp.float32),
        conv2_w=nrm((16, 8, 3, 3)), conv2_b=jnp.zeros((16,), jnp.float32),
        fc_w=nrm((16, LEN)), fc_b=jnp.zeros((LEN,), jnp.float32),
    )
    gru = []
    for layer in range(NUM_LAYERS):
        din = EMB if layer == 0 else NUM_DIRS * HIDDEN
        lp = {}
        for d in ("fwd", "bwd"):
            lp[d] = dict(
                w_ih=nrm((3 * HIDDEN, din)),
                w_hh=nrm((3 * HIDDEN, HIDDEN)),
                b_ih=jnp.zeros((3 * HIDDEN,), jnp.float32),
                b_hh=jnp.zeros((3 * HIDDEN,), jnp.float32),
            )
        gru.append(lp)
    txt = dict(
        embedding=nrm((VOCAB, EMB), 1.0),   # stands in for np.load('EmbeddingWeight.npy')
        gru=gru,
        fc_w=nrm((NUM_DIRS * HIDDEN, LEN)),
        fc_b=jnp.zeros((LEN,), jnp.float32),
    )
    return dict(img=img, txt=txt)


def pack_params(p):
    """One-time transpose/stack/pad/bf16-cast into kernel-ready layouts."""
    bf16, f32 = jnp.bfloat16, jnp.float32
    H = HIDDEN

    def conv_im2col(wt):   # (Cout, Cin, 3, 3) -> (9*Cin, Cout), tap-major rows
        cout, cin = wt.shape[0], wt.shape[1]
        return jnp.transpose(wt, (2, 3, 1, 0)).reshape(9 * cin, cout).astype(bf16)

    def pad_lane(m, width):   # (K, L) -> (K, width) zero-padded along lanes
        return jnp.zeros((m.shape[0], width), m.dtype).at[:, :m.shape[1]].set(m)

    def gate_interleave(wf_t, wb_t):
        # (K, 3H) fwd / bwd (cols [r,z,n]) -> (K, 6H) cols [r_f,r_b,z_f,z_b,n_f,n_b]
        parts = []
        for g in range(3):
            parts.append(wf_t[:, g * H:(g + 1) * H])
            parts.append(wb_t[:, g * H:(g + 1) * H])
        return jnp.concatenate(parts, axis=1)

    img = p["img"]
    pk_img = dict(
        w1=conv_im2col(img["conv1_w"]),
        b1=img["conv1_b"].reshape(1, -1).astype(f32),
        w2=conv_im2col(img["conv2_w"]),
        b2=img["conv2_b"].reshape(1, -1).astype(f32),
        fc_w=pad_lane(img["fc_w"], LEN_PAD).astype(bf16),
        fc_b=pad_lane(img["fc_b"].reshape(1, -1), LEN_PAD).astype(f32),
    )

    txt = p["txt"]
    layers = []
    for lp in txt["gru"]:
        fw, bw = lp["fwd"], lp["bwd"]
        w_ih = gate_interleave(fw["w_ih"].T, bw["w_ih"].T).astype(bf16)
        # block-diagonal recurrent weights: rows 0:H act on h_fwd, H:2H on h_bwd
        whh = jnp.zeros((2 * H, 6 * H), f32)
        wf_t, wb_t = fw["w_hh"].T, bw["w_hh"].T
        for g in range(3):
            whh = whh.at[:H, (2 * g) * H:(2 * g + 1) * H].set(
                wf_t[:, g * H:(g + 1) * H])
            whh = whh.at[H:, (2 * g + 1) * H:(2 * g + 2) * H].set(
                wb_t[:, g * H:(g + 1) * H])
        layers.append(dict(
            w_ih=w_ih,
            w_hh=whh.astype(bf16),
            b_ih=gate_interleave(fw["b_ih"].reshape(1, -1),
                                 bw["b_ih"].reshape(1, -1)).astype(f32),
            b_hh=gate_interleave(fw["b_hh"].reshape(1, -1),
                                 bw["b_hh"].reshape(1, -1)).astype(f32),
        ))
    pk_txt = dict(
        embedding=txt["embedding"].astype(f32),
        gru=layers,
        fc_w=pad_lane(txt["fc_w"], LEN_PAD).astype(bf16),   # rows [fwd H; bwd H]
        fc_b=pad_lane(txt["fc_b"].reshape(1, -1), LEN_PAD).astype(f32),
    )
    return dict(img=pk_img, txt=pk_txt)


def dcmh_forward(packed, img, txt, data_length, batch_size, flag, h0_key):
    f = imgnet_forward(packed["img"], img)
    # mirrors: h0 = torch.randn((2 * 2, batch_size, HIDDEN))
    h0 = jax.random.normal(h0_key, (NUM_LAYERS * NUM_DIRS, batch_size, HIDDEN),
                           dtype=jnp.float32)
    g = txtnet_forward(packed["txt"], txt, h0, data_length, flag)
    return f, g


if __name__ == "__main__":
    key = jax.random.PRNGKey(0)
    kp, kimg, ktxt, kh0 = jax.random.split(key, 4)
    params = init_params(kp)
    packed = pack_params(params)

    B, T = 2, 8
    img = jax.random.normal(kimg, (B, 4, 16, 16), dtype=jnp.float32)    # NCHW
    txt = jax.random.randint(ktxt, (B, T), 0, VOCAB, dtype=jnp.int32)
    data_length = jnp.array([T, T - 2], dtype=jnp.int32)

    f, g = dcmh_forward(packed, img, txt, data_length, B, True, kh0)
    jax.block_until_ready((f, g))
    assert f.shape == (B, LEN) and g.shape == (B, LEN)
    assert f.dtype == jnp.float32 and g.dtype == jnp.float32
    print("KERNEL_OK")
</pallas_src>

<mosaic_0001>
module attributes {stable_mosaic.version = 11 : i64} {
  func.func @_imgnet_kernel(%arg0: i32, %arg1: memref<2x16x16x4xbf16, #tpu.memory_space<vmem>>, %arg2: memref<36x8xbf16, #tpu.memory_space<vmem>>, %arg3: memref<1x8xf32, #tpu.memory_space<vmem>>, %arg4: memref<72x16xbf16, #tpu.memory_space<vmem>>, %arg5: memref<1x16xf32, #tpu.memory_space<vmem>>, %arg6: memref<16x128xbf16, #tpu.memory_space<vmem>>, %arg7: memref<1x128xf32, #tpu.memory_space<vmem>>, %arg8: memref<2x128xf32, #tpu.memory_space<vmem>>, %arg9: memref<2x18x25x4xbf16, #tpu.memory_space<vmem>>, %arg10: memref<2x18x25x8xbf16, #tpu.memory_space<vmem>>) attributes {dimension_semantics = [#tpu.dimension_semantics<parallel>], iteration_bounds = array<i64: 1>, scalar_prefetch = 0 : i64, scratch_operands = 2 : i64, tpu.core_type = #tpu.core_type<tc>, window_params = [{transform_indices = @transform_0, window_bounds = array<i64: 2, 16, 16, 4>}, {pipeline_mode = #tpu.pipeline_mode<synchronous>, transform_indices = @transform_1, window_bounds = array<i64: 36, 8>}, {pipeline_mode = #tpu.pipeline_mode<synchronous>, transform_indices = @transform_2, window_bounds = array<i64: 1, 8>}, {pipeline_mode = #tpu.pipeline_mode<synchronous>, transform_indices = @transform_3, window_bounds = array<i64: 72, 16>}, {pipeline_mode = #tpu.pipeline_mode<synchronous>, transform_indices = @transform_4, window_bounds = array<i64: 1, 16>}, {pipeline_mode = #tpu.pipeline_mode<synchronous>, transform_indices = @transform_5, window_bounds = array<i64: 16, 128>}, {pipeline_mode = #tpu.pipeline_mode<synchronous>, transform_indices = @transform_6, window_bounds = array<i64: 1, 128>}, {transform_indices = @transform_7, window_bounds = array<i64: 2, 128>}]} {
    %c0 = arith.constant 0 : index
    %c0_0 = arith.constant 0 : index
    %c0_1 = arith.constant 0 : index
    %c0_2 = arith.constant 0 : index
    %0 = vector.load %arg1[%c0, %c0_0, %c0_1, %c0_2] : memref<2x16x16x4xbf16, #tpu.memory_space<vmem>>, vector<2x16x16x4xbf16>
    %cst = arith.constant 0.000000e+00 : bf16
    %1 = vector.broadcast %cst : bf16 to vector<2x18x25x4xbf16>
    %c0_3 = arith.constant 0 : index
    %c0_4 = arith.constant 0 : index
    %c0_5 = arith.constant 0 : index
    %c0_6 = arith.constant 0 : index
    %2 = vector.load %arg9[%c0_3, %c0_4, %c0_5, %c0_6] : memref<2x18x25x4xbf16, #tpu.memory_space<vmem>>, vector<2x18x25x4xbf16>
    tpu.vector_store %arg9[%c0_3, %c0_4, %c0_5, %c0_6], %1 {strides = array<i32>} : memref<2x18x25x4xbf16, #tpu.memory_space<vmem>>, vector<2x18x25x4xbf16>,
    %c0_7 = arith.constant 0 : index
    %c1 = arith.constant 1 : index
    %c8 = arith.constant 8 : index
    %c0_8 = arith.constant 0 : index
    %3 = vector.load %arg9[%c0_7, %c1, %c8, %c0_8] : memref<2x18x25x4xbf16, #tpu.memory_space<vmem>>, vector<2x16x16x4xbf16>
    tpu.vector_store %arg9[%c0_7, %c1, %c8, %c0_8], %0 {strides = array<i32>} : memref<2x18x25x4xbf16, #tpu.memory_space<vmem>>, vector<2x16x16x4xbf16>,
    %c0_9 = arith.constant 0 : index
    %c0_10 = arith.constant 0 : index
    %c7 = arith.constant 7 : index
    %c0_11 = arith.constant 0 : index
    %4 = vector.load %arg9[%c0_9, %c0_10, %c7, %c0_11] : memref<2x18x25x4xbf16, #tpu.memory_space<vmem>>, vector<2x16x16x4xbf16>
    %5 = vector.shape_cast %4 : vector<2x16x16x4xbf16> to vector<512x4xbf16>
    %c0_12 = arith.constant 0 : index
    %c0_13 = arith.constant 0 : index
    %c8_14 = arith.constant 8 : index
    %c0_15 = arith.constant 0 : index
    %6 = vector.load %arg9[%c0_12, %c0_13, %c8_14, %c0_15] : memref<2x18x25x4xbf16, #tpu.memory_space<vmem>>, vector<2x16x16x4xbf16>
    %7 = vector.shape_cast %6 : vector<2x16x16x4xbf16> to vector<512x4xbf16>
    %c0_16 = arith.constant 0 : index
    %c0_17 = arith.constant 0 : index
    %c9 = arith.constant 9 : index
    %c0_18 = arith.constant 0 : index
    %8 = vector.load %arg9[%c0_16, %c0_17, %c9, %c0_18] : memref<2x18x25x4xbf16, #tpu.memory_space<vmem>>, vector<2x16x16x4xbf16>
    %9 = vector.shape_cast %8 : vector<2x16x16x4xbf16> to vector<512x4xbf16>
    %c0_19 = arith.constant 0 : index
    %c1_20 = arith.constant 1 : index
    %c7_21 = arith.constant 7 : index
    %c0_22 = arith.constant 0 : index
    %10 = vector.load %arg9[%c0_19, %c1_20, %c7_21, %c0_22] : memref<2x18x25x4xbf16, #tpu.memory_space<vmem>>, vector<2x16x16x4xbf16>
    %11 = vector.shape_cast %10 : vector<2x16x16x4xbf16> to vector<512x4xbf16>
    %c0_23 = arith.constant 0 : index
    %c1_24 = arith.constant 1 : index
    %c8_25 = arith.constant 8 : index
    %c0_26 = arith.constant 0 : index
    %12 = vector.load %arg9[%c0_23, %c1_24, %c8_25, %c0_26] : memref<2x18x25x4xbf16, #tpu.memory_space<vmem>>, vector<2x16x16x4xbf16>
    %13 = vector.shape_cast %12 : vector<2x16x16x4xbf16> to vector<512x4xbf16>
    %c0_27 = arith.constant 0 : index
    %c1_28 = arith.constant 1 : index
    %c9_29 = arith.constant 9 : index
    %c0_30 = arith.constant 0 : index
    %14 = vector.load %arg9[%c0_27, %c1_28, %c9_29, %c0_30] : memref<2x18x25x4xbf16, #tpu.memory_space<vmem>>, vector<2x16x16x4xbf16>
    %15 = vector.shape_cast %14 : vector<2x16x16x4xbf16> to vector<512x4xbf16>
    %c0_31 = arith.constant 0 : index
    %c2 = arith.constant 2 : index
    %c7_32 = arith.constant 7 : index
    %c0_33 = arith.constant 0 : index
    %16 = vector.load %arg9[%c0_31, %c2, %c7_32, %c0_33] : memref<2x18x25x4xbf16, #tpu.memory_space<vmem>>, vector<2x16x16x4xbf16>
    %17 = vector.shape_cast %16 : vector<2x16x16x4xbf16> to vector<512x4xbf16>
    %c0_34 = arith.constant 0 : index
    %c2_35 = arith.constant 2 : index
    %c8_36 = arith.constant 8 : index
    %c0_37 = arith.constant 0 : index
    %18 = vector.load %arg9[%c0_34, %c2_35, %c8_36, %c0_37] : memref<2x18x25x4xbf16, #tpu.memory_space<vmem>>, vector<2x16x16x4xbf16>
    %19 = vector.shape_cast %18 : vector<2x16x16x4xbf16> to vector<512x4xbf16>
    %c0_38 = arith.constant 0 : index
    %c2_39 = arith.constant 2 : index
    %c9_40 = arith.constant 9 : index
    %c0_41 = arith.constant 0 : index
    %20 = vector.load %arg9[%c0_38, %c2_39, %c9_40, %c0_41] : memref<2x18x25x4xbf16, #tpu.memory_space<vmem>>, vector<2x16x16x4xbf16>
    %21 = vector.shape_cast %20 : vector<2x16x16x4xbf16> to vector<512x4xbf16>
    %22 = tpu.concatenate %5, %7, %9, %11, %13, %15, %17, %19, %21 in 1 : vector<512x4xbf16>, vector<512x4xbf16>, vector<512x4xbf16>, vector<512x4xbf16>, vector<512x4xbf16>, vector<512x4xbf16>, vector<512x4xbf16>, vector<512x4xbf16>, vector<512x4xbf16> -> vector<512x36xbf16>
    %c0_42 = arith.constant 0 : index
    %c0_43 = arith.constant 0 : index
    %23 = vector.load %arg2[%c0_42, %c0_43] : memref<36x8xbf16, #tpu.memory_space<vmem>>, vector<36x8xbf16>
    %cst_44 = arith.constant dense<0.000000e+00> : vector<512x8xf32>
    %24 = tpu.matmul %22, %23, %cst_44 {dimension_numbers = #tpu.dot_dimension_numbers<[1], [0], [0], [1], [0, 0, 1, 1], [], []>} : vector<512x36xbf16>, vector<36x8xbf16>, vector<512x8xf32> -> vector<512x8xf32>
    %c0_45 = arith.constant 0 : index
    %c0_46 = arith.constant 0 : index
    %25 = vector.load %arg3[%c0_45, %c0_46] : memref<1x8xf32, #tpu.memory_space<vmem>>, vector<1x8xf32>
    %26 = vector.broadcast %25 : vector<1x8xf32> to vector<512x8xf32>
    %27 = arith.addf %24, %26 : vector<512x8xf32>
    %cst_47 = arith.constant 0.000000e+00 : f32
    %28 = vector.broadcast %cst_47 : f32 to vector<512x8xf32>
    %29 = arith.maximumf %27, %28 : vector<512x8xf32>
    %30 = vector.shape_cast %29 : vector<512x8xf32> to vector<2x16x16x8xf32>
    %31 = arith.truncf %30 : vector<2x16x16x8xf32> to vector<2x16x16x8xbf16>
    %cst_48 = arith.constant 0.000000e+00 : bf16
    %32 = vector.broadcast %cst_48 : bf16 to vector<2x18x25x8xbf16>
    %c0_49 = arith.constant 0 : index
    %c0_50 = arith.constant 0 : index
    %c0_51 = arith.constant 0 : index
    %c0_52 = arith.constant 0 : index
    %33 = vector.load %arg10[%c0_49, %c0_50, %c0_51, %c0_52] : memref<2x18x25x8xbf16, #tpu.memory_space<vmem>>, vector<2x18x25x8xbf16>
    tpu.vector_store %arg10[%c0_49, %c0_50, %c0_51, %c0_52], %32 {strides = array<i32>} : memref<2x18x25x8xbf16, #tpu.memory_space<vmem>>, vector<2x18x25x8xbf16>,
    %c0_53 = arith.constant 0 : index
    %c1_54 = arith.constant 1 : index
    %c8_55 = arith.constant 8 : index
    %c0_56 = arith.constant 0 : index
    %34 = vector.load %arg10[%c0_53, %c1_54, %c8_55, %c0_56] : memref<2x18x25x8xbf16, #tpu.memory_space<vmem>>, vector<2x16x16x8xbf16>
    tpu.vector_store %arg10[%c0_53, %c1_54, %c8_55, %c0_56], %31 {strides = array<i32>} : memref<2x18x25x8xbf16, #tpu.memory_space<vmem>>, vector<2x16x16x8xbf16>,
    %c0_57 = arith.constant 0 : index
    %c0_58 = arith.constant 0 : index
    %c7_59 = arith.constant 7 : index
    %c0_60 = arith.constant 0 : index
    %35 = vector.load %arg10[%c0_57, %c0_58, %c7_59, %c0_60] : memref<2x18x25x8xbf16, #tpu.memory_space<vmem>>, vector<2x16x16x8xbf16>
    %36 = vector.shape_cast %35 : vector<2x16x16x8xbf16> to vector<512x8xbf16>
    %c0_61 = arith.constant 0 : index
    %c0_62 = arith.constant 0 : index
    %c8_63 = arith.constant 8 : index
    %c0_64 = arith.constant 0 : index
    %37 = vector.load %arg10[%c0_61, %c0_62, %c8_63, %c0_64] : memref<2x18x25x8xbf16, #tpu.memory_space<vmem>>, vector<2x16x16x8xbf16>
    %38 = vector.shape_cast %37 : vector<2x16x16x8xbf16> to vector<512x8xbf16>
    %c0_65 = arith.constant 0 : index
    %c0_66 = arith.constant 0 : index
    %c9_67 = arith.constant 9 : index
    %c0_68 = arith.constant 0 : index
    %39 = vector.load %arg10[%c0_65, %c0_66, %c9_67, %c0_68] : memref<2x18x25x8xbf16, #tpu.memory_space<vmem>>, vector<2x16x16x8xbf16>
    %40 = vector.shape_cast %39 : vector<2x16x16x8xbf16> to vector<512x8xbf16>
    %c0_69 = arith.constant 0 : index
    %c1_70 = arith.constant 1 : index
    %c7_71 = arith.constant 7 : index
    %c0_72 = arith.constant 0 : index
    %41 = vector.load %arg10[%c0_69, %c1_70, %c7_71, %c0_72] : memref<2x18x25x8xbf16, #tpu.memory_space<vmem>>, vector<2x16x16x8xbf16>
    %42 = vector.shape_cast %41 : vector<2x16x16x8xbf16> to vector<512x8xbf16>
    %c0_73 = arith.constant 0 : index
    %c1_74 = arith.constant 1 : index
    %c8_75 = arith.constant 8 : index
    %c0_76 = arith.constant 0 : index
    %43 = vector.load %arg10[%c0_73, %c1_74, %c8_75, %c0_76] : memref<2x18x25x8xbf16, #tpu.memory_space<vmem>>, vector<2x16x16x8xbf16>
    %44 = vector.shape_cast %43 : vector<2x16x16x8xbf16> to vector<512x8xbf16>
    %c0_77 = arith.constant 0 : index
    %c1_78 = arith.constant 1 : index
    %c9_79 = arith.constant 9 : index
    %c0_80 = arith.constant 0 : index
    %45 = vector.load %arg10[%c0_77, %c1_78, %c9_79, %c0_80] : memref<2x18x25x8xbf16, #tpu.memory_space<vmem>>, vector<2x16x16x8xbf16>
    %46 = vector.shape_cast %45 : vector<2x16x16x8xbf16> to vector<512x8xbf16>
    %c0_81 = arith.constant 0 : index
    %c2_82 = arith.constant 2 : index
    %c7_83 = arith.constant 7 : index
    %c0_84 = arith.constant 0 : index
    %47 = vector.load %arg10[%c0_81, %c2_82, %c7_83, %c0_84] : memref<2x18x25x8xbf16, #tpu.memory_space<vmem>>, vector<2x16x16x8xbf16>
    %48 = vector.shape_cast %47 : vector<2x16x16x8xbf16> to vector<512x8xbf16>
    %c0_85 = arith.constant 0 : index
    %c2_86 = arith.constant 2 : index
    %c8_87 = arith.constant 8 : index
    %c0_88 = arith.constant 0 : index
    %49 = vector.load %arg10[%c0_85, %c2_86, %c8_87, %c0_88] : memref<2x18x25x8xbf16, #tpu.memory_space<vmem>>, vector<2x16x16x8xbf16>
    %50 = vector.shape_cast %49 : vector<2x16x16x8xbf16> to vector<512x8xbf16>
    %c0_89 = arith.constant 0 : index
    %c2_90 = arith.constant 2 : index
    %c9_91 = arith.constant 9 : index
    %c0_92 = arith.constant 0 : index
    %51 = vector.load %arg10[%c0_89, %c2_90, %c9_91, %c0_92] : memref<2x18x25x8xbf16, #tpu.memory_space<vmem>>, vector<2x16x16x8xbf16>
    %52 = vector.shape_cast %51 : vector<2x16x16x8xbf16> to vector<512x8xbf16>
    %53 = tpu.concatenate %36, %38, %40, %42, %44, %46, %48, %50, %52 in 1 : vector<512x8xbf16>, vector<512x8xbf16>, vector<512x8xbf16>, vector<512x8xbf16>, vector<512x8xbf16>, vector<512x8xbf16>, vector<512x8xbf16>, vector<512x8xbf16>, vector<512x8xbf16> -> vector<512x72xbf16>
    %c0_93 = arith.constant 0 : index
    %c0_94 = arith.constant 0 : index
    %54 = vector.load %arg4[%c0_93, %c0_94] : memref<72x16xbf16, #tpu.memory_space<vmem>>, vector<72x16xbf16>
    %cst_95 = arith.constant dense<0.000000e+00> : vector<512x16xf32>
    %55 = tpu.matmul %53, %54, %cst_95 {dimension_numbers = #tpu.dot_dimension_numbers<[1], [0], [0], [1], [0, 0, 1, 1], [], []>} : vector<512x72xbf16>, vector<72x16xbf16>, vector<512x16xf32> -> vector<512x16xf32>
    %c0_96 = arith.constant 0 : index
    %c0_97 = arith.constant 0 : index
    %56 = vector.load %arg5[%c0_96, %c0_97] : memref<1x16xf32, #tpu.memory_space<vmem>>, vector<1x16xf32>
    %57 = vector.broadcast %56 : vector<1x16xf32> to vector<512x16xf32>
    %58 = arith.addf %55, %57 : vector<512x16xf32>
    %cst_98 = arith.constant 0.000000e+00 : f32
    %59 = vector.broadcast %cst_98 : f32 to vector<512x16xf32>
    %60 = arith.maximumf %58, %59 : vector<512x16xf32>
    %61 = vector.shape_cast %60 : vector<512x16xf32> to vector<2x256x16xf32>
    %cst_99 = arith.constant dense<0.000000e+00> : vector<2x16xf32>
    %62 = vector.multi_reduction <add>, %61, %cst_99 [1] : vector<2x256x16xf32> to vector<2x16xf32>
    %cst_100 = arith.constant 2.560000e+02 : f32
    %63 = vector.broadcast %cst_100 : f32 to vector<2x16xf32>
    %64 = arith.divf %62, %63 : vector<2x16xf32>
    %65 = arith.truncf %64 : vector<2x16xf32> to vector<2x16xbf16>
    %c0_101 = arith.constant 0 : index
    %c0_102 = arith.constant 0 : index
    %66 = vector.load %arg6[%c0_101, %c0_102] : memref<16x128xbf16, #tpu.memory_space<vmem>>, vector<16x128xbf16>
    %cst_103 = arith.constant dense<0.000000e+00> : vector<2x128xf32>
    %67 = tpu.matmul %65, %66, %cst_103 {dimension_numbers = #tpu.dot_dimension_numbers<[1], [0], [0], [1], [0, 0, 1, 1], [], []>} : vector<2x16xbf16>, vector<16x128xbf16>, vector<2x128xf32> -> vector<2x128xf32>
    %c0_104 = arith.constant 0 : index
    %c0_105 = arith.constant 0 : index
    %68 = vector.load %arg7[%c0_104, %c0_105] : memref<1x128xf32, #tpu.memory_space<vmem>>, vector<1x128xf32>
    %69 = vector.broadcast %68 : vector<1x128xf32> to vector<2x128xf32>
    %70 = arith.addf %67, %69 : vector<2x128xf32>
    %71 = math.tanh %70 : vector<2x128xf32>
    %c0_106 = arith.constant 0 : index
    %c0_107 = arith.constant 0 : index
    %72 = vector.load %arg8[%c0_106, %c0_107] : memref<2x128xf32, #tpu.memory_space<vmem>>, vector<2x128xf32>
    tpu.vector_store %arg8[%c0_106, %c0_107], %71 {strides = array<i32>} : memref<2x128xf32, #tpu.memory_space<vmem>>, vector<2x128xf32>,
    return
  }
  func.func @transform_0(%arg0: i32) -> (i32, i32, i32, i32) {
    %c0_i32 = arith.constant 0 : i32
    %c0_i32_0 = arith.constant 0 : i32
    %c0_i32_1 = arith.constant 0 : i32
    %c0_i32_2 = arith.constant 0 : i32
    return %arg0, %c0_i32, %c0_i32_0, %c0_i32_1 : i32, i32, i32, i32
  }
  func.func @transform_1(%arg0: i32) -> (i32, i32) {
    %c0_i32 = arith.constant 0 : i32
    %c0_i32_0 = arith.constant 0 : i32
    %c0_i32_1 = arith.constant 0 : i32
    return %c0_i32, %c0_i32_0 : i32, i32
  }
  func.func @transform_2(%arg0: i32) -> (i32, i32) {
    %c0_i32 = arith.constant 0 : i32
    %c0_i32_0 = arith.constant 0 : i32
    %c0_i32_1 = arith.constant 0 : i32
    return %c0_i32, %c0_i32_0 : i32, i32
  }
  func.func @transform_3(%arg0: i32) -> (i32, i32) {
    %c0_i32 = arith.constant 0 : i32
    %c0_i32_0 = arith.constant 0 : i32
    %c0_i32_1 = arith.constant 0 : i32
    return %c0_i32, %c0_i32_0 : i32, i32
  }
  func.func @transform_4(%arg0: i32) -> (i32, i32) {
    %c0_i32 = arith.constant 0 : i32
    %c0_i32_0 = arith.constant 0 : i32
    %c0_i32_1 = arith.constant 0 : i32
    return %c0_i32, %c0_i32_0 : i32, i32
  }
  func.func @transform_5(%arg0: i32) -> (i32, i32) {
    %c0_i32 = arith.constant 0 : i32
    %c0_i32_0 = arith.constant 0 : i32
    %c0_i32_1 = arith.constant 0 : i32
    return %c0_i32, %c0_i32_0 : i32, i32
  }
  func.func @transform_6(%arg0: i32) -> (i32, i32) {
    %c0_i32 = arith.constant 0 : i32
    %c0_i32_0 = arith.constant 0 : i32
    %c0_i32_1 = arith.constant 0 : i32
    return %c0_i32, %c0_i32_0 : i32, i32
  }
  func.func @transform_7(%arg0: i32) -> (i32, i32) {
    %c0_i32 = arith.constant 0 : i32
    %c0_i32_0 = arith.constant 0 : i32
    return %arg0, %c0_i32 : i32, i32
  }
}

</mosaic_0001>

<llo_original>
// kernel: tpu_custom_call.1
$region0: #{tpu_custom_call.1}
  #allocation0 [shape = 'u32[]', space=smem, size = 0x4, offset = 0x4, fixed_abs, tag = 'smem constant byte address 0x4 - core index']
  #allocation1 [shape = 'u32[144,128]{1,0:T(1,128)}', space=vmem, size = 0x12000, scoped, tag = 'internal scratch']
  #allocation2 [shape = 'bf16[2,18,25,4]{3,2,1,0:T(8,128)(2,1)}', space=vmem, size = 0x48000, scoped, tag = 'scratch operand']
  #allocation3 [shape = 'bf16[2,18,25,8]{3,2,1,0:T(8,128)(2,1)}', space=vmem, size = 0x48000, scoped, tag = 'scratch operand']
  %s0 = inlined_call_operand.vmem [shape: bf16[2,16,16,4], index: 0, kind: input, shape index: {}]
  %s1 = inlined_call_operand.vmem [shape: bf16[36,8], index: 1, kind: input, shape index: {}]
  %s2 = inlined_call_operand.vmem [shape: f32[1,8], index: 2, kind: input, shape index: {}]
  %s3 = inlined_call_operand.vmem [shape: bf16[72,16], index: 3, kind: input, shape index: {}]
  %s4 = inlined_call_operand.vmem [shape: f32[1,16], index: 4, kind: input, shape index: {}]
  %s5 = inlined_call_operand.vmem [shape: bf16[16,128], index: 5, kind: input, shape index: {}]
  %s6 = inlined_call_operand.vmem [shape: f32[1,128], index: 6, kind: input, shape index: {}]
  %s7 = inlined_call_operand.hbm [shape: f32[2,128], index: 7, kind: output, shape index: {}]
  %s8 = sld [smem:[#allocation0]]
  $region38: #{tpu_custom_call.1} parent=0
    _
  %s10 = ssub.s32 1, %s8
  %s11 = scalar_select 0, %s10, %s8
  $region1: #{tpu_custom_call.1} parent=0
    #allocation4 [shape = 'u8[1024]{0}', space=vmem, size = 0x400, scoped, tag = 'output window, operand 0, single buffered']
    #allocation5 [shape = 's32[1]{0}', space=sflag, size = 0x4, scoped, tag = 'scoped memory for tpu_custom_call.1']
    %12 = vsyncpa [#allocation5], 0
    // Predicated region
    $region2: #{tpu_custom_call.1} parent=1 // pred_check
      _
    $region3: #{tpu_custom_call.1} parent=1 // pred_check_branch
      %14 = sbr.rel (0) target = $region5
    $region4: #{tpu_custom_call.1} parent=1 // pred_region
      _
    $region5: #{tpu_custom_call.1} parent=1 // pred_fallthru
      _
    // Predicated region
    $region6: #{tpu_custom_call.1} parent=1 // pred_check
      _
    $region7: #{tpu_custom_call.1} parent=1 // pred_check_branch
      %16 = sbr.rel (0) target = $region9
    $region8: #{tpu_custom_call.1} parent=1 // pred_region
      _
    $region9: #{tpu_custom_call.1} parent=1 // pred_fallthru
      _
    // Predicated region
    $region10: #{tpu_custom_call.1} parent=1 // pred_check
      _
    $region11: #{tpu_custom_call.1} parent=1 // pred_check_branch
      %18 = sbr.rel (0) target = $region13
    $region12: #{tpu_custom_call.1} parent=1 // pred_region
      _
    $region13: #{tpu_custom_call.1} parent=1 // pred_fallthru
      _
    // Predicated region
    $region14: #{tpu_custom_call.1} parent=1 // pred_check
      _
    $region15: #{tpu_custom_call.1} parent=1 // pred_check_branch
      %20 = sbr.rel (0) target = $region17
    $region16: #{tpu_custom_call.1} parent=1 // pred_region
      _
    $region17: #{tpu_custom_call.1} parent=1 // pred_fallthru
      _
    // Predicated region
    $region18: #{tpu_custom_call.1} parent=1 // pred_check
      _
    $region19: #{tpu_custom_call.1} parent=1 // pred_check_branch
      %22 = sbr.rel (0) target = $region21
    $region20: #{tpu_custom_call.1} parent=1 // pred_region
      _
    $region21: #{tpu_custom_call.1} parent=1 // pred_fallthru
      _
    // Predicated region
    $region22: #{tpu_custom_call.1} parent=1 // pred_check
      _
    $region23: #{tpu_custom_call.1} parent=1 // pred_check_branch
      %24 = sbr.rel (0) target = $region25
    $region24: #{tpu_custom_call.1} parent=1 // pred_region
      _
    $region25: #{tpu_custom_call.1} parent=1 // pred_fallthru
      _
    // Predicated region
    $region26: #{tpu_custom_call.1} parent=1 // pred_check
      _
    $region27: #{tpu_custom_call.1} parent=1 // pred_check_branch
      %26 = sbr.rel (0) target = $region29
    $region28: #{tpu_custom_call.1} parent=1 // pred_region
      _
    $region29: #{tpu_custom_call.1} parent=1 // pred_fallthru
      _
    %v28 = vld [vmem:[%s0] sm:$0xf]
    %v29 = vld [vmem:[%s0 + $0x4] sm:$0xf]
    %v30 = vld [vmem:[%s0 + $0x8] sm:$0xf]
    %v31 = vld [vmem:[%s0 + $0xc] sm:$0xf]
    %v32 = vld [vmem:[%s0 + $0x10] sm:$0xf]
    %v33 = vld [vmem:[%s0 + $0x14] sm:$0xf]
    %v34 = vld [vmem:[%s0 + $0x18] sm:$0xf]
    %v35 = vld [vmem:[%s0 + $0x1c] sm:$0xf]
    %v36 = vld [vmem:[%s0 + $0x20] sm:$0xf]
    %v37 = vld [vmem:[%s0 + $0x24] sm:$0xf]
    %v38 = vld [vmem:[%s0 + $0x28] sm:$0xf]
    %v39 = vld [vmem:[%s0 + $0x2c] sm:$0xf]
    %v40 = vld [vmem:[%s0 + $0x30] sm:$0xf]
    %v41 = vld [vmem:[%s0 + $0x34] sm:$0xf]
    %v42 = vld [vmem:[%s0 + $0x38] sm:$0xf]
    %v43 = vld [vmem:[%s0 + $0x3c] sm:$0xf]
    %v44 = vld [vmem:[%s0 + $0x40] sm:$0xf]
    %v45 = vld [vmem:[%s0 + $0x44] sm:$0xf]
    %v46 = vld [vmem:[%s0 + $0x48] sm:$0xf]
    %v47 = vld [vmem:[%s0 + $0x4c] sm:$0xf]
    %v48 = vld [vmem:[%s0 + $0x50] sm:$0xf]
    %v49 = vld [vmem:[%s0 + $0x54] sm:$0xf]
    %v50 = vld [vmem:[%s0 + $0x58] sm:$0xf]
    %v51 = vld [vmem:[%s0 + $0x5c] sm:$0xf]
    %v52 = vld [vmem:[%s0 + $0x60] sm:$0xf]
    %v53 = vld [vmem:[%s0 + $0x64] sm:$0xf]
    %v54 = vld [vmem:[%s0 + $0x68] sm:$0xf]
    %v55 = vld [vmem:[%s0 + $0x6c] sm:$0xf]
    %v56 = vld [vmem:[%s0 + $0x70] sm:$0xf]
    %v57 = vld [vmem:[%s0 + $0x74] sm:$0xf]
    %v58 = vld [vmem:[%s0 + $0x78] sm:$0xf]
    %v59 = vld [vmem:[%s0 + $0x7c] sm:$0xf]
    %v60 = vld [vmem:[%s0 + $0x80] sm:$0xf]
    %v61 = vld [vmem:[%s0 + $0x84] sm:$0xf]
    %v62 = vld [vmem:[%s0 + $0x88] sm:$0xf]
    %v63 = vld [vmem:[%s0 + $0x8c] sm:$0xf]
    %v64 = vld [vmem:[%s0 + $0x90] sm:$0xf]
    %v65 = vld [vmem:[%s0 + $0x94] sm:$0xf]
    %v66 = vld [vmem:[%s0 + $0x98] sm:$0xf]
    %v67 = vld [vmem:[%s0 + $0x9c] sm:$0xf]
    %v68 = vld [vmem:[%s0 + $0xa0] sm:$0xf]
    %v69 = vld [vmem:[%s0 + $0xa4] sm:$0xf]
    %v70 = vld [vmem:[%s0 + $0xa8] sm:$0xf]
    %v71 = vld [vmem:[%s0 + $0xac] sm:$0xf]
    %v72 = vld [vmem:[%s0 + $0xb0] sm:$0xf]
    %v73 = vld [vmem:[%s0 + $0xb4] sm:$0xf]
    %v74 = vld [vmem:[%s0 + $0xb8] sm:$0xf]
    %v75 = vld [vmem:[%s0 + $0xbc] sm:$0xf]
    %v76 = vld [vmem:[%s0 + $0xc0] sm:$0xf]
    %v77 = vld [vmem:[%s0 + $0xc4] sm:$0xf]
    %v78 = vld [vmem:[%s0 + $0xc8] sm:$0xf]
    %v79 = vld [vmem:[%s0 + $0xcc] sm:$0xf]
    %v80 = vld [vmem:[%s0 + $0xd0] sm:$0xf]
    %v81 = vld [vmem:[%s0 + $0xd4] sm:$0xf]
    %v82 = vld [vmem:[%s0 + $0xd8] sm:$0xf]
    %v83 = vld [vmem:[%s0 + $0xdc] sm:$0xf]
    %v84 = vld [vmem:[%s0 + $0xe0] sm:$0xf]
    %v85 = vld [vmem:[%s0 + $0xe4] sm:$0xf]
    %v86 = vld [vmem:[%s0 + $0xe8] sm:$0xf]
    %v87 = vld [vmem:[%s0 + $0xec] sm:$0xf]
    %v88 = vld [vmem:[%s0 + $0xf0] sm:$0xf]
    %v89 = vld [vmem:[%s0 + $0xf4] sm:$0xf]
    %v90 = vld [vmem:[%s0 + $0xf8] sm:$0xf]
    %v91 = vld [vmem:[%s0 + $0xfc] sm:$0xf]
    %vm92 = vcmask 27648
    %93 = vst.msk [vmem:[#allocation2] sm:$0xf] %vm92, 0
    %94 = vst.msk [vmem:[#allocation2 + $0x4] sm:$0xf] %vm92, 0
    %95 = vst.msk [vmem:[#allocation2 + $0x8] sm:$0xf] %vm92, 0
    %vm96 = vcmask 24576
    %vm97 = vsmask.f32 256
    %vm98 = vmand %vm96, %vm97
    %v99 = vld [vmem:[#allocation2 + $0xc] sm:$0x1]
    %v100 = vsel %vm98, 0, %v99
    %101 = vst [vmem:[#allocation2 + $0xc] sm:$0x1] %v100
    %102 = vst.msk [vmem:[#allocation2 + $0x10] sm:$0xf] %vm92, 0
    %103 = vst.msk [vmem:[#allocation2 + $0x14] sm:$0xf] %vm92, 0
    %104 = vst.msk [vmem:[#allocation2 + $0x18] sm:$0xf] %vm92, 0
    %v105 = vld [vmem:[#allocation2 + $0x1c] sm:$0x1]
    %v106 = vsel %vm98, 0, %v105
    %107 = vst [vmem:[#allocation2 + $0x1c] sm:$0x1] %v106
    %108 = vst.msk [vmem:[#allocation2 + $0x20] sm:$0xf] %vm92, 0
    %109 = vst.msk [vmem:[#allocation2 + $0x24] sm:$0xf] %vm92, 0
    %110 = vst.msk [vmem:[#allocation2 + $0x28] sm:$0xf] %vm92, 0
    %v111 = vld [vmem:[#allocation2 + $0x2c] sm:$0x1]
    %v112 = vsel %vm98, 0, %v111
    %113 = vst [vmem:[#allocation2 + $0x2c] sm:$0x1] %v112
    %114 = vst.msk [vmem:[#allocation2 + $0x30] sm:$0xf] %vm92, 0
    %115 = vst.msk [vmem:[#allocation2 + $0x34] sm:$0xf] %vm92, 0
    %116 = vst.msk [vmem:[#allocation2 + $0x38] sm:$0xf] %vm92, 0
    %v117 = vld [vmem:[#allocation2 + $0x3c] sm:$0x1]
    %v118 = vsel %vm98, 0, %v117
    %119 = vst [vmem:[#allocation2 + $0x3c] sm:$0x1] %v118
    %120 = vst.msk [vmem:[#allocation2 + $0x40] sm:$0xf] %vm92, 0
    %121 = vst.msk [vmem:[#allocation2 + $0x44] sm:$0xf] %vm92, 0
    %122 = vst.msk [vmem:[#allocation2 + $0x48] sm:$0xf] %vm92, 0
    %v123 = vld [vmem:[#allocation2 + $0x4c] sm:$0x1]
    %v124 = vsel %vm98, 0, %v123
    %125 = vst [vmem:[#allocation2 + $0x4c] sm:$0x1] %v124
    %126 = vst.msk [vmem:[#allocation2 + $0x50] sm:$0xf] %vm92, 0
    %127 = vst.msk [vmem:[#allocation2 + $0x54] sm:$0xf] %vm92, 0
    %128 = vst.msk [vmem:[#allocation2 + $0x58] sm:$0xf] %vm92, 0
    %v129 = vld [vmem:[#allocation2 + $0x5c] sm:$0x1]
    %v130 = vsel %vm98, 0, %v129
    %131 = vst [vmem:[#allocation2 + $0x5c] sm:$0x1] %v130
    %132 = vst.msk [vmem:[#allocation2 + $0x60] sm:$0xf] %vm92, 0
    %133 = vst.msk [vmem:[#allocation2 + $0x64] sm:$0xf] %vm92, 0
    %134 = vst.msk [vmem:[#allocation2 + $0x68] sm:$0xf] %vm92, 0
    %v135 = vld [vmem:[#allocation2 + $0x6c] sm:$0x1]
    %v136 = vsel %vm98, 0, %v135
    %137 = vst [vmem:[#allocation2 + $0x6c] sm:$0x1] %v136
    %138 = vst.msk [vmem:[#allocation2 + $0x70] sm:$0xf] %vm92, 0
    %139 = vst.msk [vmem:[#allocation2 + $0x74] sm:$0xf] %vm92, 0
    %140 = vst.msk [vmem:[#allocation2 + $0x78] sm:$0xf] %vm92, 0
    %v141 = vld [vmem:[#allocation2 + $0x7c] sm:$0x1]
    %v142 = vsel %vm98, 0, %v141
    %143 = vst [vmem:[#allocation2 + $0x7c] sm:$0x1] %v142
    %144 = vst.msk [vmem:[#allocation2 + $0x80] sm:$0xf] %vm92, 0
    %145 = vst.msk [vmem:[#allocation2 + $0x84] sm:$0xf] %vm92, 0
    %146 = vst.msk [vmem:[#allocation2 + $0x88] sm:$0xf] %vm92, 0
    %v147 = vld [vmem:[#allocation2 + $0x8c] sm:$0x1]
    %v148 = vsel %vm98, 0, %v147
    %149 = vst [vmem:[#allocation2 + $0x8c] sm:$0x1] %v148
    %150 = vst.msk [vmem:[#allocation2 + $0x90] sm:$0xf] %vm92, 0
    %151 = vst.msk [vmem:[#allocation2 + $0x94] sm:$0xf] %vm92, 0
    %152 = vst.msk [vmem:[#allocation2 + $0x98] sm:$0xf] %vm92, 0
    %v153 = vld [vmem:[#allocation2 + $0x9c] sm:$0x1]
    %v154 = vsel %vm98, 0, %v153
    %155 = vst [vmem:[#allocation2 + $0x9c] sm:$0x1] %v154
    %156 = vst.msk [vmem:[#allocation2 + $0xa0] sm:$0xf] %vm92, 0
    %157 = vst.msk [vmem:[#allocation2 + $0xa4] sm:$0xf] %vm92, 0
    %158 = vst.msk [vmem:[#allocation2 + $0xa8] sm:$0xf] %vm92, 0
    %v159 = vld [vmem:[#allocation2 + $0xac] sm:$0x1]
    %v160 = vsel %vm98, 0, %v159
    %161 = vst [vmem:[#allocation2 + $0xac] sm:$0x1] %v160
    %162 = vst.msk [vmem:[#allocation2 + $0xb0] sm:$0xf] %vm92, 0
    %163 = vst.msk [vmem:[#allocation2 + $0xb4] sm:$0xf] %vm92, 0
    %164 = vst.msk [vmem:[#allocation2 + $0xb8] sm:$0xf] %vm92, 0
    %v165 = vld [vmem:[#allocation2 + $0xbc] sm:$0x1]
    %v166 = vsel %vm98, 0, %v165
    %167 = vst [vmem:[#allocation2 + $0xbc] sm:$0x1] %v166
    %168 = vst.msk [vmem:[#allocation2 + $0xc0] sm:$0xf] %vm92, 0
    %169 = vst.msk [vmem:[#allocation2 + $0xc4] sm:$0xf] %vm92, 0
    %170 = vst.msk [vmem:[#allocation2 + $0xc8] sm:$0xf] %vm92, 0
    %v171 = vld [vmem:[#allocation2 + $0xcc] sm:$0x1]
    %v172 = vsel %vm98, 0, %v171
    %173 = vst [vmem:[#allocation2 + $0xcc] sm:$0x1] %v172
    %174 = vst.msk [vmem:[#allocation2 + $0xd0] sm:$0xf] %vm92, 0
    %175 = vst.msk [vmem:[#allocation2 + $0xd4] sm:$0xf] %vm92, 0
    %176 = vst.msk [vmem:[#allocation2 + $0xd8] sm:$0xf] %vm92, 0
    %v177 = vld [vmem:[#allocation2 + $0xdc] sm:$0x1]
    %v178 = vsel %vm98, 0, %v177
    %179 = vst [vmem:[#allocation2 + $0xdc] sm:$0x1] %v178
    %180 = vst.msk [vmem:[#allocation2 + $0xe0] sm:$0xf] %vm92, 0
    %181 = vst.msk [vmem:[#allocation2 + $0xe4] sm:$0xf] %vm92, 0
    %182 = vst.msk [vmem:[#allocation2 + $0xe8] sm:$0xf] %vm92, 0
    %v183 = vld [vmem:[#allocation2 + $0xec] sm:$0x1]
    %v184 = vsel %vm98, 0, %v183
    %185 = vst [vmem:[#allocation2 + $0xec] sm:$0x1] %v184
    %186 = vst.msk [vmem:[#allocation2 + $0xf0] sm:$0xf] %vm92, 0
    %187 = vst.msk [vmem:[#allocation2 + $0xf4] sm:$0xf] %vm92, 0
    %188 = vst.msk [vmem:[#allocation2 + $0xf8] sm:$0xf] %vm92, 0
    %v189 = vld [vmem:[#allocation2 + $0xfc] sm:$0x1]
    %v190 = vsel %vm98, 0, %v189
    %191 = vst [vmem:[#allocation2 + $0xfc] sm:$0x1] %v190
    %192 = vst.msk [vmem:[#allocation2 + $0x100] sm:$0xf] %vm92, 0
    %193 = vst.msk [vmem:[#allocation2 + $0x104] sm:$0xf] %vm92, 0
    %194 = vst.msk [vmem:[#allocation2 + $0x108] sm:$0xf] %vm92, 0
    %v195 = vld [vmem:[#allocation2 + $0x10c] sm:$0x1]
    %v196 = vsel %vm98, 0, %v195
    %197 = vst [vmem:[#allocation2 + $0x10c] sm:$0x1] %v196
    %198 = vst.msk [vmem:[#allocation2 + $0x110] sm:$0xf] %vm92, 0
    %199 = vst.msk [vmem:[#allocation2 + $0x114] sm:$0xf] %vm92, 0
    %200 = vst.msk [vmem:[#allocation2 + $0x118] sm:$0xf] %vm92, 0
    %v201 = vld [vmem:[#allocation2 + $0x11c] sm:$0x1]
    %v202 = vsel %vm98, 0, %v201
    %203 = vst [vmem:[#allocation2 + $0x11c] sm:$0x1] %v202
    %204 = vst.msk [vmem:[#allocation2 + $0x120] sm:$0xf] %vm92, 0
    %205 = vst.msk [vmem:[#allocation2 + $0x124] sm:$0xf] %vm92, 0
    %206 = vst.msk [vmem:[#allocation2 + $0x128] sm:$0xf] %vm92, 0
    %v207 = vld [vmem:[#allocation2 + $0x12c] sm:$0x1]
    %v208 = vsel %vm98, 0, %v207
    %209 = vst [vmem:[#allocation2 + $0x12c] sm:$0x1] %v208
    %210 = vst.msk [vmem:[#allocation2 + $0x130] sm:$0xf] %vm92, 0
    %211 = vst.msk [vmem:[#allocation2 + $0x134] sm:$0xf] %vm92, 0
    %212 = vst.msk [vmem:[#allocation2 + $0x138] sm:$0xf] %vm92, 0
    %v213 = vld [vmem:[#allocation2 + $0x13c] sm:$0x1]
    %v214 = vsel %vm98, 0, %v213
    %215 = vst [vmem:[#allocation2 + $0x13c] sm:$0x1] %v214
    %216 = vst.msk [vmem:[#allocation2 + $0x140] sm:$0xf] %vm92, 0
    %217 = vst.msk [vmem:[#allocation2 + $0x144] sm:$0xf] %vm92, 0
    %218 = vst.msk [vmem:[#allocation2 + $0x148] sm:$0xf] %vm92, 0
    %v219 = vld [vmem:[#allocation2 + $0x14c] sm:$0x1]
    %v220 = vsel %vm98, 0, %v219
    %221 = vst [vmem:[#allocation2 + $0x14c] sm:$0x1] %v220
    %222 = vst.msk [vmem:[#allocation2 + $0x150] sm:$0xf] %vm92, 0
    %223 = vst.msk [vmem:[#allocation2 + $0x154] sm:$0xf] %vm92, 0
    %224 = vst.msk [vmem:[#allocation2 + $0x158] sm:$0xf] %vm92, 0
    %v225 = vld [vmem:[#allocation2 + $0x15c] sm:$0x1]
    %v226 = vsel %vm98, 0, %v225
    %227 = vst [vmem:[#allocation2 + $0x15c] sm:$0x1] %v226
    %228 = vst.msk [vmem:[#allocation2 + $0x160] sm:$0xf] %vm92, 0
    %229 = vst.msk [vmem:[#allocation2 + $0x164] sm:$0xf] %vm92, 0
    %230 = vst.msk [vmem:[#allocation2 + $0x168] sm:$0xf] %vm92, 0
    %v231 = vld [vmem:[#allocation2 + $0x16c] sm:$0x1]
    %v232 = vsel %vm98, 0, %v231
    %233 = vst [vmem:[#allocation2 + $0x16c] sm:$0x1] %v232
    %234 = vst.msk [vmem:[#allocation2 + $0x170] sm:$0xf] %vm92, 0
    %235 = vst.msk [vmem:[#allocation2 + $0x174] sm:$0xf] %vm92, 0
    %236 = vst.msk [vmem:[#allocation2 + $0x178] sm:$0xf] %vm92, 0
    %v237 = vld [vmem:[#allocation2 + $0x17c] sm:$0x1]
    %v238 = vsel %vm98, 0, %v237
    %239 = vst [vmem:[#allocation2 + $0x17c] sm:$0x1] %v238
    %240 = vst.msk [vmem:[#allocation2 + $0x180] sm:$0xf] %vm92, 0
    %241 = vst.msk [vmem:[#allocation2 + $0x184] sm:$0xf] %vm92, 0
    %242 = vst.msk [vmem:[#allocation2 + $0x188] sm:$0xf] %vm92, 0
    %v243 = vld [vmem:[#allocation2 + $0x18c] sm:$0x1]
    %v244 = vsel %vm98, 0, %v243
    %245 = vst [vmem:[#allocation2 + $0x18c] sm:$0x1] %v244
    %246 = vst.msk [vmem:[#allocation2 + $0x190] sm:$0xf] %vm92, 0
    %247 = vst.msk [vmem:[#allocation2 + $0x194] sm:$0xf] %vm92, 0
    %248 = vst.msk [vmem:[#allocation2 + $0x198] sm:$0xf] %vm92, 0
    %v249 = vld [vmem:[#allocation2 + $0x19c] sm:$0x1]
    %v250 = vsel %vm98, 0, %v249
    %251 = vst [vmem:[#allocation2 + $0x19c] sm:$0x1] %v250
    %252 = vst.msk [vmem:[#allocation2 + $0x1a0] sm:$0xf] %vm92, 0
    %253 = vst.msk [vmem:[#allocation2 + $0x1a4] sm:$0xf] %vm92, 0
    %254 = vst.msk [vmem:[#allocation2 + $0x1a8] sm:$0xf] %vm92, 0
    %v255 = vld [vmem:[#allocation2 + $0x1ac] sm:$0x1]
    %v256 = vsel %vm98, 0, %v255
    %257 = vst [vmem:[#allocation2 + $0x1ac] sm:$0x1] %v256
    %258 = vst.msk [vmem:[#allocation2 + $0x1b0] sm:$0xf] %vm92, 0
    %259 = vst.msk [vmem:[#allocation2 + $0x1b4] sm:$0xf] %vm92, 0
    %260 = vst.msk [vmem:[#allocation2 + $0x1b8] sm:$0xf] %vm92, 0
    %v261 = vld [vmem:[#allocation2 + $0x1bc] sm:$0x1]
    %v262 = vsel %vm98, 0, %v261
    %263 = vst [vmem:[#allocation2 + $0x1bc] sm:$0x1] %v262
    %264 = vst.msk [vmem:[#allocation2 + $0x1c0] sm:$0xf] %vm92, 0
    %265 = vst.msk [vmem:[#allocation2 + $0x1c4] sm:$0xf] %vm92, 0
    %266 = vst.msk [vmem:[#allocation2 + $0x1c8] sm:$0xf] %vm92, 0
    %v267 = vld [vmem:[#allocation2 + $0x1cc] sm:$0x1]
    %v268 = vsel %vm98, 0, %v267
    %269 = vst [vmem:[#allocation2 + $0x1cc] sm:$0x1] %v268
    %270 = vst.msk [vmem:[#allocation2 + $0x1d0] sm:$0xf] %vm92, 0
    %271 = vst.msk [vmem:[#allocation2 + $0x1d4] sm:$0xf] %vm92, 0
    %272 = vst.msk [vmem:[#allocation2 + $0x1d8] sm:$0xf] %vm92, 0
    %v273 = vld [vmem:[#allocation2 + $0x1dc] sm:$0x1]
    %v274 = vsel %vm98, 0, %v273
    %275 = vst [vmem:[#allocation2 + $0x1dc] sm:$0x1] %v274
    %276 = vst.msk [vmem:[#allocation2 + $0x1e0] sm:$0xf] %vm92, 0
    %277 = vst.msk [vmem:[#allocation2 + $0x1e4] sm:$0xf] %vm92, 0
    %278 = vst.msk [vmem:[#allocation2 + $0x1e8] sm:$0xf] %vm92, 0
    %v279 = vld [vmem:[#allocation2 + $0x1ec] sm:$0x1]
    %v280 = vsel %vm98, 0, %v279
    %281 = vst [vmem:[#allocation2 + $0x1ec] sm:$0x1] %v280
    %282 = vst.msk [vmem:[#allocation2 + $0x1f0] sm:$0xf] %vm92, 0
    %283 = vst.msk [vmem:[#allocation2 + $0x1f4] sm:$0xf] %vm92, 0
    %284 = vst.msk [vmem:[#allocation2 + $0x1f8] sm:$0xf] %vm92, 0
    %v285 = vld [vmem:[#allocation2 + $0x1fc] sm:$0x1]
    %v286 = vsel %vm98, 0, %v285
    %287 = vst [vmem:[#allocation2 + $0x1fc] sm:$0x1] %v286
    %288 = vst.msk [vmem:[#allocation2 + $0x200] sm:$0xf] %vm92, 0
    %289 = vst.msk [vmem:[#allocation2 + $0x204] sm:$0xf] %vm92, 0
    %290 = vst.msk [vmem:[#allocation2 + $0x208] sm:$0xf] %vm92, 0
    %v291 = vld [vmem:[#allocation2 + $0x20c] sm:$0x1]
    %v292 = vsel %vm98, 0, %v291
    %293 = vst [vmem:[#allocation2 + $0x20c] sm:$0x1] %v292
    %294 = vst.msk [vmem:[#allocation2 + $0x210] sm:$0xf] %vm92, 0
    %295 = vst.msk [vmem:[#allocation2 + $0x214] sm:$0xf] %vm92, 0
    %296 = vst.msk [vmem:[#allocation2 + $0x218] sm:$0xf] %vm92, 0
    %v297 = vld [vmem:[#allocation2 + $0x21c] sm:$0x1]
    %v298 = vsel %vm98, 0, %v297
    %299 = vst [vmem:[#allocation2 + $0x21c] sm:$0x1] %v298
    %300 = vst.msk [vmem:[#allocation2 + $0x220] sm:$0xf] %vm92, 0
    %301 = vst.msk [vmem:[#allocation2 + $0x224] sm:$0xf] %vm92, 0
    %302 = vst.msk [vmem:[#allocation2 + $0x228] sm:$0xf] %vm92, 0
    %v303 = vld [vmem:[#allocation2 + $0x22c] sm:$0x1]
    %v304 = vsel %vm98, 0, %v303
    %305 = vst [vmem:[#allocation2 + $0x22c] sm:$0x1] %v304
    %306 = vst.msk [vmem:[#allocation2 + $0x230] sm:$0xf] %vm92, 0
    %307 = vst.msk [vmem:[#allocation2 + $0x234] sm:$0xf] %vm92, 0
    %308 = vst.msk [vmem:[#allocation2 + $0x238] sm:$0xf] %vm92, 0
    %v309 = vld [vmem:[#allocation2 + $0x23c] sm:$0x1]
    %v310 = vsel %vm98, 0, %v309
    %311 = vst [vmem:[#allocation2 + $0x23c] sm:$0x1] %v310
    %s312 = scalar_lea.vmem [#allocation2], 16
    %313 = vst.msk [vmem:[%s312 + $0x4] sm:$0xf] %vm92, %v28
    %314 = vst.msk [vmem:[%s312 + $0x8] sm:$0xf] %vm92, %v29
    %315 = vst.msk [vmem:[%s312 + $0x14] sm:$0xf] %vm92, %v30
    %316 = vst.msk [vmem:[%s312 + $0x18] sm:$0xf] %vm92, %v31
    %317 = vst.msk [vmem:[%s312 + $0x24] sm:$0xf] %vm92, %v32
    %318 = vst.msk [vmem:[%s312 + $0x28] sm:$0xf] %vm92, %v33
    %319 = vst.msk [vmem:[%s312 + $0x34] sm:$0xf] %vm92, %v34
    %320 = vst.msk [vmem:[%s312 + $0x38] sm:$0xf] %vm92, %v35
    %321 = vst.msk [vmem:[%s312 + $0x44] sm:$0xf] %vm92, %v36
    %322 = vst.msk [vmem:[%s312 + $0x48] sm:$0xf] %vm92, %v37
    %323 = vst.msk [vmem:[%s312 + $0x54] sm:$0xf] %vm92, %v38
    %324 = vst.msk [vmem:[%s312 + $0x58] sm:$0xf] %vm92, %v39
    %325 = vst.msk [vmem:[%s312 + $0x64] sm:$0xf] %vm92, %v40
    %326 = vst.msk [vmem:[%s312 + $0x68] sm:$0xf] %vm92, %v41
    %327 = vst.msk [vmem:[%s312 + $0x74] sm:$0xf] %vm92, %v42
    %328 = vst.msk [vmem:[%s312 + $0x78] sm:$0xf] %vm92, %v43
    %329 = vst.msk [vmem:[%s312 + $0x84] sm:$0xf] %vm92, %v44
    %330 = vst.msk [vmem:[%s312 + $0x88] sm:$0xf] %vm92, %v45
    %331 = vst.msk [vmem:[%s312 + $0x94] sm:$0xf] %vm92, %v46
    %332 = vst.msk [vmem:[%s312 + $0x98] sm:$0xf] %vm92, %v47
    %333 = vst.msk [vmem:[%s312 + $0xa4] sm:$0xf] %vm92, %v48
    %334 = vst.msk [vmem:[%s312 + $0xa8] sm:$0xf] %vm92, %v49
    %335 = vst.msk [vmem:[%s312 + $0xb4] sm:$0xf] %vm92, %v50
    %336 = vst.msk [vmem:[%s312 + $0xb8] sm:$0xf] %vm92, %v51
    %337 = vst.msk [vmem:[%s312 + $0xc4] sm:$0xf] %vm92, %v52
    %338 = vst.msk [vmem:[%s312 + $0xc8] sm:$0xf] %vm92, %v53
    %339 = vst.msk [vmem:[%s312 + $0xd4] sm:$0xf] %vm92, %v54
    %340 = vst.msk [vmem:[%s312 + $0xd8] sm:$0xf] %vm92, %v55
    %341 = vst.msk [vmem:[%s312 + $0xe4] sm:$0xf] %vm92, %v56
    %342 = vst.msk [vmem:[%s312 + $0xe8] sm:$0xf] %vm92, %v57
    %343 = vst.msk [vmem:[%s312 + $0xf4] sm:$0xf] %vm92, %v58
    %344 = vst.msk [vmem:[%s312 + $0xf8] sm:$0xf] %vm92, %v59
    %345 = vst.msk [vmem:[%s312 + $0x124] sm:$0xf] %vm92, %v60
    %346 = vst.msk [vmem:[%s312 + $0x128] sm:$0xf] %vm92, %v61
    %347 = vst.msk [vmem:[%s312 + $0x134] sm:$0xf] %vm92, %v62
    %348 = vst.msk [vmem:[%s312 + $0x138] sm:$0xf] %vm92, %v63
    %349 = vst.msk [vmem:[%s312 + $0x144] sm:$0xf] %vm92, %v64
    %350 = vst.msk [vmem:[%s312 + $0x148] sm:$0xf] %vm92, %v65
    %351 = vst.msk [vmem:[%s312 + $0x154] sm:$0xf] %vm92, %v66
    %352 = vst.msk [vmem:[%s312 + $0x158] sm:$0xf] %vm92, %v67
    %353 = vst.msk [vmem:[%s312 + $0x164] sm:$0xf] %vm92, %v68
    %354 = vst.msk [vmem:[%s312 + $0x168] sm:$0xf] %vm92, %v69
    %355 = vst.msk [vmem:[%s312 + $0x174] sm:$0xf] %vm92, %v70
    %356 = vst.msk [vmem:[%s312 + $0x178] sm:$0xf] %vm92, %v71
    %357 = vst.msk [vmem:[%s312 + $0x184] sm:$0xf] %vm92, %v72
    %358 = vst.msk [vmem:[%s312 + $0x188] sm:$0xf] %vm92, %v73
    %359 = vst.msk [vmem:[%s312 + $0x194] sm:$0xf] %vm92, %v74
    %360 = vst.msk [vmem:[%s312 + $0x198] sm:$0xf] %vm92, %v75
    %361 = vst.msk [vmem:[%s312 + $0x1a4] sm:$0xf] %vm92, %v76
    %362 = vst.msk [vmem:[%s312 + $0x1a8] sm:$0xf] %vm92, %v77
    %363 = vst.msk [vmem:[%s312 + $0x1b4] sm:$0xf] %vm92, %v78
    %364 = vst.msk [vmem:[%s312 + $0x1b8] sm:$0xf] %vm92, %v79
    %365 = vst.msk [vmem:[%s312 + $0x1c4] sm:$0xf] %vm92, %v80
    %366 = vst.msk [vmem:[%s312 + $0x1c8] sm:$0xf] %vm92, %v81
    %367 = vst.msk [vmem:[%s312 + $0x1d4] sm:$0xf] %vm92, %v82
    %368 = vst.msk [vmem:[%s312 + $0x1d8] sm:$0xf] %vm92, %v83
    %369 = vst.msk [vmem:[%s312 + $0x1e4] sm:$0xf] %vm92, %v84
    %370 = vst.msk [vmem:[%s312 + $0x1e8] sm:$0xf] %vm92, %v85
    %371 = vst.msk [vmem:[%s312 + $0x1f4] sm:$0xf] %vm92, %v86
    %372 = vst.msk [vmem:[%s312 + $0x1f8] sm:$0xf] %vm92, %v87
    %373 = vst.msk [vmem:[%s312 + $0x204] sm:$0xf] %vm92, %v88
    %374 = vst.msk [vmem:[%s312 + $0x208] sm:$0xf] %vm92, %v89
    %375 = vst.msk [vmem:[%s312 + $0x214] sm:$0xf] %vm92, %v90
    %376 = vst.msk [vmem:[%s312 + $0x218] sm:$0xf] %vm92, %v91
    %v377 = vld [vmem:[#allocation2] sm:$0x8]
    %v378 = vld [vmem:[#allocation2 + $0x4] sm:$0xf]
    %v379 = vld [vmem:[#allocation2 + $0x8] sm:$0xf]
    %v380 = vld [vmem:[#allocation2 + $0x10] sm:$0x8]
    %v381 = vld [vmem:[#allocation2 + $0x14] sm:$0xf]
    %v382 = vld [vmem:[#allocation2 + $0x18] sm:$0xf]
    %v383 = vld [vmem:[#allocation2 + $0x20] sm:$0x8]
    %v384 = vld [vmem:[#allocation2 + $0x24] sm:$0xf]
    %v385 = vld [vmem:[#allocation2 + $0x28] sm:$0xf]
    %v386 = vld [vmem:[#allocation2 + $0x30] sm:$0x8]
    %v387 = vld [vmem:[#allocation2 + $0x34] sm:$0xf]
    %v388 = vld [vmem:[#allocation2 + $0x38] sm:$0xf]
    %v389 = vld [vmem:[#allocation2 + $0x40] sm:$0x8]
    %v390 = vld [vmem:[#allocation2 + $0x44] sm:$0xf]
    %v391 = vld [vmem:[#allocation2 + $0x48] sm:$0xf]
    %v392 = vld [vmem:[#allocation2 + $0x50] sm:$0x8]
    %v393 = vld [vmem:[#allocation2 + $0x54] sm:$0xf]
    %v394 = vld [vmem:[#allocation2 + $0x58] sm:$0xf]
    %v395 = vld [vmem:[#allocation2 + $0x60] sm:$0x8]
    %v396 = vld [vmem:[#allocation2 + $0x64] sm:$0xf]
    %v397 = vld [vmem:[#allocation2 + $0x68] sm:$0xf]
    %v398 = vld [vmem:[#allocation2 + $0x70] sm:$0x8]
    %v399 = vld [vmem:[#allocation2 + $0x74] sm:$0xf]
    %v400 = vld [vmem:[#allocation2 + $0x78] sm:$0xf]
    %v401 = vld [vmem:[#allocation2 + $0x80] sm:$0x8]
    %v402 = vld [vmem:[#allocation2 + $0x84] sm:$0xf]
    %v403 = vld [vmem:[#allocation2 + $0x88] sm:$0xf]
    %v404 = vld [vmem:[#allocation2 + $0x90] sm:$0x8]
    %v405 = vld [vmem:[#allocation2 + $0x94] sm:$0xf]
    %v406 = vld [vmem:[#allocation2 + $0x98] sm:$0xf]
    %v407 = vld [vmem:[#allocation2 + $0xa0] sm:$0x8]
    %v408 = vld [vmem:[#allocation2 + $0xa4] sm:$0xf]
    %v409 = vld [vmem:[#allocation2 + $0xa8] sm:$0xf]
    %v410 = vld [vmem:[#allocation2 + $0xb0] sm:$0x8]
    %v411 = vld [vmem:[#allocation2 + $0xb4] sm:$0xf]
    %v412 = vld [vmem:[#allocation2 + $0xb8] sm:$0xf]
    %v413 = vld [vmem:[#allocation2 + $0xc0] sm:$0x8]
    %v414 = vld [vmem:[#allocation2 + $0xc4] sm:$0xf]
    %v415 = vld [vmem:[#allocation2 + $0xc8] sm:$0xf]
    %v416 = vld [vmem:[#allocation2 + $0xd0] sm:$0x8]
    %v417 = vld [vmem:[#allocation2 + $0xd4] sm:$0xf]
    %v418 = vld [vmem:[#allocation2 + $0xd8] sm:$0xf]
    %v419 = vld [vmem:[#allocation2 + $0xe0] sm:$0x8]
    %v420 = vld [vmem:[#allocation2 + $0xe4] sm:$0xf]
    %v421 = vld [vmem:[#allocation2 + $0xe8] sm:$0xf]
    %v422 = vld [vmem:[#allocation2 + $0xf0] sm:$0x8]
    %v423 = vld [vmem:[#allocation2 + $0xf4] sm:$0xf]
    %v424 = vld [vmem:[#allocation2 + $0xf8] sm:$0xf]
    %v425 = vld [vmem:[#allocation2 + $0x120] sm:$0x8]
    %v426 = vld [vmem:[#allocation2 + $0x124] sm:$0xf]
    %v427 = vld [vmem:[#allocation2 + $0x128] sm:$0xf]
    %v428 = vld [vmem:[#allocation2 + $0x130] sm:$0x8]
    %v429 = vld [vmem:[#allocation2 + $0x134] sm:$0xf]
    %v430 = vld [vmem:[#allocation2 + $0x138] sm:$0xf]
    %v431 = vld [vmem:[#allocation2 + $0x140] sm:$0x8]
    %v432 = vld [vmem:[#allocation2 + $0x144] sm:$0xf]
    %v433 = vld [vmem:[#allocation2 + $0x148] sm:$0xf]
    %v434 = vld [vmem:[#allocation2 + $0x150] sm:$0x8]
    %v435 = vld [vmem:[#allocation2 + $0x154] sm:$0xf]
    %v436 = vld [vmem:[#allocation2 + $0x158] sm:$0xf]
    %v437 = vld [vmem:[#allocation2 + $0x160] sm:$0x8]
    %v438 = vld [vmem:[#allocation2 + $0x164] sm:$0xf]
    %v439 = vld [vmem:[#allocation2 + $0x168] sm:$0xf]
    %v440 = vld [vmem:[#allocation2 + $0x170] sm:$0x8]
    %v441 = vld [vmem:[#allocation2 + $0x174] sm:$0xf]
    %v442 = vld [vmem:[#allocation2 + $0x178] sm:$0xf]
    %v443 = vld [vmem:[#allocation2 + $0x180] sm:$0x8]
    %v444 = vld [vmem:[#allocation2 + $0x184] sm:$0xf]
    %v445 = vld [vmem:[#allocation2 + $0x188] sm:$0xf]
    %v446 = vld [vmem:[#allocation2 + $0x190] sm:$0x8]
    %v447 = vld [vmem:[#allocation2 + $0x194] sm:$0xf]
    %v448 = vld [vmem:[#allocation2 + $0x198] sm:$0xf]
    %v449 = vld [vmem:[#allocation2 + $0x1a0] sm:$0x8]
    %v450 = vld [vmem:[#allocation2 + $0x1a4] sm:$0xf]
    %v451 = vld [vmem:[#allocation2 + $0x1a8] sm:$0xf]
    %v452 = vld [vmem:[#allocation2 + $0x1b0] sm:$0x8]
    %v453 = vld [vmem:[#allocation2 + $0x1b4] sm:$0xf]
    %v454 = vld [vmem:[#allocation2 + $0x1b8] sm:$0xf]
    %v455 = vld [vmem:[#allocation2 + $0x1c0] sm:$0x8]
    %v456 = vld [vmem:[#allocation2 + $0x1c4] sm:$0xf]
    %v457 = vld [vmem:[#allocation2 + $0x1c8] sm:$0xf]
    %v458 = vld [vmem:[#allocation2 + $0x1d0] sm:$0x8]
    %v459 = vld [vmem:[#allocation2 + $0x1d4] sm:$0xf]
    %v460 = vld [vmem:[#allocation2 + $0x1d8] sm:$0xf]
    %v461 = vld [vmem:[#allocation2 + $0x1e0] sm:$0x8]
    %v462 = vld [vmem:[#allocation2 + $0x1e4] sm:$0xf]
    %v463 = vld [vmem:[#allocation2 + $0x1e8] sm:$0xf]
    %v464 = vld [vmem:[#allocation2 + $0x1f0] sm:$0x8]
    %v465 = vld [vmem:[#allocation2 + $0x1f4] sm:$0xf]
    %v466 = vld [vmem:[#allocation2 + $0x1f8] sm:$0xf]
    %v467 = vld [vmem:[#allocation2 + $0x200] sm:$0x8]
    %v468 = vld [vmem:[#allocation2 + $0x204] sm:$0xf]
    %v469 = vld [vmem:[#allocation2 + $0x208] sm:$0xf]
    %v470 = vld [vmem:[#allocation2 + $0x210] sm:$0x8]
    %v471 = vld [vmem:[#allocation2 + $0x214] sm:$0xf]
    %v472 = vld [vmem:[#allocation2 + $0x218] sm:$0xf]
    %vm473 = vsmask.f32 4368
    %vm474 = vmor %vm97, %vm473
    %v476 = vshrl.u32 %v377, 16
    %v478 = vrot.slane %v476, 7
    %v479 = vrot.slane %v478, 4
    %v481 = vshrl.u32 %v378, 16
    %v483 = vrot.slane %v481, 7
    %v484 = vshll.u32 %v378, 16
    %v486 = vor.u32 %v483, %v484
    %v487 = vsel %vm474, %v479, %v486
    %v488 = vrot.slane %v483, 4
    %v490 = vshrl.u32 %v379, 16
    %v492 = vrot.slane %v490, 7
    %v493 = vshll.u32 %v379, 16
    %v495 = vor.u32 %v492, %v493
    %v496 = vsel %vm474, %v488, %v495
    %v498 = vshrl.u32 %v380, 16
    %v500 = vrot.slane %v498, 7
    %v501 = vrot.slane %v500, 4
    %v503 = vshrl.u32 %v381, 16
    %v505 = vrot.slane %v503, 7
    %v506 = vshll.u32 %v381, 16
    %v508 = vor.u32 %v505, %v506
    %v509 = vsel %vm474, %v501, %v508
    %v510 = vrot.slane %v505, 4
    %v512 = vshrl.u32 %v382, 16
    %v514 = vrot.slane %v512, 7
    %v515 = vshll.u32 %v382, 16
    %v517 = vor.u32 %v514, %v515
    %v518 = vsel %vm474, %v510, %v517
    %v520 = vshrl.u32 %v383, 16
    %v522 = vrot.slane %v520, 7
    %v523 = vrot.slane %v522, 4
    %v525 = vshrl.u32 %v384, 16
    %v527 = vrot.slane %v525, 7
    %v528 = vshll.u32 %v384, 16
    %v530 = vor.u32 %v527, %v528
    %v531 = vsel %vm474, %v523, %v530
    %v532 = vrot.slane %v527, 4
    %v534 = vshrl.u32 %v385, 16
    %v536 = vrot.slane %v534, 7
    %v537 = vshll.u32 %v385, 16
    %v539 = vor.u32 %v536, %v537
    %v540 = vsel %vm474, %v532, %v539
    %v542 = vshrl.u32 %v386, 16
    %v544 = vrot.slane %v542, 7
    %v545 = vrot.slane %v544, 4
    %v547 = vshrl.u32 %v387, 16
    %v549 = vrot.slane %v547, 7
    %v550 = vshll.u32 %v387, 16
    %v552 = vor.u32 %v549, %v550
    %v553 = vsel %vm474, %v545, %v552
    %v554 = vrot.slane %v549, 4
    %v556 = vshrl.u32 %v388, 16
    %v558 = vrot.slane %v556, 7
    %v559 = vshll.u32 %v388, 16
    %v561 = vor.u32 %v558, %v559
    %v562 = vsel %vm474, %v554, %v561
    %v564 = vshrl.u32 %v389, 16
    %v566 = vrot.slane %v564, 7
    %v567 = vrot.slane %v566, 4
    %v569 = vshrl.u32 %v390, 16
    %v571 = vrot.slane %v569, 7
    %v572 = vshll.u32 %v390, 16
    %v574 = vor.u32 %v571, %v572
    %v575 = vsel %vm474, %v567, %v574
    %v576 = vrot.slane %v571, 4
    %v578 = vshrl.u32 %v391, 16
    %v580 = vrot.slane %v578, 7
    %v581 = vshll.u32 %v391, 16
    %v583 = vor.u32 %v580, %v581
    %v584 = vsel %vm474, %v576, %v583
    %v586 = vshrl.u32 %v392, 16
    %v588 = vrot.slane %v586, 7
    %v589 = vrot.slane %v588, 4
    %v591 = vshrl.u32 %v393, 16
    %v593 = vrot.slane %v591, 7
    %v594 = vshll.u32 %v393, 16
    %v596 = vor.u32 %v593, %v594
    %v597 = vsel %vm474, %v589, %v596
    %v598 = vrot.slane %v593, 4
    %v600 = vshrl.u32 %v394, 16
    %v602 = vrot.slane %v600, 7
    %v603 = vshll.u32 %v394, 16
    %v605 = vor.u32 %v602, %v603
    %v606 = vsel %vm474, %v598, %v605
    %v608 = vshrl.u32 %v395, 16
    %v610 = vrot.slane %v608, 7
    %v611 = vrot.slane %v610, 4
    %v613 = vshrl.u32 %v396, 16
    %v615 = vrot.slane %v613, 7
    %v616 = vshll.u32 %v396, 16
    %v618 = vor.u32 %v615, %v616
    %v619 = vsel %vm474, %v611, %v618
    %v620 = vrot.slane %v615, 4
    %v622 = vshrl.u32 %v397, 16
    %v624 = vrot.slane %v622, 7
    %v625 = vshll.u32 %v397, 16
    %v627 = vor.u32 %v624, %v625
    %v628 = vsel %vm474, %v620, %v627
    %v630 = vshrl.u32 %v398, 16
    %v632 = vrot.slane %v630, 7
    %v633 = vrot.slane %v632, 4
    %v635 = vshrl.u32 %v399, 16
    %v637 = vrot.slane %v635, 7
    %v638 = vshll.u32 %v399, 16
    %v640 = vor.u32 %v637, %v638
    %v641 = vsel %vm474, %v633, %v640
    %v642 = vrot.slane %v637, 4
    %v644 = vshrl.u32 %v400, 16
    %v646 = vrot.slane %v644, 7
    %v647 = vshll.u32 %v400, 16
    %v649 = vor.u32 %v646, %v647
    %v650 = vsel %vm474, %v642, %v649
    %v652 = vshrl.u32 %v401, 16
    %v654 = vrot.slane %v652, 7
    %v655 = vrot.slane %v654, 4
    %v657 = vshrl.u32 %v402, 16
    %v659 = vrot.slane %v657, 7
    %v660 = vshll.u32 %v402, 16
    %v662 = vor.u32 %v659, %v660
    %v663 = vsel %vm474, %v655, %v662
    %v664 = vrot.slane %v659, 4
    %v666 = vshrl.u32 %v403, 16
    %v668 = vrot.slane %v666, 7
    %v669 = vshll.u32 %v403, 16
    %v671 = vor.u32 %v668, %v669
    %v672 = vsel %vm474, %v664, %v671
    %v674 = vshrl.u32 %v404, 16
    %v676 = vrot.slane %v674, 7
    %v677 = vrot.slane %v676, 4
    %v679 = vshrl.u32 %v405, 16
    %v681 = vrot.slane %v679, 7
    %v682 = vshll.u32 %v405, 16
    %v684 = vor.u32 %v681, %v682
    %v685 = vsel %vm474, %v677, %v684
    %v686 = vrot.slane %v681, 4
    %v688 = vshrl.u32 %v406, 16
    %v690 = vrot.slane %v688, 7
    %v691 = vshll.u32 %v406, 16
    %v693 = vor.u32 %v690, %v691
    %v694 = vsel %vm474, %v686, %v693
    %v696 = vshrl.u32 %v407, 16
    %v698 = vrot.slane %v696, 7
    %v699 = vrot.slane %v698, 4
    %v701 = vshrl.u32 %v408, 16
    %v703 = vrot.slane %v701, 7
    %v704 = vshll.u32 %v408, 16
    %v706 = vor.u32 %v703, %v704
    %v707 = vsel %vm474, %v699, %v706
    %v708 = vrot.slane %v703, 4
    %v710 = vshrl.u32 %v409, 16
    %v712 = vrot.slane %v710, 7
    %v713 = vshll.u32 %v409, 16
    %v715 = vor.u32 %v712, %v713
    %v716 = vsel %vm474, %v708, %v715
    %v718 = vshrl.u32 %v410, 16
    %v720 = vrot.slane %v718, 7
    %v721 = vrot.slane %v720, 4
    %v723 = vshrl.u32 %v411, 16
    %v725 = vrot.slane %v723, 7
    %v726 = vshll.u32 %v411, 16
    %v728 = vor.u32 %v725, %v726
    %v729 = vsel %vm474, %v721, %v728
    %v730 = vrot.slane %v725, 4
    %v732 = vshrl.u32 %v412, 16
    %v734 = vrot.slane %v732, 7
    %v735 = vshll.u32 %v412, 16
    %v737 = vor.u32 %v734, %v735
    %v738 = vsel %vm474, %v730, %v737
    %v740 = vshrl.u32 %v413, 16
    %v742 = vrot.slane %v740, 7
    %v743 = vrot.slane %v742, 4
    %v745 = vshrl.u32 %v414, 16
    %v747 = vrot.slane %v745, 7
    %v748 = vshll.u32 %v414, 16
    %v750 = vor.u32 %v747, %v748
    %v751 = vsel %vm474, %v743, %v750
    %v752 = vrot.slane %v747, 4
    %v754 = vshrl.u32 %v415, 16
    %v756 = vrot.slane %v754, 7
    %v757 = vshll.u32 %v415, 16
    %v759 = vor.u32 %v756, %v757
    %v760 = vsel %vm474, %v752, %v759
    %v762 = vshrl.u32 %v416, 16
    %v764 = vrot.slane %v762, 7
    %v765 = vrot.slane %v764, 4
    %v767 = vshrl.u32 %v417, 16
    %v769 = vrot.slane %v767, 7
    %v770 = vshll.u32 %v417, 16
    %v772 = vor.u32 %v769, %v770
    %v773 = vsel %vm474, %v765, %v772
    %v774 = vrot.slane %v769, 4
    %v776 = vshrl.u32 %v418, 16
    %v778 = vrot.slane %v776, 7
    %v779 = vshll.u32 %v418, 16
    %v781 = vor.u32 %v778, %v779
    %v782 = vsel %vm474, %v774, %v781
    %v784 = vshrl.u32 %v419, 16
    %v786 = vrot.slane %v784, 7
    %v787 = vrot.slane %v786, 4
    %v789 = vshrl.u32 %v420, 16
    %v791 = vrot.slane %v789, 7
    %v792 = vshll.u32 %v420, 16
    %v794 = vor.u32 %v791, %v792
    %v795 = vsel %vm474, %v787, %v794
    %v796 = vrot.slane %v791, 4
    %v798 = vshrl.u32 %v421, 16
    %v800 = vrot.slane %v798, 7
    %v801 = vshll.u32 %v421, 16
    %v803 = vor.u32 %v800, %v801
    %v804 = vsel %vm474, %v796, %v803
    %v806 = vshrl.u32 %v422, 16
    %v808 = vrot.slane %v806, 7
    %v809 = vrot.slane %v808, 4
    %v811 = vshrl.u32 %v423, 16
    %v813 = vrot.slane %v811, 7
    %v814 = vshll.u32 %v423, 16
    %v816 = vor.u32 %v813, %v814
    %v817 = vsel %vm474, %v809, %v816
    %v818 = vrot.slane %v813, 4
    %v820 = vshrl.u32 %v424, 16
    %v822 = vrot.slane %v820, 7
    %v823 = vshll.u32 %v424, 16
    %v825 = vor.u32 %v822, %v823
    %v826 = vsel %vm474, %v818, %v825
    %v828 = vshrl.u32 %v425, 16
    %v830 = vrot.slane %v828, 7
    %v831 = vrot.slane %v830, 4
    %v833 = vshrl.u32 %v426, 16
    %v835 = vrot.slane %v833, 7
    %v836 = vshll.u32 %v426, 16
    %v838 = vor.u32 %v835, %v836
    %v839 = vsel %vm474, %v831, %v838
    %v840 = vrot.slane %v835, 4
    %v842 = vshrl.u32 %v427, 16
    %v844 = vrot.slane %v842, 7
    %v845 = vshll.u32 %v427, 16
    %v847 = vor.u32 %v844, %v845
    %v848 = vsel %vm474, %v840, %v847
    %v850 = vshrl.u32 %v428, 16
    %v852 = vrot.slane %v850, 7
    %v853 = vrot.slane %v852, 4
    %v855 = vshrl.u32 %v429, 16
    %v857 = vrot.slane %v855, 7
    %v858 = vshll.u32 %v429, 16
    %v860 = vor.u32 %v857, %v858
    %v861 = vsel %vm474, %v853, %v860
    %v862 = vrot.slane %v857, 4
    %v864 = vshrl.u32 %v430, 16
    %v866 = vrot.slane %v864, 7
    %v867 = vshll.u32 %v430, 16
    %v869 = vor.u32 %v866, %v867
    %v870 = vsel %vm474, %v862, %v869
    %v872 = vshrl.u32 %v431, 16
    %v874 = vrot.slane %v872, 7
    %v875 = vrot.slane %v874, 4
    %v877 = vshrl.u32 %v432, 16
    %v879 = vrot.slane %v877, 7
    %v880 = vshll.u32 %v432, 16
    %v882 = vor.u32 %v879, %v880
    %v883 = vsel %vm474, %v875, %v882
    %v884 = vrot.slane %v879, 4
    %v886 = vshrl.u32 %v433, 16
    %v888 = vrot.slane %v886, 7
    %v889 = vshll.u32 %v433, 16
    %v891 = vor.u32 %v888, %v889
    %v892 = vsel %vm474, %v884, %v891
    %v894 = vshrl.u32 %v434, 16
    %v896 = vrot.slane %v894, 7
    %v897 = vrot.slane %v896, 4
    %v899 = vshrl.u32 %v435, 16
    %v901 = vrot.slane %v899, 7
    %v902 = vshll.u32 %v435, 16
    %v904 = vor.u32 %v901, %v902
    %v905 = vsel %vm474, %v897, %v904
    %v906 = vrot.slane %v901, 4
    %v908 = vshrl.u32 %v436, 16
    %v910 = vrot.slane %v908, 7
    %v911 = vshll.u32 %v436, 16
    %v913 = vor.u32 %v910, %v911
    %v914 = vsel %vm474, %v906, %v913
    %v916 = vshrl.u32 %v437, 16
    %v918 = vrot.slane %v916, 7
    %v919 = vrot.slane %v918, 4
    %v921 = vshrl.u32 %v438, 16
    %v923 = vrot.slane %v921, 7
    %v924 = vshll.u32 %v438, 16
    %v926 = vor.u32 %v923, %v924
    %v927 = vsel %vm474, %v919, %v926
    %v928 = vrot.slane %v923, 4
    %v930 = vshrl.u32 %v439, 16
    %v932 = vrot.slane %v930, 7
    %v933 = vshll.u32 %v439, 16
    %v935 = vor.u32 %v932, %v933
    %v936 = vsel %vm474, %v928, %v935
    %v938 = vshrl.u32 %v440, 16
    %v940 = vrot.slane %v938, 7
    %v941 = vrot.slane %v940, 4
    %v943 = vshrl.u32 %v441, 16
    %v945 = vrot.slane %v943, 7
    %v946 = vshll.u32 %v441, 16
    %v948 = vor.u32 %v945, %v946
    %v949 = vsel %vm474, %v941, %v948
    %v950 = vrot.slane %v945, 4
    %v952 = vshrl.u32 %v442, 16
    %v954 = vrot.slane %v952, 7
    %v955 = vshll.u32 %v442, 16
    %v957 = vor.u32 %v954, %v955
    %v958 = vsel %vm474, %v950, %v957
    %v960 = vshrl.u32 %v443, 16
    %v962 = vrot.slane %v960, 7
    %v963 = vrot.slane %v962, 4
    %v965 = vshrl.u32 %v444, 16
    %v967 = vrot.slane %v965, 7
    %v968 = vshll.u32 %v444, 16
    %v970 = vor.u32 %v967, %v968
    %v971 = vsel %vm474, %v963, %v970
    %v972 = vrot.slane %v967, 4
    %v974 = vshrl.u32 %v445, 16
    %v976 = vrot.slane %v974, 7
    %v977 = vshll.u32 %v445, 16
    %v979 = vor.u32 %v976, %v977
    %v980 = vsel %vm474, %v972, %v979
    %v982 = vshrl.u32 %v446, 16
    %v984 = vrot.slane %v982, 7
    %v985 = vrot.slane %v984, 4
    %v987 = vshrl.u32 %v447, 16
    %v989 = vrot.slane %v987, 7
    %v990 = vshll.u32 %v447, 16
    %v992 = vor.u32 %v989, %v990
    %v993 = vsel %vm474, %v985, %v992
    %v994 = vrot.slane %v989, 4
    %v996 = vshrl.u32 %v448, 16
    %v998 = vrot.slane %v996, 7
    %v999 = vshll.u32 %v448, 16
    %v1001 = vor.u32 %v998, %v999
    %v1002 = vsel %vm474, %v994, %v1001
    %v1004 = vshrl.u32 %v449, 16
    %v1006 = vrot.slane %v1004, 7
    %v1007 = vrot.slane %v1006, 4
    %v1009 = vshrl.u32 %v450, 16
    %v1011 = vrot.slane %v1009, 7
    %v1012 = vshll.u32 %v450, 16
    %v1014 = vor.u32 %v1011, %v1012
    %v1015 = vsel %vm474, %v1007, %v1014
    %v1016 = vrot.slane %v1011, 4
    %v1018 = vshrl.u32 %v451, 16
    %v1020 = vrot.slane %v1018, 7
    %v1021 = vshll.u32 %v451, 16
    %v1023 = vor.u32 %v1020, %v1021
    %v1024 = vsel %vm474, %v1016, %v1023
    %v1026 = vshrl.u32 %v452, 16
    %v1028 = vrot.slane %v1026, 7
    %v1029 = vrot.slane %v1028, 4
    %v1031 = vshrl.u32 %v453, 16
    %v1033 = vrot.slane %v1031, 7
    %v1034 = vshll.u32 %v453, 16
    %v1036 = vor.u32 %v1033, %v1034
    %v1037 = vsel %vm474, %v1029, %v1036
    %v1038 = vrot.slane %v1033, 4
    %v1040 = vshrl.u32 %v454, 16
    %v1042 = vrot.slane %v1040, 7
    %v1043 = vshll.u32 %v454, 16
    %v1045 = vor.u32 %v1042, %v1043
    %v1046 = vsel %vm474, %v1038, %v1045
    %v1048 = vshrl.u32 %v455, 16
    %v1050 = vrot.slane %v1048, 7
    %v1051 = vrot.slane %v1050, 4
    %v1053 = vshrl.u32 %v456, 16
    %v1055 = vrot.slane %v1053, 7
    %v1056 = vshll.u32 %v456, 16
    %v1058 = vor.u32 %v1055, %v1056
    %v1059 = vsel %vm474, %v1051, %v1058
    %v1060 = vrot.slane %v1055, 4
    %v1062 = vshrl.u32 %v457, 16
    %v1064 = vrot.slane %v1062, 7
    %v1065 = vshll.u32 %v457, 16
    %v1067 = vor.u32 %v1064, %v1065
    %v1068 = vsel %vm474, %v1060, %v1067
    %v1070 = vshrl.u32 %v458, 16
    %v1072 = vrot.slane %v1070, 7
    %v1073 = vrot.slane %v1072, 4
    %v1075 = vshrl.u32 %v459, 16
    %v1077 = vrot.slane %v1075, 7
    %v1078 = vshll.u32 %v459, 16
    %v1080 = vor.u32 %v1077, %v1078
    %v1081 = vsel %vm474, %v1073, %v1080
    %v1082 = vrot.slane %v1077, 4
    %v1084 = vshrl.u32 %v460, 16
    %v1086 = vrot.slane %v1084, 7
    %v1087 = vshll.u32 %v460, 16
    %v1089 = vor.u32 %v1086, %v1087
    %v1090 = vsel %vm474, %v1082, %v1089
    %v1092 = vshrl.u32 %v461, 16
    %v1094 = vrot.slane %v1092, 7
    %v1095 = vrot.slane %v1094, 4
    %v1097 = vshrl.u32 %v462, 16
    %v1099 = vrot.slane %v1097, 7
    %v1100 = vshll.u32 %v462, 16
    %v1102 = vor.u32 %v1099, %v1100
    %v1103 = vsel %vm474, %v1095, %v1102
    %v1104 = vrot.slane %v1099, 4
    %v1106 = vshrl.u32 %v463, 16
    %v1108 = vrot.slane %v1106, 7
    %v1109 = vshll.u32 %v463, 16
    %v1111 = vor.u32 %v1108, %v1109
    %v1112 = vsel %vm474, %v1104, %v1111
    %v1114 = vshrl.u32 %v464, 16
    %v1116 = vrot.slane %v1114, 7
    %v1117 = vrot.slane %v1116, 4
    %v1119 = vshrl.u32 %v465, 16
    %v1121 = vrot.slane %v1119, 7
    %v1122 = vshll.u32 %v465, 16
    %v1124 = vor.u32 %v1121, %v1122
    %v1125 = vsel %vm474, %v1117, %v1124
    %v1126 = vrot.slane %v1121, 4
    %v1128 = vshrl.u32 %v466, 16
    %v1130 = vrot.slane %v1128, 7
    %v1131 = vshll.u32 %v466, 16
    %v1133 = vor.u32 %v1130, %v1131
    %v1134 = vsel %vm474, %v1126, %v1133
    %v1136 = vshrl.u32 %v467, 16
    %v1138 = vrot.slane %v1136, 7
    %v1139 = vrot.slane %v1138, 4
    %v1141 = vshrl.u32 %v468, 16
    %v1143 = vrot.slane %v1141, 7
    %v1144 = vshll.u32 %v468, 16
    %v1146 = vor.u32 %v1143, %v1144
    %v1147 = vsel %vm474, %v1139, %v1146
    %v1148 = vrot.slane %v1143, 4
    %v1150 = vshrl.u32 %v469, 16
    %v1152 = vrot.slane %v1150, 7
    %v1153 = vshll.u32 %v469, 16
    %v1155 = vor.u32 %v1152, %v1153
    %v1156 = vsel %vm474, %v1148, %v1155
    %v1158 = vshrl.u32 %v470, 16
    %v1160 = vrot.slane %v1158, 7
    %v1161 = vrot.slane %v1160, 4
    %v1163 = vshrl.u32 %v471, 16
    %v1165 = vrot.slane %v1163, 7
    %v1166 = vshll.u32 %v471, 16
    %v1168 = vor.u32 %v1165, %v1166
    %v1169 = vsel %vm474, %v1161, %v1168
    %v1170 = vrot.slane %v1165, 4
    %v1172 = vshrl.u32 %v472, 16
    %v1174 = vrot.slane %v1172, 7
    %v1175 = vshll.u32 %v472, 16
    %v1177 = vor.u32 %v1174, %v1175
    %v1178 = vsel %vm474, %v1170, %v1177
    %v1179 = vld [vmem:[#allocation2 + $0xc] sm:$0x1]
    %v1180 = vld [vmem:[#allocation2 + $0x1c] sm:$0x1]
    %v1181 = vld [vmem:[#allocation2 + $0x2c] sm:$0x1]
    %v1182 = vld [vmem:[#allocation2 + $0x3c] sm:$0x1]
    %v1183 = vld [vmem:[#allocation2 + $0x4c] sm:$0x1]
    %v1184 = vld [vmem:[#allocation2 + $0x5c] sm:$0x1]
    %v1185 = vld [vmem:[#allocation2 + $0x6c] sm:$0x1]
    %v1186 = vld [vmem:[#allocation2 + $0x7c] sm:$0x1]
    %v1187 = vld [vmem:[#allocation2 + $0x8c] sm:$0x1]
    %v1188 = vld [vmem:[#allocation2 + $0x9c] sm:$0x1]
    %v1189 = vld [vmem:[#allocation2 + $0xac] sm:$0x1]
    %v1190 = vld [vmem:[#allocation2 + $0xbc] sm:$0x1]
    %v1191 = vld [vmem:[#allocation2 + $0xcc] sm:$0x1]
    %v1192 = vld [vmem:[#allocation2 + $0xdc] sm:$0x1]
    %v1193 = vld [vmem:[#allocation2 + $0xec] sm:$0x1]
    %v1194 = vld [vmem:[#allocation2 + $0xfc] sm:$0x1]
    %v1195 = vld [vmem:[#allocation2 + $0x12c] sm:$0x1]
    %v1196 = vld [vmem:[#allocation2 + $0x13c] sm:$0x1]
    %v1197 = vld [vmem:[#allocation2 + $0x14c] sm:$0x1]
    %v1198 = vld [vmem:[#allocation2 + $0x15c] sm:$0x1]
    %v1199 = vld [vmem:[#allocation2 + $0x16c] sm:$0x1]
    %v1200 = vld [vmem:[#allocation2 + $0x17c] sm:$0x1]
    %v1201 = vld [vmem:[#allocation2 + $0x18c] sm:$0x1]
    %v1202 = vld [vmem:[#allocation2 + $0x19c] sm:$0x1]
    %v1203 = vld [vmem:[#allocation2 + $0x1ac] sm:$0x1]
    %v1204 = vld [vmem:[#allocation2 + $0x1bc] sm:$0x1]
    %v1205 = vld [vmem:[#allocation2 + $0x1cc] sm:$0x1]
    %v1206 = vld [vmem:[#allocation2 + $0x1dc] sm:$0x1]
    %v1207 = vld [vmem:[#allocation2 + $0x1ec] sm:$0x1]
    %v1208 = vld [vmem:[#allocation2 + $0x1fc] sm:$0x1]
    %v1209 = vld [vmem:[#allocation2 + $0x20c] sm:$0x1]
    %v1210 = vld [vmem:[#allocation2 + $0x21c] sm:$0x1]
    %vm1211 = vsmask.f32 3328
    %vm1212 = vsmask.f32 7440
    %vm1213 = vmor %vm1211, %vm1212
    %v1214 = vrot.slane %v481, 4
    %v1215 = vrot.slane %v484, 5
    %v1216 = vor.u32 %v1214, %v1215
    %v1217 = vrot.slane %v1216, 4
    %v1218 = vrot.slane %v493, 5
    %v1219 = vsel %vm1213, %v1217, %v1218
    %v1220 = vrot.slane %v490, 4
    %v1221 = vor.u32 %v1220, %v1218
    %v1222 = vrot.slane %v1221, 4
    %v1224 = vshll.u32 %v1179, 16
    %v1226 = vrot.slane %v1224, 5
    %v1227 = vsel %vm1213, %v1222, %v1226
    %v1228 = vrot.slane %v503, 4
    %v1229 = vrot.slane %v506, 5
    %v1230 = vor.u32 %v1228, %v1229
    %v1231 = vrot.slane %v1230, 4
    %v1232 = vrot.slane %v515, 5
    %v1233 = vsel %vm1213, %v1231, %v1232
    %v1234 = vrot.slane %v512, 4
    %v1235 = vor.u32 %v1234, %v1232
    %v1236 = vrot.slane %v1235, 4
    %v1238 = vshll.u32 %v1180, 16
    %v1240 = vrot.slane %v1238, 5
    %v1241 = vsel %vm1213, %v1236, %v1240
    %v1242 = vrot.slane %v525, 4
    %v1243 = vrot.slane %v528, 5
    %v1244 = vor.u32 %v1242, %v1243
    %v1245 = vrot.slane %v1244, 4
    %v1246 = vrot.slane %v537, 5
    %v1247 = vsel %vm1213, %v1245, %v1246
    %v1248 = vrot.slane %v534, 4
    %v1249 = vor.u32 %v1248, %v1246
    %v1250 = vrot.slane %v1249, 4
    %v1252 = vshll.u32 %v1181, 16
    %v1254 = vrot.slane %v1252, 5
    %v1255 = vsel %vm1213, %v1250, %v1254
    %v1256 = vrot.slane %v547, 4
    %v1257 = vrot.slane %v550, 5
    %v1258 = vor.u32 %v1256, %v1257
    %v1259 = vrot.slane %v1258, 4
    %v1260 = vrot.slane %v559, 5
    %v1261 = vsel %vm1213, %v1259, %v1260
    %v1262 = vrot.slane %v556, 4
    %v1263 = vor.u32 %v1262, %v1260
    %v1264 = vrot.slane %v1263, 4
    %v1266 = vshll.u32 %v1182, 16
    %v1268 = vrot.slane %v1266, 5
    %v1269 = vsel %vm1213, %v1264, %v1268
    %v1270 = vrot.slane %v569, 4
    %v1271 = vrot.slane %v572, 5
    %v1272 = vor.u32 %v1270, %v1271
    %v1273 = vrot.slane %v1272, 4
    %v1274 = vrot.slane %v581, 5
    %v1275 = vsel %vm1213, %v1273, %v1274
    %v1276 = vrot.slane %v578, 4
    %v1277 = vor.u32 %v1276, %v1274
    %v1278 = vrot.slane %v1277, 4
    %v1280 = vshll.u32 %v1183, 16
    %v1282 = vrot.slane %v1280, 5
    %v1283 = vsel %vm1213, %v1278, %v1282
    %v1284 = vrot.slane %v591, 4
    %v1285 = vrot.slane %v594, 5
    %v1286 = vor.u32 %v1284, %v1285
    %v1287 = vrot.slane %v1286, 4
    %v1288 = vrot.slane %v603, 5
    %v1289 = vsel %vm1213, %v1287, %v1288
    %v1290 = vrot.slane %v600, 4
    %v1291 = vor.u32 %v1290, %v1288
    %v1292 = vrot.slane %v1291, 4
    %v1294 = vshll.u32 %v1184, 16
    %v1296 = vrot.slane %v1294, 5
    %v1297 = vsel %vm1213, %v1292, %v1296
    %v1298 = vrot.slane %v613, 4
    %v1299 = vrot.slane %v616, 5
    %v1300 = vor.u32 %v1298, %v1299
    %v1301 = vrot.slane %v1300, 4
    %v1302 = vrot.slane %v625, 5
    %v1303 = vsel %vm1213, %v1301, %v1302
    %v1304 = vrot.slane %v622, 4
    %v1305 = vor.u32 %v1304, %v1302
    %v1306 = vrot.slane %v1305, 4
    %v1308 = vshll.u32 %v1185, 16
    %v1310 = vrot.slane %v1308, 5
    %v1311 = vsel %vm1213, %v1306, %v1310
    %v1312 = vrot.slane %v635, 4
    %v1313 = vrot.slane %v638, 5
    %v1314 = vor.u32 %v1312, %v1313
    %v1315 = vrot.slane %v1314, 4
    %v1316 = vrot.slane %v647, 5
    %v1317 = vsel %vm1213, %v1315, %v1316
    %v1318 = vrot.slane %v644, 4
    %v1319 = vor.u32 %v1318, %v1316
    %v1320 = vrot.slane %v1319, 4
    %v1322 = vshll.u32 %v1186, 16
    %v1324 = vrot.slane %v1322, 5
    %v1325 = vsel %vm1213, %v1320, %v1324
    %v1326 = vrot.slane %v657, 4
    %v1327 = vrot.slane %v660, 5
    %v1328 = vor.u32 %v1326, %v1327
    %v1329 = vrot.slane %v1328, 4
    %v1330 = vrot.slane %v669, 5
    %v1331 = vsel %vm1213, %v1329, %v1330
    %v1332 = vrot.slane %v666, 4
    %v1333 = vor.u32 %v1332, %v1330
    %v1334 = vrot.slane %v1333, 4
    %v1336 = vshll.u32 %v1187, 16
    %v1338 = vrot.slane %v1336, 5
    %v1339 = vsel %vm1213, %v1334, %v1338
    %v1340 = vrot.slane %v679, 4
    %v1341 = vrot.slane %v682, 5
    %v1342 = vor.u32 %v1340, %v1341
    %v1343 = vrot.slane %v1342, 4
    %v1344 = vrot.slane %v691, 5
    %v1345 = vsel %vm1213, %v1343, %v1344
    %v1346 = vrot.slane %v688, 4
    %v1347 = vor.u32 %v1346, %v1344
    %v1348 = vrot.slane %v1347, 4
    %v1350 = vshll.u32 %v1188, 16
    %v1352 = vrot.slane %v1350, 5
    %v1353 = vsel %vm1213, %v1348, %v1352
    %v1354 = vrot.slane %v701, 4
    %v1355 = vrot.slane %v704, 5
    %v1356 = vor.u32 %v1354, %v1355
    %v1357 = vrot.slane %v1356, 4
    %v1358 = vrot.slane %v713, 5
    %v1359 = vsel %vm1213, %v1357, %v1358
    %v1360 = vrot.slane %v710, 4
    %v1361 = vor.u32 %v1360, %v1358
    %v1362 = vrot.slane %v1361, 4
    %v1364 = vshll.u32 %v1189, 16
    %v1366 = vrot.slane %v1364, 5
    %v1367 = vsel %vm1213, %v1362, %v1366
    %v1368 = vrot.slane %v723, 4
    %v1369 = vrot.slane %v726, 5
    %v1370 = vor.u32 %v1368, %v1369
    %v1371 = vrot.slane %v1370, 4
    %v1372 = vrot.slane %v735, 5
    %v1373 = vsel %vm1213, %v1371, %v1372
    %v1374 = vrot.slane %v732, 4
    %v1375 = vor.u32 %v1374, %v1372
    %v1376 = vrot.slane %v1375, 4
    %v1378 = vshll.u32 %v1190, 16
    %v1380 = vrot.slane %v1378, 5
    %v1381 = vsel %vm1213, %v1376, %v1380
    %v1382 = vrot.slane %v745, 4
    %v1383 = vrot.slane %v748, 5
    %v1384 = vor.u32 %v1382, %v1383
    %v1385 = vrot.slane %v1384, 4
    %v1386 = vrot.slane %v757, 5
    %v1387 = vsel %vm1213, %v1385, %v1386
    %v1388 = vrot.slane %v754, 4
    %v1389 = vor.u32 %v1388, %v1386
    %v1390 = vrot.slane %v1389, 4
    %v1392 = vshll.u32 %v1191, 16
    %v1394 = vrot.slane %v1392, 5
    %v1395 = vsel %vm1213, %v1390, %v1394
    %v1396 = vrot.slane %v767, 4
    %v1397 = vrot.slane %v770, 5
    %v1398 = vor.u32 %v1396, %v1397
    %v1399 = vrot.slane %v1398, 4
    %v1400 = vrot.slane %v779, 5
    %v1401 = vsel %vm1213, %v1399, %v1400
    %v1402 = vrot.slane %v776, 4
    %v1403 = vor.u32 %v1402, %v1400
    %v1404 = vrot.slane %v1403, 4
    %v1406 = vshll.u32 %v1192, 16
    %v1408 = vrot.slane %v1406, 5
    %v1409 = vsel %vm1213, %v1404, %v1408
    %v1410 = vrot.slane %v789, 4
    %v1411 = vrot.slane %v792, 5
    %v1412 = vor.u32 %v1410, %v1411
    %v1413 = vrot.slane %v1412, 4
    %v1414 = vrot.slane %v801, 5
    %v1415 = vsel %vm1213, %v1413, %v1414
    %v1416 = vrot.slane %v798, 4
    %v1417 = vor.u32 %v1416, %v1414
    %v1418 = vrot.slane %v1417, 4
    %v1420 = vshll.u32 %v1193, 16
    %v1422 = vrot.slane %v1420, 5
    %v1423 = vsel %vm1213, %v1418, %v1422
    %v1424 = vrot.slane %v811, 4
    %v1425 = vrot.slane %v814, 5
    %v1426 = vor.u32 %v1424, %v1425
    %v1427 = vrot.slane %v1426, 4
    %v1428 = vrot.slane %v823, 5
    %v1429 = vsel %vm1213, %v1427, %v1428
    %v1430 = vrot.slane %v820, 4
    %v1431 = vor.u32 %v1430, %v1428
    %v1432 = vrot.slane %v1431, 4
    %v1434 = vshll.u32 %v1194, 16
    %v1436 = vrot.slane %v1434, 5
    %v1437 = vsel %vm1213, %v1432, %v1436
    %v1438 = vrot.slane %v833, 4
    %v1439 = vrot.slane %v836, 5
    %v1440 = vor.u32 %v1438, %v1439
    %v1441 = vrot.slane %v1440, 4
    %v1442 = vrot.slane %v845, 5
    %v1443 = vsel %vm1213, %v1441, %v1442
    %v1444 = vrot.slane %v842, 4
    %v1445 = vor.u32 %v1444, %v1442
    %v1446 = vrot.slane %v1445, 4
    %v1448 = vshll.u32 %v1195, 16
    %v1450 = vrot.slane %v1448, 5
    %v1451 = vsel %vm1213, %v1446, %v1450
    %v1452 = vrot.slane %v855, 4
    %v1453 = vrot.slane %v858, 5
    %v1454 = vor.u32 %v1452, %v1453
    %v1455 = vrot.slane %v1454, 4
    %v1456 = vrot.slane %v867, 5
    %v1457 = vsel %vm1213, %v1455, %v1456
    %v1458 = vrot.slane %v864, 4
    %v1459 = vor.u32 %v1458, %v1456
    %v1460 = vrot.slane %v1459, 4
    %v1462 = vshll.u32 %v1196, 16
    %v1464 = vrot.slane %v1462, 5
    %v1465 = vsel %vm1213, %v1460, %v1464
    %v1466 = vrot.slane %v877, 4
    %v1467 = vrot.slane %v880, 5
    %v1468 = vor.u32 %v1466, %v1467
    %v1469 = vrot.slane %v1468, 4
    %v1470 = vrot.slane %v889, 5
    %v1471 = vsel %vm1213, %v1469, %v1470
    %v1472 = vrot.slane %v886, 4
    %v1473 = vor.u32 %v1472, %v1470
    %v1474 = vrot.slane %v1473, 4
    %v1476 = vshll.u32 %v1197, 16
    %v1478 = vrot.slane %v1476, 5
    %v1479 = vsel %vm1213, %v1474, %v1478
    %v1480 = vrot.slane %v899, 4
    %v1481 = vrot.slane %v902, 5
    %v1482 = vor.u32 %v1480, %v1481
    %v1483 = vrot.slane %v1482, 4
    %v1484 = vrot.slane %v911, 5
    %v1485 = vsel %vm1213, %v1483, %v1484
    %v1486 = vrot.slane %v908, 4
    %v1487 = vor.u32 %v1486, %v1484
    %v1488 = vrot.slane %v1487, 4
    %v1490 = vshll.u32 %v1198, 16
    %v1492 = vrot.slane %v1490, 5
    %v1493 = vsel %vm1213, %v1488, %v1492
    %v1494 = vrot.slane %v921, 4
    %v1495 = vrot.slane %v924, 5
    %v1496 = vor.u32 %v1494, %v1495
    %v1497 = vrot.slane %v1496, 4
    %v1498 = vrot.slane %v933, 5
    %v1499 = vsel %vm1213, %v1497, %v1498
    %v1500 = vrot.slane %v930, 4
    %v1501 = vor.u32 %v1500, %v1498
    %v1502 = vrot.slane %v1501, 4
    %v1504 = vshll.u32 %v1199, 16
    %v1506 = vrot.slane %v1504, 5
    %v1507 = vsel %vm1213, %v1502, %v1506
    %v1508 = vrot.slane %v943, 4
    %v1509 = vrot.slane %v946, 5
    %v1510 = vor.u32 %v1508, %v1509
    %v1511 = vrot.slane %v1510, 4
    %v1512 = vrot.slane %v955, 5
    %v1513 = vsel %vm1213, %v1511, %v1512
    %v1514 = vrot.slane %v952, 4
    %v1515 = vor.u32 %v1514, %v1512
    %v1516 = vrot.slane %v1515, 4
    %v1518 = vshll.u32 %v1200, 16
    %v1520 = vrot.slane %v1518, 5
    %v1521 = vsel %vm1213, %v1516, %v1520
    %v1522 = vrot.slane %v965, 4
    %v1523 = vrot.slane %v968, 5
    %v1524 = vor.u32 %v1522, %v1523
    %v1525 = vrot.slane %v1524, 4
    %v1526 = vrot.slane %v977, 5
    %v1527 = vsel %vm1213, %v1525, %v1526
    %v1528 = vrot.slane %v974, 4
    %v1529 = vor.u32 %v1528, %v1526
    %v1530 = vrot.slane %v1529, 4
    %v1532 = vshll.u32 %v1201, 16
    %v1534 = vrot.slane %v1532, 5
    %v1535 = vsel %vm1213, %v1530, %v1534
    %v1536 = vrot.slane %v987, 4
    %v1537 = vrot.slane %v990, 5
    %v1538 = vor.u32 %v1536, %v1537
    %v1539 = vrot.slane %v1538, 4
    %v1540 = vrot.slane %v999, 5
    %v1541 = vsel %vm1213, %v1539, %v1540
    %v1542 = vrot.slane %v996, 4
    %v1543 = vor.u32 %v1542, %v1540
    %v1544 = vrot.slane %v1543, 4
    %v1546 = vshll.u32 %v1202, 16
    %v1548 = vrot.slane %v1546, 5
    %v1549 = vsel %vm1213, %v1544, %v1548
    %v1550 = vrot.slane %v1009, 4
    %v1551 = vrot.slane %v1012, 5
    %v1552 = vor.u32 %v1550, %v1551
    %v1553 = vrot.slane %v1552, 4
    %v1554 = vrot.slane %v1021, 5
    %v1555 = vsel %vm1213, %v1553, %v1554
    %v1556 = vrot.slane %v1018, 4
    %v1557 = vor.u32 %v1556, %v1554
    %v1558 = vrot.slane %v1557, 4
    %v1560 = vshll.u32 %v1203, 16
    %v1562 = vrot.slane %v1560, 5
    %v1563 = vsel %vm1213, %v1558, %v1562
    %v1564 = vrot.slane %v1031, 4
    %v1565 = vrot.slane %v1034, 5
    %v1566 = vor.u32 %v1564, %v1565
    %v1567 = vrot.slane %v1566, 4
    %v1568 = vrot.slane %v1043, 5
    %v1569 = vsel %vm1213, %v1567, %v1568
    %v1570 = vrot.slane %v1040, 4
    %v1571 = vor.u32 %v1570, %v1568
    %v1572 = vrot.slane %v1571, 4
    %v1574 = vshll.u32 %v1204, 16
    %v1576 = vrot.slane %v1574, 5
    %v1577 = vsel %vm1213, %v1572, %v1576
    %v1578 = vrot.slane %v1053, 4
    %v1579 = vrot.slane %v1056, 5
    %v1580 = vor.u32 %v1578, %v1579
    %v1581 = vrot.slane %v1580, 4
    %v1582 = vrot.slane %v1065, 5
    %v1583 = vsel %vm1213, %v1581, %v1582
    %v1584 = vrot.slane %v1062, 4
    %v1585 = vor.u32 %v1584, %v1582
    %v1586 = vrot.slane %v1585, 4
    %v1588 = vshll.u32 %v1205, 16
    %v1590 = vrot.slane %v1588, 5
    %v1591 = vsel %vm1213, %v1586, %v1590
    %v1592 = vrot.slane %v1075, 4
    %v1593 = vrot.slane %v1078, 5
    %v1594 = vor.u32 %v1592, %v1593
    %v1595 = vrot.slane %v1594, 4
    %v1596 = vrot.slane %v1087, 5
    %v1597 = vsel %vm1213, %v1595, %v1596
    %v1598 = vrot.slane %v1084, 4
    %v1599 = vor.u32 %v1598, %v1596
    %v1600 = vrot.slane %v1599, 4
    %v1602 = vshll.u32 %v1206, 16
    %v1604 = vrot.slane %v1602, 5
    %v1605 = vsel %vm1213, %v1600, %v1604
    %v1606 = vrot.slane %v1097, 4
    %v1607 = vrot.slane %v1100, 5
    %v1608 = vor.u32 %v1606, %v1607
    %v1609 = vrot.slane %v1608, 4
    %v1610 = vrot.slane %v1109, 5
    %v1611 = vsel %vm1213, %v1609, %v1610
    %v1612 = vrot.slane %v1106, 4
    %v1613 = vor.u32 %v1612, %v1610
    %v1614 = vrot.slane %v1613, 4
    %v1616 = vshll.u32 %v1207, 16
    %v1618 = vrot.slane %v1616, 5
    %v1619 = vsel %vm1213, %v1614, %v1618
    %v1620 = vrot.slane %v1119, 4
    %v1621 = vrot.slane %v1122, 5
    %v1622 = vor.u32 %v1620, %v1621
    %v1623 = vrot.slane %v1622, 4
    %v1624 = vrot.slane %v1131, 5
    %v1625 = vsel %vm1213, %v1623, %v1624
    %v1626 = vrot.slane %v1128, 4
    %v1627 = vor.u32 %v1626, %v1624
    %v1628 = vrot.slane %v1627, 4
    %v1630 = vshll.u32 %v1208, 16
    %v1632 = vrot.slane %v1630, 5
    %v1633 = vsel %vm1213, %v1628, %v1632
    %v1634 = vrot.slane %v1141, 4
    %v1635 = vrot.slane %v1144, 5
    %v1636 = vor.u32 %v1634, %v1635
    %v1637 = vrot.slane %v1636, 4
    %v1638 = vrot.slane %v1153, 5
    %v1639 = vsel %vm1213, %v1637, %v1638
    %v1640 = vrot.slane %v1150, 4
    %v1641 = vor.u32 %v1640, %v1638
    %v1642 = vrot.slane %v1641, 4
    %v1644 = vshll.u32 %v1209, 16
    %v1646 = vrot.slane %v1644, 5
    %v1647 = vsel %vm1213, %v1642, %v1646
    %v1648 = vrot.slane %v1163, 4
    %v1649 = vrot.slane %v1166, 5
    %v1650 = vor.u32 %v1648, %v1649
    %v1651 = vrot.slane %v1650, 4
    %v1652 = vrot.slane %v1175, 5
    %v1653 = vsel %vm1213, %v1651, %v1652
    %v1654 = vrot.slane %v1172, 4
    %v1655 = vor.u32 %v1654, %v1652
    %v1656 = vrot.slane %v1655, 4
    %v1658 = vshll.u32 %v1210, 16
    %v1660 = vrot.slane %v1658, 5
    %v1661 = vsel %vm1213, %v1656, %v1660
    %v1662 = vld [vmem:[%s312] sm:$0x8]
    %v1663 = vld [vmem:[%s312 + $0x4] sm:$0xf]
    %v1664 = vld [vmem:[%s312 + $0x8] sm:$0xf]
    %v1665 = vld [vmem:[%s312 + $0x10] sm:$0x8]
    %v1666 = vld [vmem:[%s312 + $0x14] sm:$0xf]
    %v1667 = vld [vmem:[%s312 + $0x18] sm:$0xf]
    %v1668 = vld [vmem:[%s312 + $0x20] sm:$0x8]
    %v1669 = vld [vmem:[%s312 + $0x24] sm:$0xf]
    %v1670 = vld [vmem:[%s312 + $0x28] sm:$0xf]
    %v1671 = vld [vmem:[%s312 + $0x30] sm:$0x8]
    %v1672 = vld [vmem:[%s312 + $0x34] sm:$0xf]
    %v1673 = vld [vmem:[%s312 + $0x38] sm:$0xf]
    %v1674 = vld [vmem:[%s312 + $0x40] sm:$0x8]
    %v1675 = vld [vmem:[%s312 + $0x44] sm:$0xf]
    %v1676 = vld [vmem:[%s312 + $0x48] sm:$0xf]
    %v1677 = vld [vmem:[%s312 + $0x50] sm:$0x8]
    %v1678 = vld [vmem:[%s312 + $0x54] sm:$0xf]
    %v1679 = vld [vmem:[%s312 + $0x58] sm:$0xf]
    %v1680 = vld [vmem:[%s312 + $0x60] sm:$0x8]
    %v1681 = vld [vmem:[%s312 + $0x64] sm:$0xf]
    %v1682 = vld [vmem:[%s312 + $0x68] sm:$0xf]
    %v1683 = vld [vmem:[%s312 + $0x70] sm:$0x8]
    %v1684 = vld [vmem:[%s312 + $0x74] sm:$0xf]
    %v1685 = vld [vmem:[%s312 + $0x78] sm:$0xf]
    %v1686 = vld [vmem:[%s312 + $0x80] sm:$0x8]
    %v1687 = vld [vmem:[%s312 + $0x84] sm:$0xf]
    %v1688 = vld [vmem:[%s312 + $0x88] sm:$0xf]
    %v1689 = vld [vmem:[%s312 + $0x90] sm:$0x8]
    %v1690 = vld [vmem:[%s312 + $0x94] sm:$0xf]
    %v1691 = vld [vmem:[%s312 + $0x98] sm:$0xf]
    %v1692 = vld [vmem:[%s312 + $0xa0] sm:$0x8]
    %v1693 = vld [vmem:[%s312 + $0xa4] sm:$0xf]
    %v1694 = vld [vmem:[%s312 + $0xa8] sm:$0xf]
    %v1695 = vld [vmem:[%s312 + $0xb0] sm:$0x8]
    %v1696 = vld [vmem:[%s312 + $0xb4] sm:$0xf]
    %v1697 = vld [vmem:[%s312 + $0xb8] sm:$0xf]
    %v1698 = vld [vmem:[%s312 + $0xc0] sm:$0x8]
    %v1699 = vld [vmem:[%s312 + $0xc4] sm:$0xf]
    %v1700 = vld [vmem:[%s312 + $0xc8] sm:$0xf]
    %v1701 = vld [vmem:[%s312 + $0xd0] sm:$0x8]
    %v1702 = vld [vmem:[%s312 + $0xd4] sm:$0xf]
    %v1703 = vld [vmem:[%s312 + $0xd8] sm:$0xf]
    %v1704 = vld [vmem:[%s312 + $0xe0] sm:$0x8]
    %v1705 = vld [vmem:[%s312 + $0xe4] sm:$0xf]
    %v1706 = vld [vmem:[%s312 + $0xe8] sm:$0xf]
    %v1707 = vld [vmem:[%s312 + $0xf0] sm:$0x8]
    %v1708 = vld [vmem:[%s312 + $0xf4] sm:$0xf]
    %v1709 = vld [vmem:[%s312 + $0xf8] sm:$0xf]
    %v1710 = vld [vmem:[%s312 + $0x120] sm:$0x8]
    %v1711 = vld [vmem:[%s312 + $0x124] sm:$0xf]
    %v1712 = vld [vmem:[%s312 + $0x128] sm:$0xf]
    %v1713 = vld [vmem:[%s312 + $0x130] sm:$0x8]
    %v1714 = vld [vmem:[%s312 + $0x134] sm:$0xf]
    %v1715 = vld [vmem:[%s312 + $0x138] sm:$0xf]
    %v1716 = vld [vmem:[%s312 + $0x140] sm:$0x8]
    %v1717 = vld [vmem:[%s312 + $0x144] sm:$0xf]
    %v1718 = vld [vmem:[%s312 + $0x148] sm:$0xf]
    %v1719 = vld [vmem:[%s312 + $0x150] sm:$0x8]
    %v1720 = vld [vmem:[%s312 + $0x154] sm:$0xf]
    %v1721 = vld [vmem:[%s312 + $0x158] sm:$0xf]
    %v1722 = vld [vmem:[%s312 + $0x160] sm:$0x8]
    %v1723 = vld [vmem:[%s312 + $0x164] sm:$0xf]
    %v1724 = vld [vmem:[%s312 + $0x168] sm:$0xf]
    %v1725 = vld [vmem:[%s312 + $0x170] sm:$0x8]
    %v1726 = vld [vmem:[%s312 + $0x174] sm:$0xf]
    %v1727 = vld [vmem:[%s312 + $0x178] sm:$0xf]
    %v1728 = vld [vmem:[%s312 + $0x180] sm:$0x8]
    %v1729 = vld [vmem:[%s312 + $0x184] sm:$0xf]
    %v1730 = vld [vmem:[%s312 + $0x188] sm:$0xf]
    %v1731 = vld [vmem:[%s312 + $0x190] sm:$0x8]
    %v1732 = vld [vmem:[%s312 + $0x194] sm:$0xf]
    %v1733 = vld [vmem:[%s312 + $0x198] sm:$0xf]
    %v1734 = vld [vmem:[%s312 + $0x1a0] sm:$0x8]
    %v1735 = vld [vmem:[%s312 + $0x1a4] sm:$0xf]
    %v1736 = vld [vmem:[%s312 + $0x1a8] sm:$0xf]
    %v1737 = vld [vmem:[%s312 + $0x1b0] sm:$0x8]
    %v1738 = vld [vmem:[%s312 + $0x1b4] sm:$0xf]
    %v1739 = vld [vmem:[%s312 + $0x1b8] sm:$0xf]
    %v1740 = vld [vmem:[%s312 + $0x1c0] sm:$0x8]
    %v1741 = vld [vmem:[%s312 + $0x1c4] sm:$0xf]
    %v1742 = vld [vmem:[%s312 + $0x1c8] sm:$0xf]
    %v1743 = vld [vmem:[%s312 + $0x1d0] sm:$0x8]
    %v1744 = vld [vmem:[%s312 + $0x1d4] sm:$0xf]
    %v1745 = vld [vmem:[%s312 + $0x1d8] sm:$0xf]
    %v1746 = vld [vmem:[%s312 + $0x1e0] sm:$0x8]
    %v1747 = vld [vmem:[%s312 + $0x1e4] sm:$0xf]
    %v1748 = vld [vmem:[%s312 + $0x1e8] sm:$0xf]
    %v1749 = vld [vmem:[%s312 + $0x1f0] sm:$0x8]
    %v1750 = vld [vmem:[%s312 + $0x1f4] sm:$0xf]
    %v1751 = vld [vmem:[%s312 + $0x1f8] sm:$0xf]
    %v1752 = vld [vmem:[%s312 + $0x200] sm:$0x8]
    %v1753 = vld [vmem:[%s312 + $0x204] sm:$0xf]
    %v1754 = vld [vmem:[%s312 + $0x208] sm:$0xf]
    %v1755 = vld [vmem:[%s312 + $0x210] sm:$0x8]
    %v1756 = vld [vmem:[%s312 + $0x214] sm:$0xf]
    %v1757 = vld [vmem:[%s312 + $0x218] sm:$0xf]
    %v1759 = vshrl.u32 %v1662, 16
    %v1761 = vrot.slane %v1759, 7
    %v1762 = vrot.slane %v1761, 4
    %v1764 = vshrl.u32 %v1663, 16
    %v1766 = vrot.slane %v1764, 7
    %v1767 = vshll.u32 %v1663, 16
    %v1769 = vor.u32 %v1766, %v1767
    %v1770 = vsel %vm474, %v1762, %v1769
    %v1771 = vrot.slane %v1766, 4
    %v1773 = vshrl.u32 %v1664, 16
    %v1775 = vrot.slane %v1773, 7
    %v1776 = vshll.u32 %v1664, 16
    %v1778 = vor.u32 %v1775, %v1776
    %v1779 = vsel %vm474, %v1771, %v1778
    %v1781 = vshrl.u32 %v1665, 16
    %v1783 = vrot.slane %v1781, 7
    %v1784 = vrot.slane %v1783, 4
    %v1786 = vshrl.u32 %v1666, 16
    %v1788 = vrot.slane %v1786, 7
    %v1789 = vshll.u32 %v1666, 16
    %v1791 = vor.u32 %v1788, %v1789
    %v1792 = vsel %vm474, %v1784, %v1791
    %v1793 = vrot.slane %v1788, 4
    %v1795 = vshrl.u32 %v1667, 16
    %v1797 = vrot.slane %v1795, 7
    %v1798 = vshll.u32 %v1667, 16
    %v1800 = vor.u32 %v1797, %v1798
    %v1801 = vsel %vm474, %v1793, %v1800
    %v1803 = vshrl.u32 %v1668, 16
    %v1805 = vrot.slane %v1803, 7
    %v1806 = vrot.slane %v1805, 4
    %v1808 = vshrl.u32 %v1669, 16
    %v1810 = vrot.slane %v1808, 7
    %v1811 = vshll.u32 %v1669, 16
    %v1813 = vor.u32 %v1810, %v1811
    %v1814 = vsel %vm474, %v1806, %v1813
    %v1815 = vrot.slane %v1810, 4
    %v1817 = vshrl.u32 %v1670, 16
    %v1819 = vrot.slane %v1817, 7
    %v1820 = vshll.u32 %v1670, 16
    %v1822 = vor.u32 %v1819, %v1820
    %v1823 = vsel %vm474, %v1815, %v1822
    %v1825 = vshrl.u32 %v1671, 16
    %v1827 = vrot.slane %v1825, 7
    %v1828 = vrot.slane %v1827, 4
    %v1830 = vshrl.u32 %v1672, 16
    %v1832 = vrot.slane %v1830, 7
    %v1833 = vshll.u32 %v1672, 16
    %v1835 = vor.u32 %v1832, %v1833
    %v1836 = vsel %vm474, %v1828, %v1835
    %v1837 = vrot.slane %v1832, 4
    %v1839 = vshrl.u32 %v1673, 16
    %v1841 = vrot.slane %v1839, 7
    %v1842 = vshll.u32 %v1673, 16
    %v1844 = vor.u32 %v1841, %v1842
    %v1845 = vsel %vm474, %v1837, %v1844
    %v1847 = vshrl.u32 %v1674, 16
    %v1849 = vrot.slane %v1847, 7
    %v1850 = vrot.slane %v1849, 4
    %v1852 = vshrl.u32 %v1675, 16
    %v1854 = vrot.slane %v1852, 7
    %v1855 = vshll.u32 %v1675, 16
    %v1857 = vor.u32 %v1854, %v1855
    %v1858 = vsel %vm474, %v1850, %v1857
    %v1859 = vrot.slane %v1854, 4
    %v1861 = vshrl.u32 %v1676, 16
    %v1863 = vrot.slane %v1861, 7
    %v1864 = vshll.u32 %v1676, 16
    %v1866 = vor.u32 %v1863, %v1864
    %v1867 = vsel %vm474, %v1859, %v1866
    %v1869 = vshrl.u32 %v1677, 16
    %v1871 = vrot.slane %v1869, 7
    %v1872 = vrot.slane %v1871, 4
    %v1874 = vshrl.u32 %v1678, 16
    %v1876 = vrot.slane %v1874, 7
    %v1877 = vshll.u32 %v1678, 16
    %v1879 = vor.u32 %v1876, %v1877
    %v1880 = vsel %vm474, %v1872, %v1879
    %v1881 = vrot.slane %v1876, 4
    %v1883 = vshrl.u32 %v1679, 16
    %v1885 = vrot.slane %v1883, 7
    %v1886 = vshll.u32 %v1679, 16
    %v1888 = vor.u32 %v1885, %v1886
    %v1889 = vsel %vm474, %v1881, %v1888
    %v1891 = vshrl.u32 %v1680, 16
    %v1893 = vrot.slane %v1891, 7
    %v1894 = vrot.slane %v1893, 4
    %v1896 = vshrl.u32 %v1681, 16
    %v1898 = vrot.slane %v1896, 7
    %v1899 = vshll.u32 %v1681, 16
    %v1901 = vor.u32 %v1898, %v1899
    %v1902 = vsel %vm474, %v1894, %v1901
    %v1903 = vrot.slane %v1898, 4
    %v1905 = vshrl.u32 %v1682, 16
    %v1907 = vrot.slane %v1905, 7
    %v1908 = vshll.u32 %v1682, 16
    %v1910 = vor.u32 %v1907, %v1908
    %v1911 = vsel %vm474, %v1903, %v1910
    %v1913 = vshrl.u32 %v1683, 16
    %v1915 = vrot.slane %v1913, 7
    %v1916 = vrot.slane %v1915, 4
    %v1918 = vshrl.u32 %v1684, 16
    %v1920 = vrot.slane %v1918, 7
    %v1921 = vshll.u32 %v1684, 16
    %v1923 = vor.u32 %v1920, %v1921
    %v1924 = vsel %vm474, %v1916, %v1923
    %v1925 = vrot.slane %v1920, 4
    %v1927 = vshrl.u32 %v1685, 16
    %v1929 = vrot.slane %v1927, 7
    %v1930 = vshll.u32 %v1685, 16
    %v1932 = vor.u32 %v1929, %v1930
    %v1933 = vsel %vm474, %v1925, %v1932
    %v1935 = vshrl.u32 %v1686, 16
    %v1937 = vrot.slane %v1935, 7
    %v1938 = vrot.slane %v1937, 4
    %v1940 = vshrl.u32 %v1687, 16
    %v1942 = vrot.slane %v1940, 7
    %v1943 = vshll.u32 %v1687, 16
    %v1945 = vor.u32 %v1942, %v1943
    %v1946 = vsel %vm474, %v1938, %v1945
    %v1947 = vrot.slane %v1942, 4
    %v1949 = vshrl.u32 %v1688, 16
    %v1951 = vrot.slane %v1949, 7
    %v1952 = vshll.u32 %v1688, 16
    %v1954 = vor.u32 %v1951, %v1952
    %v1955 = vsel %vm474, %v1947, %v1954
    %v1957 = vshrl.u32 %v1689, 16
    %v1959 = vrot.slane %v1957, 7
    %v1960 = vrot.slane %v1959, 4
    %v1962 = vshrl.u32 %v1690, 16
    %v1964 = vrot.slane %v1962, 7
    %v1965 = vshll.u32 %v1690, 16
    %v1967 = vor.u32 %v1964, %v1965
    %v1968 = vsel %vm474, %v1960, %v1967
    %v1969 = vrot.slane %v1964, 4
    %v1971 = vshrl.u32 %v1691, 16
    %v1973 = vrot.slane %v1971, 7
    %v1974 = vshll.u32 %v1691, 16
    %v1976 = vor.u32 %v1973, %v1974
    %v1977 = vsel %vm474, %v1969, %v1976
    %v1979 = vshrl.u32 %v1692, 16
    %v1981 = vrot.slane %v1979, 7
    %v1982 = vrot.slane %v1981, 4
    %v1984 = vshrl.u32 %v1693, 16
    %v1986 = vrot.slane %v1984, 7
    %v1987 = vshll.u32 %v1693, 16
    %v1989 = vor.u32 %v1986, %v1987
    %v1990 = vsel %vm474, %v1982, %v1989
    %v1991 = vrot.slane %v1986, 4
    %v1993 = vshrl.u32 %v1694, 16
    %v1995 = vrot.slane %v1993, 7
    %v1996 = vshll.u32 %v1694, 16
    %v1998 = vor.u32 %v1995, %v1996
    %v1999 = vsel %vm474, %v1991, %v1998
    %v2001 = vshrl.u32 %v1695, 16
    %v2003 = vrot.slane %v2001, 7
    %v2004 = vrot.slane %v2003, 4
    %v2006 = vshrl.u32 %v1696, 16
    %v2008 = vrot.slane %v2006, 7
    %v2009 = vshll.u32 %v1696, 16
    %v2011 = vor.u32 %v2008, %v2009
    %v2012 = vsel %vm474, %v2004, %v2011
    %v2013 = vrot.slane %v2008, 4
    %v2015 = vshrl.u32 %v1697, 16
    %v2017 = vrot.slane %v2015, 7
    %v2018 = vshll.u32 %v1697, 16
    %v2020 = vor.u32 %v2017, %v2018
    %v2021 = vsel %vm474, %v2013, %v2020
    %v2023 = vshrl.u32 %v1698, 16
    %v2025 = vrot.slane %v2023, 7
    %v2026 = vrot.slane %v2025, 4
    %v2028 = vshrl.u32 %v1699, 16
    %v2030 = vrot.slane %v2028, 7
    %v2031 = vshll.u32 %v1699, 16
    %v2033 = vor.u32 %v2030, %v2031
    %v2034 = vsel %vm474, %v2026, %v2033
    %v2035 = vrot.slane %v2030, 4
    %v2037 = vshrl.u32 %v1700, 16
    %v2039 = vrot.slane %v2037, 7
    %v2040 = vshll.u32 %v1700, 16
    %v2042 = vor.u32 %v2039, %v2040
    %v2043 = vsel %vm474, %v2035, %v2042
    %v2045 = vshrl.u32 %v1701, 16
    %v2047 = vrot.slane %v2045, 7
    %v2048 = vrot.slane %v2047, 4
    %v2050 = vshrl.u32 %v1702, 16
    %v2052 = vrot.slane %v2050, 7
    %v2053 = vshll.u32 %v1702, 16
    %v2055 = vor.u32 %v2052, %v2053
    %v2056 = vsel %vm474, %v2048, %v2055
    %v2057 = vrot.slane %v2052, 4
    %v2059 = vshrl.u32 %v1703, 16
    %v2061 = vrot.slane %v2059, 7
    %v2062 = vshll.u32 %v1703, 16
    %v2064 = vor.u32 %v2061, %v2062
    %v2065 = vsel %vm474, %v2057, %v2064
    %v2067 = vshrl.u32 %v1704, 16
    %v2069 = vrot.slane %v2067, 7
    %v2070 = vrot.slane %v2069, 4
    %v2072 = vshrl.u32 %v1705, 16
    %v2074 = vrot.slane %v2072, 7
    %v2075 = vshll.u32 %v1705, 16
    %v2077 = vor.u32 %v2074, %v2075
    %v2078 = vsel %vm474, %v2070, %v2077
    %v2079 = vrot.slane %v2074, 4
    %v2081 = vshrl.u32 %v1706, 16
    %v2083 = vrot.slane %v2081, 7
    %v2084 = vshll.u32 %v1706, 16
    %v2086 = vor.u32 %v2083, %v2084
    %v2087 = vsel %vm474, %v2079, %v2086
    %v2089 = vshrl.u32 %v1707, 16
    %v2091 = vrot.slane %v2089, 7
    %v2092 = vrot.slane %v2091, 4
    %v2094 = vshrl.u32 %v1708, 16
    %v2096 = vrot.slane %v2094, 7
    %v2097 = vshll.u32 %v1708, 16
    %v2099 = vor.u32 %v2096, %v2097
    %v2100 = vsel %vm474, %v2092, %v2099
    %v2101 = vrot.slane %v2096, 4
    %v2103 = vshrl.u32 %v1709, 16
    %v2105 = vrot.slane %v2103, 7
    %v2106 = vshll.u32 %v1709, 16
    %v2108 = vor.u32 %v2105, %v2106
    %v2109 = vsel %vm474, %v2101, %v2108
    %v2111 = vshrl.u32 %v1710, 16
    %v2113 = vrot.slane %v2111, 7
    %v2114 = vrot.slane %v2113, 4
    %v2116 = vshrl.u32 %v1711, 16
    %v2118 = vrot.slane %v2116, 7
    %v2119 = vshll.u32 %v1711, 16
    %v2121 = vor.u32 %v2118, %v2119
    %v2122 = vsel %vm474, %v2114, %v2121
    %v2123 = vrot.slane %v2118, 4
    %v2125 = vshrl.u32 %v1712, 16
    %v2127 = vrot.slane %v2125, 7
    %v2128 = vshll.u32 %v1712, 16
    %v2130 = vor.u32 %v2127, %v2128
    %v2131 = vsel %vm474, %v2123, %v2130
    %v2133 = vshrl.u32 %v1713, 16
    %v2135 = vrot.slane %v2133, 7
    %v2136 = vrot.slane %v2135, 4
    %v2138 = vshrl.u32 %v1714, 16
    %v2140 = vrot.slane %v2138, 7
    %v2141 = vshll.u32 %v1714, 16
    %v2143 = vor.u32 %v2140, %v2141
    %v2144 = vsel %vm474, %v2136, %v2143
    %v2145 = vrot.slane %v2140, 4
    %v2147 = vshrl.u32 %v1715, 16
    %v2149 = vrot.slane %v2147, 7
    %v2150 = vshll.u32 %v1715, 16
    %v2152 = vor.u32 %v2149, %v2150
    %v2153 = vsel %vm474, %v2145, %v2152
    %v2155 = vshrl.u32 %v1716, 16
    %v2157 = vrot.slane %v2155, 7
    %v2158 = vrot.slane %v2157, 4
    %v2160 = vshrl.u32 %v1717, 16
    %v2162 = vrot.slane %v2160, 7
    %v2163 = vshll.u32 %v1717, 16
    %v2165 = vor.u32 %v2162, %v2163
    %v2166 = vsel %vm474, %v2158, %v2165
    %v2167 = vrot.slane %v2162, 4
    %v2169 = vshrl.u32 %v1718, 16
    %v2171 = vrot.slane %v2169, 7
    %v2172 = vshll.u32 %v1718, 16
    %v2174 = vor.u32 %v2171, %v2172
    %v2175 = vsel %vm474, %v2167, %v2174
    %v2177 = vshrl.u32 %v1719, 16
    %v2179 = vrot.slane %v2177, 7
    %v2180 = vrot.slane %v2179, 4
    %v2182 = vshrl.u32 %v1720, 16
    %v2184 = vrot.slane %v2182, 7
    %v2185 = vshll.u32 %v1720, 16
    %v2187 = vor.u32 %v2184, %v2185
    %v2188 = vsel %vm474, %v2180, %v2187
    %v2189 = vrot.slane %v2184, 4
    %v2191 = vshrl.u32 %v1721, 16
    %v2193 = vrot.slane %v2191, 7
    %v2194 = vshll.u32 %v1721, 16
    %v2196 = vor.u32 %v2193, %v2194
    %v2197 = vsel %vm474, %v2189, %v2196
    %v2199 = vshrl.u32 %v1722, 16
    %v2201 = vrot.slane %v2199, 7
    %v2202 = vrot.slane %v2201, 4
    %v2204 = vshrl.u32 %v1723, 16
    %v2206 = vrot.slane %v2204, 7
    %v2207 = vshll.u32 %v1723, 16
    %v2209 = vor.u32 %v2206, %v2207
    %v2210 = vsel %vm474, %v2202, %v2209
    %v2211 = vrot.slane %v2206, 4
    %v2213 = vshrl.u32 %v1724, 16
    %v2215 = vrot.slane %v2213, 7
    %v2216 = vshll.u32 %v1724, 16
    %v2218 = vor.u32 %v2215, %v2216
    %v2219 = vsel %vm474, %v2211, %v2218
    %v2221 = vshrl.u32 %v1725, 16
    %v2223 = vrot.slane %v2221, 7
    %v2224 = vrot.slane %v2223, 4
    %v2226 = vshrl.u32 %v1726, 16
    %v2228 = vrot.slane %v2226, 7
    %v2229 = vshll.u32 %v1726, 16
    %v2231 = vor.u32 %v2228, %v2229
    %v2232 = vsel %vm474, %v2224, %v2231
    %v2233 = vrot.slane %v2228, 4
    %v2235 = vshrl.u32 %v1727, 16
    %v2237 = vrot.slane %v2235, 7
    %v2238 = vshll.u32 %v1727, 16
    %v2240 = vor.u32 %v2237, %v2238
    %v2241 = vsel %vm474, %v2233, %v2240
    %v2243 = vshrl.u32 %v1728, 16
    %v2245 = vrot.slane %v2243, 7
    %v2246 = vrot.slane %v2245, 4
    %v2248 = vshrl.u32 %v1729, 16
    %v2250 = vrot.slane %v2248, 7
    %v2251 = vshll.u32 %v1729, 16
    %v2253 = vor.u32 %v2250, %v2251
    %v2254 = vsel %vm474, %v2246, %v2253
    %v2255 = vrot.slane %v2250, 4
    %v2257 = vshrl.u32 %v1730, 16
    %v2259 = vrot.slane %v2257, 7
    %v2260 = vshll.u32 %v1730, 16
    %v2262 = vor.u32 %v2259, %v2260
    %v2263 = vsel %vm474, %v2255, %v2262
    %v2265 = vshrl.u32 %v1731, 16
    %v2267 = vrot.slane %v2265, 7
    %v2268 = vrot.slane %v2267, 4
    %v2270 = vshrl.u32 %v1732, 16
    %v2272 = vrot.slane %v2270, 7
    %v2273 = vshll.u32 %v1732, 16
    %v2275 = vor.u32 %v2272, %v2273
    %v2276 = vsel %vm474, %v2268, %v2275
    %v2277 = vrot.slane %v2272, 4
    %v2279 = vshrl.u32 %v1733, 16
    %v2281 = vrot.slane %v2279, 7
    %v2282 = vshll.u32 %v1733, 16
    %v2284 = vor.u32 %v2281, %v2282
    %v2285 = vsel %vm474, %v2277, %v2284
    %v2287 = vshrl.u32 %v1734, 16
    %v2289 = vrot.slane %v2287, 7
    %v2290 = vrot.slane %v2289, 4
    %v2292 = vshrl.u32 %v1735, 16
    %v2294 = vrot.slane %v2292, 7
    %v2295 = vshll.u32 %v1735, 16
    %v2297 = vor.u32 %v2294, %v2295
    %v2298 = vsel %vm474, %v2290, %v2297
    %v2299 = vrot.slane %v2294, 4
    %v2301 = vshrl.u32 %v1736, 16
    %v2303 = vrot.slane %v2301, 7
    %v2304 = vshll.u32 %v1736, 16
    %v2306 = vor.u32 %v2303, %v2304
    %v2307 = vsel %vm474, %v2299, %v2306
    %v2309 = vshrl.u32 %v1737, 16
    %v2311 = vrot.slane %v2309, 7
    %v2312 = vrot.slane %v2311, 4
    %v2314 = vshrl.u32 %v1738, 16
    %v2316 = vrot.slane %v2314, 7
    %v2317 = vshll.u32 %v1738, 16
    %v2319 = vor.u32 %v2316, %v2317
    %v2320 = vsel %vm474, %v2312, %v2319
    %v2321 = vrot.slane %v2316, 4
    %v2323 = vshrl.u32 %v1739, 16
    %v2325 = vrot.slane %v2323, 7
    %v2326 = vshll.u32 %v1739, 16
    %v2328 = vor.u32 %v2325, %v2326
    %v2329 = vsel %vm474, %v2321, %v2328
    %v2331 = vshrl.u32 %v1740, 16
    %v2333 = vrot.slane %v2331, 7
    %v2334 = vrot.slane %v2333, 4
    %v2336 = vshrl.u32 %v1741, 16
    %v2338 = vrot.slane %v2336, 7
    %v2339 = vshll.u32 %v1741, 16
    %v2341 = vor.u32 %v2338, %v2339
    %v2342 = vsel %vm474, %v2334, %v2341
    %v2343 = vrot.slane %v2338, 4
    %v2345 = vshrl.u32 %v1742, 16
    %v2347 = vrot.slane %v2345, 7
    %v2348 = vshll.u32 %v1742, 16
    %v2350 = vor.u32 %v2347, %v2348
    %v2351 = vsel %vm474, %v2343, %v2350
    %v2353 = vshrl.u32 %v1743, 16
    %v2355 = vrot.slane %v2353, 7
    %v2356 = vrot.slane %v2355, 4
    %v2358 = vshrl.u32 %v1744, 16
    %v2360 = vrot.slane %v2358, 7
    %v2361 = vshll.u32 %v1744, 16
    %v2363 = vor.u32 %v2360, %v2361
    %v2364 = vsel %vm474, %v2356, %v2363
    %v2365 = vrot.slane %v2360, 4
    %v2367 = vshrl.u32 %v1745, 16
    %v2369 = vrot.slane %v2367, 7
    %v2370 = vshll.u32 %v1745, 16
    %v2372 = vor.u32 %v2369, %v2370
    %v2373 = vsel %vm474, %v2365, %v2372
    %v2375 = vshrl.u32 %v1746, 16
    %v2377 = vrot.slane %v2375, 7
    %v2378 = vrot.slane %v2377, 4
    %v2380 = vshrl.u32 %v1747, 16
    %v2382 = vrot.slane %v2380, 7
    %v2383 = vshll.u32 %v1747, 16
    %v2385 = vor.u32 %v2382, %v2383
    %v2386 = vsel %vm474, %v2378, %v2385
    %v2387 = vrot.slane %v2382, 4
    %v2389 = vshrl.u32 %v1748, 16
    %v2391 = vrot.slane %v2389, 7
    %v2392 = vshll.u32 %v1748, 16
    %v2394 = vor.u32 %v2391, %v2392
    %v2395 = vsel %vm474, %v2387, %v2394
    %v2397 = vshrl.u32 %v1749, 16
    %v2399 = vrot.slane %v2397, 7
    %v2400 = vrot.slane %v2399, 4
    %v2402 = vshrl.u32 %v1750, 16
    %v2404 = vrot.slane %v2402, 7
    %v2405 = vshll.u32 %v1750, 16
    %v2407 = vor.u32 %v2404, %v2405
    %v2408 = vsel %vm474, %v2400, %v2407
    %v2409 = vrot.slane %v2404, 4
    %v2411 = vshrl.u32 %v1751, 16
    %v2413 = vrot.slane %v2411, 7
    %v2414 = vshll.u32 %v1751, 16
    %v2416 = vor.u32 %v2413, %v2414
    %v2417 = vsel %vm474, %v2409, %v2416
    %v2419 = vshrl.u32 %v1752, 16
    %v2421 = vrot.slane %v2419, 7
    %v2422 = vrot.slane %v2421, 4
    %v2424 = vshrl.u32 %v1753, 16
    %v2426 = vrot.slane %v2424, 7
    %v2427 = vshll.u32 %v1753, 16
    %v2429 = vor.u32 %v2426, %v2427
    %v2430 = vsel %vm474, %v2422, %v2429
    %v2431 = vrot.slane %v2426, 4
    %v2433 = vshrl.u32 %v1754, 16
    %v2435 = vrot.slane %v2433, 7
    %v2436 = vshll.u32 %v1754, 16
    %v2438 = vor.u32 %v2435, %v2436
    %v2439 = vsel %vm474, %v2431, %v2438
    %v2441 = vshrl.u32 %v1755, 16
    %v2443 = vrot.slane %v2441, 7
    %v2444 = vrot.slane %v2443, 4
    %v2446 = vshrl.u32 %v1756, 16
    %v2448 = vrot.slane %v2446, 7
    %v2449 = vshll.u32 %v1756, 16
    %v2451 = vor.u32 %v2448, %v2449
    %v2452 = vsel %vm474, %v2444, %v2451
    %v2453 = vrot.slane %v2448, 4
    %v2455 = vshrl.u32 %v1757, 16
    %v2457 = vrot.slane %v2455, 7
    %v2458 = vshll.u32 %v1757, 16
    %v2460 = vor.u32 %v2457, %v2458
    %v2461 = vsel %vm474, %v2453, %v2460
    %v2462 = vld [vmem:[%s312 + $0xc] sm:$0x1]
    %v2463 = vld [vmem:[%s312 + $0x1c] sm:$0x1]
    %v2464 = vld [vmem:[%s312 + $0x2c] sm:$0x1]
    %v2465 = vld [vmem:[%s312 + $0x3c] sm:$0x1]
    %v2466 = vld [vmem:[%s312 + $0x4c] sm:$0x1]
    %v2467 = vld [vmem:[%s312 + $0x5c] sm:$0x1]
    %v2468 = vld [vmem:[%s312 + $0x6c] sm:$0x1]
    %v2469 = vld [vmem:[%s312 + $0x7c] sm:$0x1]
    %v2470 = vld [vmem:[%s312 + $0x8c] sm:$0x1]
    %v2471 = vld [vmem:[%s312 + $0x9c] sm:$0x1]
    %v2472 = vld [vmem:[%s312 + $0xac] sm:$0x1]
    %v2473 = vld [vmem:[%s312 + $0xbc] sm:$0x1]
    %v2474 = vld [vmem:[%s312 + $0xcc] sm:$0x1]
    %v2475 = vld [vmem:[%s312 + $0xdc] sm:$0x1]
    %v2476 = vld [vmem:[%s312 + $0xec] sm:$0x1]
    %v2477 = vld [vmem:[%s312 + $0xfc] sm:$0x1]
    %v2478 = vld [vmem:[%s312 + $0x12c] sm:$0x1]
    %v2479 = vld [vmem:[%s312 + $0x13c] sm:$0x1]
    %v2480 = vld [vmem:[%s312 + $0x14c] sm:$0x1]
    %v2481 = vld [vmem:[%s312 + $0x15c] sm:$0x1]
    %v2482 = vld [vmem:[%s312 + $0x16c] sm:$0x1]
    %v2483 = vld [vmem:[%s312 + $0x17c] sm:$0x1]
    %v2484 = vld [vmem:[%s312 + $0x18c] sm:$0x1]
    %v2485 = vld [vmem:[%s312 + $0x19c] sm:$0x1]
    %v2486 = vld [vmem:[%s312 + $0x1ac] sm:$0x1]
    %v2487 = vld [vmem:[%s312 + $0x1bc] sm:$0x1]
    %v2488 = vld [vmem:[%s312 + $0x1cc] sm:$0x1]
    %v2489 = vld [vmem:[%s312 + $0x1dc] sm:$0x1]
    %v2490 = vld [vmem:[%s312 + $0x1ec] sm:$0x1]
    %v2491 = vld [vmem:[%s312 + $0x1fc] sm:$0x1]
    %v2492 = vld [vmem:[%s312 + $0x20c] sm:$0x1]
    %v2493 = vld [vmem:[%s312 + $0x21c] sm:$0x1]
    %v2494 = vrot.slane %v1764, 4
    %v2495 = vrot.slane %v1767, 5
    %v2496 = vor.u32 %v2494, %v2495
    %v2497 = vrot.slane %v2496, 4
    %v2498 = vrot.slane %v1776, 5
    %v2499 = vsel %vm1213, %v2497, %v2498
    %v2500 = vrot.slane %v1773, 4
    %v2501 = vor.u32 %v2500, %v2498
    %v2502 = vrot.slane %v2501, 4
    %v2504 = vshll.u32 %v2462, 16
    %v2506 = vrot.slane %v2504, 5
    %v2507 = vsel %vm1213, %v2502, %v2506
    %v2508 = vrot.slane %v1786, 4
    %v2509 = vrot.slane %v1789, 5
    %v2510 = vor.u32 %v2508, %v2509
    %v2511 = vrot.slane %v2510, 4
    %v2512 = vrot.slane %v1798, 5
    %v2513 = vsel %vm1213, %v2511, %v2512
    %v2514 = vrot.slane %v1795, 4
    %v2515 = vor.u32 %v2514, %v2512
    %v2516 = vrot.slane %v2515, 4
    %v2518 = vshll.u32 %v2463, 16
    %v2520 = vrot.slane %v2518, 5
    %v2521 = vsel %vm1213, %v2516, %v2520
    %v2522 = vrot.slane %v1808, 4
    %v2523 = vrot.slane %v1811, 5
    %v2524 = vor.u32 %v2522, %v2523
    %v2525 = vrot.slane %v2524, 4
    %v2526 = vrot.slane %v1820, 5
    %v2527 = vsel %vm1213, %v2525, %v2526
    %v2528 = vrot.slane %v1817, 4
    %v2529 = vor.u32 %v2528, %v2526
    %v2530 = vrot.slane %v2529, 4
    %v2532 = vshll.u32 %v2464, 16
    %v2534 = vrot.slane %v2532, 5
    %v2535 = vsel %vm1213, %v2530, %v2534
    %v2536 = vrot.slane %v1830, 4
    %v2537 = vrot.slane %v1833, 5
    %v2538 = vor.u32 %v2536, %v2537
    %v2539 = vrot.slane %v2538, 4
    %v2540 = vrot.slane %v1842, 5
    %v2541 = vsel %vm1213, %v2539, %v2540
    %v2542 = vrot.slane %v1839, 4
    %v2543 = vor.u32 %v2542, %v2540
    %v2544 = vrot.slane %v2543, 4
    %v2546 = vshll.u32 %v2465, 16
    %v2548 = vrot.slane %v2546, 5
    %v2549 = vsel %vm1213, %v2544, %v2548
    %v2550 = vrot.slane %v1852, 4
    %v2551 = vrot.slane %v1855, 5
    %v2552 = vor.u32 %v2550, %v2551
    %v2553 = vrot.slane %v2552, 4
    %v2554 = vrot.slane %v1864, 5
    %v2555 = vsel %vm1213, %v2553, %v2554
    %v2556 = vrot.slane %v1861, 4
    %v2557 = vor.u32 %v2556, %v2554
    %v2558 = vrot.slane %v2557, 4
    %v2560 = vshll.u32 %v2466, 16
    %v2562 = vrot.slane %v2560, 5
    %v2563 = vsel %vm1213, %v2558, %v2562
    %v2564 = vrot.slane %v1874, 4
    %v2565 = vrot.slane %v1877, 5
    %v2566 = vor.u32 %v2564, %v2565
    %v2567 = vrot.slane %v2566, 4
    %v2568 = vrot.slane %v1886, 5
    %v2569 = vsel %vm1213, %v2567, %v2568
    %v2570 = vrot.slane %v1883, 4
    %v2571 = vor.u32 %v2570, %v2568
    %v2572 = vrot.slane %v2571, 4
    %v2574 = vshll.u32 %v2467, 16
    %v2576 = vrot.slane %v2574, 5
    %v2577 = vsel %vm1213, %v2572, %v2576
    %v2578 = vrot.slane %v1896, 4
    %v2579 = vrot.slane %v1899, 5
    %v2580 = vor.u32 %v2578, %v2579
    %v2581 = vrot.slane %v2580, 4
    %v2582 = vrot.slane %v1908, 5
    %v2583 = vsel %vm1213, %v2581, %v2582
    %v2584 = vrot.slane %v1905, 4
    %v2585 = vor.u32 %v2584, %v2582
    %v2586 = vrot.slane %v2585, 4
    %v2588 = vshll.u32 %v2468, 16
    %v2590 = vrot.slane %v2588, 5
    %v2591 = vsel %vm1213, %v2586, %v2590
    %v2592 = vrot.slane %v1918, 4
    %v2593 = vrot.slane %v1921, 5
    %v2594 = vor.u32 %v2592, %v2593
    %v2595 = vrot.slane %v2594, 4
    %v2596 = vrot.slane %v1930, 5
    %v2597 = vsel %vm1213, %v2595, %v2596
    %v2598 = vrot.slane %v1927, 4
    %v2599 = vor.u32 %v2598, %v2596
    %v2600 = vrot.slane %v2599, 4
    %v2602 = vshll.u32 %v2469, 16
    %v2604 = vrot.slane %v2602, 5
    %v2605 = vsel %vm1213, %v2600, %v2604
    %v2606 = vrot.slane %v1940, 4
    %v2607 = vrot.slane %v1943, 5
    %v2608 = vor.u32 %v2606, %v2607
    %v2609 = vrot.slane %v2608, 4
    %v2610 = vrot.slane %v1952, 5
    %v2611 = vsel %vm1213, %v2609, %v2610
    %v2612 = vrot.slane %v1949, 4
    %v2613 = vor.u32 %v2612, %v2610
    %v2614 = vrot.slane %v2613, 4
    %v2616 = vshll.u32 %v2470, 16
    %v2618 = vrot.slane %v2616, 5
    %v2619 = vsel %vm1213, %v2614, %v2618
    %v2620 = vrot.slane %v1962, 4
    %v2621 = vrot.slane %v1965, 5
    %v2622 = vor.u32 %v2620, %v2621
    %v2623 = vrot.slane %v2622, 4
    %v2624 = vrot.slane %v1974, 5
    %v2625 = vsel %vm1213, %v2623, %v2624
    %v2626 = vrot.slane %v1971, 4
    %v2627 = vor.u32 %v2626, %v2624
    %v2628 = vrot.slane %v2627, 4
    %v2630 = vshll.u32 %v2471, 16
    %v2632 = vrot.slane %v2630, 5
    %v2633 = vsel %vm1213, %v2628, %v2632
    %v2634 = vrot.slane %v1984, 4
    %v2635 = vrot.slane %v1987, 5
    %v2636 = vor.u32 %v2634, %v2635
    %v2637 = vrot.slane %v2636, 4
    %v2638 = vrot.slane %v1996, 5
    %v2639 = vsel %vm1213, %v2637, %v2638
    %v2640 = vrot.slane %v1993, 4
    %v2641 = vor.u32 %v2640, %v2638
    %v2642 = vrot.slane %v2641, 4
    %v2644 = vshll.u32 %v2472, 16
    %v2646 = vrot.slane %v2644, 5
    %v2647 = vsel %vm1213, %v2642, %v2646
    %v2648 = vrot.slane %v2006, 4
    %v2649 = vrot.slane %v2009, 5
    %v2650 = vor.u32 %v2648, %v2649
    %v2651 = vrot.slane %v2650, 4
    %v2652 = vrot.slane %v2018, 5
    %v2653 = vsel %vm1213, %v2651, %v2652
    %v2654 = vrot.slane %v2015, 4
    %v2655 = vor.u32 %v2654, %v2652
    %v2656 = vrot.slane %v2655, 4
    %v2658 = vshll.u32 %v2473, 16
    %v2660 = vrot.slane %v2658, 5
    %v2661 = vsel %vm1213, %v2656, %v2660
    %v2662 = vrot.slane %v2028, 4
    %v2663 = vrot.slane %v2031, 5
    %v2664 = vor.u32 %v2662, %v2663
    %v2665 = vrot.slane %v2664, 4
    %v2666 = vrot.slane %v2040, 5
    %v2667 = vsel %vm1213, %v2665, %v2666
    %v2668 = vrot.slane %v2037, 4
    %v2669 = vor.u32 %v2668, %v2666
    %v2670 = vrot.slane %v2669, 4
    %v2672 = vshll.u32 %v2474, 16
    %v2674 = vrot.slane %v2672, 5
    %v2675 = vsel %vm1213, %v2670, %v2674
    %v2676 = vrot.slane %v2050, 4
    %v2677 = vrot.slane %v2053, 5
    %v2678 = vor.u32 %v2676, %v2677
    %v2679 = vrot.slane %v2678, 4
    %v2680 = vrot.slane %v2062, 5
    %v2681 = vsel %vm1213, %v2679, %v2680
    %v2682 = vrot.slane %v2059, 4
    %v2683 = vor.u32 %v2682, %v2680
    %v2684 = vrot.slane %v2683, 4
    %v2686 = vshll.u32 %v2475, 16
    %v2688 = vrot.slane %v2686, 5
    %v2689 = vsel %vm1213, %v2684, %v2688
    %v2690 = vrot.slane %v2072, 4
    %v2691 = vrot.slane %v2075, 5
    %v2692 = vor.u32 %v2690, %v2691
    %v2693 = vrot.slane %v2692, 4
    %v2694 = vrot.slane %v2084, 5
    %v2695 = vsel %vm1213, %v2693, %v2694
    %v2696 = vrot.slane %v2081, 4
    %v2697 = vor.u32 %v2696, %v2694
    %v2698 = vrot.slane %v2697, 4
    %v2700 = vshll.u32 %v2476, 16
    %v2702 = vrot.slane %v2700, 5
    %v2703 = vsel %vm1213, %v2698, %v2702
    %v2704 = vrot.slane %v2094, 4
    %v2705 = vrot.slane %v2097, 5
    %v2706 = vor.u32 %v2704, %v2705
    %v2707 = vrot.slane %v2706, 4
    %v2708 = vrot.slane %v2106, 5
    %v2709 = vsel %vm1213, %v2707, %v2708
    %v2710 = vrot.slane %v2103, 4
    %v2711 = vor.u32 %v2710, %v2708
    %v2712 = vrot.slane %v2711, 4
    %v2714 = vshll.u32 %v2477, 16
    %v2716 = vrot.slane %v2714, 5
    %v2717 = vsel %vm1213, %v2712, %v2716
    %v2718 = vrot.slane %v2116, 4
    %v2719 = vrot.slane %v2119, 5
    %v2720 = vor.u32 %v2718, %v2719
    %v2721 = vrot.slane %v2720, 4
    %v2722 = vrot.slane %v2128, 5
    %v2723 = vsel %vm1213, %v2721, %v2722
    %v2724 = vrot.slane %v2125, 4
    %v2725 = vor.u32 %v2724, %v2722
    %v2726 = vrot.slane %v2725, 4
    %v2728 = vshll.u32 %v2478, 16
    %v2730 = vrot.slane %v2728, 5
    %v2731 = vsel %vm1213, %v2726, %v2730
    %v2732 = vrot.slane %v2138, 4
    %v2733 = vrot.slane %v2141, 5
    %v2734 = vor.u32 %v2732, %v2733
    %v2735 = vrot.slane %v2734, 4
    %v2736 = vrot.slane %v2150, 5
    %v2737 = vsel %vm1213, %v2735, %v2736
    %v2738 = vrot.slane %v2147, 4
    %v2739 = vor.u32 %v2738, %v2736
    %v2740 = vrot.slane %v2739, 4
    %v2742 = vshll.u32 %v2479, 16
    %v2744 = vrot.slane %v2742, 5
    %v2745 = vsel %vm1213, %v2740, %v2744
    %v2746 = vrot.slane %v2160, 4
    %v2747 = vrot.slane %v2163, 5
    %v2748 = vor.u32 %v2746, %v2747
    %v2749 = vrot.slane %v2748, 4
    %v2750 = vrot.slane %v2172, 5
    %v2751 = vsel %vm1213, %v2749, %v2750
    %v2752 = vrot.slane %v2169, 4
    %v2753 = vor.u32 %v2752, %v2750
    %v2754 = vrot.slane %v2753, 4
    %v2756 = vshll.u32 %v2480, 16
    %v2758 = vrot.slane %v2756, 5
    %v2759 = vsel %vm1213, %v2754, %v2758
    %v2760 = vrot.slane %v2182, 4
    %v2761 = vrot.slane %v2185, 5
    %v2762 = vor.u32 %v2760, %v2761
    %v2763 = vrot.slane %v2762, 4
    %v2764 = vrot.slane %v2194, 5
    %v2765 = vsel %vm1213, %v2763, %v2764
    %v2766 = vrot.slane %v2191, 4
    %v2767 = vor.u32 %v2766, %v2764
    %v2768 = vrot.slane %v2767, 4
    %v2770 = vshll.u32 %v2481, 16
    %v2772 = vrot.slane %v2770, 5
    %v2773 = vsel %vm1213, %v2768, %v2772
    %v2774 = vrot.slane %v2204, 4
    %v2775 = vrot.slane %v2207, 5
    %v2776 = vor.u32 %v2774, %v2775
    %v2777 = vrot.slane %v2776, 4
    %v2778 = vrot.slane %v2216, 5
    %v2779 = vsel %vm1213, %v2777, %v2778
    %v2780 = vrot.slane %v2213, 4
    %v2781 = vor.u32 %v2780, %v2778
    %v2782 = vrot.slane %v2781, 4
    %v2784 = vshll.u32 %v2482, 16
    %v2786 = vrot.slane %v2784, 5
    %v2787 = vsel %vm1213, %v2782, %v2786
    %v2788 = vrot.slane %v2226, 4
    %v2789 = vrot.slane %v2229, 5
    %v2790 = vor.u32 %v2788, %v2789
    %v2791 = vrot.slane %v2790, 4
    %v2792 = vrot.slane %v2238, 5
    %v2793 = vsel %vm1213, %v2791, %v2792
    %v2794 = vrot.slane %v2235, 4
    %v2795 = vor.u32 %v2794, %v2792
    %v2796 = vrot.slane %v2795, 4
    %v2798 = vshll.u32 %v2483, 16
    %v2800 = vrot.slane %v2798, 5
    %v2801 = vsel %vm1213, %v2796, %v2800
    %v2802 = vrot.slane %v2248, 4
    %v2803 = vrot.slane %v2251, 5
    %v2804 = vor.u32 %v2802, %v2803
    %v2805 = vrot.slane %v2804, 4
    %v2806 = vrot.slane %v2260, 5
    %v2807 = vsel %vm1213, %v2805, %v2806
    %v2808 = vrot.slane %v2257, 4
    %v2809 = vor.u32 %v2808, %v2806
    %v2810 = vrot.slane %v2809, 4
    %v2812 = vshll.u32 %v2484, 16
    %v2814 = vrot.slane %v2812, 5
    %v2815 = vsel %vm1213, %v2810, %v2814
    %v2816 = vrot.slane %v2270, 4
    %v2817 = vrot.slane %v2273, 5
    %v2818 = vor.u32 %v2816, %v2817
    %v2819 = vrot.slane %v2818, 4
    %v2820 = vrot.slane %v2282, 5
    %v2821 = vsel %vm1213, %v2819, %v2820
    %v2822 = vrot.slane %v2279, 4
    %v2823 = vor.u32 %v2822, %v2820
    %v2824 = vrot.slane %v2823, 4
    %v2826 = vshll.u32 %v2485, 16
    %v2828 = vrot.slane %v2826, 5
    %v2829 = vsel %vm1213, %v2824, %v2828
    %v2830 = vrot.slane %v2292, 4
    %v2831 = vrot.slane %v2295, 5
    %v2832 = vor.u32 %v2830, %v2831
    %v2833 = vrot.slane %v2832, 4
    %v2834 = vrot.slane %v2304, 5
    %v2835 = vsel %vm1213, %v2833, %v2834
    %v2836 = vrot.slane %v2301, 4
    %v2837 = vor.u32 %v2836, %v2834
    %v2838 = vrot.slane %v2837, 4
    %v2840 = vshll.u32 %v2486, 16
    %v2842 = vrot.slane %v2840, 5
    %v2843 = vsel %vm1213, %v2838, %v2842
    %v2844 = vrot.slane %v2314, 4
    %v2845 = vrot.slane %v2317, 5
    %v2846 = vor.u32 %v2844, %v2845
    %v2847 = vrot.slane %v2846, 4
    %v2848 = vrot.slane %v2326, 5
    %v2849 = vsel %vm1213, %v2847, %v2848
    %v2850 = vrot.slane %v2323, 4
    %v2851 = vor.u32 %v2850, %v2848
    %v2852 = vrot.slane %v2851, 4
    %v2854 = vshll.u32 %v2487, 16
    %v2856 = vrot.slane %v2854, 5
    %v2857 = vsel %vm1213, %v2852, %v2856
    %v2858 = vrot.slane %v2336, 4
    %v2859 = vrot.slane %v2339, 5
    %v2860 = vor.u32 %v2858, %v2859
    %v2861 = vrot.slane %v2860, 4
    %v2862 = vrot.slane %v2348, 5
    %v2863 = vsel %vm1213, %v2861, %v2862
    %v2864 = vrot.slane %v2345, 4
    %v2865 = vor.u32 %v2864, %v2862
    %v2866 = vrot.slane %v2865, 4
    %v2868 = vshll.u32 %v2488, 16
    %v2870 = vrot.slane %v2868, 5
    %v2871 = vsel %vm1213, %v2866, %v2870
    %v2872 = vrot.slane %v2358, 4
    %v2873 = vrot.slane %v2361, 5
    %v2874 = vor.u32 %v2872, %v2873
    %v2875 = vrot.slane %v2874, 4
    %v2876 = vrot.slane %v2370, 5
    %v2877 = vsel %vm1213, %v2875, %v2876
    %v2878 = vrot.slane %v2367, 4
    %v2879 = vor.u32 %v2878, %v2876
    %v2880 = vrot.slane %v2879, 4
    %v2882 = vshll.u32 %v2489, 16
    %v2884 = vrot.slane %v2882, 5
    %v2885 = vsel %vm1213, %v2880, %v2884
    %v2886 = vrot.slane %v2380, 4
    %v2887 = vrot.slane %v2383, 5
    %v2888 = vor.u32 %v2886, %v2887
    %v2889 = vrot.slane %v2888, 4
    %v2890 = vrot.slane %v2392, 5
    %v2891 = vsel %vm1213, %v2889, %v2890
    %v2892 = vrot.slane %v2389, 4
    %v2893 = vor.u32 %v2892, %v2890
    %v2894 = vrot.slane %v2893, 4
    %v2896 = vshll.u32 %v2490, 16
    %v2898 = vrot.slane %v2896, 5
    %v2899 = vsel %vm1213, %v2894, %v2898
    %v2900 = vrot.slane %v2402, 4
    %v2901 = vrot.slane %v2405, 5
    %v2902 = vor.u32 %v2900, %v2901
    %v2903 = vrot.slane %v2902, 4
    %v2904 = vrot.slane %v2414, 5
    %v2905 = vsel %vm1213, %v2903, %v2904
    %v2906 = vrot.slane %v2411, 4
    %v2907 = vor.u32 %v2906, %v2904
    %v2908 = vrot.slane %v2907, 4
    %v2910 = vshll.u32 %v2491, 16
    %v2912 = vrot.slane %v2910, 5
    %v2913 = vsel %vm1213, %v2908, %v2912
    %v2914 = vrot.slane %v2424, 4
    %v2915 = vrot.slane %v2427, 5
    %v2916 = vor.u32 %v2914, %v2915
    %v2917 = vrot.slane %v2916, 4
    %v2918 = vrot.slane %v2436, 5
    %v2919 = vsel %vm1213, %v2917, %v2918
    %v2920 = vrot.slane %v2433, 4
    %v2921 = vor.u32 %v2920, %v2918
    %v2922 = vrot.slane %v2921, 4
    %v2924 = vshll.u32 %v2492, 16
    %v2926 = vrot.slane %v2924, 5
    %v2927 = vsel %vm1213, %v2922, %v2926
    %v2928 = vrot.slane %v2446, 4
    %v2929 = vrot.slane %v2449, 5
    %v2930 = vor.u32 %v2928, %v2929
    %v2931 = vrot.slane %v2930, 4
    %v2932 = vrot.slane %v2458, 5
    %v2933 = vsel %vm1213, %v2931, %v2932
    %v2934 = vrot.slane %v2455, 4
    %v2935 = vor.u32 %v2934, %v2932
    %v2936 = vrot.slane %v2935, 4
    %v2938 = vshll.u32 %v2493, 16
    %v2940 = vrot.slane %v2938, 5
    %v2941 = vsel %vm1213, %v2936, %v2940
    %s2942 = scalar_lea.vmem [#allocation2], 32
    %v2943 = vld [vmem:[%s2942] sm:$0x8]
    %v2944 = vld [vmem:[%s2942 + $0x4] sm:$0xf]
    %v2945 = vld [vmem:[%s2942 + $0x8] sm:$0xf]
    %v2946 = vld [vmem:[%s2942 + $0x10] sm:$0x8]
    %v2947 = vld [vmem:[%s2942 + $0x14] sm:$0xf]
    %v2948 = vld [vmem:[%s2942 + $0x18] sm:$0xf]
    %v2949 = vld [vmem:[%s2942 + $0x20] sm:$0x8]
    %v2950 = vld [vmem:[%s2942 + $0x24] sm:$0xf]
    %v2951 = vld [vmem:[%s2942 + $0x28] sm:$0xf]
    %v2952 = vld [vmem:[%s2942 + $0x30] sm:$0x8]
    %v2953 = vld [vmem:[%s2942 + $0x34] sm:$0xf]
    %v2954 = vld [vmem:[%s2942 + $0x38] sm:$0xf]
    %v2955 = vld [vmem:[%s2942 + $0x40] sm:$0x8]
    %v2956 = vld [vmem:[%s2942 + $0x44] sm:$0xf]
    %v2957 = vld [vmem:[%s2942 + $0x48] sm:$0xf]
    %v2958 = vld [vmem:[%s2942 + $0x50] sm:$0x8]
    %v2959 = vld [vmem:[%s2942 + $0x54] sm:$0xf]
    %v2960 = vld [vmem:[%s2942 + $0x58] sm:$0xf]
    %v2961 = vld [vmem:[%s2942 + $0x60] sm:$0x8]
    %v2962 = vld [vmem:[%s2942 + $0x64] sm:$0xf]
    %v2963 = vld [vmem:[%s2942 + $0x68] sm:$0xf]
    %v2964 = vld [vmem:[%s2942 + $0x70] sm:$0x8]
    %v2965 = vld [vmem:[%s2942 + $0x74] sm:$0xf]
    %v2966 = vld [vmem:[%s2942 + $0x78] sm:$0xf]
    %v2967 = vld [vmem:[%s2942 + $0x80] sm:$0x8]
    %v2968 = vld [vmem:[%s2942 + $0x84] sm:$0xf]
    %v2969 = vld [vmem:[%s2942 + $0x88] sm:$0xf]
    %v2970 = vld [vmem:[%s2942 + $0x90] sm:$0x8]
    %v2971 = vld [vmem:[%s2942 + $0x94] sm:$0xf]
    %v2972 = vld [vmem:[%s2942 + $0x98] sm:$0xf]
    %v2973 = vld [vmem:[%s2942 + $0xa0] sm:$0x8]
    %v2974 = vld [vmem:[%s2942 + $0xa4] sm:$0xf]
    %v2975 = vld [vmem:[%s2942 + $0xa8] sm:$0xf]
    %v2976 = vld [vmem:[%s2942 + $0xb0] sm:$0x8]
    %v2977 = vld [vmem:[%s2942 + $0xb4] sm:$0xf]
    %v2978 = vld [vmem:[%s2942 + $0xb8] sm:$0xf]
    %v2979 = vld [vmem:[%s2942 + $0xc0] sm:$0x8]
    %v2980 = vld [vmem:[%s2942 + $0xc4] sm:$0xf]
    %v2981 = vld [vmem:[%s2942 + $0xc8] sm:$0xf]
    %v2982 = vld [vmem:[%s2942 + $0xd0] sm:$0x8]
    %v2983 = vld [vmem:[%s2942 + $0xd4] sm:$0xf]
    %v2984 = vld [vmem:[%s2942 + $0xd8] sm:$0xf]
    %v2985 = vld [vmem:[%s2942 + $0xe0] sm:$0x8]
    %v2986 = vld [vmem:[%s2942 + $0xe4] sm:$0xf]
    %v2987 = vld [vmem:[%s2942 + $0xe8] sm:$0xf]
    %v2988 = vld [vmem:[%s2942 + $0xf0] sm:$0x8]
    %v2989 = vld [vmem:[%s2942 + $0xf4] sm:$0xf]
    %v2990 = vld [vmem:[%s2942 + $0xf8] sm:$0xf]
    %v2991 = vld [vmem:[%s2942 + $0x120] sm:$0x8]
    %v2992 = vld [vmem:[%s2942 + $0x124] sm:$0xf]
    %v2993 = vld [vmem:[%s2942 + $0x128] sm:$0xf]
    %v2994 = vld [vmem:[%s2942 + $0x130] sm:$0x8]
    %v2995 = vld [vmem:[%s2942 + $0x134] sm:$0xf]
    %v2996 = vld [vmem:[%s2942 + $0x138] sm:$0xf]
    %v2997 = vld [vmem:[%s2942 + $0x140] sm:$0x8]
    %v2998 = vld [vmem:[%s2942 + $0x144] sm:$0xf]
    %v2999 = vld [vmem:[%s2942 + $0x148] sm:$0xf]
    %v3000 = vld [vmem:[%s2942 + $0x150] sm:$0x8]
    %v3001 = vld [vmem:[%s2942 + $0x154] sm:$0xf]
    %v3002 = vld [vmem:[%s2942 + $0x158] sm:$0xf]
    %v3003 = vld [vmem:[%s2942 + $0x160] sm:$0x8]
    %v3004 = vld [vmem:[%s2942 + $0x164] sm:$0xf]
    %v3005 = vld [vmem:[%s2942 + $0x168] sm:$0xf]
    %v3006 = vld [vmem:[%s2942 + $0x170] sm:$0x8]
    %v3007 = vld [vmem:[%s2942 + $0x174] sm:$0xf]
    %v3008 = vld [vmem:[%s2942 + $0x178] sm:$0xf]
    %v3009 = vld [vmem:[%s2942 + $0x180] sm:$0x8]
    %v3010 = vld [vmem:[%s2942 + $0x184] sm:$0xf]
    %v3011 = vld [vmem:[%s2942 + $0x188] sm:$0xf]
    %v3012 = vld [vmem:[%s2942 + $0x190] sm:$0x8]
    %v3013 = vld [vmem:[%s2942 + $0x194] sm:$0xf]
    %v3014 = vld [vmem:[%s2942 + $0x198] sm:$0xf]
    %v3015 = vld [vmem:[%s2942 + $0x1a0] sm:$0x8]
    %v3016 = vld [vmem:[%s2942 + $0x1a4] sm:$0xf]
    %v3017 = vld [vmem:[%s2942 + $0x1a8] sm:$0xf]
    %v3018 = vld [vmem:[%s2942 + $0x1b0] sm:$0x8]
    %v3019 = vld [vmem:[%s2942 + $0x1b4] sm:$0xf]
    %v3020 = vld [vmem:[%s2942 + $0x1b8] sm:$0xf]
    %v3021 = vld [vmem:[%s2942 + $0x1c0] sm:$0x8]
    %v3022 = vld [vmem:[%s2942 + $0x1c4] sm:$0xf]
    %v3023 = vld [vmem:[%s2942 + $0x1c8] sm:$0xf]
    %v3024 = vld [vmem:[%s2942 + $0x1d0] sm:$0x8]
    %v3025 = vld [vmem:[%s2942 + $0x1d4] sm:$0xf]
    %v3026 = vld [vmem:[%s2942 + $0x1d8] sm:$0xf]
    %v3027 = vld [vmem:[%s2942 + $0x1e0] sm:$0x8]
    %v3028 = vld [vmem:[%s2942 + $0x1e4] sm:$0xf]
    %v3029 = vld [vmem:[%s2942 + $0x1e8] sm:$0xf]
    %v3030 = vld [vmem:[%s2942 + $0x1f0] sm:$0x8]
    %v3031 = vld [vmem:[%s2942 + $0x1f4] sm:$0xf]
    %v3032 = vld [vmem:[%s2942 + $0x1f8] sm:$0xf]
    %v3033 = vld [vmem:[%s2942 + $0x200] sm:$0x8]
    %v3034 = vld [vmem:[%s2942 + $0x204] sm:$0xf]
    %v3035 = vld [vmem:[%s2942 + $0x208] sm:$0xf]
    %v3036 = vld [vmem:[%s2942 + $0x210] sm:$0x8]
    %v3037 = vld [vmem:[%s2942 + $0x214] sm:$0xf]
    %v3038 = vld [vmem:[%s2942 + $0x218] sm:$0xf]
    %v3040 = vshrl.u32 %v2943, 16
    %v3042 = vrot.slane %v3040, 7
    %v3043 = vrot.slane %v3042, 4
    %v3045 = vshrl.u32 %v2944, 16
    %v3047 = vrot.slane %v3045, 7
    %v3048 = vshll.u32 %v2944, 16
    %v3050 = vor.u32 %v3047, %v3048
    %v3051 = vsel %vm474, %v3043, %v3050
    %v3052 = vrot.slane %v3047, 4
    %v3054 = vshrl.u32 %v2945, 16
    %v3056 = vrot.slane %v3054, 7
    %v3057 = vshll.u32 %v2945, 16
    %v3059 = vor.u32 %v3056, %v3057
    %v3060 = vsel %vm474, %v3052, %v3059
    %v3062 = vshrl.u32 %v2946, 16
    %v3064 = vrot.slane %v3062, 7
    %v3065 = vrot.slane %v3064, 4
    %v3067 = vshrl.u32 %v2947, 16
    %v3069 = vrot.slane %v3067, 7
    %v3070 = vshll.u32 %v2947, 16
    %v3072 = vor.u32 %v3069, %v3070
    %v3073 = vsel %vm474, %v3065, %v3072
    %v3074 = vrot.slane %v3069, 4
    %v3076 = vshrl.u32 %v2948, 16
    %v3078 = vrot.slane %v3076, 7
    %v3079 = vshll.u32 %v2948, 16
    %v3081 = vor.u32 %v3078, %v3079
    %v3082 = vsel %vm474, %v3074, %v3081
    %v3084 = vshrl.u32 %v2949, 16
    %v3086 = vrot.slane %v3084, 7
    %v3087 = vrot.slane %v3086, 4
    %v3089 = vshrl.u32 %v2950, 16
    %v3091 = vrot.slane %v3089, 7
    %v3092 = vshll.u32 %v2950, 16
    %v3094 = vor.u32 %v3091, %v3092
    %v3095 = vsel %vm474, %v3087, %v3094
    %v3096 = vrot.slane %v3091, 4
    %v3098 = vshrl.u32 %v2951, 16
    %v3100 = vrot.slane %v3098, 7
    %v3101 = vshll.u32 %v2951, 16
    %v3103 = vor.u32 %v3100, %v3101
    %v3104 = vsel %vm474, %v3096, %v3103
    %v3106 = vshrl.u32 %v2952, 16
    %v3108 = vrot.slane %v3106, 7
    %v3109 = vrot.slane %v3108, 4
    %v3111 = vshrl.u32 %v2953, 16
    %v3113 = vrot.slane %v3111, 7
    %v3114 = vshll.u32 %v2953, 16
    %v3116 = vor.u32 %v3113, %v3114
    %v3117 = vsel %vm474, %v3109, %v3116
    %v3118 = vrot.slane %v3113, 4
    %v3120 = vshrl.u32 %v2954, 16
    %v3122 = vrot.slane %v3120, 7
    %v3123 = vshll.u32 %v2954, 16
    %v3125 = vor.u32 %v3122, %v3123
    %v3126 = vsel %vm474, %v3118, %v3125
    %v3128 = vshrl.u32 %v2955, 16
    %v3130 = vrot.slane %v3128, 7
    %v3131 = vrot.slane %v3130, 4
    %v3133 = vshrl.u32 %v2956, 16
    %v3135 = vrot.slane %v3133, 7
    %v3136 = vshll.u32 %v2956, 16
    %v3138 = vor.u32 %v3135, %v3136
    %v3139 = vsel %vm474, %v3131, %v3138
    %v3140 = vrot.slane %v3135, 4
    %v3142 = vshrl.u32 %v2957, 16
    %v3144 = vrot.slane %v3142, 7
    %v3145 = vshll.u32 %v2957, 16
    %v3147 = vor.u32 %v3144, %v3145
    %v3148 = vsel %vm474, %v3140, %v3147
    %v3150 = vshrl.u32 %v2958, 16
    %v3152 = vrot.slane %v3150, 7
    %v3153 = vrot.slane %v3152, 4
    %v3155 = vshrl.u32 %v2959, 16
    %v3157 = vrot.slane %v3155, 7
    %v3158 = vshll.u32 %v2959, 16
    %v3160 = vor.u32 %v3157, %v3158
    %v3161 = vsel %vm474, %v3153, %v3160
    %v3162 = vrot.slane %v3157, 4
    %v3164 = vshrl.u32 %v2960, 16
    %v3166 = vrot.slane %v3164, 7
    %v3167 = vshll.u32 %v2960, 16
    %v3169 = vor.u32 %v3166, %v3167
    %v3170 = vsel %vm474, %v3162, %v3169
    %v3172 = vshrl.u32 %v2961, 16
    %v3174 = vrot.slane %v3172, 7
    %v3175 = vrot.slane %v3174, 4
    %v3177 = vshrl.u32 %v2962, 16
    %v3179 = vrot.slane %v3177, 7
    %v3180 = vshll.u32 %v2962, 16
    %v3182 = vor.u32 %v3179, %v3180
    %v3183 = vsel %vm474, %v3175, %v3182
    %v3184 = vrot.slane %v3179, 4
    %v3186 = vshrl.u32 %v2963, 16
    %v3188 = vrot.slane %v3186, 7
    %v3189 = vshll.u32 %v2963, 16
    %v3191 = vor.u32 %v3188, %v3189
    %v3192 = vsel %vm474, %v3184, %v3191
    %v3194 = vshrl.u32 %v2964, 16
    %v3196 = vrot.slane %v3194, 7
    %v3197 = vrot.slane %v3196, 4
    %v3199 = vshrl.u32 %v2965, 16
    %v3201 = vrot.slane %v3199, 7
    %v3202 = vshll.u32 %v2965, 16
    %v3204 = vor.u32 %v3201, %v3202
    %v3205 = vsel %vm474, %v3197, %v3204
    %v3206 = vrot.slane %v3201, 4
    %v3208 = vshrl.u32 %v2966, 16
    %v3210 = vrot.slane %v3208, 7
    %v3211 = vshll.u32 %v2966, 16
    %v3213 = vor.u32 %v3210, %v3211
    %v3214 = vsel %vm474, %v3206, %v3213
    %v3216 = vshrl.u32 %v2967, 16
    %v3218 = vrot.slane %v3216, 7
    %v3219 = vrot.slane %v3218, 4
    %v3221 = vshrl.u32 %v2968, 16
    %v3223 = vrot.slane %v3221, 7
    %v3224 = vshll.u32 %v2968, 16
    %v3226 = vor.u32 %v3223, %v3224
    %v3227 = vsel %vm474, %v3219, %v3226
    %v3228 = vrot.slane %v3223, 4
    %v3230 = vshrl.u32 %v2969, 16
    %v3232 = vrot.slane %v3230, 7
    %v3233 = vshll.u32 %v2969, 16
    %v3235 = vor.u32 %v3232, %v3233
    %v3236 = vsel %vm474, %v3228, %v3235
    %v3238 = vshrl.u32 %v2970, 16
    %v3240 = vrot.slane %v3238, 7
    %v3241 = vrot.slane %v3240, 4
    %v3243 = vshrl.u32 %v2971, 16
    %v3245 = vrot.slane %v3243, 7
    %v3246 = vshll.u32 %v2971, 16
    %v3248 = vor.u32 %v3245, %v3246
    %v3249 = vsel %vm474, %v3241, %v3248
    %v3250 = vrot.slane %v3245, 4
    %v3252 = vshrl.u32 %v2972, 16
    %v3254 = vrot.slane %v3252, 7
    %v3255 = vshll.u32 %v2972, 16
    %v3257 = vor.u32 %v3254, %v3255
    %v3258 = vsel %vm474, %v3250, %v3257
    %v3260 = vshrl.u32 %v2973, 16
    %v3262 = vrot.slane %v3260, 7
    %v3263 = vrot.slane %v3262, 4
    %v3265 = vshrl.u32 %v2974, 16
    %v3267 = vrot.slane %v3265, 7
    %v3268 = vshll.u32 %v2974, 16
    %v3270 = vor.u32 %v3267, %v3268
    %v3271 = vsel %vm474, %v3263, %v3270
    %v3272 = vrot.slane %v3267, 4
    %v3274 = vshrl.u32 %v2975, 16
    %v3276 = vrot.slane %v3274, 7
    %v3277 = vshll.u32 %v2975, 16
    %v3279 = vor.u32 %v3276, %v3277
    %v3280 = vsel %vm474, %v3272, %v3279
    %v3282 = vshrl.u32 %v2976, 16
    %v3284 = vrot.slane %v3282, 7
    %v3285 = vrot.slane %v3284, 4
    %v3287 = vshrl.u32 %v2977, 16
    %v3289 = vrot.slane %v3287, 7
    %v3290 = vshll.u32 %v2977, 16
    %v3292 = vor.u32 %v3289, %v3290
    %v3293 = vsel %vm474, %v3285, %v3292
    %v3294 = vrot.slane %v3289, 4
    %v3296 = vshrl.u32 %v2978, 16
    %v3298 = vrot.slane %v3296, 7
    %v3299 = vshll.u32 %v2978, 16
    %v3301 = vor.u32 %v3298, %v3299
    %v3302 = vsel %vm474, %v3294, %v3301
    %v3304 = vshrl.u32 %v2979, 16
    %v3306 = vrot.slane %v3304, 7
    %v3307 = vrot.slane %v3306, 4
    %v3309 = vshrl.u32 %v2980, 16
    %v3311 = vrot.slane %v3309, 7
    %v3312 = vshll.u32 %v2980, 16
    %v3314 = vor.u32 %v3311, %v3312
    %v3315 = vsel %vm474, %v3307, %v3314
    %v3316 = vrot.slane %v3311, 4
    %v3318 = vshrl.u32 %v2981, 16
    %v3320 = vrot.slane %v3318, 7
    %v3321 = vshll.u32 %v2981, 16
    %v3323 = vor.u32 %v3320, %v3321
    %v3324 = vsel %vm474, %v3316, %v3323
    %v3326 = vshrl.u32 %v2982, 16
    %v3328 = vrot.slane %v3326, 7
    %v3329 = vrot.slane %v3328, 4
    %v3331 = vshrl.u32 %v2983, 16
    %v3333 = vrot.slane %v3331, 7
    %v3334 = vshll.u32 %v2983, 16
    %v3336 = vor.u32 %v3333, %v3334
    %v3337 = vsel %vm474, %v3329, %v3336
    %v3338 = vrot.slane %v3333, 4
    %v3340 = vshrl.u32 %v2984, 16
    %v3342 = vrot.slane %v3340, 7
    %v3343 = vshll.u32 %v2984, 16
    %v3345 = vor.u32 %v3342, %v3343
    %v3346 = vsel %vm474, %v3338, %v3345
    %v3348 = vshrl.u32 %v2985, 16
    %v3350 = vrot.slane %v3348, 7
    %v3351 = vrot.slane %v3350, 4
    %v3353 = vshrl.u32 %v2986, 16
    %v3355 = vrot.slane %v3353, 7
    %v3356 = vshll.u32 %v2986, 16
    %v3358 = vor.u32 %v3355, %v3356
    %v3359 = vsel %vm474, %v3351, %v3358
    %v3360 = vrot.slane %v3355, 4
    %v3362 = vshrl.u32 %v2987, 16
    %v3364 = vrot.slane %v3362, 7
    %v3365 = vshll.u32 %v2987, 16
    %v3367 = vor.u32 %v3364, %v3365
    %v3368 = vsel %vm474, %v3360, %v3367
    %v3370 = vshrl.u32 %v2988, 16
    %v3372 = vrot.slane %v3370, 7
    %v3373 = vrot.slane %v3372, 4
    %v3375 = vshrl.u32 %v2989, 16
    %v3377 = vrot.slane %v3375, 7
    %v3378 = vshll.u32 %v2989, 16
    %v3380 = vor.u32 %v3377, %v3378
    %v3381 = vsel %vm474, %v3373, %v3380
    %v3382 = vrot.slane %v3377, 4
    %v3384 = vshrl.u32 %v2990, 16
    %v3386 = vrot.slane %v3384, 7
    %v3387 = vshll.u32 %v2990, 16
    %v3389 = vor.u32 %v3386, %v3387
    %v3390 = vsel %vm474, %v3382, %v3389
    %v3392 = vshrl.u32 %v2991, 16
    %v3394 = vrot.slane %v3392, 7
    %v3395 = vrot.slane %v3394, 4
    %v3397 = vshrl.u32 %v2992, 16
    %v3399 = vrot.slane %v3397, 7
    %v3400 = vshll.u32 %v2992, 16
    %v3402 = vor.u32 %v3399, %v3400
    %v3403 = vsel %vm474, %v3395, %v3402
    %v3404 = vrot.slane %v3399, 4
    %v3406 = vshrl.u32 %v2993, 16
    %v3408 = vrot.slane %v3406, 7
    %v3409 = vshll.u32 %v2993, 16
    %v3411 = vor.u32 %v3408, %v3409
    %v3412 = vsel %vm474, %v3404, %v3411
    %v3414 = vshrl.u32 %v2994, 16
    %v3416 = vrot.slane %v3414, 7
    %v3417 = vrot.slane %v3416, 4
    %v3419 = vshrl.u32 %v2995, 16
    %v3421 = vrot.slane %v3419, 7
    %v3422 = vshll.u32 %v2995, 16
    %v3424 = vor.u32 %v3421, %v3422
    %v3425 = vsel %vm474, %v3417, %v3424
    %v3426 = vrot.slane %v3421, 4
    %v3428 = vshrl.u32 %v2996, 16
    %v3430 = vrot.slane %v3428, 7
    %v3431 = vshll.u32 %v2996, 16
    %v3433 = vor.u32 %v3430, %v3431
    %v3434 = vsel %vm474, %v3426, %v3433
    %v3436 = vshrl.u32 %v2997, 16
    %v3438 = vrot.slane %v3436, 7
    %v3439 = vrot.slane %v3438, 4
    %v3441 = vshrl.u32 %v2998, 16
    %v3443 = vrot.slane %v3441, 7
    %v3444 = vshll.u32 %v2998, 16
    %v3446 = vor.u32 %v3443, %v3444
    %v3447 = vsel %vm474, %v3439, %v3446
    %v3448 = vrot.slane %v3443, 4
    %v3450 = vshrl.u32 %v2999, 16
    %v3452 = vrot.slane %v3450, 7
    %v3453 = vshll.u32 %v2999, 16
    %v3455 = vor.u32 %v3452, %v3453
    %v3456 = vsel %vm474, %v3448, %v3455
    %v3458 = vshrl.u32 %v3000, 16
    %v3460 = vrot.slane %v3458, 7
    %v3461 = vrot.slane %v3460, 4
    %v3463 = vshrl.u32 %v3001, 16
    %v3465 = vrot.slane %v3463, 7
    %v3466 = vshll.u32 %v3001, 16
    %v3468 = vor.u32 %v3465, %v3466
    %v3469 = vsel %vm474, %v3461, %v3468
    %v3470 = vrot.slane %v3465, 4
    %v3472 = vshrl.u32 %v3002, 16
    %v3474 = vrot.slane %v3472, 7
    %v3475 = vshll.u32 %v3002, 16
    %v3477 = vor.u32 %v3474, %v3475
    %v3478 = vsel %vm474, %v3470, %v3477
    %v3480 = vshrl.u32 %v3003, 16
    %v3482 = vrot.slane %v3480, 7
    %v3483 = vrot.slane %v3482, 4
    %v3485 = vshrl.u32 %v3004, 16
    %v3487 = vrot.slane %v3485, 7
    %v3488 = vshll.u32 %v3004, 16
    %v3490 = vor.u32 %v3487, %v3488
    %v3491 = vsel %vm474, %v3483, %v3490
    %v3492 = vrot.slane %v3487, 4
    %v3494 = vshrl.u32 %v3005, 16
    %v3496 = vrot.slane %v3494, 7
    %v3497 = vshll.u32 %v3005, 16
    %v3499 = vor.u32 %v3496, %v3497
    %v3500 = vsel %vm474, %v3492, %v3499
    %v3502 = vshrl.u32 %v3006, 16
    %v3504 = vrot.slane %v3502, 7
    %v3505 = vrot.slane %v3504, 4
    %v3507 = vshrl.u32 %v3007, 16
    %v3509 = vrot.slane %v3507, 7
    %v3510 = vshll.u32 %v3007, 16
    %v3512 = vor.u32 %v3509, %v3510
    %v3513 = vsel %vm474, %v3505, %v3512
    %v3514 = vrot.slane %v3509, 4
    %v3516 = vshrl.u32 %v3008, 16
    %v3518 = vrot.slane %v3516, 7
    %v3519 = vshll.u32 %v3008, 16
    %v3521 = vor.u32 %v3518, %v3519
    %v3522 = vsel %vm474, %v3514, %v3521
    %v3524 = vshrl.u32 %v3009, 16
    %v3526 = vrot.slane %v3524, 7
    %v3527 = vrot.slane %v3526, 4
    %v3529 = vshrl.u32 %v3010, 16
    %v3531 = vrot.slane %v3529, 7
    %v3532 = vshll.u32 %v3010, 16
    %v3534 = vor.u32 %v3531, %v3532
    %v3535 = vsel %vm474, %v3527, %v3534
    %v3536 = vrot.slane %v3531, 4
    %v3538 = vshrl.u32 %v3011, 16
    %v3540 = vrot.slane %v3538, 7
    %v3541 = vshll.u32 %v3011, 16
    %v3543 = vor.u32 %v3540, %v3541
    %v3544 = vsel %vm474, %v3536, %v3543
    %v3546 = vshrl.u32 %v3012, 16
    %v3548 = vrot.slane %v3546, 7
    %v3549 = vrot.slane %v3548, 4
    %v3551 = vshrl.u32 %v3013, 16
    %v3553 = vrot.slane %v3551, 7
    %v3554 = vshll.u32 %v3013, 16
    %v3556 = vor.u32 %v3553, %v3554
    %v3557 = vsel %vm474, %v3549, %v3556
    %v3558 = vrot.slane %v3553, 4
    %v3560 = vshrl.u32 %v3014, 16
    %v3562 = vrot.slane %v3560, 7
    %v3563 = vshll.u32 %v3014, 16
    %v3565 = vor.u32 %v3562, %v3563
    %v3566 = vsel %vm474, %v3558, %v3565
    %v3568 = vshrl.u32 %v3015, 16
    %v3570 = vrot.slane %v3568, 7
    %v3571 = vrot.slane %v3570, 4
    %v3573 = vshrl.u32 %v3016, 16
    %v3575 = vrot.slane %v3573, 7
    %v3576 = vshll.u32 %v3016, 16
    %v3578 = vor.u32 %v3575, %v3576
    %v3579 = vsel %vm474, %v3571, %v3578
    %v3580 = vrot.slane %v3575, 4
    %v3582 = vshrl.u32 %v3017, 16
    %v3584 = vrot.slane %v3582, 7
    %v3585 = vshll.u32 %v3017, 16
    %v3587 = vor.u32 %v3584, %v3585
    %v3588 = vsel %vm474, %v3580, %v3587
    %v3590 = vshrl.u32 %v3018, 16
    %v3592 = vrot.slane %v3590, 7
    %v3593 = vrot.slane %v3592, 4
    %v3595 = vshrl.u32 %v3019, 16
    %v3597 = vrot.slane %v3595, 7
    %v3598 = vshll.u32 %v3019, 16
    %v3600 = vor.u32 %v3597, %v3598
    %v3601 = vsel %vm474, %v3593, %v3600
    %v3602 = vrot.slane %v3597, 4
    %v3604 = vshrl.u32 %v3020, 16
    %v3606 = vrot.slane %v3604, 7
    %v3607 = vshll.u32 %v3020, 16
    %v3609 = vor.u32 %v3606, %v3607
    %v3610 = vsel %vm474, %v3602, %v3609
    %v3612 = vshrl.u32 %v3021, 16
    %v3614 = vrot.slane %v3612, 7
    %v3615 = vrot.slane %v3614, 4
    %v3617 = vshrl.u32 %v3022, 16
    %v3619 = vrot.slane %v3617, 7
    %v3620 = vshll.u32 %v3022, 16
    %v3622 = vor.u32 %v3619, %v3620
    %v3623 = vsel %vm474, %v3615, %v3622
    %v3624 = vrot.slane %v3619, 4
    %v3626 = vshrl.u32 %v3023, 16
    %v3628 = vrot.slane %v3626, 7
    %v3629 = vshll.u32 %v3023, 16
    %v3631 = vor.u32 %v3628, %v3629
    %v3632 = vsel %vm474, %v3624, %v3631
    %v3634 = vshrl.u32 %v3024, 16
    %v3636 = vrot.slane %v3634, 7
    %v3637 = vrot.slane %v3636, 4
    %v3639 = vshrl.u32 %v3025, 16
    %v3641 = vrot.slane %v3639, 7
    %v3642 = vshll.u32 %v3025, 16
    %v3644 = vor.u32 %v3641, %v3642
    %v3645 = vsel %vm474, %v3637, %v3644
    %v3646 = vrot.slane %v3641, 4
    %v3648 = vshrl.u32 %v3026, 16
    %v3650 = vrot.slane %v3648, 7
    %v3651 = vshll.u32 %v3026, 16
    %v3653 = vor.u32 %v3650, %v3651
    %v3654 = vsel %vm474, %v3646, %v3653
    %v3656 = vshrl.u32 %v3027, 16
    %v3658 = vrot.slane %v3656, 7
    %v3659 = vrot.slane %v3658, 4
    %v3661 = vshrl.u32 %v3028, 16
    %v3663 = vrot.slane %v3661, 7
    %v3664 = vshll.u32 %v3028, 16
    %v3666 = vor.u32 %v3663, %v3664
    %v3667 = vsel %vm474, %v3659, %v3666
    %v3668 = vrot.slane %v3663, 4
    %v3670 = vshrl.u32 %v3029, 16
    %v3672 = vrot.slane %v3670, 7
    %v3673 = vshll.u32 %v3029, 16
    %v3675 = vor.u32 %v3672, %v3673
    %v3676 = vsel %vm474, %v3668, %v3675
    %v3678 = vshrl.u32 %v3030, 16
    %v3680 = vrot.slane %v3678, 7
    %v3681 = vrot.slane %v3680, 4
    %v3683 = vshrl.u32 %v3031, 16
    %v3685 = vrot.slane %v3683, 7
    %v3686 = vshll.u32 %v3031, 16
    %v3688 = vor.u32 %v3685, %v3686
    %v3689 = vsel %vm474, %v3681, %v3688
    %v3690 = vrot.slane %v3685, 4
    %v3692 = vshrl.u32 %v3032, 16
    %v3694 = vrot.slane %v3692, 7
    %v3695 = vshll.u32 %v3032, 16
    %v3697 = vor.u32 %v3694, %v3695
    %v3698 = vsel %vm474, %v3690, %v3697
    %v3700 = vshrl.u32 %v3033, 16
    %v3702 = vrot.slane %v3700, 7
    %v3703 = vrot.slane %v3702, 4
    %v3705 = vshrl.u32 %v3034, 16
    %v3707 = vrot.slane %v3705, 7
    %v3708 = vshll.u32 %v3034, 16
    %v3710 = vor.u32 %v3707, %v3708
    %v3711 = vsel %vm474, %v3703, %v3710
    %v3712 = vrot.slane %v3707, 4
    %v3714 = vshrl.u32 %v3035, 16
    %v3716 = vrot.slane %v3714, 7
    %v3717 = vshll.u32 %v3035, 16
    %v3719 = vor.u32 %v3716, %v3717
    %v3720 = vsel %vm474, %v3712, %v3719
    %v3722 = vshrl.u32 %v3036, 16
    %v3724 = vrot.slane %v3722, 7
    %v3725 = vrot.slane %v3724, 4
    %v3727 = vshrl.u32 %v3037, 16
    %v3729 = vrot.slane %v3727, 7
    %v3730 = vshll.u32 %v3037, 16
    %v3732 = vor.u32 %v3729, %v3730
    %v3733 = vsel %vm474, %v3725, %v3732
    %v3734 = vrot.slane %v3729, 4
    %v3736 = vshrl.u32 %v3038, 16
    %v3738 = vrot.slane %v3736, 7
    %v3739 = vshll.u32 %v3038, 16
    %v3741 = vor.u32 %v3738, %v3739
    %v3742 = vsel %vm474, %v3734, %v3741
    %v3743 = vld [vmem:[%s2942 + $0xc] sm:$0x1]
    %v3744 = vld [vmem:[%s2942 + $0x1c] sm:$0x1]
    %v3745 = vld [vmem:[%s2942 + $0x2c] sm:$0x1]
    %v3746 = vld [vmem:[%s2942 + $0x3c] sm:$0x1]
    %v3747 = vld [vmem:[%s2942 + $0x4c] sm:$0x1]
    %v3748 = vld [vmem:[%s2942 + $0x5c] sm:$0x1]
    %v3749 = vld [vmem:[%s2942 + $0x6c] sm:$0x1]
    %v3750 = vld [vmem:[%s2942 + $0x7c] sm:$0x1]
    %v3751 = vld [vmem:[%s2942 + $0x8c] sm:$0x1]
    %v3752 = vld [vmem:[%s2942 + $0x9c] sm:$0x1]
    %v3753 = vld [vmem:[%s2942 + $0xac] sm:$0x1]
    %v3754 = vld [vmem:[%s2942 + $0xbc] sm:$0x1]
    %v3755 = vld [vmem:[%s2942 + $0xcc] sm:$0x1]
    %v3756 = vld [vmem:[%s2942 + $0xdc] sm:$0x1]
    %v3757 = vld [vmem:[%s2942 + $0xec] sm:$0x1]
    %v3758 = vld [vmem:[%s2942 + $0xfc] sm:$0x1]
    %v3759 = vld [vmem:[%s2942 + $0x12c] sm:$0x1]
    %v3760 = vld [vmem:[%s2942 + $0x13c] sm:$0x1]
    %v3761 = vld [vmem:[%s2942 + $0x14c] sm:$0x1]
    %v3762 = vld [vmem:[%s2942 + $0x15c] sm:$0x1]
    %v3763 = vld [vmem:[%s2942 + $0x16c] sm:$0x1]
    %v3764 = vld [vmem:[%s2942 + $0x17c] sm:$0x1]
    %v3765 = vld [vmem:[%s2942 + $0x18c] sm:$0x1]
    %v3766 = vld [vmem:[%s2942 + $0x19c] sm:$0x1]
    %v3767 = vld [vmem:[%s2942 + $0x1ac] sm:$0x1]
    %v3768 = vld [vmem:[%s2942 + $0x1bc] sm:$0x1]
    %v3769 = vld [vmem:[%s2942 + $0x1cc] sm:$0x1]
    %v3770 = vld [vmem:[%s2942 + $0x1dc] sm:$0x1]
    %v3771 = vld [vmem:[%s2942 + $0x1ec] sm:$0x1]
    %v3772 = vld [vmem:[%s2942 + $0x1fc] sm:$0x1]
    %v3773 = vld [vmem:[%s2942 + $0x20c] sm:$0x1]
    %v3774 = vld [vmem:[%s2942 + $0x21c] sm:$0x1]
    %v3775 = vrot.slane %v3045, 4
    %v3776 = vrot.slane %v3048, 5
    %v3777 = vor.u32 %v3775, %v3776
    %v3778 = vrot.slane %v3777, 4
    %v3779 = vrot.slane %v3057, 5
    %v3780 = vsel %vm1213, %v3778, %v3779
    %v3781 = vrot.slane %v3054, 4
    %v3782 = vor.u32 %v3781, %v3779
    %v3783 = vrot.slane %v3782, 4
    %v3785 = vshll.u32 %v3743, 16
    %v3787 = vrot.slane %v3785, 5
    %v3788 = vsel %vm1213, %v3783, %v3787
    %v3789 = vrot.slane %v3067, 4
    %v3790 = vrot.slane %v3070, 5
    %v3791 = vor.u32 %v3789, %v3790
    %v3792 = vrot.slane %v3791, 4
    %v3793 = vrot.slane %v3079, 5
    %v3794 = vsel %vm1213, %v3792, %v3793
    %v3795 = vrot.slane %v3076, 4
    %v3796 = vor.u32 %v3795, %v3793
    %v3797 = vrot.slane %v3796, 4
    %v3799 = vshll.u32 %v3744, 16
    %v3801 = vrot.slane %v3799, 5
    %v3802 = vsel %vm1213, %v3797, %v3801
    %v3803 = vrot.slane %v3089, 4
    %v3804 = vrot.slane %v3092, 5
    %v3805 = vor.u32 %v3803, %v3804
    %v3806 = vrot.slane %v3805, 4
    %v3807 = vrot.slane %v3101, 5
    %v3808 = vsel %vm1213, %v3806, %v3807
    %v3809 = vrot.slane %v3098, 4
    %v3810 = vor.u32 %v3809, %v3807
    %v3811 = vrot.slane %v3810, 4
    %v3813 = vshll.u32 %v3745, 16
    %v3815 = vrot.slane %v3813, 5
    %v3816 = vsel %vm1213, %v3811, %v3815
    %v3817 = vrot.slane %v3111, 4
    %v3818 = vrot.slane %v3114, 5
    %v3819 = vor.u32 %v3817, %v3818
    %v3820 = vrot.slane %v3819, 4
    %v3821 = vrot.slane %v3123, 5
    %v3822 = vsel %vm1213, %v3820, %v3821
    %v3823 = vrot.slane %v3120, 4
    %v3824 = vor.u32 %v3823, %v3821
    %v3825 = vrot.slane %v3824, 4
    %v3827 = vshll.u32 %v3746, 16
    %v3829 = vrot.slane %v3827, 5
    %v3830 = vsel %vm1213, %v3825, %v3829
    %v3831 = vrot.slane %v3133, 4
    %v3832 = vrot.slane %v3136, 5
    %v3833 = vor.u32 %v3831, %v3832
    %v3834 = vrot.slane %v3833, 4
    %v3835 = vrot.slane %v3145, 5
    %v3836 = vsel %vm1213, %v3834, %v3835
    %v3837 = vrot.slane %v3142, 4
    %v3838 = vor.u32 %v3837, %v3835
    %v3839 = vrot.slane %v3838, 4
    %v3841 = vshll.u32 %v3747, 16
    %v3843 = vrot.slane %v3841, 5
    %v3844 = vsel %vm1213, %v3839, %v3843
    %v3845 = vrot.slane %v3155, 4
    %v3846 = vrot.slane %v3158, 5
    %v3847 = vor.u32 %v3845, %v3846
    %v3848 = vrot.slane %v3847, 4
    %v3849 = vrot.slane %v3167, 5
    %v3850 = vsel %vm1213, %v3848, %v3849
    %v3851 = vrot.slane %v3164, 4
    %v3852 = vor.u32 %v3851, %v3849
    %v3853 = vrot.slane %v3852, 4
    %v3855 = vshll.u32 %v3748, 16
    %v3857 = vrot.slane %v3855, 5
    %v3858 = vsel %vm1213, %v3853, %v3857
    %v3859 = vrot.slane %v3177, 4
    %v3860 = vrot.slane %v3180, 5
    %v3861 = vor.u32 %v3859, %v3860
    %v3862 = vrot.slane %v3861, 4
    %v3863 = vrot.slane %v3189, 5
    %v3864 = vsel %vm1213, %v3862, %v3863
    %v3865 = vrot.slane %v3186, 4
    %v3866 = vor.u32 %v3865, %v3863
    %v3867 = vrot.slane %v3866, 4
    %v3869 = vshll.u32 %v3749, 16
    %v3871 = vrot.slane %v3869, 5
    %v3872 = vsel %vm1213, %v3867, %v3871
    %v3873 = vrot.slane %v3199, 4
    %v3874 = vrot.slane %v3202, 5
    %v3875 = vor.u32 %v3873, %v3874
    %v3876 = vrot.slane %v3875, 4
    %v3877 = vrot.slane %v3211, 5
    %v3878 = vsel %vm1213, %v3876, %v3877
    %v3879 = vrot.slane %v3208, 4
    %v3880 = vor.u32 %v3879, %v3877
    %v3881 = vrot.slane %v3880, 4
    %v3883 = vshll.u32 %v3750, 16
    %v3885 = vrot.slane %v3883, 5
    %v3886 = vsel %vm1213, %v3881, %v3885
    %v3887 = vrot.slane %v3221, 4
    %v3888 = vrot.slane %v3224, 5
    %v3889 = vor.u32 %v3887, %v3888
    %v3890 = vrot.slane %v3889, 4
    %v3891 = vrot.slane %v3233, 5
    %v3892 = vsel %vm1213, %v3890, %v3891
    %v3893 = vrot.slane %v3230, 4
    %v3894 = vor.u32 %v3893, %v3891
    %v3895 = vrot.slane %v3894, 4
    %v3897 = vshll.u32 %v3751, 16
    %v3899 = vrot.slane %v3897, 5
    %v3900 = vsel %vm1213, %v3895, %v3899
    %v3901 = vrot.slane %v3243, 4
    %v3902 = vrot.slane %v3246, 5
    %v3903 = vor.u32 %v3901, %v3902
    %v3904 = vrot.slane %v3903, 4
    %v3905 = vrot.slane %v3255, 5
    %v3906 = vsel %vm1213, %v3904, %v3905
    %v3907 = vrot.slane %v3252, 4
    %v3908 = vor.u32 %v3907, %v3905
    %v3909 = vrot.slane %v3908, 4
    %v3911 = vshll.u32 %v3752, 16
    %v3913 = vrot.slane %v3911, 5
    %v3914 = vsel %vm1213, %v3909, %v3913
    %v3915 = vrot.slane %v3265, 4
    %v3916 = vrot.slane %v3268, 5
    %v3917 = vor.u32 %v3915, %v3916
    %v3918 = vrot.slane %v3917, 4
    %v3919 = vrot.slane %v3277, 5
    %v3920 = vsel %vm1213, %v3918, %v3919
    %v3921 = vrot.slane %v3274, 4
    %v3922 = vor.u32 %v3921, %v3919
    %v3923 = vrot.slane %v3922, 4
    %v3925 = vshll.u32 %v3753, 16
    %v3927 = vrot.slane %v3925, 5
    %v3928 = vsel %vm1213, %v3923, %v3927
    %v3929 = vrot.slane %v3287, 4
    %v3930 = vrot.slane %v3290, 5
    %v3931 = vor.u32 %v3929, %v3930
    %v3932 = vrot.slane %v3931, 4
    %v3933 = vrot.slane %v3299, 5
    %v3934 = vsel %vm1213, %v3932, %v3933
    %v3935 = vrot.slane %v3296, 4
    %v3936 = vor.u32 %v3935, %v3933
    %v3937 = vrot.slane %v3936, 4
    %v3939 = vshll.u32 %v3754, 16
    %v3941 = vrot.slane %v3939, 5
    %v3942 = vsel %vm1213, %v3937, %v3941
    %v3943 = vrot.slane %v3309, 4
    %v3944 = vrot.slane %v3312, 5
    %v3945 = vor.u32 %v3943, %v3944
    %v3946 = vrot.slane %v3945, 4
    %v3947 = vrot.slane %v3321, 5
    %v3948 = vsel %vm1213, %v3946, %v3947
    %v3949 = vrot.slane %v3318, 4
    %v3950 = vor.u32 %v3949, %v3947
    %v3951 = vrot.slane %v3950, 4
    %v3953 = vshll.u32 %v3755, 16
    %v3955 = vrot.slane %v3953, 5
    %v3956 = vsel %vm1213, %v3951, %v3955
    %v3957 = vrot.slane %v3331, 4
    %v3958 = vrot.slane %v3334, 5
    %v3959 = vor.u32 %v3957, %v3958
    %v3960 = vrot.slane %v3959, 4
    %v3961 = vrot.slane %v3343, 5
    %v3962 = vsel %vm1213, %v3960, %v3961
    %v3963 = vrot.slane %v3340, 4
    %v3964 = vor.u32 %v3963, %v3961
    %v3965 = vrot.slane %v3964, 4
    %v3967 = vshll.u32 %v3756, 16
    %v3969 = vrot.slane %v3967, 5
    %v3970 = vsel %vm1213, %v3965, %v3969
    %v3971 = vrot.slane %v3353, 4
    %v3972 = vrot.slane %v3356, 5
    %v3973 = vor.u32 %v3971, %v3972
    %v3974 = vrot.slane %v3973, 4
    %v3975 = vrot.slane %v3365, 5
    %v3976 = vsel %vm1213, %v3974, %v3975
    %v3977 = vrot.slane %v3362, 4
    %v3978 = vor.u32 %v3977, %v3975
    %v3979 = vrot.slane %v3978, 4
    %v3981 = vshll.u32 %v3757, 16
    %v3983 = vrot.slane %v3981, 5
    %v3984 = vsel %vm1213, %v3979, %v3983
    %v3985 = vrot.slane %v3375, 4
    %v3986 = vrot.slane %v3378, 5
    %v3987 = vor.u32 %v3985, %v3986
    %v3988 = vrot.slane %v3987, 4
    %v3989 = vrot.slane %v3387, 5
    %v3990 = vsel %vm1213, %v3988, %v3989
    %v3991 = vrot.slane %v3384, 4
    %v3992 = vor.u32 %v3991, %v3989
    %v3993 = vrot.slane %v3992, 4
    %v3995 = vshll.u32 %v3758, 16
    %v3997 = vrot.slane %v3995, 5
    %v3998 = vsel %vm1213, %v3993, %v3997
    %v3999 = vrot.slane %v3397, 4
    %v4000 = vrot.slane %v3400, 5
    %v4001 = vor.u32 %v3999, %v4000
    %v4002 = vrot.slane %v4001, 4
    %v4003 = vrot.slane %v3409, 5
    %v4004 = vsel %vm1213, %v4002, %v4003
    %v4005 = vrot.slane %v3406, 4
    %v4006 = vor.u32 %v4005, %v4003
    %v4007 = vrot.slane %v4006, 4
    %v4009 = vshll.u32 %v3759, 16
    %v4011 = vrot.slane %v4009, 5
    %v4012 = vsel %vm1213, %v4007, %v4011
    %v4013 = vrot.slane %v3419, 4
    %v4014 = vrot.slane %v3422, 5
    %v4015 = vor.u32 %v4013, %v4014
    %v4016 = vrot.slane %v4015, 4
    %v4017 = vrot.slane %v3431, 5
    %v4018 = vsel %vm1213, %v4016, %v4017
    %v4019 = vrot.slane %v3428, 4
    %v4020 = vor.u32 %v4019, %v4017
    %v4021 = vrot.slane %v4020, 4
    %v4023 = vshll.u32 %v3760, 16
    %v4025 = vrot.slane %v4023, 5
    %v4026 = vsel %vm1213, %v4021, %v4025
    %v4027 = vrot.slane %v3441, 4
    %v4028 = vrot.slane %v3444, 5
    %v4029 = vor.u32 %v4027, %v4028
    %v4030 = vrot.slane %v4029, 4
    %v4031 = vrot.slane %v3453, 5
    %v4032 = vsel %vm1213, %v4030, %v4031
    %v4033 = vrot.slane %v3450, 4
    %v4034 = vor.u32 %v4033, %v4031
    %v4035 = vrot.slane %v4034, 4
    %v4037 = vshll.u32 %v3761, 16
    %v4039 = vrot.slane %v4037, 5
    %v4040 = vsel %vm1213, %v4035, %v4039
    %v4041 = vrot.slane %v3463, 4
    %v4042 = vrot.slane %v3466, 5
    %v4043 = vor.u32 %v4041, %v4042
    %v4044 = vrot.slane %v4043, 4
    %v4045 = vrot.slane %v3475, 5
    %v4046 = vsel %vm1213, %v4044, %v4045
    %v4047 = vrot.slane %v3472, 4
    %v4048 = vor.u32 %v4047, %v4045
    %v4049 = vrot.slane %v4048, 4
    %v4051 = vshll.u32 %v3762, 16
    %v4053 = vrot.slane %v4051, 5
    %v4054 = vsel %vm1213, %v4049, %v4053
    %v4055 = vrot.slane %v3485, 4
    %v4056 = vrot.slane %v3488, 5
    %v4057 = vor.u32 %v4055, %v4056
    %v4058 = vrot.slane %v4057, 4
    %v4059 = vrot.slane %v3497, 5
    %v4060 = vsel %vm1213, %v4058, %v4059
    %v4061 = vrot.slane %v3494, 4
    %v4062 = vor.u32 %v4061, %v4059
    %v4063 = vrot.slane %v4062, 4
    %v4065 = vshll.u32 %v3763, 16
    %v4067 = vrot.slane %v4065, 5
    %v4068 = vsel %vm1213, %v4063, %v4067
    %v4069 = vrot.slane %v3507, 4
    %v4070 = vrot.slane %v3510, 5
    %v4071 = vor.u32 %v4069, %v4070
    %v4072 = vrot.slane %v4071, 4
    %v4073 = vrot.slane %v3519, 5
    %v4074 = vsel %vm1213, %v4072, %v4073
    %v4075 = vrot.slane %v3516, 4
    %v4076 = vor.u32 %v4075, %v4073
    %v4077 = vrot.slane %v4076, 4
    %v4079 = vshll.u32 %v3764, 16
    %v4081 = vrot.slane %v4079, 5
    %v4082 = vsel %vm1213, %v4077, %v4081
    %v4083 = vrot.slane %v3529, 4
    %v4084 = vrot.slane %v3532, 5
    %v4085 = vor.u32 %v4083, %v4084
    %v4086 = vrot.slane %v4085, 4
    %v4087 = vrot.slane %v3541, 5
    %v4088 = vsel %vm1213, %v4086, %v4087
    %v4089 = vrot.slane %v3538, 4
    %v4090 = vor.u32 %v4089, %v4087
    %v4091 = vrot.slane %v4090, 4
    %v4093 = vshll.u32 %v3765, 16
    %v4095 = vrot.slane %v4093, 5
    %v4096 = vsel %vm1213, %v4091, %v4095
    %v4097 = vrot.slane %v3551, 4
    %v4098 = vrot.slane %v3554, 5
    %v4099 = vor.u32 %v4097, %v4098
    %v4100 = vrot.slane %v4099, 4
    %v4101 = vrot.slane %v3563, 5
    %v4102 = vsel %vm1213, %v4100, %v4101
    %v4103 = vrot.slane %v3560, 4
    %v4104 = vor.u32 %v4103, %v4101
    %v4105 = vrot.slane %v4104, 4
    %v4107 = vshll.u32 %v3766, 16
    %v4109 = vrot.slane %v4107, 5
    %v4110 = vsel %vm1213, %v4105, %v4109
    %v4111 = vrot.slane %v3573, 4
    %v4112 = vrot.slane %v3576, 5
    %v4113 = vor.u32 %v4111, %v4112
    %v4114 = vrot.slane %v4113, 4
    %v4115 = vrot.slane %v3585, 5
    %v4116 = vsel %vm1213, %v4114, %v4115
    %v4117 = vrot.slane %v3582, 4
    %v4118 = vor.u32 %v4117, %v4115
    %v4119 = vrot.slane %v4118, 4
    %v4121 = vshll.u32 %v3767, 16
    %v4123 = vrot.slane %v4121, 5
    %v4124 = vsel %vm1213, %v4119, %v4123
    %v4125 = vrot.slane %v3595, 4
    %v4126 = vrot.slane %v3598, 5
    %v4127 = vor.u32 %v4125, %v4126
    %v4128 = vrot.slane %v4127, 4
    %v4129 = vrot.slane %v3607, 5
    %v4130 = vsel %vm1213, %v4128, %v4129
    %v4131 = vrot.slane %v3604, 4
    %v4132 = vor.u32 %v4131, %v4129
    %v4133 = vrot.slane %v4132, 4
    %v4135 = vshll.u32 %v3768, 16
    %v4137 = vrot.slane %v4135, 5
    %v4138 = vsel %vm1213, %v4133, %v4137
    %v4139 = vrot.slane %v3617, 4
    %v4140 = vrot.slane %v3620, 5
    %v4141 = vor.u32 %v4139, %v4140
    %v4142 = vrot.slane %v4141, 4
    %v4143 = vrot.slane %v3629, 5
    %v4144 = vsel %vm1213, %v4142, %v4143
    %v4145 = vrot.slane %v3626, 4
    %v4146 = vor.u32 %v4145, %v4143
    %v4147 = vrot.slane %v4146, 4
    %v4149 = vshll.u32 %v3769, 16
    %v4151 = vrot.slane %v4149, 5
    %v4152 = vsel %vm1213, %v4147, %v4151
    %v4153 = vrot.slane %v3639, 4
    %v4154 = vrot.slane %v3642, 5
    %v4155 = vor.u32 %v4153, %v4154
    %v4156 = vrot.slane %v4155, 4
    %v4157 = vrot.slane %v3651, 5
    %v4158 = vsel %vm1213, %v4156, %v4157
    %v4159 = vrot.slane %v3648, 4
    %v4160 = vor.u32 %v4159, %v4157
    %v4161 = vrot.slane %v4160, 4
    %v4163 = vshll.u32 %v3770, 16
    %v4165 = vrot.slane %v4163, 5
    %v4166 = vsel %vm1213, %v4161, %v4165
    %v4167 = vrot.slane %v3661, 4
    %v4168 = vrot.slane %v3664, 5
    %v4169 = vor.u32 %v4167, %v4168
    %v4170 = vrot.slane %v4169, 4
    %v4171 = vrot.slane %v3673, 5
    %v4172 = vsel %vm1213, %v4170, %v4171
    %v4173 = vrot.slane %v3670, 4
    %v4174 = vor.u32 %v4173, %v4171
    %v4175 = vrot.slane %v4174, 4
    %v4177 = vshll.u32 %v3771, 16
    %v4179 = vrot.slane %v4177, 5
    %v4180 = vsel %vm1213, %v4175, %v4179
    %v4181 = vrot.slane %v3683, 4
    %v4182 = vrot.slane %v3686, 5
    %v4183 = vor.u32 %v4181, %v4182
    %v4184 = vrot.slane %v4183, 4
    %v4185 = vrot.slane %v3695, 5
    %v4186 = vsel %vm1213, %v4184, %v4185
    %v4187 = vrot.slane %v3692, 4
    %v4188 = vor.u32 %v4187, %v4185
    %v4189 = vrot.slane %v4188, 4
    %v4191 = vshll.u32 %v3772, 16
    %v4193 = vrot.slane %v4191, 5
    %v4194 = vsel %vm1213, %v4189, %v4193
    %v4195 = vrot.slane %v3705, 4
    %v4196 = vrot.slane %v3708, 5
    %v4197 = vor.u32 %v4195, %v4196
    %v4198 = vrot.slane %v4197, 4
    %v4199 = vrot.slane %v3717, 5
    %v4200 = vsel %vm1213, %v4198, %v4199
    %v4201 = vrot.slane %v3714, 4
    %v4202 = vor.u32 %v4201, %v4199
    %v4203 = vrot.slane %v4202, 4
    %v4205 = vshll.u32 %v3773, 16
    %v4207 = vrot.slane %v4205, 5
    %v4208 = vsel %vm1213, %v4203, %v4207
    %v4209 = vrot.slane %v3727, 4
    %v4210 = vrot.slane %v3730, 5
    %v4211 = vor.u32 %v4209, %v4210
    %v4212 = vrot.slane %v4211, 4
    %v4213 = vrot.slane %v3739, 5
    %v4214 = vsel %vm1213, %v4212, %v4213
    %v4215 = vrot.slane %v3736, 4
    %v4216 = vor.u32 %v4215, %v4213
    %v4217 = vrot.slane %v4216, 4
    %v4219 = vshll.u32 %v3774, 16
    %v4221 = vrot.slane %v4219, 5
    %v4222 = vsel %vm1213, %v4217, %v4221
    %v4223 = vunpack.c.l.b16 %v487
    %v4224 = vunpack.c.l.b16 %v496
    %v4225 = vunpack.c.l.b16 %v509
    %v4226 = vunpack.c.l.b16 %v518
    %v4227 = vunpack.c.l.b16 %v531
    %v4228 = vunpack.c.l.b16 %v540
    %v4229 = vunpack.c.l.b16 %v553
    %v4230 = vunpack.c.l.b16 %v562
    %v4231 = vunpack.c.l.b16 %v575
    %v4232 = vunpack.c.l.b16 %v584
    %v4233 = vunpack.c.l.b16 %v597
    %v4234 = vunpack.c.l.b16 %v606
    %v4235 = vunpack.c.l.b16 %v619
    %v4236 = vunpack.c.l.b16 %v628
    %v4237 = vunpack.c.l.b16 %v641
    %v4238 = vunpack.c.l.b16 %v650
    %v4239 = vunpack.c.l.b16 %v663
    %v4240 = vunpack.c.l.b16 %v672
    %v4241 = vunpack.c.l.b16 %v685
    %v4242 = vunpack.c.l.b16 %v694
    %v4243 = vunpack.c.l.b16 %v707
    %v4244 = vunpack.c.l.b16 %v716
    %v4245 = vunpack.c.l.b16 %v729
    %v4246 = vunpack.c.l.b16 %v738
    %v4247 = vunpack.c.l.b16 %v751
    %v4248 = vunpack.c.l.b16 %v760
    %v4249 = vunpack.c.l.b16 %v773
    %v4250 = vunpack.c.l.b16 %v782
    %v4251 = vunpack.c.l.b16 %v795
    %v4252 = vunpack.c.l.b16 %v804
    %v4253 = vunpack.c.l.b16 %v817
    %v4254 = vunpack.c.l.b16 %v826
    %v4255 = vunpack.c.l.b16 %v839
    %v4256 = vunpack.c.l.b16 %v848
    %v4257 = vunpack.c.l.b16 %v861
    %v4258 = vunpack.c.l.b16 %v870
    %v4259 = vunpack.c.l.b16 %v883
    %v4260 = vunpack.c.l.b16 %v892
    %v4261 = vunpack.c.l.b16 %v905
    %v4262 = vunpack.c.l.b16 %v914
    %v4263 = vunpack.c.l.b16 %v927
    %v4264 = vunpack.c.l.b16 %v936
    %v4265 = vunpack.c.l.b16 %v949
    %v4266 = vunpack.c.l.b16 %v958
    %v4267 = vunpack.c.l.b16 %v971
    %v4268 = vunpack.c.l.b16 %v980
    %v4269 = vunpack.c.l.b16 %v993
    %v4270 = vunpack.c.l.b16 %v1002
    %v4271 = vunpack.c.l.b16 %v1015
    %v4272 = vunpack.c.l.b16 %v1024
    %v4273 = vunpack.c.l.b16 %v1037
    %v4274 = vunpack.c.l.b16 %v1046
    %v4275 = vunpack.c.l.b16 %v1059
    %v4276 = vunpack.c.l.b16 %v1068
    %v4277 = vunpack.c.l.b16 %v1081
    %v4278 = vunpack.c.l.b16 %v1090
    %v4279 = vunpack.c.l.b16 %v1103
    %v4280 = vunpack.c.l.b16 %v1112
    %v4281 = vunpack.c.l.b16 %v1125
    %v4282 = vunpack.c.l.b16 %v1134
    %v4283 = vunpack.c.l.b16 %v1147
    %v4284 = vunpack.c.l.b16 %v1156
    %v4285 = vunpack.c.l.b16 %v1169
    %v4286 = vunpack.c.l.b16 %v1178
    %v4287 = vpack.c.b16 %v4224, %v4223
    %v4288 = vpack.c.b16 %v4226, %v4225
    %v4289 = vpack.c.b16 %v4228, %v4227
    %v4290 = vpack.c.b16 %v4230, %v4229
    %v4291 = vpack.c.b16 %v4232, %v4231
    %v4292 = vpack.c.b16 %v4234, %v4233
    %v4293 = vpack.c.b16 %v4236, %v4235
    %v4294 = vpack.c.b16 %v4238, %v4237
    %v4295 = vpack.c.b16 %v4240, %v4239
    %v4296 = vpack.c.b16 %v4242, %v4241
    %v4297 = vpack.c.b16 %v4244, %v4243
    %v4298 = vpack.c.b16 %v4246, %v4245
    %v4299 = vpack.c.b16 %v4248, %v4247
    %v4300 = vpack.c.b16 %v4250, %v4249
    %v4301 = vpack.c.b16 %v4252, %v4251
    %v4302 = vpack.c.b16 %v4254, %v4253
    %v4303 = vpack.c.b16 %v4256, %v4255
    %v4304 = vpack.c.b16 %v4258, %v4257
    %v4305 = vpack.c.b16 %v4260, %v4259
    %v4306 = vpack.c.b16 %v4262, %v4261
    %v4307 = vpack.c.b16 %v4264, %v4263
    %v4308 = vpack.c.b16 %v4266, %v4265
    %v4309 = vpack.c.b16 %v4268, %v4267
    %v4310 = vpack.c.b16 %v4270, %v4269
    %v4311 = vpack.c.b16 %v4272, %v4271
    %v4312 = vpack.c.b16 %v4274, %v4273
    %v4313 = vpack.c.b16 %v4276, %v4275
    %v4314 = vpack.c.b16 %v4278, %v4277
    %v4315 = vpack.c.b16 %v4280, %v4279
    %v4316 = vpack.c.b16 %v4282, %v4281
    %v4317 = vpack.c.b16 %v4284, %v4283
    %v4318 = vpack.c.b16 %v4286, %v4285
    %v4383 = vunpack.c.l.b16 %v378
    %v4384 = vunpack.c.l.b16 %v379
    %v4385 = vunpack.c.l.b16 %v381
    %v4386 = vunpack.c.l.b16 %v382
    %v4387 = vunpack.c.l.b16 %v384
    %v4388 = vunpack.c.l.b16 %v385
    %v4389 = vunpack.c.l.b16 %v387
    %v4390 = vunpack.c.l.b16 %v388
    %v4391 = vunpack.c.l.b16 %v390
    %v4392 = vunpack.c.l.b16 %v391
    %v4393 = vunpack.c.l.b16 %v393
    %v4394 = vunpack.c.l.b16 %v394
    %v4395 = vunpack.c.l.b16 %v396
    %v4396 = vunpack.c.l.b16 %v397
    %v4397 = vunpack.c.l.b16 %v399
    %v4398 = vunpack.c.l.b16 %v400
    %v4399 = vunpack.c.l.b16 %v402
    %v4400 = vunpack.c.l.b16 %v403
    %v4401 = vunpack.c.l.b16 %v405
    %v4402 = vunpack.c.l.b16 %v406
    %v4403 = vunpack.c.l.b16 %v408
    %v4404 = vunpack.c.l.b16 %v409
    %v4405 = vunpack.c.l.b16 %v411
    %v4406 = vunpack.c.l.b16 %v412
    %v4407 = vunpack.c.l.b16 %v414
    %v4408 = vunpack.c.l.b16 %v415
    %v4409 = vunpack.c.l.b16 %v417
    %v4410 = vunpack.c.l.b16 %v418
    %v4411 = vunpack.c.l.b16 %v420
    %v4412 = vunpack.c.l.b16 %v421
    %v4413 = vunpack.c.l.b16 %v423
    %v4414 = vunpack.c.l.b16 %v424
    %v4415 = vunpack.c.l.b16 %v426
    %v4416 = vunpack.c.l.b16 %v427
    %v4417 = vunpack.c.l.b16 %v429
    %v4418 = vunpack.c.l.b16 %v430
    %v4419 = vunpack.c.l.b16 %v432
    %v4420 = vunpack.c.l.b16 %v433
    %v4421 = vunpack.c.l.b16 %v435
    %v4422 = vunpack.c.l.b16 %v436
    %v4423 = vunpack.c.l.b16 %v438
    %v4424 = vunpack.c.l.b16 %v439
    %v4425 = vunpack.c.l.b16 %v441
    %v4426 = vunpack.c.l.b16 %v442
    %v4427 = vunpack.c.l.b16 %v444
    %v4428 = vunpack.c.l.b16 %v445
    %v4429 = vunpack.c.l.b16 %v447
    %v4430 = vunpack.c.l.b16 %v448
    %v4431 = vunpack.c.l.b16 %v450
    %v4432 = vunpack.c.l.b16 %v451
    %v4433 = vunpack.c.l.b16 %v453
    %v4434 = vunpack.c.l.b16 %v454
    %v4435 = vunpack.c.l.b16 %v456
    %v4436 = vunpack.c.l.b16 %v457
    %v4437 = vunpack.c.l.b16 %v459
    %v4438 = vunpack.c.l.b16 %v460
    %v4439 = vunpack.c.l.b16 %v462
    %v4440 = vunpack.c.l.b16 %v463
    %v4441 = vunpack.c.l.b16 %v465
    %v4442 = vunpack.c.l.b16 %v466
    %v4443 = vunpack.c.l.b16 %v468
    %v4444 = vunpack.c.l.b16 %v469
    %v4445 = vunpack.c.l.b16 %v471
    %v4446 = vunpack.c.l.b16 %v472
    %v4447 = vpack.c.b16 %v4384, %v4383
    %v4448 = vpack.c.b16 %v4386, %v4385
    %v4449 = vpack.c.b16 %v4388, %v4387
    %v4450 = vpack.c.b16 %v4390, %v4389
    %v4451 = vpack.c.b16 %v4392, %v4391
    %v4452 = vpack.c.b16 %v4394, %v4393
    %v4453 = vpack.c.b16 %v4396, %v4395
    %v4454 = vpack.c.b16 %v4398, %v4397
    %v4455 = vpack.c.b16 %v4400, %v4399
    %v4456 = vpack.c.b16 %v4402, %v4401
    %v4457 = vpack.c.b16 %v4404, %v4403
    %v4458 = vpack.c.b16 %v4406, %v4405
    %v4459 = vpack.c.b16 %v4408, %v4407
    %v4460 = vpack.c.b16 %v4410, %v4409
    %v4461 = vpack.c.b16 %v4412, %v4411
    %v4462 = vpack.c.b16 %v4414, %v4413
    %v4463 = vpack.c.b16 %v4416, %v4415
    %v4464 = vpack.c.b16 %v4418, %v4417
    %v4465 = vpack.c.b16 %v4420, %v4419
    %v4466 = vpack.c.b16 %v4422, %v4421
    %v4467 = vpack.c.b16 %v4424, %v4423
    %v4468 = vpack.c.b16 %v4426, %v4425
    %v4469 = vpack.c.b16 %v4428, %v4427
    %v4470 = vpack.c.b16 %v4430, %v4429
    %v4471 = vpack.c.b16 %v4432, %v4431
    %v4472 = vpack.c.b16 %v4434, %v4433
    %v4473 = vpack.c.b16 %v4436, %v4435
    %v4474 = vpack.c.b16 %v4438, %v4437
    %v4475 = vpack.c.b16 %v4440, %v4439
    %v4476 = vpack.c.b16 %v4442, %v4441
    %v4477 = vpack.c.b16 %v4444, %v4443
    %v4478 = vpack.c.b16 %v4446, %v4445
    %4479 = vrot.lane.b32.xlu0 %v4447, 4
    %v4480 = vpop.permute.xlu0 %4479
    %4481 = vrot.lane.b32.xlu0 %v4448, 4
    %v4482 = vpop.permute.xlu0 %4481
    %4483 = vrot.lane.b32.xlu0 %v4449, 4
    %v4484 = vpop.permute.xlu0 %4483
    %4485 = vrot.lane.b32.xlu0 %v4450, 4
    %v4486 = vpop.permute.xlu0 %4485
    %4487 = vrot.lane.b32.xlu0 %v4451, 4
    %v4488 = vpop.permute.xlu0 %4487
    %4489 = vrot.lane.b32.xlu0 %v4452, 4
    %v4490 = vpop.permute.xlu0 %4489
    %4491 = vrot.lane.b32.xlu0 %v4453, 4
    %v4492 = vpop.permute.xlu0 %4491
    %4493 = vrot.lane.b32.xlu0 %v4454, 4
    %v4494 = vpop.permute.xlu0 %4493
    %4495 = vrot.lane.b32.xlu0 %v4455, 4
    %v4496 = vpop.permute.xlu0 %4495
    %4497 = vrot.lane.b32.xlu0 %v4456, 4
    %v4498 = vpop.permute.xlu0 %4497
    %4499 = vrot.lane.b32.xlu0 %v4457, 4
    %v4500 = vpop.permute.xlu0 %4499
    %4501 = vrot.lane.b32.xlu0 %v4458, 4
    %v4502 = vpop.permute.xlu0 %4501
    %4503 = vrot.lane.b32.xlu0 %v4459, 4
    %v4504 = vpop.permute.xlu0 %4503
    %4505 = vrot.lane.b32.xlu0 %v4460, 4
    %v4506 = vpop.permute.xlu0 %4505
    %4507 = vrot.lane.b32.xlu0 %v4461, 4
    %v4508 = vpop.permute.xlu0 %4507
    %4509 = vrot.lane.b32.xlu0 %v4462, 4
    %v4510 = vpop.permute.xlu0 %4509
    %4511 = vrot.lane.b32.xlu0 %v4463, 4
    %v4512 = vpop.permute.xlu0 %4511
    %4513 = vrot.lane.b32.xlu0 %v4464, 4
    %v4514 = vpop.permute.xlu0 %4513
    %4515 = vrot.lane.b32.xlu0 %v4465, 4
    %v4516 = vpop.permute.xlu0 %4515
    %4517 = vrot.lane.b32.xlu0 %v4466, 4
    %v4518 = vpop.permute.xlu0 %4517
    %4519 = vrot.lane.b32.xlu0 %v4467, 4
    %v4520 = vpop.permute.xlu0 %4519
    %4521 = vrot.lane.b32.xlu0 %v4468, 4
    %v4522 = vpop.permute.xlu0 %4521
    %4523 = vrot.lane.b32.xlu0 %v4469, 4
    %v4524 = vpop.permute.xlu0 %4523
    %4525 = vrot.lane.b32.xlu0 %v4470, 4
    %v4526 = vpop.permute.xlu0 %4525
    %4527 = vrot.lane.b32.xlu0 %v4471, 4
    %v4528 = vpop.permute.xlu0 %4527
    %4529 = vrot.lane.b32.xlu0 %v4472, 4
    %v4530 = vpop.permute.xlu0 %4529
    %4531 = vrot.lane.b32.xlu0 %v4473, 4
    %v4532 = vpop.permute.xlu0 %4531
    %4533 = vrot.lane.b32.xlu0 %v4474, 4
    %v4534 = vpop.permute.xlu0 %4533
    %4535 = vrot.lane.b32.xlu0 %v4475, 4
    %v4536 = vpop.permute.xlu0 %4535
    %4537 = vrot.lane.b32.xlu0 %v4476, 4
    %v4538 = vpop.permute.xlu0 %4537
    %4539 = vrot.lane.b32.xlu0 %v4477, 4
    %v4540 = vpop.permute.xlu0 %4539
    %4541 = vrot.lane.b32.xlu0 %v4478, 4
    %v4542 = vpop.permute.xlu0 %4541
    %v4543 = vunpack.c.l.b16 %v1219
    %v4544 = vunpack.c.l.b16 %v1227
    %v4545 = vunpack.c.l.b16 %v1233
    %v4546 = vunpack.c.l.b16 %v1241
    %v4547 = vunpack.c.l.b16 %v1247
    %v4548 = vunpack.c.l.b16 %v1255
    %v4549 = vunpack.c.l.b16 %v1261
    %v4550 = vunpack.c.l.b16 %v1269
    %v4551 = vunpack.c.l.b16 %v1275
    %v4552 = vunpack.c.l.b16 %v1283
    %v4553 = vunpack.c.l.b16 %v1289
    %v4554 = vunpack.c.l.b16 %v1297
    %v4555 = vunpack.c.l.b16 %v1303
    %v4556 = vunpack.c.l.b16 %v1311
    %v4557 = vunpack.c.l.b16 %v1317
    %v4558 = vunpack.c.l.b16 %v1325
    %v4559 = vunpack.c.l.b16 %v1331
    %v4560 = vunpack.c.l.b16 %v1339
    %v4561 = vunpack.c.l.b16 %v1345
    %v4562 = vunpack.c.l.b16 %v1353
    %v4563 = vunpack.c.l.b16 %v1359
    %v4564 = vunpack.c.l.b16 %v1367
    %v4565 = vunpack.c.l.b16 %v1373
    %v4566 = vunpack.c.l.b16 %v1381
    %v4567 = vunpack.c.l.b16 %v1387
    %v4568 = vunpack.c.l.b16 %v1395
    %v4569 = vunpack.c.l.b16 %v1401
    %v4570 = vunpack.c.l.b16 %v1409
    %v4571 = vunpack.c.l.b16 %v1415
    %v4572 = vunpack.c.l.b16 %v1423
    %v4573 = vunpack.c.l.b16 %v1429
    %v4574 = vunpack.c.l.b16 %v1437
    %v4575 = vunpack.c.l.b16 %v1443
    %v4576 = vunpack.c.l.b16 %v1451
    %v4577 = vunpack.c.l.b16 %v1457
    %v4578 = vunpack.c.l.b16 %v1465
    %v4579 = vunpack.c.l.b16 %v1471
    %v4580 = vunpack.c.l.b16 %v1479
    %v4581 = vunpack.c.l.b16 %v1485
    %v4582 = vunpack.c.l.b16 %v1493
    %v4583 = vunpack.c.l.b16 %v1499
    %v4584 = vunpack.c.l.b16 %v1507
    %v4585 = vunpack.c.l.b16 %v1513
    %v4586 = vunpack.c.l.b16 %v1521
    %v4587 = vunpack.c.l.b16 %v1527
    %v4588 = vunpack.c.l.b16 %v1535
    %v4589 = vunpack.c.l.b16 %v1541
    %v4590 = vunpack.c.l.b16 %v1549
    %v4591 = vunpack.c.l.b16 %v1555
    %v4592 = vunpack.c.l.b16 %v1563
    %v4593 = vunpack.c.l.b16 %v1569
    %v4594 = vunpack.c.l.b16 %v1577
    %v4595 = vunpack.c.l.b16 %v1583
    %v4596 = vunpack.c.l.b16 %v1591
    %v4597 = vunpack.c.l.b16 %v1597
    %v4598 = vunpack.c.l.b16 %v1605
    %v4599 = vunpack.c.l.b16 %v1611
    %v4600 = vunpack.c.l.b16 %v1619
    %v4601 = vunpack.c.l.b16 %v1625
    %v4602 = vunpack.c.l.b16 %v1633
    %v4603 = vunpack.c.l.b16 %v1639
    %v4604 = vunpack.c.l.b16 %v1647
    %v4605 = vunpack.c.l.b16 %v1653
    %v4606 = vunpack.c.l.b16 %v1661
    %v4607 = vpack.c.b16 %v4544, %v4543
    %v4608 = vpack.c.b16 %v4546, %v4545
    %v4609 = vpack.c.b16 %v4548, %v4547
    %v4610 = vpack.c.b16 %v4550, %v4549
    %v4611 = vpack.c.b16 %v4552, %v4551
    %v4612 = vpack.c.b16 %v4554, %v4553
    %v4613 = vpack.c.b16 %v4556, %v4555
    %v4614 = vpack.c.b16 %v4558, %v4557
    %v4615 = vpack.c.b16 %v4560, %v4559
    %v4616 = vpack.c.b16 %v4562, %v4561
    %v4617 = vpack.c.b16 %v4564, %v4563
    %v4618 = vpack.c.b16 %v4566, %v4565
    %v4619 = vpack.c.b16 %v4568, %v4567
    %v4620 = vpack.c.b16 %v4570, %v4569
    %v4621 = vpack.c.b16 %v4572, %v4571
    %v4622 = vpack.c.b16 %v4574, %v4573
    %v4623 = vpack.c.b16 %v4576, %v4575
    %v4624 = vpack.c.b16 %v4578, %v4577
    %v4625 = vpack.c.b16 %v4580, %v4579
    %v4626 = vpack.c.b16 %v4582, %v4581
    %v4627 = vpack.c.b16 %v4584, %v4583
    %v4628 = vpack.c.b16 %v4586, %v4585
    %v4629 = vpack.c.b16 %v4588, %v4587
    %v4630 = vpack.c.b16 %v4590, %v4589
    %v4631 = vpack.c.b16 %v4592, %v4591
    %v4632 = vpack.c.b16 %v4594, %v4593
    %v4633 = vpack.c.b16 %v4596, %v4595
    %v4634 = vpack.c.b16 %v4598, %v4597
    %v4635 = vpack.c.b16 %v4600, %v4599
    %v4636 = vpack.c.b16 %v4602, %v4601
    %v4637 = vpack.c.b16 %v4604, %v4603
    %v4638 = vpack.c.b16 %v4606, %v4605
    %4639 = vrot.lane.b32.xlu0 %v4607, 8
    %v4640 = vpop.permute.xlu0 %4639
    %4641 = vrot.lane.b32.xlu0 %v4608, 8
    %v4642 = vpop.permute.xlu0 %4641
    %4643 = vrot.lane.b32.xlu0 %v4609, 8
    %v4644 = vpop.permute.xlu0 %4643
    %4645 = vrot.lane.b32.xlu0 %v4610, 8
    %v4646 = vpop.permute.xlu0 %4645
    %4647 = vrot.lane.b32.xlu0 %v4611, 8
    %v4648 = vpop.permute.xlu0 %4647
    %4649 = vrot.lane.b32.xlu0 %v4612, 8
    %v4650 = vpop.permute.xlu0 %4649
    %4651 = vrot.lane.b32.xlu0 %v4613, 8
    %v4652 = vpop.permute.xlu0 %4651
    %4653 = vrot.lane.b32.xlu0 %v4614, 8
    %v4654 = vpop.permute.xlu0 %4653
    %4655 = vrot.lane.b32.xlu0 %v4615, 8
    %v4656 = vpop.permute.xlu0 %4655
    %4657 = vrot.lane.b32.xlu0 %v4616, 8
    %v4658 = vpop.permute.xlu0 %4657
    %4659 = vrot.lane.b32.xlu0 %v4617, 8
    %v4660 = vpop.permute.xlu0 %4659
    %4661 = vrot.lane.b32.xlu0 %v4618, 8
    %v4662 = vpop.permute.xlu0 %4661
    %4663 = vrot.lane.b32.xlu0 %v4619, 8
    %v4664 = vpop.permute.xlu0 %4663
    %4665 = vrot.lane.b32.xlu0 %v4620, 8
    %v4666 = vpop.permute.xlu0 %4665
    %4667 = vrot.lane.b32.xlu0 %v4621, 8
    %v4668 = vpop.permute.xlu0 %4667
    %4669 = vrot.lane.b32.xlu0 %v4622, 8
    %v4670 = vpop.permute.xlu0 %4669
    %4671 = vrot.lane.b32.xlu0 %v4623, 8
    %v4672 = vpop.permute.xlu0 %4671
    %4673 = vrot.lane.b32.xlu0 %v4624, 8
    %v4674 = vpop.permute.xlu0 %4673
    %4675 = vrot.lane.b32.xlu0 %v4625, 8
    %v4676 = vpop.permute.xlu0 %4675
    %4677 = vrot.lane.b32.xlu0 %v4626, 8
    %v4678 = vpop.permute.xlu0 %4677
    %4679 = vrot.lane.b32.xlu0 %v4627, 8
    %v4680 = vpop.permute.xlu0 %4679
    %4681 = vrot.lane.b32.xlu0 %v4628, 8
    %v4682 = vpop.permute.xlu0 %4681
    %4683 = vrot.lane.b32.xlu0 %v4629, 8
    %v4684 = vpop.permute.xlu0 %4683
    %4685 = vrot.lane.b32.xlu0 %v4630, 8
    %v4686 = vpop.permute.xlu0 %4685
    %4687 = vrot.lane.b32.xlu0 %v4631, 8
    %v4688 = vpop.permute.xlu0 %4687
    %4689 = vrot.lane.b32.xlu0 %v4632, 8
    %v4690 = vpop.permute.xlu0 %4689
    %4691 = vrot.lane.b32.xlu0 %v4633, 8
    %v4692 = vpop.permute.xlu0 %4691
    %4693 = vrot.lane.b32.xlu0 %v4634, 8
    %v4694 = vpop.permute.xlu0 %4693
    %4695 = vrot.lane.b32.xlu0 %v4635, 8
    %v4696 = vpop.permute.xlu0 %4695
    %4697 = vrot.lane.b32.xlu0 %v4636, 8
    %v4698 = vpop.permute.xlu0 %4697
    %4699 = vrot.lane.b32.xlu0 %v4637, 8
    %v4700 = vpop.permute.xlu0 %4699
    %4701 = vrot.lane.b32.xlu0 %v4638, 8
    %v4702 = vpop.permute.xlu0 %4701
    %v4703 = vunpack.c.l.b16 %v1770
    %v4704 = vunpack.c.l.b16 %v1779
    %v4705 = vunpack.c.l.b16 %v1792
    %v4706 = vunpack.c.l.b16 %v1801
    %v4707 = vunpack.c.l.b16 %v1814
    %v4708 = vunpack.c.l.b16 %v1823
    %v4709 = vunpack.c.l.b16 %v1836
    %v4710 = vunpack.c.l.b16 %v1845
    %v4711 = vunpack.c.l.b16 %v1858
    %v4712 = vunpack.c.l.b16 %v1867
    %v4713 = vunpack.c.l.b16 %v1880
    %v4714 = vunpack.c.l.b16 %v1889
    %v4715 = vunpack.c.l.b16 %v1902
    %v4716 = vunpack.c.l.b16 %v1911
    %v4717 = vunpack.c.l.b16 %v1924
    %v4718 = vunpack.c.l.b16 %v1933
    %v4719 = vunpack.c.l.b16 %v1946
    %v4720 = vunpack.c.l.b16 %v1955
    %v4721 = vunpack.c.l.b16 %v1968
    %v4722 = vunpack.c.l.b16 %v1977
    %v4723 = vunpack.c.l.b16 %v1990
    %v4724 = vunpack.c.l.b16 %v1999
    %v4725 = vunpack.c.l.b16 %v2012
    %v4726 = vunpack.c.l.b16 %v2021
    %v4727 = vunpack.c.l.b16 %v2034
    %v4728 = vunpack.c.l.b16 %v2043
    %v4729 = vunpack.c.l.b16 %v2056
    %v4730 = vunpack.c.l.b16 %v2065
    %v4731 = vunpack.c.l.b16 %v2078
    %v4732 = vunpack.c.l.b16 %v2087
    %v4733 = vunpack.c.l.b16 %v2100
    %v4734 = vunpack.c.l.b16 %v2109
    %v4735 = vunpack.c.l.b16 %v2122
    %v4736 = vunpack.c.l.b16 %v2131
    %v4737 = vunpack.c.l.b16 %v2144
    %v4738 = vunpack.c.l.b16 %v2153
    %v4739 = vunpack.c.l.b16 %v2166
    %v4740 = vunpack.c.l.b16 %v2175
    %v4741 = vunpack.c.l.b16 %v2188
    %v4742 = vunpack.c.l.b16 %v2197
    %v4743 = vunpack.c.l.b16 %v2210
    %v4744 = vunpack.c.l.b16 %v2219
    %v4745 = vunpack.c.l.b16 %v2232
    %v4746 = vunpack.c.l.b16 %v2241
    %v4747 = vunpack.c.l.b16 %v2254
    %v4748 = vunpack.c.l.b16 %v2263
    %v4749 = vunpack.c.l.b16 %v2276
    %v4750 = vunpack.c.l.b16 %v2285
    %v4751 = vunpack.c.l.b16 %v2298
    %v4752 = vunpack.c.l.b16 %v2307
    %v4753 = vunpack.c.l.b16 %v2320
    %v4754 = vunpack.c.l.b16 %v2329
    %v4755 = vunpack.c.l.b16 %v2342
    %v4756 = vunpack.c.l.b16 %v2351
    %v4757 = vunpack.c.l.b16 %v2364
    %v4758 = vunpack.c.l.b16 %v2373
    %v4759 = vunpack.c.l.b16 %v2386
    %v4760 = vunpack.c.l.b16 %v2395
    %v4761 = vunpack.c.l.b16 %v2408
    %v4762 = vunpack.c.l.b16 %v2417
    %v4763 = vunpack.c.l.b16 %v2430
    %v4764 = vunpack.c.l.b16 %v2439
    %v4765 = vunpack.c.l.b16 %v2452
    %v4766 = vunpack.c.l.b16 %v2461
    %v4767 = vpack.c.b16 %v4704, %v4703
    %v4768 = vpack.c.b16 %v4706, %v4705
    %v4769 = vpack.c.b16 %v4708, %v4707
    %v4770 = vpack.c.b16 %v4710, %v4709
    %v4771 = vpack.c.b16 %v4712, %v4711
    %v4772 = vpack.c.b16 %v4714, %v4713
    %v4773 = vpack.c.b16 %v4716, %v4715
    %v4774 = vpack.c.b16 %v4718, %v4717
    %v4775 = vpack.c.b16 %v4720, %v4719
    %v4776 = vpack.c.b16 %v4722, %v4721
    %v4777 = vpack.c.b16 %v4724, %v4723
    %v4778 = vpack.c.b16 %v4726, %v4725
    %v4779 = vpack.c.b16 %v4728, %v4727
    %v4780 = vpack.c.b16 %v4730, %v4729
    %v4781 = vpack.c.b16 %v4732, %v4731
    %v4782 = vpack.c.b16 %v4734, %v4733
    %v4783 = vpack.c.b16 %v4736, %v4735
    %v4784 = vpack.c.b16 %v4738, %v4737
    %v4785 = vpack.c.b16 %v4740, %v4739
    %v4786 = vpack.c.b16 %v4742, %v4741
    %v4787 = vpack.c.b16 %v4744, %v4743
    %v4788 = vpack.c.b16 %v4746, %v4745
    %v4789 = vpack.c.b16 %v4748, %v4747
    %v4790 = vpack.c.b16 %v4750, %v4749
    %v4791 = vpack.c.b16 %v4752, %v4751
    %v4792 = vpack.c.b16 %v4754, %v4753
    %v4793 = vpack.c.b16 %v4756, %v4755
    %v4794 = vpack.c.b16 %v4758, %v4757
    %v4795 = vpack.c.b16 %v4760, %v4759
    %v4796 = vpack.c.b16 %v4762, %v4761
    %v4797 = vpack.c.b16 %v4764, %v4763
    %v4798 = vpack.c.b16 %v4766, %v4765
    %4799 = vrot.lane.b32.xlu0 %v4767, 12
    %v4800 = vpop.permute.xlu0 %4799
    %4801 = vrot.lane.b32.xlu0 %v4768, 12
    %v4802 = vpop.permute.xlu0 %4801
    %4803 = vrot.lane.b32.xlu0 %v4769, 12
    %v4804 = vpop.permute.xlu0 %4803
    %4805 = vrot.lane.b32.xlu0 %v4770, 12
    %v4806 = vpop.permute.xlu0 %4805
    %4807 = vrot.lane.b32.xlu0 %v4771, 12
    %v4808 = vpop.permute.xlu0 %4807
    %4809 = vrot.lane.b32.xlu0 %v4772, 12
    %v4810 = vpop.permute.xlu0 %4809
    %4811 = vrot.lane.b32.xlu0 %v4773, 12
    %v4812 = vpop.permute.xlu0 %4811
    %4813 = vrot.lane.b32.xlu0 %v4774, 12
    %v4814 = vpop.permute.xlu0 %4813
    %4815 = vrot.lane.b32.xlu0 %v4775, 12
    %v4816 = vpop.permute.xlu0 %4815
    %4817 = vrot.lane.b32.xlu0 %v4776, 12
    %v4818 = vpop.permute.xlu0 %4817
    %4819 = vrot.lane.b32.xlu0 %v4777, 12
    %v4820 = vpop.permute.xlu0 %4819
    %4821 = vrot.lane.b32.xlu0 %v4778, 12
    %v4822 = vpop.permute.xlu0 %4821
    %4823 = vrot.lane.b32.xlu0 %v4779, 12
    %v4824 = vpop.permute.xlu0 %4823
    %4825 = vrot.lane.b32.xlu0 %v4780, 12
    %v4826 = vpop.permute.xlu0 %4825
    %4827 = vrot.lane.b32.xlu0 %v4781, 12
    %v4828 = vpop.permute.xlu0 %4827
    %4829 = vrot.lane.b32.xlu0 %v4782, 12
    %v4830 = vpop.permute.xlu0 %4829
    %4831 = vrot.lane.b32.xlu0 %v4783, 12
    %v4832 = vpop.permute.xlu0 %4831
    %4833 = vrot.lane.b32.xlu0 %v4784, 12
    %v4834 = vpop.permute.xlu0 %4833
    %4835 = vrot.lane.b32.xlu0 %v4785, 12
    %v4836 = vpop.permute.xlu0 %4835
    %4837 = vrot.lane.b32.xlu0 %v4786, 12
    %v4838 = vpop.permute.xlu0 %4837
    %4839 = vrot.lane.b32.xlu0 %v4787, 12
    %v4840 = vpop.permute.xlu0 %4839
    %4841 = vrot.lane.b32.xlu0 %v4788, 12
    %v4842 = vpop.permute.xlu0 %4841
    %4843 = vrot.lane.b32.xlu0 %v4789, 12
    %v4844 = vpop.permute.xlu0 %4843
    %4845 = vrot.lane.b32.xlu0 %v4790, 12
    %v4846 = vpop.permute.xlu0 %4845
    %4847 = vrot.lane.b32.xlu0 %v4791, 12
    %v4848 = vpop.permute.xlu0 %4847
    %4849 = vrot.lane.b32.xlu0 %v4792, 12
    %v4850 = vpop.permute.xlu0 %4849
    %4851 = vrot.lane.b32.xlu0 %v4793, 12
    %v4852 = vpop.permute.xlu0 %4851
    %4853 = vrot.lane.b32.xlu0 %v4794, 12
    %v4854 = vpop.permute.xlu0 %4853
    %4855 = vrot.lane.b32.xlu0 %v4795, 12
    %v4856 = vpop.permute.xlu0 %4855
    %4857 = vrot.lane.b32.xlu0 %v4796, 12
    %v4858 = vpop.permute.xlu0 %4857
    %4859 = vrot.lane.b32.xlu0 %v4797, 12
    %v4860 = vpop.permute.xlu0 %4859
    %4861 = vrot.lane.b32.xlu0 %v4798, 12
    %v4862 = vpop.permute.xlu0 %4861
    %v4927 = vunpack.c.l.b16 %v1663
    %v4928 = vunpack.c.l.b16 %v1664
    %v4929 = vunpack.c.l.b16 %v1666
    %v4930 = vunpack.c.l.b16 %v1667
    %v4931 = vunpack.c.l.b16 %v1669
    %v4932 = vunpack.c.l.b16 %v1670
    %v4933 = vunpack.c.l.b16 %v1672
    %v4934 = vunpack.c.l.b16 %v1673
    %v4935 = vunpack.c.l.b16 %v1675
    %v4936 = vunpack.c.l.b16 %v1676
    %v4937 = vunpack.c.l.b16 %v1678
    %v4938 = vunpack.c.l.b16 %v1679
    %v4939 = vunpack.c.l.b16 %v1681
    %v4940 = vunpack.c.l.b16 %v1682
    %v4941 = vunpack.c.l.b16 %v1684
    %v4942 = vunpack.c.l.b16 %v1685
    %v4943 = vunpack.c.l.b16 %v1687
    %v4944 = vunpack.c.l.b16 %v1688
    %v4945 = vunpack.c.l.b16 %v1690
    %v4946 = vunpack.c.l.b16 %v1691
    %v4947 = vunpack.c.l.b16 %v1693
    %v4948 = vunpack.c.l.b16 %v1694
    %v4949 = vunpack.c.l.b16 %v1696
    %v4950 = vunpack.c.l.b16 %v1697
    %v4951 = vunpack.c.l.b16 %v1699
    %v4952 = vunpack.c.l.b16 %v1700
    %v4953 = vunpack.c.l.b16 %v1702
    %v4954 = vunpack.c.l.b16 %v1703
    %v4955 = vunpack.c.l.b16 %v1705
    %v4956 = vunpack.c.l.b16 %v1706
    %v4957 = vunpack.c.l.b16 %v1708
    %v4958 = vunpack.c.l.b16 %v1709
    %v4959 = vunpack.c.l.b16 %v1711
    %v4960 = vunpack.c.l.b16 %v1712
    %v4961 = vunpack.c.l.b16 %v1714
    %v4962 = vunpack.c.l.b16 %v1715
    %v4963 = vunpack.c.l.b16 %v1717
    %v4964 = vunpack.c.l.b16 %v1718
    %v4965 = vunpack.c.l.b16 %v1720
    %v4966 = vunpack.c.l.b16 %v1721
    %v4967 = vunpack.c.l.b16 %v1723
    %v4968 = vunpack.c.l.b16 %v1724
    %v4969 = vunpack.c.l.b16 %v1726
    %v4970 = vunpack.c.l.b16 %v1727
    %v4971 = vunpack.c.l.b16 %v1729
    %v4972 = vunpack.c.l.b16 %v1730
    %v4973 = vunpack.c.l.b16 %v1732
    %v4974 = vunpack.c.l.b16 %v1733
    %v4975 = vunpack.c.l.b16 %v1735
    %v4976 = vunpack.c.l.b16 %v1736
    %v4977 = vunpack.c.l.b16 %v1738
    %v4978 = vunpack.c.l.b16 %v1739
    %v4979 = vunpack.c.l.b16 %v1741
    %v4980 = vunpack.c.l.b16 %v1742
    %v4981 = vunpack.c.l.b16 %v1744
    %v4982 = vunpack.c.l.b16 %v1745
    %v4983 = vunpack.c.l.b16 %v1747
    %v4984 = vunpack.c.l.b16 %v1748
    %v4985 = vunpack.c.l.b16 %v1750
    %v4986 = vunpack.c.l.b16 %v1751
    %v4987 = vunpack.c.l.b16 %v1753
    %v4988 = vunpack.c.l.b16 %v1754
    %v4989 = vunpack.c.l.b16 %v1756
    %v4990 = vunpack.c.l.b16 %v1757
    %v4991 = vpack.c.b16 %v4928, %v4927
    %v4992 = vpack.c.b16 %v4930, %v4929
    %v4993 = vpack.c.b16 %v4932, %v4931
    %v4994 = vpack.c.b16 %v4934, %v4933
    %v4995 = vpack.c.b16 %v4936, %v4935
    %v4996 = vpack.c.b16 %v4938, %v4937
    %v4997 = vpack.c.b16 %v4940, %v4939
    %v4998 = vpack.c.b16 %v4942, %v4941
    %v4999 = vpack.c.b16 %v4944, %v4943
    %v5000 = vpack.c.b16 %v4946, %v4945
    %v5001 = vpack.c.b16 %v4948, %v4947
    %v5002 = vpack.c.b16 %v4950, %v4949
    %v5003 = vpack.c.b16 %v4952, %v4951
    %v5004 = vpack.c.b16 %v4954, %v4953
    %v5005 = vpack.c.b16 %v4956, %v4955
    %v5006 = vpack.c.b16 %v4958, %v4957
    %v5007 = vpack.c.b16 %v4960, %v4959
    %v5008 = vpack.c.b16 %v4962, %v4961
    %v5009 = vpack.c.b16 %v4964, %v4963
    %v5010 = vpack.c.b16 %v4966, %v4965
    %v5011 = vpack.c.b16 %v4968, %v4967
    %v5012 = vpack.c.b16 %v4970, %v4969
    %v5013 = vpack.c.b16 %v4972, %v4971
    %v5014 = vpack.c.b16 %v4974, %v4973
    %v5015 = vpack.c.b16 %v4976, %v4975
    %v5016 = vpack.c.b16 %v4978, %v4977
    %v5017 = vpack.c.b16 %v4980, %v4979
    %v5018 = vpack.c.b16 %v4982, %v4981
    %v5019 = vpack.c.b16 %v4984, %v4983
    %v5020 = vpack.c.b16 %v4986, %v4985
    %v5021 = vpack.c.b16 %v4988, %v4987
    %v5022 = vpack.c.b16 %v4990, %v4989
    %5023 = vrot.lane.b32.xlu0 %v4991, 16
    %v5024 = vpop.permute.xlu0 %5023
    %5025 = vrot.lane.b32.xlu0 %v4992, 16
    %v5026 = vpop.permute.xlu0 %5025
    %5027 = vrot.lane.b32.xlu0 %v4993, 16
    %v5028 = vpop.permute.xlu0 %5027
    %5029 = vrot.lane.b32.xlu0 %v4994, 16
    %v5030 = vpop.permute.xlu0 %5029
    %5031 = vrot.lane.b32.xlu0 %v4995, 16
    %v5032 = vpop.permute.xlu0 %5031
    %5033 = vrot.lane.b32.xlu0 %v4996, 16
    %v5034 = vpop.permute.xlu0 %5033
    %5035 = vrot.lane.b32.xlu0 %v4997, 16
    %v5036 = vpop.permute.xlu0 %5035
    %5037 = vrot.lane.b32.xlu0 %v4998, 16
    %v5038 = vpop.permute.xlu0 %5037
    %5039 = vrot.lane.b32.xlu0 %v4999, 16
    %v5040 = vpop.permute.xlu0 %5039
    %5041 = vrot.lane.b32.xlu0 %v5000, 16
    %v5042 = vpop.permute.xlu0 %5041
    %5043 = vrot.lane.b32.xlu0 %v5001, 16
    %v5044 = vpop.permute.xlu0 %5043
    %5045 = vrot.lane.b32.xlu0 %v5002, 16
    %v5046 = vpop.permute.xlu0 %5045
    %5047 = vrot.lane.b32.xlu0 %v5003, 16
    %v5048 = vpop.permute.xlu0 %5047
    %5049 = vrot.lane.b32.xlu0 %v5004, 16
    %v5050 = vpop.permute.xlu0 %5049
    %5051 = vrot.lane.b32.xlu0 %v5005, 16
    %v5052 = vpop.permute.xlu0 %5051
    %5053 = vrot.lane.b32.xlu0 %v5006, 16
    %v5054 = vpop.permute.xlu0 %5053
    %5055 = vrot.lane.b32.xlu0 %v5007, 16
    %v5056 = vpop.permute.xlu0 %5055
    %5057 = vrot.lane.b32.xlu0 %v5008, 16
    %v5058 = vpop.permute.xlu0 %5057
    %5059 = vrot.lane.b32.xlu0 %v5009, 16
    %v5060 = vpop.permute.xlu0 %5059
    %5061 = vrot.lane.b32.xlu0 %v5010, 16
    %v5062 = vpop.permute.xlu0 %5061
    %5063 = vrot.lane.b32.xlu0 %v5011, 16
    %v5064 = vpop.permute.xlu0 %5063
    %5065 = vrot.lane.b32.xlu0 %v5012, 16
    %v5066 = vpop.permute.xlu0 %5065
    %5067 = vrot.lane.b32.xlu0 %v5013, 16
    %v5068 = vpop.permute.xlu0 %5067
    %5069 = vrot.lane.b32.xlu0 %v5014, 16
    %v5070 = vpop.permute.xlu0 %5069
    %5071 = vrot.lane.b32.xlu0 %v5015, 16
    %v5072 = vpop.permute.xlu0 %5071
    %5073 = vrot.lane.b32.xlu0 %v5016, 16
    %v5074 = vpop.permute.xlu0 %5073
    %5075 = vrot.lane.b32.xlu0 %v5017, 16
    %v5076 = vpop.permute.xlu0 %5075
    %5077 = vrot.lane.b32.xlu0 %v5018, 16
    %v5078 = vpop.permute.xlu0 %5077
    %5079 = vrot.lane.b32.xlu0 %v5019, 16
    %v5080 = vpop.permute.xlu0 %5079
    %5081 = vrot.lane.b32.xlu0 %v5020, 16
    %v5082 = vpop.permute.xlu0 %5081
    %5083 = vrot.lane.b32.xlu0 %v5021, 16
    %v5084 = vpop.permute.xlu0 %5083
    %5085 = vrot.lane.b32.xlu0 %v5022, 16
    %v5086 = vpop.permute.xlu0 %5085
    %v5087 = vunpack.c.l.b16 %v2499
    %v5088 = vunpack.c.l.b16 %v2507
    %v5089 = vunpack.c.l.b16 %v2513
    %v5090 = vunpack.c.l.b16 %v2521
    %v5091 = vunpack.c.l.b16 %v2527
    %v5092 = vunpack.c.l.b16 %v2535
    %v5093 = vunpack.c.l.b16 %v2541
    %v5094 = vunpack.c.l.b16 %v2549
    %v5095 = vunpack.c.l.b16 %v2555
    %v5096 = vunpack.c.l.b16 %v2563
    %v5097 = vunpack.c.l.b16 %v2569
    %v5098 = vunpack.c.l.b16 %v2577
    %v5099 = vunpack.c.l.b16 %v2583
    %v5100 = vunpack.c.l.b16 %v2591
    %v5101 = vunpack.c.l.b16 %v2597
    %v5102 = vunpack.c.l.b16 %v2605
    %v5103 = vunpack.c.l.b16 %v2611
    %v5104 = vunpack.c.l.b16 %v2619
    %v5105 = vunpack.c.l.b16 %v2625
    %v5106 = vunpack.c.l.b16 %v2633
    %v5107 = vunpack.c.l.b16 %v2639
    %v5108 = vunpack.c.l.b16 %v2647
    %v5109 = vunpack.c.l.b16 %v2653
    %v5110 = vunpack.c.l.b16 %v2661
    %v5111 = vunpack.c.l.b16 %v2667
    %v5112 = vunpack.c.l.b16 %v2675
    %v5113 = vunpack.c.l.b16 %v2681
    %v5114 = vunpack.c.l.b16 %v2689
    %v5115 = vunpack.c.l.b16 %v2695
    %v5116 = vunpack.c.l.b16 %v2703
    %v5117 = vunpack.c.l.b16 %v2709
    %v5118 = vunpack.c.l.b16 %v2717
    %v5119 = vunpack.c.l.b16 %v2723
    %v5120 = vunpack.c.l.b16 %v2731
    %v5121 = vunpack.c.l.b16 %v2737
    %v5122 = vunpack.c.l.b16 %v2745
    %v5123 = vunpack.c.l.b16 %v2751
    %v5124 = vunpack.c.l.b16 %v2759
    %v5125 = vunpack.c.l.b16 %v2765
    %v5126 = vunpack.c.l.b16 %v2773
    %v5127 = vunpack.c.l.b16 %v2779
    %v5128 = vunpack.c.l.b16 %v2787
    %v5129 = vunpack.c.l.b16 %v2793
    %v5130 = vunpack.c.l.b16 %v2801
    %v5131 = vunpack.c.l.b16 %v2807
    %v5132 = vunpack.c.l.b16 %v2815
    %v5133 = vunpack.c.l.b16 %v2821
    %v5134 = vunpack.c.l.b16 %v2829
    %v5135 = vunpack.c.l.b16 %v2835
    %v5136 = vunpack.c.l.b16 %v2843
    %v5137 = vunpack.c.l.b16 %v2849
    %v5138 = vunpack.c.l.b16 %v2857
    %v5139 = vunpack.c.l.b16 %v2863
    %v5140 = vunpack.c.l.b16 %v2871
    %v5141 = vunpack.c.l.b16 %v2877
    %v5142 = vunpack.c.l.b16 %v2885
    %v5143 = vunpack.c.l.b16 %v2891
    %v5144 = vunpack.c.l.b16 %v2899
    %v5145 = vunpack.c.l.b16 %v2905
    %v5146 = vunpack.c.l.b16 %v2913
    %v5147 = vunpack.c.l.b16 %v2919
    %v5148 = vunpack.c.l.b16 %v2927
    %v5149 = vunpack.c.l.b16 %v2933
    %v5150 = vunpack.c.l.b16 %v2941
    %v5151 = vpack.c.b16 %v5088, %v5087
    %v5152 = vpack.c.b16 %v5090, %v5089
    %v5153 = vpack.c.b16 %v5092, %v5091
    %v5154 = vpack.c.b16 %v5094, %v5093
    %v5155 = vpack.c.b16 %v5096, %v5095
    %v5156 = vpack.c.b16 %v5098, %v5097
    %v5157 = vpack.c.b16 %v5100, %v5099
    %v5158 = vpack.c.b16 %v5102, %v5101
    %v5159 = vpack.c.b16 %v5104, %v5103
    %v5160 = vpack.c.b16 %v5106, %v5105
    %v5161 = vpack.c.b16 %v5108, %v5107
    %v5162 = vpack.c.b16 %v5110, %v5109
    %v5163 = vpack.c.b16 %v5112, %v5111
    %v5164 = vpack.c.b16 %v5114, %v5113
    %v5165 = vpack.c.b16 %v5116, %v5115
    %v5166 = vpack.c.b16 %v5118, %v5117
    %v5167 = vpack.c.b16 %v5120, %v5119
    %v5168 = vpack.c.b16 %v5122, %v5121
    %v5169 = vpack.c.b16 %v5124, %v5123
    %v5170 = vpack.c.b16 %v5126, %v5125
    %v5171 = vpack.c.b16 %v5128, %v5127
    %v5172 = vpack.c.b16 %v5130, %v5129
    %v5173 = vpack.c.b16 %v5132, %v5131
    %v5174 = vpack.c.b16 %v5134, %v5133
    %v5175 = vpack.c.b16 %v5136, %v5135
    %v5176 = vpack.c.b16 %v5138, %v5137
    %v5177 = vpack.c.b16 %v5140, %v5139
    %v5178 = vpack.c.b16 %v5142, %v5141
    %v5179 = vpack.c.b16 %v5144, %v5143
    %v5180 = vpack.c.b16 %v5146, %v5145
    %v5181 = vpack.c.b16 %v5148, %v5147
    %v5182 = vpack.c.b16 %v5150, %v5149
    %5183 = vrot.lane.b32.xlu0 %v5151, 20
    %v5184 = vpop.permute.xlu0 %5183
    %5185 = vrot.lane.b32.xlu0 %v5152, 20
    %v5186 = vpop.permute.xlu0 %5185
    %5187 = vrot.lane.b32.xlu0 %v5153, 20
    %v5188 = vpop.permute.xlu0 %5187
    %5189 = vrot.lane.b32.xlu0 %v5154, 20
    %v5190 = vpop.permute.xlu0 %5189
    %5191 = vrot.lane.b32.xlu0 %v5155, 20
    %v5192 = vpop.permute.xlu0 %5191
    %5193 = vrot.lane.b32.xlu0 %v5156, 20
    %v5194 = vpop.permute.xlu0 %5193
    %5195 = vrot.lane.b32.xlu0 %v5157, 20
    %v5196 = vpop.permute.xlu0 %5195
    %5197 = vrot.lane.b32.xlu0 %v5158, 20
    %v5198 = vpop.permute.xlu0 %5197
    %5199 = vrot.lane.b32.xlu0 %v5159, 20
    %v5200 = vpop.permute.xlu0 %5199
    %5201 = vrot.lane.b32.xlu0 %v5160, 20
    %v5202 = vpop.permute.xlu0 %5201
    %5203 = vrot.lane.b32.xlu0 %v5161, 20
    %v5204 = vpop.permute.xlu0 %5203
    %5205 = vrot.lane.b32.xlu0 %v5162, 20
    %v5206 = vpop.permute.xlu0 %5205
    %5207 = vrot.lane.b32.xlu0 %v5163, 20
    %v5208 = vpop.permute.xlu0 %5207
    %5209 = vrot.lane.b32.xlu0 %v5164, 20
    %v5210 = vpop.permute.xlu0 %5209
    %5211 = vrot.lane.b32.xlu0 %v5165, 20
    %v5212 = vpop.permute.xlu0 %5211
    %5213 = vrot.lane.b32.xlu0 %v5166, 20
    %v5214 = vpop.permute.xlu0 %5213
    %5215 = vrot.lane.b32.xlu0 %v5167, 20
    %v5216 = vpop.permute.xlu0 %5215
    %5217 = vrot.lane.b32.xlu0 %v5168, 20
    %v5218 = vpop.permute.xlu0 %5217
    %5219 = vrot.lane.b32.xlu0 %v5169, 20
    %v5220 = vpop.permute.xlu0 %5219
    %5221 = vrot.lane.b32.xlu0 %v5170, 20
    %v5222 = vpop.permute.xlu0 %5221
    %5223 = vrot.lane.b32.xlu0 %v5171, 20
    %v5224 = vpop.permute.xlu0 %5223
    %5225 = vrot.lane.b32.xlu0 %v5172, 20
    %v5226 = vpop.permute.xlu0 %5225
    %5227 = vrot.lane.b32.xlu0 %v5173, 20
    %v5228 = vpop.permute.xlu0 %5227
    %5229 = vrot.lane.b32.xlu0 %v5174, 20
    %v5230 = vpop.permute.xlu0 %5229
    %5231 = vrot.lane.b32.xlu0 %v5175, 20
    %v5232 = vpop.permute.xlu0 %5231
    %5233 = vrot.lane.b32.xlu0 %v5176, 20
    %v5234 = vpop.permute.xlu0 %5233
    %5235 = vrot.lane.b32.xlu0 %v5177, 20
    %v5236 = vpop.permute.xlu0 %5235
    %5237 = vrot.lane.b32.xlu0 %v5178, 20
    %v5238 = vpop.permute.xlu0 %5237
    %5239 = vrot.lane.b32.xlu0 %v5179, 20
    %v5240 = vpop.permute.xlu0 %5239
    %5241 = vrot.lane.b32.xlu0 %v5180, 20
    %v5242 = vpop.permute.xlu0 %5241
    %5243 = vrot.lane.b32.xlu0 %v5181, 20
    %v5244 = vpop.permute.xlu0 %5243
    %5245 = vrot.lane.b32.xlu0 %v5182, 20
    %v5246 = vpop.permute.xlu0 %5245
    %v5247 = vunpack.c.l.b16 %v3051
    %v5248 = vunpack.c.l.b16 %v3060
    %v5249 = vunpack.c.l.b16 %v3073
    %v5250 = vunpack.c.l.b16 %v3082
    %v5251 = vunpack.c.l.b16 %v3095
    %v5252 = vunpack.c.l.b16 %v3104
    %v5253 = vunpack.c.l.b16 %v3117
    %v5254 = vunpack.c.l.b16 %v3126
    %v5255 = vunpack.c.l.b16 %v3139
    %v5256 = vunpack.c.l.b16 %v3148
    %v5257 = vunpack.c.l.b16 %v3161
    %v5258 = vunpack.c.l.b16 %v3170
    %v5259 = vunpack.c.l.b16 %v3183
    %v5260 = vunpack.c.l.b16 %v3192
    %v5261 = vunpack.c.l.b16 %v3205
    %v5262 = vunpack.c.l.b16 %v3214
    %v5263 = vunpack.c.l.b16 %v3227
    %v5264 = vunpack.c.l.b16 %v3236
    %v5265 = vunpack.c.l.b16 %v3249
    %v5266 = vunpack.c.l.b16 %v3258
    %v5267 = vunpack.c.l.b16 %v3271
    %v5268 = vunpack.c.l.b16 %v3280
    %v5269 = vunpack.c.l.b16 %v3293
    %v5270 = vunpack.c.l.b16 %v3302
    %v5271 = vunpack.c.l.b16 %v3315
    %v5272 = vunpack.c.l.b16 %v3324
    %v5273 = vunpack.c.l.b16 %v3337
    %v5274 = vunpack.c.l.b16 %v3346
    %v5275 = vunpack.c.l.b16 %v3359
    %v5276 = vunpack.c.l.b16 %v3368
    %v5277 = vunpack.c.l.b16 %v3381
    %v5278 = vunpack.c.l.b16 %v3390
    %v5279 = vunpack.c.l.b16 %v3403
    %v5280 = vunpack.c.l.b16 %v3412
    %v5281 = vunpack.c.l.b16 %v3425
    %v5282 = vunpack.c.l.b16 %v3434
    %v5283 = vunpack.c.l.b16 %v3447
    %v5284 = vunpack.c.l.b16 %v3456
    %v5285 = vunpack.c.l.b16 %v3469
    %v5286 = vunpack.c.l.b16 %v3478
    %v5287 = vunpack.c.l.b16 %v3491
    %v5288 = vunpack.c.l.b16 %v3500
    %v5289 = vunpack.c.l.b16 %v3513
    %v5290 = vunpack.c.l.b16 %v3522
    %v5291 = vunpack.c.l.b16 %v3535
    %v5292 = vunpack.c.l.b16 %v3544
    %v5293 = vunpack.c.l.b16 %v3557
    %v5294 = vunpack.c.l.b16 %v3566
    %v5295 = vunpack.c.l.b16 %v3579
    %v5296 = vunpack.c.l.b16 %v3588
    %v5297 = vunpack.c.l.b16 %v3601
    %v5298 = vunpack.c.l.b16 %v3610
    %v5299 = vunpack.c.l.b16 %v3623
    %v5300 = vunpack.c.l.b16 %v3632
    %v5301 = vunpack.c.l.b16 %v3645
    %v5302 = vunpack.c.l.b16 %v3654
    %v5303 = vunpack.c.l.b16 %v3667
    %v5304 = vunpack.c.l.b16 %v3676
    %v5305 = vunpack.c.l.b16 %v3689
    %v5306 = vunpack.c.l.b16 %v3698
    %v5307 = vunpack.c.l.b16 %v3711
    %v5308 = vunpack.c.l.b16 %v3720
    %v5309 = vunpack.c.l.b16 %v3733
    %v5310 = vunpack.c.l.b16 %v3742
    %v5311 = vpack.c.b16 %v5248, %v5247
    %v5312 = vpack.c.b16 %v5250, %v5249
    %v5313 = vpack.c.b16 %v5252, %v5251
    %v5314 = vpack.c.b16 %v5254, %v5253
    %v5315 = vpack.c.b16 %v5256, %v5255
    %v5316 = vpack.c.b16 %v5258, %v5257
    %v5317 = vpack.c.b16 %v5260, %v5259
    %v5318 = vpack.c.b16 %v5262, %v5261
    %v5319 = vpack.c.b16 %v5264, %v5263
    %v5320 = vpack.c.b16 %v5266, %v5265
    %v5321 = vpack.c.b16 %v5268, %v5267
    %v5322 = vpack.c.b16 %v5270, %v5269
    %v5323 = vpack.c.b16 %v5272, %v5271
    %v5324 = vpack.c.b16 %v5274, %v5273
    %v5325 = vpack.c.b16 %v5276, %v5275
    %v5326 = vpack.c.b16 %v5278, %v5277
    %v5327 = vpack.c.b16 %v5280, %v5279
    %v5328 = vpack.c.b16 %v5282, %v5281
    %v5329 = vpack.c.b16 %v5284, %v5283
    %v5330 = vpack.c.b16 %v5286, %v5285
    %v5331 = vpack.c.b16 %v5288, %v5287
    %v5332 = vpack.c.b16 %v5290, %v5289
    %v5333 = vpack.c.b16 %v5292, %v5291
    %v5334 = vpack.c.b16 %v5294, %v5293
    %v5335 = vpack.c.b16 %v5296, %v5295
    %v5336 = vpack.c.b16 %v5298, %v5297
    %v5337 = vpack.c.b16 %v5300, %v5299
    %v5338 = vpack.c.b16 %v5302, %v5301
    %v5339 = vpack.c.b16 %v5304, %v5303
    %v5340 = vpack.c.b16 %v5306, %v5305
    %v5341 = vpack.c.b16 %v5308, %v5307
    %v5342 = vpack.c.b16 %v5310, %v5309
    %5343 = vrot.lane.b32.xlu0 %v5311, 24
    %v5344 = vpop.permute.xlu0 %5343
    %5345 = vrot.lane.b32.xlu0 %v5312, 24
    %v5346 = vpop.permute.xlu0 %5345
    %5347 = vrot.lane.b32.xlu0 %v5313, 24
    %v5348 = vpop.permute.xlu0 %5347
    %5349 = vrot.lane.b32.xlu0 %v5314, 24
    %v5350 = vpop.permute.xlu0 %5349
    %5351 = vrot.lane.b32.xlu0 %v5315, 24
    %v5352 = vpop.permute.xlu0 %5351
    %5353 = vrot.lane.b32.xlu0 %v5316, 24
    %v5354 = vpop.permute.xlu0 %5353
    %5355 = vrot.lane.b32.xlu0 %v5317, 24
    %v5356 = vpop.permute.xlu0 %5355
    %5357 = vrot.lane.b32.xlu0 %v5318, 24
    %v5358 = vpop.permute.xlu0 %5357
    %5359 = vrot.lane.b32.xlu0 %v5319, 24
    %v5360 = vpop.permute.xlu0 %5359
    %5361 = vrot.lane.b32.xlu0 %v5320, 24
    %v5362 = vpop.permute.xlu0 %5361
    %5363 = vrot.lane.b32.xlu0 %v5321, 24
    %v5364 = vpop.permute.xlu0 %5363
    %5365 = vrot.lane.b32.xlu0 %v5322, 24
    %v5366 = vpop.permute.xlu0 %5365
    %5367 = vrot.lane.b32.xlu0 %v5323, 24
    %v5368 = vpop.permute.xlu0 %5367
    %5369 = vrot.lane.b32.xlu0 %v5324, 24
    %v5370 = vpop.permute.xlu0 %5369
    %5371 = vrot.lane.b32.xlu0 %v5325, 24
    %v5372 = vpop.permute.xlu0 %5371
    %5373 = vrot.lane.b32.xlu0 %v5326, 24
    %v5374 = vpop.permute.xlu0 %5373
    %5375 = vrot.lane.b32.xlu0 %v5327, 24
    %v5376 = vpop.permute.xlu0 %5375
    %5377 = vrot.lane.b32.xlu0 %v5328, 24
    %v5378 = vpop.permute.xlu0 %5377
    %5379 = vrot.lane.b32.xlu0 %v5329, 24
    %v5380 = vpop.permute.xlu0 %5379
    %5381 = vrot.lane.b32.xlu0 %v5330, 24
    %v5382 = vpop.permute.xlu0 %5381
    %5383 = vrot.lane.b32.xlu0 %v5331, 24
    %v5384 = vpop.permute.xlu0 %5383
    %5385 = vrot.lane.b32.xlu0 %v5332, 24
    %v5386 = vpop.permute.xlu0 %5385
    %5387 = vrot.lane.b32.xlu0 %v5333, 24
    %v5388 = vpop.permute.xlu0 %5387
    %5389 = vrot.lane.b32.xlu0 %v5334, 24
    %v5390 = vpop.permute.xlu0 %5389
    %5391 = vrot.lane.b32.xlu0 %v5335, 24
    %v5392 = vpop.permute.xlu0 %5391
    %5393 = vrot.lane.b32.xlu0 %v5336, 24
    %v5394 = vpop.permute.xlu0 %5393
    %5395 = vrot.lane.b32.xlu0 %v5337, 24
    %v5396 = vpop.permute.xlu0 %5395
    %5397 = vrot.lane.b32.xlu0 %v5338, 24
    %v5398 = vpop.permute.xlu0 %5397
    %5399 = vrot.lane.b32.xlu0 %v5339, 24
    %v5400 = vpop.permute.xlu0 %5399
    %5401 = vrot.lane.b32.xlu0 %v5340, 24
    %v5402 = vpop.permute.xlu0 %5401
    %5403 = vrot.lane.b32.xlu0 %v5341, 24
    %v5404 = vpop.permute.xlu0 %5403
    %5405 = vrot.lane.b32.xlu0 %v5342, 24
    %v5406 = vpop.permute.xlu0 %5405
    %v5471 = vunpack.c.l.b16 %v2944
    %v5472 = vunpack.c.l.b16 %v2945
    %v5473 = vunpack.c.l.b16 %v2947
    %v5474 = vunpack.c.l.b16 %v2948
    %v5475 = vunpack.c.l.b16 %v2950
    %v5476 = vunpack.c.l.b16 %v2951
    %v5477 = vunpack.c.l.b16 %v2953
    %v5478 = vunpack.c.l.b16 %v2954
    %v5479 = vunpack.c.l.b16 %v2956
    %v5480 = vunpack.c.l.b16 %v2957
    %v5481 = vunpack.c.l.b16 %v2959
    %v5482 = vunpack.c.l.b16 %v2960
    %v5483 = vunpack.c.l.b16 %v2962
    %v5484 = vunpack.c.l.b16 %v2963
    %v5485 = vunpack.c.l.b16 %v2965
    %v5486 = vunpack.c.l.b16 %v2966
    %v5487 = vunpack.c.l.b16 %v2968
    %v5488 = vunpack.c.l.b16 %v2969
    %v5489 = vunpack.c.l.b16 %v2971
    %v5490 = vunpack.c.l.b16 %v2972
    %v5491 = vunpack.c.l.b16 %v2974
    %v5492 = vunpack.c.l.b16 %v2975
    %v5493 = vunpack.c.l.b16 %v2977
    %v5494 = vunpack.c.l.b16 %v2978
    %v5495 = vunpack.c.l.b16 %v2980
    %v5496 = vunpack.c.l.b16 %v2981
    %v5497 = vunpack.c.l.b16 %v2983
    %v5498 = vunpack.c.l.b16 %v2984
    %v5499 = vunpack.c.l.b16 %v2986
    %v5500 = vunpack.c.l.b16 %v2987
    %v5501 = vunpack.c.l.b16 %v2989
    %v5502 = vunpack.c.l.b16 %v2990
    %v5503 = vunpack.c.l.b16 %v2992
    %v5504 = vunpack.c.l.b16 %v2993
    %v5505 = vunpack.c.l.b16 %v2995
    %v5506 = vunpack.c.l.b16 %v2996
    %v5507 = vunpack.c.l.b16 %v2998
    %v5508 = vunpack.c.l.b16 %v2999
    %v5509 = vunpack.c.l.b16 %v3001
    %v5510 = vunpack.c.l.b16 %v3002
    %v5511 = vunpack.c.l.b16 %v3004
    %v5512 = vunpack.c.l.b16 %v3005
    %v5513 = vunpack.c.l.b16 %v3007
    %v5514 = vunpack.c.l.b16 %v3008
    %v5515 = vunpack.c.l.b16 %v3010
    %v5516 = vunpack.c.l.b16 %v3011
    %v5517 = vunpack.c.l.b16 %v3013
    %v5518 = vunpack.c.l.b16 %v3014
    %v5519 = vunpack.c.l.b16 %v3016
    %v5520 = vunpack.c.l.b16 %v3017
    %v5521 = vunpack.c.l.b16 %v3019
    %v5522 = vunpack.c.l.b16 %v3020
    %v5523 = vunpack.c.l.b16 %v3022
    %v5524 = vunpack.c.l.b16 %v3023
    %v5525 = vunpack.c.l.b16 %v3025
    %v5526 = vunpack.c.l.b16 %v3026
    %v5527 = vunpack.c.l.b16 %v3028
    %v5528 = vunpack.c.l.b16 %v3029
    %v5529 = vunpack.c.l.b16 %v3031
    %v5530 = vunpack.c.l.b16 %v3032
    %v5531 = vunpack.c.l.b16 %v3034
    %v5532 = vunpack.c.l.b16 %v3035
    %v5533 = vunpack.c.l.b16 %v3037
    %v5534 = vunpack.c.l.b16 %v3038
    %v5535 = vpack.c.b16 %v5472, %v5471
    %v5536 = vpack.c.b16 %v5474, %v5473
    %v5537 = vpack.c.b16 %v5476, %v5475
    %v5538 = vpack.c.b16 %v5478, %v5477
    %v5539 = vpack.c.b16 %v5480, %v5479
    %v5540 = vpack.c.b16 %v5482, %v5481
    %v5541 = vpack.c.b16 %v5484, %v5483
    %v5542 = vpack.c.b16 %v5486, %v5485
    %v5543 = vpack.c.b16 %v5488, %v5487
    %v5544 = vpack.c.b16 %v5490, %v5489
    %v5545 = vpack.c.b16 %v5492, %v5491
    %v5546 = vpack.c.b16 %v5494, %v5493
    %v5547 = vpack.c.b16 %v5496, %v5495
    %v5548 = vpack.c.b16 %v5498, %v5497
    %v5549 = vpack.c.b16 %v5500, %v5499
    %v5550 = vpack.c.b16 %v5502, %v5501
    %v5551 = vpack.c.b16 %v5504, %v5503
    %v5552 = vpack.c.b16 %v5506, %v5505
    %v5553 = vpack.c.b16 %v5508, %v5507
    %v5554 = vpack.c.b16 %v5510, %v5509
    %v5555 = vpack.c.b16 %v5512, %v5511
    %v5556 = vpack.c.b16 %v5514, %v5513
    %v5557 = vpack.c.b16 %v5516, %v5515
    %v5558 = vpack.c.b16 %v5518, %v5517
    %v5559 = vpack.c.b16 %v5520, %v5519
    %v5560 = vpack.c.b16 %v5522, %v5521
    %v5561 = vpack.c.b16 %v5524, %v5523
    %v5562 = vpack.c.b16 %v5526, %v5525
    %v5563 = vpack.c.b16 %v5528, %v5527
    %v5564 = vpack.c.b16 %v5530, %v5529
    %v5565 = vpack.c.b16 %v5532, %v5531
    %v5566 = vpack.c.b16 %v5534, %v5533
    %5567 = vrot.lane.b32.xlu0 %v5535, 28
    %v5568 = vpop.permute.xlu0 %5567
    %5569 = vrot.lane.b32.xlu0 %v5536, 28
    %v5570 = vpop.permute.xlu0 %5569
    %5571 = vrot.lane.b32.xlu0 %v5537, 28
    %v5572 = vpop.permute.xlu0 %5571
    %5573 = vrot.lane.b32.xlu0 %v5538, 28
    %v5574 = vpop.permute.xlu0 %5573
    %5575 = vrot.lane.b32.xlu0 %v5539, 28
    %v5576 = vpop.permute.xlu0 %5575
    %5577 = vrot.lane.b32.xlu0 %v5540, 28
    %v5578 = vpop.permute.xlu0 %5577
    %5579 = vrot.lane.b32.xlu0 %v5541, 28
    %v5580 = vpop.permute.xlu0 %5579
    %5581 = vrot.lane.b32.xlu0 %v5542, 28
    %v5582 = vpop.permute.xlu0 %5581
    %5583 = vrot.lane.b32.xlu0 %v5543, 28
    %v5584 = vpop.permute.xlu0 %5583
    %5585 = vrot.lane.b32.xlu0 %v5544, 28
    %v5586 = vpop.permute.xlu0 %5585
    %5587 = vrot.lane.b32.xlu0 %v5545, 28
    %v5588 = vpop.permute.xlu0 %5587
    %5589 = vrot.lane.b32.xlu0 %v5546, 28
    %v5590 = vpop.permute.xlu0 %5589
    %5591 = vrot.lane.b32.xlu0 %v5547, 28
    %v5592 = vpop.permute.xlu0 %5591
    %5593 = vrot.lane.b32.xlu0 %v5548, 28
    %v5594 = vpop.permute.xlu0 %5593
    %5595 = vrot.lane.b32.xlu0 %v5549, 28
    %v5596 = vpop.permute.xlu0 %5595
    %5597 = vrot.lane.b32.xlu0 %v5550, 28
    %v5598 = vpop.permute.xlu0 %5597
    %5599 = vrot.lane.b32.xlu0 %v5551, 28
    %v5600 = vpop.permute.xlu0 %5599
    %5601 = vrot.lane.b32.xlu0 %v5552, 28
    %v5602 = vpop.permute.xlu0 %5601
    %5603 = vrot.lane.b32.xlu0 %v5553, 28
    %v5604 = vpop.permute.xlu0 %5603
    %5605 = vrot.lane.b32.xlu0 %v5554, 28
    %v5606 = vpop.permute.xlu0 %5605
    %5607 = vrot.lane.b32.xlu0 %v5555, 28
    %v5608 = vpop.permute.xlu0 %5607
    %5609 = vrot.lane.b32.xlu0 %v5556, 28
    %v5610 = vpop.permute.xlu0 %5609
    %5611 = vrot.lane.b32.xlu0 %v5557, 28
    %v5612 = vpop.permute.xlu0 %5611
    %5613 = vrot.lane.b32.xlu0 %v5558, 28
    %v5614 = vpop.permute.xlu0 %5613
    %5615 = vrot.lane.b32.xlu0 %v5559, 28
    %v5616 = vpop.permute.xlu0 %5615
    %5617 = vrot.lane.b32.xlu0 %v5560, 28
    %v5618 = vpop.permute.xlu0 %5617
    %5619 = vrot.lane.b32.xlu0 %v5561, 28
    %v5620 = vpop.permute.xlu0 %5619
    %5621 = vrot.lane.b32.xlu0 %v5562, 28
    %v5622 = vpop.permute.xlu0 %5621
    %5623 = vrot.lane.b32.xlu0 %v5563, 28
    %v5624 = vpop.permute.xlu0 %5623
    %5625 = vrot.lane.b32.xlu0 %v5564, 28
    %v5626 = vpop.permute.xlu0 %5625
    %5627 = vrot.lane.b32.xlu0 %v5565, 28
    %v5628 = vpop.permute.xlu0 %5627
    %5629 = vrot.lane.b32.xlu0 %v5566, 28
    %v5630 = vpop.permute.xlu0 %5629
    %v5631 = vunpack.c.l.b16 %v3780
    %v5632 = vunpack.c.l.b16 %v3788
    %v5633 = vunpack.c.l.b16 %v3794
    %v5634 = vunpack.c.l.b16 %v3802
    %v5635 = vunpack.c.l.b16 %v3808
    %v5636 = vunpack.c.l.b16 %v3816
    %v5637 = vunpack.c.l.b16 %v3822
    %v5638 = vunpack.c.l.b16 %v3830
    %v5639 = vunpack.c.l.b16 %v3836
    %v5640 = vunpack.c.l.b16 %v3844
    %v5641 = vunpack.c.l.b16 %v3850
    %v5642 = vunpack.c.l.b16 %v3858
    %v5643 = vunpack.c.l.b16 %v3864
    %v5644 = vunpack.c.l.b16 %v3872
    %v5645 = vunpack.c.l.b16 %v3878
    %v5646 = vunpack.c.l.b16 %v3886
    %v5647 = vunpack.c.l.b16 %v3892
    %v5648 = vunpack.c.l.b16 %v3900
    %v5649 = vunpack.c.l.b16 %v3906
    %v5650 = vunpack.c.l.b16 %v3914
    %v5651 = vunpack.c.l.b16 %v3920
    %v5652 = vunpack.c.l.b16 %v3928
    %v5653 = vunpack.c.l.b16 %v3934
    %v5654 = vunpack.c.l.b16 %v3942
    %v5655 = vunpack.c.l.b16 %v3948
    %v5656 = vunpack.c.l.b16 %v3956
    %v5657 = vunpack.c.l.b16 %v3962
    %v5658 = vunpack.c.l.b16 %v3970
    %v5659 = vunpack.c.l.b16 %v3976
    %v5660 = vunpack.c.l.b16 %v3984
    %v5661 = vunpack.c.l.b16 %v3990
    %v5662 = vunpack.c.l.b16 %v3998
    %v5663 = vunpack.c.l.b16 %v4004
    %v5664 = vunpack.c.l.b16 %v4012
    %v5665 = vunpack.c.l.b16 %v4018
    %v5666 = vunpack.c.l.b16 %v4026
    %v5667 = vunpack.c.l.b16 %v4032
    %v5668 = vunpack.c.l.b16 %v4040
    %v5669 = vunpack.c.l.b16 %v4046
    %v5670 = vunpack.c.l.b16 %v4054
    %v5671 = vunpack.c.l.b16 %v4060
    %v5672 = vunpack.c.l.b16 %v4068
    %v5673 = vunpack.c.l.b16 %v4074
    %v5674 = vunpack.c.l.b16 %v4082
    %v5675 = vunpack.c.l.b16 %v4088
    %v5676 = vunpack.c.l.b16 %v4096
    %v5677 = vunpack.c.l.b16 %v4102
    %v5678 = vunpack.c.l.b16 %v4110
    %v5679 = vunpack.c.l.b16 %v4116
    %v5680 = vunpack.c.l.b16 %v4124
    %v5681 = vunpack.c.l.b16 %v4130
    %v5682 = vunpack.c.l.b16 %v4138
    %v5683 = vunpack.c.l.b16 %v4144
    %v5684 = vunpack.c.l.b16 %v4152
    %v5685 = vunpack.c.l.b16 %v4158
    %v5686 = vunpack.c.l.b16 %v4166
    %v5687 = vunpack.c.l.b16 %v4172
    %v5688 = vunpack.c.l.b16 %v4180
    %v5689 = vunpack.c.l.b16 %v4186
    %v5690 = vunpack.c.l.b16 %v4194
    %v5691 = vunpack.c.l.b16 %v4200
    %v5692 = vunpack.c.l.b16 %v4208
    %v5693 = vunpack.c.l.b16 %v4214
    %v5694 = vunpack.c.l.b16 %v4222
    %v5695 = vpack.c.b16 %v5632, %v5631
    %v5696 = vpack.c.b16 %v5634, %v5633
    %v5697 = vpack.c.b16 %v5636, %v5635
    %v5698 = vpack.c.b16 %v5638, %v5637
    %v5699 = vpack.c.b16 %v5640, %v5639
    %v5700 = vpack.c.b16 %v5642, %v5641
    %v5701 = vpack.c.b16 %v5644, %v5643
    %v5702 = vpack.c.b16 %v5646, %v5645
    %v5703 = vpack.c.b16 %v5648, %v5647
    %v5704 = vpack.c.b16 %v5650, %v5649
    %v5705 = vpack.c.b16 %v5652, %v5651
    %v5706 = vpack.c.b16 %v5654, %v5653
    %v5707 = vpack.c.b16 %v5656, %v5655
    %v5708 = vpack.c.b16 %v5658, %v5657
    %v5709 = vpack.c.b16 %v5660, %v5659
    %v5710 = vpack.c.b16 %v5662, %v5661
    %v5711 = vpack.c.b16 %v5664, %v5663
    %v5712 = vpack.c.b16 %v5666, %v5665
    %v5713 = vpack.c.b16 %v5668, %v5667
    %v5714 = vpack.c.b16 %v5670, %v5669
    %v5715 = vpack.c.b16 %v5672, %v5671
    %v5716 = vpack.c.b16 %v5674, %v5673
    %v5717 = vpack.c.b16 %v5676, %v5675
    %v5718 = vpack.c.b16 %v5678, %v5677
    %v5719 = vpack.c.b16 %v5680, %v5679
    %v5720 = vpack.c.b16 %v5682, %v5681
    %v5721 = vpack.c.b16 %v5684, %v5683
    %v5722 = vpack.c.b16 %v5686, %v5685
    %v5723 = vpack.c.b16 %v5688, %v5687
    %v5724 = vpack.c.b16 %v5690, %v5689
    %v5725 = vpack.c.b16 %v5692, %v5691
    %v5726 = vpack.c.b16 %v5694, %v5693
    %5727 = vrot.lane.b32.xlu0 %v5695, 32
    %v5728 = vpop.permute.xlu0 %5727
    %5729 = vrot.lane.b32.xlu0 %v5696, 32
    %v5730 = vpop.permute.xlu0 %5729
    %5731 = vrot.lane.b32.xlu0 %v5697, 32
    %v5732 = vpop.permute.xlu0 %5731
    %5733 = vrot.lane.b32.xlu0 %v5698, 32
    %v5734 = vpop.permute.xlu0 %5733
    %5735 = vrot.lane.b32.xlu0 %v5699, 32
    %v5736 = vpop.permute.xlu0 %5735
    %5737 = vrot.lane.b32.xlu0 %v5700, 32
    %v5738 = vpop.permute.xlu0 %5737
    %5739 = vrot.lane.b32.xlu0 %v5701, 32
    %v5740 = vpop.permute.xlu0 %5739
    %5741 = vrot.lane.b32.xlu0 %v5702, 32
    %v5742 = vpop.permute.xlu0 %5741
    %5743 = vrot.lane.b32.xlu0 %v5703, 32
    %v5744 = vpop.permute.xlu0 %5743
    %5745 = vrot.lane.b32.xlu0 %v5704, 32
    %v5746 = vpop.permute.xlu0 %5745
    %5747 = vrot.lane.b32.xlu0 %v5705, 32
    %v5748 = vpop.permute.xlu0 %5747
    %5749 = vrot.lane.b32.xlu0 %v5706, 32
    %v5750 = vpop.permute.xlu0 %5749
    %5751 = vrot.lane.b32.xlu0 %v5707, 32
    %v5752 = vpop.permute.xlu0 %5751
    %5753 = vrot.lane.b32.xlu0 %v5708, 32
    %v5754 = vpop.permute.xlu0 %5753
    %5755 = vrot.lane.b32.xlu0 %v5709, 32
    %v5756 = vpop.permute.xlu0 %5755
    %5757 = vrot.lane.b32.xlu0 %v5710, 32
    %v5758 = vpop.permute.xlu0 %5757
    %5759 = vrot.lane.b32.xlu0 %v5711, 32
    %v5760 = vpop.permute.xlu0 %5759
    %5761 = vrot.lane.b32.xlu0 %v5712, 32
    %v5762 = vpop.permute.xlu0 %5761
    %5763 = vrot.lane.b32.xlu0 %v5713, 32
    %v5764 = vpop.permute.xlu0 %5763
    %5765 = vrot.lane.b32.xlu0 %v5714, 32
    %v5766 = vpop.permute.xlu0 %5765
    %5767 = vrot.lane.b32.xlu0 %v5715, 32
    %v5768 = vpop.permute.xlu0 %5767
    %5769 = vrot.lane.b32.xlu0 %v5716, 32
    %v5770 = vpop.permute.xlu0 %5769
    %5771 = vrot.lane.b32.xlu0 %v5717, 32
    %v5772 = vpop.permute.xlu0 %5771
    %5773 = vrot.lane.b32.xlu0 %v5718, 32
    %v5774 = vpop.permute.xlu0 %5773
    %5775 = vrot.lane.b32.xlu0 %v5719, 32
    %v5776 = vpop.permute.xlu0 %5775
    %5777 = vrot.lane.b32.xlu0 %v5720, 32
    %v5778 = vpop.permute.xlu0 %5777
    %5779 = vrot.lane.b32.xlu0 %v5721, 32
    %v5780 = vpop.permute.xlu0 %5779
    %5781 = vrot.lane.b32.xlu0 %v5722, 32
    %v5782 = vpop.permute.xlu0 %5781
    %5783 = vrot.lane.b32.xlu0 %v5723, 32
    %v5784 = vpop.permute.xlu0 %5783
    %5785 = vrot.lane.b32.xlu0 %v5724, 32
    %v5786 = vpop.permute.xlu0 %5785
    %5787 = vrot.lane.b32.xlu0 %v5725, 32
    %v5788 = vpop.permute.xlu0 %5787
    %5789 = vrot.lane.b32.xlu0 %v5726, 32
    %v5790 = vpop.permute.xlu0 %5789
    %vm5791 = vcmask 31744
    %v5794 = vsel %vm5791, %v4287, %v4480
    %v5797 = vsel %vm5791, %v4288, %v4482
    %v5800 = vsel %vm5791, %v4289, %v4484
    %v5803 = vsel %vm5791, %v4290, %v4486
    %v5806 = vsel %vm5791, %v4291, %v4488
    %v5809 = vsel %vm5791, %v4292, %v4490
    %v5812 = vsel %vm5791, %v4293, %v4492
    %v5815 = vsel %vm5791, %v4294, %v4494
    %v5818 = vsel %vm5791, %v4295, %v4496
    %v5821 = vsel %vm5791, %v4296, %v4498
    %v5824 = vsel %vm5791, %v4297, %v4500
    %v5827 = vsel %vm5791, %v4298, %v4502
    %v5830 = vsel %vm5791, %v4299, %v4504
    %v5833 = vsel %vm5791, %v4300, %v4506
    %v5836 = vsel %vm5791, %v4301, %v4508
    %v5839 = vsel %vm5791, %v4302, %v4510
    %v5842 = vsel %vm5791, %v4303, %v4512
    %v5845 = vsel %vm5791, %v4304, %v4514
    %v5848 = vsel %vm5791, %v4305, %v4516
    %v5851 = vsel %vm5791, %v4306, %v4518
    %v5854 = vsel %vm5791, %v4307, %v4520
    %v5857 = vsel %vm5791, %v4308, %v4522
    %v5860 = vsel %vm5791, %v4309, %v4524
    %v5863 = vsel %vm5791, %v4310, %v4526
    %v5866 = vsel %vm5791, %v4311, %v4528
    %v5869 = vsel %vm5791, %v4312, %v4530
    %v5872 = vsel %vm5791, %v4313, %v4532
    %v5875 = vsel %vm5791, %v4314, %v4534
    %v5878 = vsel %vm5791, %v4315, %v4536
    %v5881 = vsel %vm5791, %v4316, %v4538
    %v5884 = vsel %vm5791, %v4317, %v4540
    %v5887 = vsel %vm5791, %v4318, %v4542
    %vm5888 = vcmask 64512
    %v5890 = vsel %vm5888, %v5794, %v4640
    %v5892 = vsel %vm5888, %v5797, %v4642
    %v5894 = vsel %vm5888, %v5800, %v4644
    %v5896 = vsel %vm5888, %v5803, %v4646
    %v5898 = vsel %vm5888, %v5806, %v4648
    %v5900 = vsel %vm5888, %v5809, %v4650
    %v5902 = vsel %vm5888, %v5812, %v4652
    %v5904 = vsel %vm5888, %v5815, %v4654
    %v5906 = vsel %vm5888, %v5818, %v4656
    %v5908 = vsel %vm5888, %v5821, %v4658
    %v5910 = vsel %vm5888, %v5824, %v4660
    %v5912 = vsel %vm5888, %v5827, %v4662
    %v5914 = vsel %vm5888, %v5830, %v4664
    %v5916 = vsel %vm5888, %v5833, %v4666
    %v5918 = vsel %vm5888, %v5836, %v4668
    %v5920 = vsel %vm5888, %v5839, %v4670
    %v5922 = vsel %vm5888, %v5842, %v4672
    %v5924 = vsel %vm5888, %v5845, %v4674
    %v5926 = vsel %vm5888, %v5848, %v4676
    %v5928 = vsel %vm5888, %v5851, %v4678
    %v5930 = vsel %vm5888, %v5854, %v4680
    %v5932 = vsel %vm5888, %v5857, %v4682
    %v5934 = vsel %vm5888, %v5860, %v4684
    %v5936 = vsel %vm5888, %v5863, %v4686
    %v5938 = vsel %vm5888, %v5866, %v4688
    %v5940 = vsel %vm5888, %v5869, %v4690
    %v5942 = vsel %vm5888, %v5872, %v4692
    %v5944 = vsel %vm5888, %v5875, %v4694
    %v5946 = vsel %vm5888, %v5878, %v4696
    %v5948 = vsel %vm5888, %v5881, %v4698
    %v5950 = vsel %vm5888, %v5884, %v4700
    %v5952 = vsel %vm5888, %v5887, %v4702
    %vm5953 = vcmask 97280
    %v5955 = vsel %vm5953, %v5890, %v4800
    %v5957 = vsel %vm5953, %v5892, %v4802
    %v5959 = vsel %vm5953, %v5894, %v4804
    %v5961 = vsel %vm5953, %v5896, %v4806
    %v5963 = vsel %vm5953, %v5898, %v4808
    %v5965 = vsel %vm5953, %v5900, %v4810
    %v5967 = vsel %vm5953, %v5902, %v4812
    %v5969 = vsel %vm5953, %v5904, %v4814
    %v5971 = vsel %vm5953, %v5906, %v4816
    %v5973 = vsel %vm5953, %v5908, %v4818
    %v5975 = vsel %vm5953, %v5910, %v4820
    %v5977 = vsel %vm5953, %v5912, %v4822
    %v5979 = vsel %vm5953, %v5914, %v4824
    %v5981 = vsel %vm5953, %v5916, %v4826
    %v5983 = vsel %vm5953, %v5918, %v4828
    %v5985 = vsel %vm5953, %v5920, %v4830
    %v5987 = vsel %vm5953, %v5922, %v4832
    %v5989 = vsel %vm5953, %v5924, %v4834
    %v5991 = vsel %vm5953, %v5926, %v4836
    %v5993 = vsel %vm5953, %v5928, %v4838
    %v5995 = vsel %vm5953, %v5930, %v4840
    %v5997 = vsel %vm5953, %v5932, %v4842
    %v5999 = vsel %vm5953, %v5934, %v4844
    %v6001 = vsel %vm5953, %v5936, %v4846
    %v6003 = vsel %vm5953, %v5938, %v4848
    %v6005 = vsel %vm5953, %v5940, %v4850
    %v6007 = vsel %vm5953, %v5942, %v4852
    %v6009 = vsel %vm5953, %v5944, %v4854
    %v6011 = vsel %vm5953, %v5946, %v4856
    %v6013 = vsel %vm5953, %v5948, %v4858
    %v6015 = vsel %vm5953, %v5950, %v4860
    %v6017 = vsel %vm5953, %v5952, %v4862
    %vm6018 = vcmask 130048
    %v6020 = vsel %vm6018, %v5955, %v5024
    %v6022 = vsel %vm6018, %v5957, %v5026
    %v6024 = vsel %vm6018, %v5959, %v5028
    %v6026 = vsel %vm6018, %v5961, %v5030
    %v6028 = vsel %vm6018, %v5963, %v5032
    %v6030 = vsel %vm6018, %v5965, %v5034
    %v6032 = vsel %vm6018, %v5967, %v5036
    %v6034 = vsel %vm6018, %v5969, %v5038
    %v6036 = vsel %vm6018, %v5971, %v5040
    %v6038 = vsel %vm6018, %v5973, %v5042
    %v6040 = vsel %vm6018, %v5975, %v5044
    %v6042 = vsel %vm6018, %v5977, %v5046
    %v6044 = vsel %vm6018, %v5979, %v5048
    %v6046 = vsel %vm6018, %v5981, %v5050
    %v6048 = vsel %vm6018, %v5983, %v5052
    %v6050 = vsel %vm6018, %v5985, %v5054
    %v6052 = vsel %vm6018, %v5987, %v5056
    %v6054 = vsel %vm6018, %v5989, %v5058
    %v6056 = vsel %vm6018, %v5991, %v5060
    %v6058 = vsel %vm6018, %v5993, %v5062
    %v6060 = vsel %vm6018, %v5995, %v5064
    %v6062 = vsel %vm6018, %v5997, %v5066
    %v6064 = vsel %vm6018, %v5999, %v5068
    %v6066 = vsel %vm6018, %v6001, %v5070
    %v6068 = vsel %vm6018, %v6003, %v5072
    %v6070 = vsel %vm6018, %v6005, %v5074
    %v6072 = vsel %vm6018, %v6007, %v5076
    %v6074 = vsel %vm6018, %v6009, %v5078
    %v6076 = vsel %vm6018, %v6011, %v5080
    %v6078 = vsel %vm6018, %v6013, %v5082
    %v6080 = vsel %vm6018, %v6015, %v5084
    %v6082 = vsel %vm6018, %v6017, %v5086
    %vm6083 = vcmask 162816
    %v6085 = vsel %vm6083, %v6020, %v5184
    %v6087 = vsel %vm6083, %v6022, %v5186
    %v6089 = vsel %vm6083, %v6024, %v5188
    %v6091 = vsel %vm6083, %v6026, %v5190
    %v6093 = vsel %vm6083, %v6028, %v5192
    %v6095 = vsel %vm6083, %v6030, %v5194
    %v6097 = vsel %vm6083, %v6032, %v5196
    %v6099 = vsel %vm6083, %v6034, %v5198
    %v6101 = vsel %vm6083, %v6036, %v5200
    %v6103 = vsel %vm6083, %v6038, %v5202
    %v6105 = vsel %vm6083, %v6040, %v5204
    %v6107 = vsel %vm6083, %v6042, %v5206
    %v6109 = vsel %vm6083, %v6044, %v5208
    %v6111 = vsel %vm6083, %v6046, %v5210
    %v6113 = vsel %vm6083, %v6048, %v5212
    %v6115 = vsel %vm6083, %v6050, %v5214
    %v6117 = vsel %vm6083, %v6052, %v5216
    %v6119 = vsel %vm6083, %v6054, %v5218
    %v6121 = vsel %vm6083, %v6056, %v5220
    %v6123 = vsel %vm6083, %v6058, %v5222
    %v6125 = vsel %vm6083, %v6060, %v5224
    %v6127 = vsel %vm6083, %v6062, %v5226
    %v6129 = vsel %vm6083, %v6064, %v5228
    %v6131 = vsel %vm6083, %v6066, %v5230
    %v6133 = vsel %vm6083, %v6068, %v5232
    %v6135 = vsel %vm6083, %v6070, %v5234
    %v6137 = vsel %vm6083, %v6072, %v5236
    %v6139 = vsel %vm6083, %v6074, %v5238
    %v6141 = vsel %vm6083, %v6076, %v5240
    %v6143 = vsel %vm6083, %v6078, %v5242
    %v6145 = vsel %vm6083, %v6080, %v5244
    %v6147 = vsel %vm6083, %v6082, %v5246
    %vm6148 = vcmask 195584
    %v6150 = vsel %vm6148, %v6085, %v5344
    %v6152 = vsel %vm6148, %v6087, %v5346
    %v6154 = vsel %vm6148, %v6089, %v5348
    %v6156 = vsel %vm6148, %v6091, %v5350
    %v6158 = vsel %vm6148, %v6093, %v5352
    %v6160 = vsel %vm6148, %v6095, %v5354
    %v6162 = vsel %vm6148, %v6097, %v5356
    %v6164 = vsel %vm6148, %v6099, %v5358
    %v6166 = vsel %vm6148, %v6101, %v5360
    %v6168 = vsel %vm6148, %v6103, %v5362
    %v6170 = vsel %vm6148, %v6105, %v5364
    %v6172 = vsel %vm6148, %v6107, %v5366
    %v6174 = vsel %vm6148, %v6109, %v5368
    %v6176 = vsel %vm6148, %v6111, %v5370
    %v6178 = vsel %vm6148, %v6113, %v5372
    %v6180 = vsel %vm6148, %v6115, %v5374
    %v6182 = vsel %vm6148, %v6117, %v5376
    %v6184 = vsel %vm6148, %v6119, %v5378
    %v6186 = vsel %vm6148, %v6121, %v5380
    %v6188 = vsel %vm6148, %v6123, %v5382
    %v6190 = vsel %vm6148, %v6125, %v5384
    %v6192 = vsel %vm6148, %v6127, %v5386
    %v6194 = vsel %vm6148, %v6129, %v5388
    %v6196 = vsel %vm6148, %v6131, %v5390
    %v6198 = vsel %vm6148, %v6133, %v5392
    %v6200 = vsel %vm6148, %v6135, %v5394
    %v6202 = vsel %vm6148, %v6137, %v5396
    %v6204 = vsel %vm6148, %v6139, %v5398
    %v6206 = vsel %vm6148, %v6141, %v5400
    %v6208 = vsel %vm6148, %v6143, %v5402
    %v6210 = vsel %vm6148, %v6145, %v5404
    %v6212 = vsel %vm6148, %v6147, %v5406
    %vm6213 = vcmask 228352
    %v6215 = vsel %vm6213, %v6150, %v5568
    %v6217 = vsel %vm6213, %v6152, %v5570
    %v6219 = vsel %vm6213, %v6154, %v5572
    %v6221 = vsel %vm6213, %v6156, %v5574
    %v6223 = vsel %vm6213, %v6158, %v5576
    %v6225 = vsel %vm6213, %v6160, %v5578
    %v6227 = vsel %vm6213, %v6162, %v5580
    %v6229 = vsel %vm6213, %v6164, %v5582
    %v6231 = vsel %vm6213, %v6166, %v5584
    %v6233 = vsel %vm6213, %v6168, %v5586
    %v6235 = vsel %vm6213, %v6170, %v5588
    %v6237 = vsel %vm6213, %v6172, %v5590
    %v6239 = vsel %vm6213, %v6174, %v5592
    %v6241 = vsel %vm6213, %v6176, %v5594
    %v6243 = vsel %vm6213, %v6178, %v5596
    %v6245 = vsel %vm6213, %v6180, %v5598
    %v6247 = vsel %vm6213, %v6182, %v5600
    %v6249 = vsel %vm6213, %v6184, %v5602
    %v6251 = vsel %vm6213, %v6186, %v5604
    %v6253 = vsel %vm6213, %v6188, %v5606
    %v6255 = vsel %vm6213, %v6190, %v5608
    %v6257 = vsel %vm6213, %v6192, %v5610
    %v6259 = vsel %vm6213, %v6194, %v5612
    %v6261 = vsel %vm6213, %v6196, %v5614
    %v6263 = vsel %vm6213, %v6198, %v5616
    %v6265 = vsel %vm6213, %v6200, %v5618
    %v6267 = vsel %vm6213, %v6202, %v5620
    %v6269 = vsel %vm6213, %v6204, %v5622
    %v6271 = vsel %vm6213, %v6206, %v5624
    %v6273 = vsel %vm6213, %v6208, %v5626
    %v6275 = vsel %vm6213, %v6210, %v5628
    %v6277 = vsel %vm6213, %v6212, %v5630
    %vm6278 = vcmask 261120
    %v6280 = vsel %vm6278, %v6215, %v5728
    %v6282 = vsel %vm6278, %v6217, %v5730
    %v6284 = vsel %vm6278, %v6219, %v5732
    %v6286 = vsel %vm6278, %v6221, %v5734
    %v6288 = vsel %vm6278, %v6223, %v5736
    %v6290 = vsel %vm6278, %v6225, %v5738
    %v6292 = vsel %vm6278, %v6227, %v5740
    %v6294 = vsel %vm6278, %v6229, %v5742
    %v6296 = vsel %vm6278, %v6231, %v5744
    %v6298 = vsel %vm6278, %v6233, %v5746
    %v6300 = vsel %vm6278, %v6235, %v5748
    %v6302 = vsel %vm6278, %v6237, %v5750
    %v6304 = vsel %vm6278, %v6239, %v5752
    %v6306 = vsel %vm6278, %v6241, %v5754
    %v6308 = vsel %vm6278, %v6243, %v5756
    %v6310 = vsel %vm6278, %v6245, %v5758
    %v6312 = vsel %vm6278, %v6247, %v5760
    %v6314 = vsel %vm6278, %v6249, %v5762
    %v6316 = vsel %vm6278, %v6251, %v5764
    %v6318 = vsel %vm6278, %v6253, %v5766
    %v6320 = vsel %vm6278, %v6255, %v5768
    %v6322 = vsel %vm6278, %v6257, %v5770
    %v6324 = vsel %vm6278, %v6259, %v5772
    %v6326 = vsel %vm6278, %v6261, %v5774
    %v6328 = vsel %vm6278, %v6263, %v5776
    %v6330 = vsel %vm6278, %v6265, %v5778
    %v6332 = vsel %vm6278, %v6267, %v5780
    %v6334 = vsel %vm6278, %v6269, %v5782
    %v6336 = vsel %vm6278, %v6271, %v5784
    %v6338 = vsel %vm6278, %v6273, %v5786
    %v6340 = vsel %vm6278, %v6275, %v5788
    %v6342 = vsel %vm6278, %v6277, %v5790
    %v6343 = vld [vmem:[%s1] sm:$0xf]
    %v6344 = vld [vmem:[%s1 + $0x4] sm:$0xf]
    %v6345 = vld [vmem:[%s1 + $0x8] sm:$0xf]
    %v6346 = vld [vmem:[%s1 + $0xc] sm:$0xf]
    %v6347 = vld [vmem:[%s1 + $0x10] sm:$0x3]
    %v6348 = vld [vmem:[%s2] sm:$0x1]
    %v6350 = vlaneseq
    %v6351 = vshrl.u32 %v6350, 7
    %v6352 = vsub.s32 0, %v6351
    %v6353 = vrot.slane %v6348, %v6352
    %v6360 = vunpack.c.l.b16 %v6343
    %v6361 = vunpack.c.l.b16 %v6344
    %v6362 = vunpack.c.l.b16 %v6345
    %v6363 = vunpack.c.l.b16 %v6346
    %v6364 = vunpack.c.l.b16 %v6347
    %v6365 = vpack.c.b16 %v6361, %v6360
    %v6366 = vpack.c.b16 %v6363, %v6362
    %v6367 = vpack.c.b16 %v6364, %v6364
    %vm6370 = vcmask 293888
    %v6371 = vsel %vm6370, %v6280, 0
    %v6373 = vsel %vm6370, %v6282, 0
    %v6375 = vsel %vm6370, %v6284, 0
    %v6377 = vsel %vm6370, %v6286, 0
    %v6379 = vsel %vm6370, %v6288, 0
    %v6381 = vsel %vm6370, %v6290, 0
    %v6383 = vsel %vm6370, %v6292, 0
    %v6385 = vsel %vm6370, %v6294, 0
    %v6387 = vsel %vm6370, %v6296, 0
    %v6389 = vsel %vm6370, %v6298, 0
    %v6391 = vsel %vm6370, %v6300, 0
    %v6393 = vsel %vm6370, %v6302, 0
    %v6395 = vsel %vm6370, %v6304, 0
    %v6397 = vsel %vm6370, %v6306, 0
    %v6399 = vsel %vm6370, %v6308, 0
    %v6401 = vsel %vm6370, %v6310, 0
    %v6403 = vsel %vm6370, %v6312, 0
    %v6405 = vsel %vm6370, %v6314, 0
    %v6407 = vsel %vm6370, %v6316, 0
    %v6409 = vsel %vm6370, %v6318, 0
    %v6411 = vsel %vm6370, %v6320, 0
    %v6413 = vsel %vm6370, %v6322, 0
    %v6415 = vsel %vm6370, %v6324, 0
    %v6417 = vsel %vm6370, %v6326, 0
    %v6419 = vsel %vm6370, %v6328, 0
    %v6421 = vsel %vm6370, %v6330, 0
    %v6423 = vsel %vm6370, %v6332, 0
    %v6425 = vsel %vm6370, %v6334, 0
    %v6427 = vsel %vm6370, %v6336, 0
    %v6429 = vsel %vm6370, %v6338, 0
    %v6431 = vsel %vm6370, %v6340, 0
    %v6433 = vsel %vm6370, %v6342, 0
    %vm6435 = vcmask 1041408
    %v6437 = vsel %vm6435, %v6367, 0
    %6439 = vmatprep.subr.bf16.mxu0 0
    %6440 = vmatpush1.bf16.msra.mxu0 0
    %6441 = vmatprep.subr.bf16.mxu0 0
    %6442 = vmatpush1.bf16.msra.mxu0 0
    %6443 = vmatprep.subr.bf16.mxu0 0
    %6444 = vmatpush1.bf16.msra.mxu0 0
    %6445 = vmatprep.subr.bf16.mxu0 0
    %6446 = vmatpush1.bf16.msra.mxu0 0
    %6447 = vmatprep.subr.bf16.mxu0 0
    %6448 = vmatpush1.bf16.msra.mxu0 0
    %6449 = vmatprep.subr.bf16.mxu0 0
    %6450 = vmatpush1.bf16.msra.mxu0 %v6437
    %6451 = vmatprep.subr.bf16.mxu0 0
    %6452 = vmatpush1.bf16.msra.mxu0 %v6366
    %6453 = vmatprep.subr.bf16.mxu0 0
    %6454 = vmatpush1.bf16.msra.mxu0 %v6365
    %6455 = vmatprep.subr.bf16.mxu0 0
    %6456 = vmatpush2.bf16.msra.mxu0 0
    %6457 = vmatprep.subr.bf16.mxu0 0
    %6458 = vmatpush2.bf16.msra.mxu0 0
    %6459 = vmatprep.subr.bf16.mxu0 0
    %6460 = vmatpush2.bf16.msra.mxu0 0
    %6461 = vmatprep.subr.bf16.mxu0 0
    %6462 = vmatpush2.bf16.msra.mxu0 0
    %6463 = vmatprep.subr.bf16.mxu0 0
    %6464 = vmatpush2.bf16.msra.mxu0 0
    %6465 = vmatprep.subr.bf16.mxu0 0
    %6466 = vmatpush2.bf16.msra.mxu0 0
    %6467 = vmatprep.subr.bf16.mxu0 0
    %6468 = vmatpush2.bf16.msra.mxu0 0
    %6469 = vmatprep.subr.bf16.mxu0 0
    %6470 = vmatpush2.bf16.msra.mxu0 0
    %6471 = vmatprep.mubr.bf16.mxu0 0
    %6472 = vmatmul.mubr.bf16.gmra.mxu0 %v6371
    %v6473 = vpop.f32.mrf.mxu0
    %v6474 = vadd.f32 %v6353, %v6473
    %v6475 = vpop.f32.mrf.mxu0
    %v6476 = vpop.f32.mrf.mxu0
    %v6477 = vadd.f32 %v6353, %v6476
    %v6478 = vpop.f32.mrf.mxu0
    %6479 = vmatprep.mubr.bf16.mxu0 0
    %6480 = vmatmul.mubr.bf16.gmra.mxu0 %v6373
    %v6481 = vpop.f32.mrf.mxu0
    %v6482 = vadd.f32 %v6353, %v6481
    %v6483 = vpop.f32.mrf.mxu0
    %v6484 = vpop.f32.mrf.mxu0
    %v6485 = vadd.f32 %v6353, %v6484
    %v6486 = vpop.f32.mrf.mxu0
    %6487 = vmatprep.mubr.bf16.mxu0 0
    %6488 = vmatmul.mubr.bf16.gmra.mxu0 %v6375
    %v6489 = vpop.f32.mrf.mxu0
    %v6490 = vadd.f32 %v6353, %v6489
    %v6491 = vpop.f32.mrf.mxu0
    %v6492 = vpop.f32.mrf.mxu0
    %v6493 = vadd.f32 %v6353, %v6492
    %v6494 = vpop.f32.mrf.mxu0
    %6495 = vmatprep.mubr.bf16.mxu0 0
    %6496 = vmatmul.mubr.bf16.gmra.mxu0 %v6377
    %v6497 = vpop.f32.mrf.mxu0
    %v6498 = vadd.f32 %v6353, %v6497
    %v6499 = vpop.f32.mrf.mxu0
    %v6500 = vpop.f32.mrf.mxu0
    %v6501 = vadd.f32 %v6353, %v6500
    %v6502 = vpop.f32.mrf.mxu0
    %6503 = vmatprep.mubr.bf16.mxu0 0
    %6504 = vmatmul.mubr.bf16.gmra.mxu0 %v6379
    %v6505 = vpop.f32.mrf.mxu0
    %v6506 = vadd.f32 %v6353, %v6505
    %v6507 = vpop.f32.mrf.mxu0
    %v6508 = vpop.f32.mrf.mxu0
    %v6509 = vadd.f32 %v6353, %v6508
    %v6510 = vpop.f32.mrf.mxu0
    %6511 = vmatprep.mubr.bf16.mxu0 0
    %6512 = vmatmul.mubr.bf16.gmra.mxu0 %v6381
    %v6513 = vpop.f32.mrf.mxu0
    %v6514 = vadd.f32 %v6353, %v6513
    %v6515 = vpop.f32.mrf.mxu0
    %v6516 = vpop.f32.mrf.mxu0
    %v6517 = vadd.f32 %v6353, %v6516
    %v6518 = vpop.f32.mrf.mxu0
    %6519 = vmatprep.mubr.bf16.mxu0 0
    %6520 = vmatmul.mubr.bf16.gmra.mxu0 %v6383
    %v6521 = vpop.f32.mrf.mxu0
    %v6522 = vadd.f32 %v6353, %v6521
    %v6523 = vpop.f32.mrf.mxu0
    %v6524 = vpop.f32.mrf.mxu0
    %v6525 = vadd.f32 %v6353, %v6524
    %v6526 = vpop.f32.mrf.mxu0
    %6527 = vmatprep.mubr.bf16.mxu0 0
    %6528 = vmatmul.mubr.bf16.gmra.mxu0 %v6385
    %v6529 = vpop.f32.mrf.mxu0
    %v6530 = vadd.f32 %v6353, %v6529
    %v6531 = vpop.f32.mrf.mxu0
    %v6532 = vpop.f32.mrf.mxu0
    %v6533 = vadd.f32 %v6353, %v6532
    %v6534 = vpop.f32.mrf.mxu0
    %6535 = vmatprep.mubr.bf16.mxu0 0
    %6536 = vmatmul.mubr.bf16.gmra.mxu0 %v6387
    %v6537 = vpop.f32.mrf.mxu0
    %v6538 = vadd.f32 %v6353, %v6537
    %v6539 = vpop.f32.mrf.mxu0
    %v6540 = vpop.f32.mrf.mxu0
    %v6541 = vadd.f32 %v6353, %v6540
    %v6542 = vpop.f32.mrf.mxu0
    %6543 = vmatprep.mubr.bf16.mxu0 0
    %6544 = vmatmul.mubr.bf16.gmra.mxu0 %v6389
    %v6545 = vpop.f32.mrf.mxu0
    %v6546 = vadd.f32 %v6353, %v6545
    %v6547 = vpop.f32.mrf.mxu0
    %v6548 = vpop.f32.mrf.mxu0
    %v6549 = vadd.f32 %v6353, %v6548
    %v6550 = vpop.f32.mrf.mxu0
    %6551 = vmatprep.mubr.bf16.mxu0 0
    %6552 = vmatmul.mubr.bf16.gmra.mxu0 %v6391
    %v6553 = vpop.f32.mrf.mxu0
    %v6554 = vadd.f32 %v6353, %v6553
    %v6555 = vpop.f32.mrf.mxu0
    %v6556 = vpop.f32.mrf.mxu0
    %v6557 = vadd.f32 %v6353, %v6556
    %v6558 = vpop.f32.mrf.mxu0
    %6559 = vmatprep.mubr.bf16.mxu0 0
    %6560 = vmatmul.mubr.bf16.gmra.mxu0 %v6393
    %v6561 = vpop.f32.mrf.mxu0
    %v6562 = vadd.f32 %v6353, %v6561
    %v6563 = vpop.f32.mrf.mxu0
    %v6564 = vpop.f32.mrf.mxu0
    %v6565 = vadd.f32 %v6353, %v6564
    %v6566 = vpop.f32.mrf.mxu0
    %6567 = vmatprep.mubr.bf16.mxu0 0
    %6568 = vmatmul.mubr.bf16.gmra.mxu0 %v6395
    %v6569 = vpop.f32.mrf.mxu0
    %v6570 = vadd.f32 %v6353, %v6569
    %v6571 = vpop.f32.mrf.mxu0
    %v6572 = vpop.f32.mrf.mxu0
    %v6573 = vadd.f32 %v6353, %v6572
    %v6574 = vpop.f32.mrf.mxu0
    %6575 = vmatprep.mubr.bf16.mxu0 0
    %6576 = vmatmul.mubr.bf16.gmra.mxu0 %v6397
    %v6577 = vpop.f32.mrf.mxu0
    %v6578 = vadd.f32 %v6353, %v6577
    %v6579 = vpop.f32.mrf.mxu0
    %v6580 = vpop.f32.mrf.mxu0
    %v6581 = vadd.f32 %v6353, %v6580
    %v6582 = vpop.f32.mrf.mxu0
    %6583 = vmatprep.mubr.bf16.mxu0 0
    %6584 = vmatmul.mubr.bf16.gmra.mxu0 %v6399
    %v6585 = vpop.f32.mrf.mxu0
    %v6586 = vadd.f32 %v6353, %v6585
    %v6587 = vpop.f32.mrf.mxu0
    %v6588 = vpop.f32.mrf.mxu0
    %v6589 = vadd.f32 %v6353, %v6588
    %v6590 = vpop.f32.mrf.mxu0
    %6591 = vmatprep.mubr.bf16.mxu0 0
    %6592 = vmatmul.mubr.bf16.gmra.mxu0 %v6401
    %v6593 = vpop.f32.mrf.mxu0
    %v6594 = vadd.f32 %v6353, %v6593
    %v6595 = vpop.f32.mrf.mxu0
    %v6596 = vpop.f32.mrf.mxu0
    %v6597 = vadd.f32 %v6353, %v6596
    %v6598 = vpop.f32.mrf.mxu0
    %6599 = vmatprep.mubr.bf16.mxu0 0
    %6600 = vmatmul.mubr.bf16.gmra.mxu0 %v6403
    %v6601 = vpop.f32.mrf.mxu0
    %v6602 = vadd.f32 %v6353, %v6601
    %v6603 = vpop.f32.mrf.mxu0
    %v6604 = vpop.f32.mrf.mxu0
    %v6605 = vadd.f32 %v6353, %v6604
    %v6606 = vpop.f32.mrf.mxu0
    %6607 = vmatprep.mubr.bf16.mxu0 0
    %6608 = vmatmul.mubr.bf16.gmra.mxu0 %v6405
    %v6609 = vpop.f32.mrf.mxu0
    %v6610 = vadd.f32 %v6353, %v6609
    %v6611 = vpop.f32.mrf.mxu0
    %v6612 = vpop.f32.mrf.mxu0
    %v6613 = vadd.f32 %v6353, %v6612
    %v6614 = vpop.f32.mrf.mxu0
    %6615 = vmatprep.mubr.bf16.mxu0 0
    %6616 = vmatmul.mubr.bf16.gmra.mxu0 %v6407
    %v6617 = vpop.f32.mrf.mxu0
    %v6618 = vadd.f32 %v6353, %v6617
    %v6619 = vpop.f32.mrf.mxu0
    %v6620 = vpop.f32.mrf.mxu0
    %v6621 = vadd.f32 %v6353, %v6620
    %v6622 = vpop.f32.mrf.mxu0
    %6623 = vmatprep.mubr.bf16.mxu0 0
    %6624 = vmatmul.mubr.bf16.gmra.mxu0 %v6409
    %v6625 = vpop.f32.mrf.mxu0
    %v6626 = vadd.f32 %v6353, %v6625
    %v6627 = vpop.f32.mrf.mxu0
    %v6628 = vpop.f32.mrf.mxu0
    %v6629 = vadd.f32 %v6353, %v6628
    %v6630 = vpop.f32.mrf.mxu0
    %6631 = vmatprep.mubr.bf16.mxu0 0
    %6632 = vmatmul.mubr.bf16.gmra.mxu0 %v6411
    %v6633 = vpop.f32.mrf.mxu0
    %v6634 = vadd.f32 %v6353, %v6633
    %v6635 = vpop.f32.mrf.mxu0
    %v6636 = vpop.f32.mrf.mxu0
    %v6637 = vadd.f32 %v6353, %v6636
    %v6638 = vpop.f32.mrf.mxu0
    %6639 = vmatprep.mubr.bf16.mxu0 0
    %6640 = vmatmul.mubr.bf16.gmra.mxu0 %v6413
    %v6641 = vpop.f32.mrf.mxu0
    %v6642 = vadd.f32 %v6353, %v6641
    %v6643 = vpop.f32.mrf.mxu0
    %v6644 = vpop.f32.mrf.mxu0
    %v6645 = vadd.f32 %v6353, %v6644
    %v6646 = vpop.f32.mrf.mxu0
    %6647 = vmatprep.mubr.bf16.mxu0 0
    %6648 = vmatmul.mubr.bf16.gmra.mxu0 %v6415
    %v6649 = vpop.f32.mrf.mxu0
    %v6650 = vadd.f32 %v6353, %v6649
    %v6651 = vpop.f32.mrf.mxu0
    %v6652 = vpop.f32.mrf.mxu0
    %v6653 = vadd.f32 %v6353, %v6652
    %v6654 = vpop.f32.mrf.mxu0
    %6655 = vmatprep.mubr.bf16.mxu0 0
    %6656 = vmatmul.mubr.bf16.gmra.mxu0 %v6417
    %v6657 = vpop.f32.mrf.mxu0
    %v6658 = vadd.f32 %v6353, %v6657
    %v6659 = vpop.f32.mrf.mxu0
    %v6660 = vpop.f32.mrf.mxu0
    %v6661 = vadd.f32 %v6353, %v6660
    %v6662 = vpop.f32.mrf.mxu0
    %6663 = vmatprep.mubr.bf16.mxu0 0
    %6664 = vmatmul.mubr.bf16.gmra.mxu0 %v6419
    %v6665 = vpop.f32.mrf.mxu0
    %v6666 = vadd.f32 %v6353, %v6665
    %v6667 = vpop.f32.mrf.mxu0
    %v6668 = vpop.f32.mrf.mxu0
    %v6669 = vadd.f32 %v6353, %v6668
    %v6670 = vpop.f32.mrf.mxu0
    %6671 = vmatprep.mubr.bf16.mxu0 0
    %6672 = vmatmul.mubr.bf16.gmra.mxu0 %v6421
    %v6673 = vpop.f32.mrf.mxu0
    %v6674 = vadd.f32 %v6353, %v6673
    %v6675 = vpop.f32.mrf.mxu0
    %v6676 = vpop.f32.mrf.mxu0
    %v6677 = vadd.f32 %v6353, %v6676
    %v6678 = vpop.f32.mrf.mxu0
    %6679 = vmatprep.mubr.bf16.mxu0 0
    %6680 = vmatmul.mubr.bf16.gmra.mxu0 %v6423
    %v6681 = vpop.f32.mrf.mxu0
    %v6682 = vadd.f32 %v6353, %v6681
    %v6683 = vpop.f32.mrf.mxu0
    %v6684 = vpop.f32.mrf.mxu0
    %v6685 = vadd.f32 %v6353, %v6684
    %v6686 = vpop.f32.mrf.mxu0
    %6687 = vmatprep.mubr.bf16.mxu0 0
    %6688 = vmatmul.mubr.bf16.gmra.mxu0 %v6425
    %v6689 = vpop.f32.mrf.mxu0
    %v6690 = vadd.f32 %v6353, %v6689
    %v6691 = vpop.f32.mrf.mxu0
    %v6692 = vpop.f32.mrf.mxu0
    %v6693 = vadd.f32 %v6353, %v6692
    %v6694 = vpop.f32.mrf.mxu0
    %6695 = vmatprep.mubr.bf16.mxu0 0
    %6696 = vmatmul.mubr.bf16.gmra.mxu0 %v6427
    %v6697 = vpop.f32.mrf.mxu0
    %v6698 = vadd.f32 %v6353, %v6697
    %v6699 = vpop.f32.mrf.mxu0
    %v6700 = vpop.f32.mrf.mxu0
    %v6701 = vadd.f32 %v6353, %v6700
    %v6702 = vpop.f32.mrf.mxu0
    %6703 = vmatprep.mubr.bf16.mxu0 0
    %6704 = vmatmul.mubr.bf16.gmra.mxu0 %v6429
    %v6705 = vpop.f32.mrf.mxu0
    %v6706 = vadd.f32 %v6353, %v6705
    %v6707 = vpop.f32.mrf.mxu0
    %v6708 = vpop.f32.mrf.mxu0
    %v6709 = vadd.f32 %v6353, %v6708
    %v6710 = vpop.f32.mrf.mxu0
    %6711 = vmatprep.mubr.bf16.mxu0 0
    %6712 = vmatmul.mubr.bf16.gmra.mxu0 %v6431
    %v6713 = vpop.f32.mrf.mxu0
    %v6714 = vadd.f32 %v6353, %v6713
    %v6715 = vpop.f32.mrf.mxu0
    %v6716 = vpop.f32.mrf.mxu0
    %v6717 = vadd.f32 %v6353, %v6716
    %v6718 = vpop.f32.mrf.mxu0
    %6719 = vmatprep.mubr.bf16.mxu0 0
    %6720 = vmatmul.mubr.bf16.gmra.mxu0 %v6433
    %v6721 = vpop.f32.mrf.mxu0
    %v6722 = vadd.f32 %v6353, %v6721
    %v6723 = vpop.f32.mrf.mxu0
    %v6724 = vpop.f32.mrf.mxu0
    %v6725 = vadd.f32 %v6353, %v6724
    %v6726 = vpop.f32.mrf.mxu0
    %6727 = vdwg.mxu0
    %v6728 = vmax.f32 %v6474, 0.0
    %v6729 = vmax.f32 %v6477, 0.0
    %v6730 = vmax.f32 %v6482, 0.0
    %v6731 = vmax.f32 %v6485, 0.0
    %v6732 = vmax.f32 %v6490, 0.0
    %v6733 = vmax.f32 %v6493, 0.0
    %v6734 = vmax.f32 %v6498, 0.0
    %v6735 = vmax.f32 %v6501, 0.0
    %v6736 = vmax.f32 %v6506, 0.0
    %v6737 = vmax.f32 %v6509, 0.0
    %v6738 = vmax.f32 %v6514, 0.0
    %v6739 = vmax.f32 %v6517, 0.0
    %v6740 = vmax.f32 %v6522, 0.0
    %v6741 = vmax.f32 %v6525, 0.0
    %v6742 = vmax.f32 %v6530, 0.0
    %v6743 = vmax.f32 %v6533, 0.0
    %v6744 = vmax.f32 %v6538, 0.0
    %v6745 = vmax.f32 %v6541, 0.0
    %v6746 = vmax.f32 %v6546, 0.0
    %v6747 = vmax.f32 %v6549, 0.0
    %v6748 = vmax.f32 %v6554, 0.0
    %v6749 = vmax.f32 %v6557, 0.0
    %v6750 = vmax.f32 %v6562, 0.0
    %v6751 = vmax.f32 %v6565, 0.0
    %v6752 = vmax.f32 %v6570, 0.0
    %v6753 = vmax.f32 %v6573, 0.0
    %v6754 = vmax.f32 %v6578, 0.0
    %v6755 = vmax.f32 %v6581, 0.0
    %v6756 = vmax.f32 %v6586, 0.0
    %v6757 = vmax.f32 %v6589, 0.0
    %v6758 = vmax.f32 %v6594, 0.0
    %v6759 = vmax.f32 %v6597, 0.0
    %v6760 = vmax.f32 %v6602, 0.0
    %v6761 = vmax.f32 %v6605, 0.0
    %v6762 = vmax.f32 %v6610, 0.0
    %v6763 = vmax.f32 %v6613, 0.0
    %v6764 = vmax.f32 %v6618, 0.0
    %v6765 = vmax.f32 %v6621, 0.0
    %v6766 = vmax.f32 %v6626, 0.0
    %v6767 = vmax.f32 %v6629, 0.0
    %v6768 = vmax.f32 %v6634, 0.0
    %v6769 = vmax.f32 %v6637, 0.0
    %v6770 = vmax.f32 %v6642, 0.0
    %v6771 = vmax.f32 %v6645, 0.0
    %v6772 = vmax.f32 %v6650, 0.0
    %v6773 = vmax.f32 %v6653, 0.0
    %v6774 = vmax.f32 %v6658, 0.0
    %v6775 = vmax.f32 %v6661, 0.0
    %v6776 = vmax.f32 %v6666, 0.0
    %v6777 = vmax.f32 %v6669, 0.0
    %v6778 = vmax.f32 %v6674, 0.0
    %v6779 = vmax.f32 %v6677, 0.0
    %v6780 = vmax.f32 %v6682, 0.0
    %v6781 = vmax.f32 %v6685, 0.0
    %v6782 = vmax.f32 %v6690, 0.0
    %v6783 = vmax.f32 %v6693, 0.0
    %v6784 = vmax.f32 %v6698, 0.0
    %v6785 = vmax.f32 %v6701, 0.0
    %v6786 = vmax.f32 %v6706, 0.0
    %v6787 = vmax.f32 %v6709, 0.0
    %v6788 = vmax.f32 %v6714, 0.0
    %v6789 = vmax.f32 %v6717, 0.0
    %v6790 = vmax.f32 %v6722, 0.0
    %v6791 = vmax.f32 %v6725, 0.0
    %v6792 = vpack.c.bf16 %v6729, %v6728
    %v6793 = vpack.c.bf16 %v6731, %v6730
    %v6794 = vpack.c.bf16 %v6733, %v6732
    %v6795 = vpack.c.bf16 %v6735, %v6734
    %v6796 = vpack.c.bf16 %v6737, %v6736
    %v6797 = vpack.c.bf16 %v6739, %v6738
    %v6798 = vpack.c.bf16 %v6741, %v6740
    %v6799 = vpack.c.bf16 %v6743, %v6742
    %v6800 = vpack.c.bf16 %v6745, %v6744
    %v6801 = vpack.c.bf16 %v6747, %v6746
    %v6802 = vpack.c.bf16 %v6749, %v6748
    %v6803 = vpack.c.bf16 %v6751, %v6750
    %v6804 = vpack.c.bf16 %v6753, %v6752
    %v6805 = vpack.c.bf16 %v6755, %v6754
    %v6806 = vpack.c.bf16 %v6757, %v6756
    %v6807 = vpack.c.bf16 %v6759, %v6758
    %v6808 = vpack.c.bf16 %v6761, %v6760
    %v6809 = vpack.c.bf16 %v6763, %v6762
    %v6810 = vpack.c.bf16 %v6765, %v6764
    %v6811 = vpack.c.bf16 %v6767, %v6766
    %v6812 = vpack.c.bf16 %v6769, %v6768
    %v6813 = vpack.c.bf16 %v6771, %v6770
    %v6814 = vpack.c.bf16 %v6773, %v6772
    %v6815 = vpack.c.bf16 %v6775, %v6774
    %v6816 = vpack.c.bf16 %v6777, %v6776
    %v6817 = vpack.c.bf16 %v6779, %v6778
    %v6818 = vpack.c.bf16 %v6781, %v6780
    %v6819 = vpack.c.bf16 %v6783, %v6782
    %v6820 = vpack.c.bf16 %v6785, %v6784
    %v6821 = vpack.c.bf16 %v6787, %v6786
    %v6822 = vpack.c.bf16 %v6789, %v6788
    %v6823 = vpack.c.bf16 %v6791, %v6790
    %vm6824 = vcmask 60416
    %6825 = vst.msk [vmem:[#allocation3] sm:$0xf] %vm6824, 0
    %6826 = vst.msk [vmem:[#allocation3 + $0x4] sm:$0xf] %vm6824, 0
    %6827 = vst.msk [vmem:[#allocation3 + $0x8] sm:$0xf] %vm6824, 0
    %vm6828 = vcmask 57344
    %vm6829 = vmand %vm6828, %vm97
    %v6830 = vld [vmem:[#allocation3 + $0xc] sm:$0x1]
    %v6831 = vsel %vm6829, 0, %v6830
    %6832 = vst [vmem:[#allocation3 + $0xc] sm:$0x1] %v6831
    %6833 = vst.msk [vmem:[#allocation3 + $0x10] sm:$0xf] %vm6824, 0
    %6834 = vst.msk [vmem:[#allocation3 + $0x14] sm:$0xf] %vm6824, 0
    %6835 = vst.msk [vmem:[#allocation3 + $0x18] sm:$0xf] %vm6824, 0
    %v6836 = vld [vmem:[#allocation3 + $0x1c] sm:$0x1]
    %v6837 = vsel %vm6829, 0, %v6836
    %6838 = vst [vmem:[#allocation3 + $0x1c] sm:$0x1] %v6837
    %6839 = vst.msk [vmem:[#allocation3 + $0x20] sm:$0xf] %vm6824, 0
    %6840 = vst.msk [vmem:[#allocation3 + $0x24] sm:$0xf] %vm6824, 0
    %6841 = vst.msk [vmem:[#allocation3 + $0x28] sm:$0xf] %vm6824, 0
    %v6842 = vld [vmem:[#allocation3 + $0x2c] sm:$0x1]
    %v6843 = vsel %vm6829, 0, %v6842
    %6844 = vst [vmem:[#allocation3 + $0x2c] sm:$0x1] %v6843
    %6845 = vst.msk [vmem:[#allocation3 + $0x30] sm:$0xf] %vm6824, 0
    %6846 = vst.msk [vmem:[#allocation3 + $0x34] sm:$0xf] %vm6824, 0
    %6847 = vst.msk [vmem:[#allocation3 + $0x38] sm:$0xf] %vm6824, 0
    %v6848 = vld [vmem:[#allocation3 + $0x3c] sm:$0x1]
    %v6849 = vsel %vm6829, 0, %v6848
    %6850 = vst [vmem:[#allocation3 + $0x3c] sm:$0x1] %v6849
    %6851 = vst.msk [vmem:[#allocation3 + $0x40] sm:$0xf] %vm6824, 0
    %6852 = vst.msk [vmem:[#allocation3 + $0x44] sm:$0xf] %vm6824, 0
    %6853 = vst.msk [vmem:[#allocation3 + $0x48] sm:$0xf] %vm6824, 0
    %v6854 = vld [vmem:[#allocation3 + $0x4c] sm:$0x1]
    %v6855 = vsel %vm6829, 0, %v6854
    %6856 = vst [vmem:[#allocation3 + $0x4c] sm:$0x1] %v6855
    %6857 = vst.msk [vmem:[#allocation3 + $0x50] sm:$0xf] %vm6824, 0
    %6858 = vst.msk [vmem:[#allocation3 + $0x54] sm:$0xf] %vm6824, 0
    %6859 = vst.msk [vmem:[#allocation3 + $0x58] sm:$0xf] %vm6824, 0
    %v6860 = vld [vmem:[#allocation3 + $0x5c] sm:$0x1]
    %v6861 = vsel %vm6829, 0, %v6860
    %6862 = vst [vmem:[#allocation3 + $0x5c] sm:$0x1] %v6861
    %6863 = vst.msk [vmem:[#allocation3 + $0x60] sm:$0xf] %vm6824, 0
    %6864 = vst.msk [vmem:[#allocation3 + $0x64] sm:$0xf] %vm6824, 0
    %6865 = vst.msk [vmem:[#allocation3 + $0x68] sm:$0xf] %vm6824, 0
    %v6866 = vld [vmem:[#allocation3 + $0x6c] sm:$0x1]
    %v6867 = vsel %vm6829, 0, %v6866
    %6868 = vst [vmem:[#allocation3 + $0x6c] sm:$0x1] %v6867
    %6869 = vst.msk [vmem:[#allocation3 + $0x70] sm:$0xf] %vm6824, 0
    %6870 = vst.msk [vmem:[#allocation3 + $0x74] sm:$0xf] %vm6824, 0
    %6871 = vst.msk [vmem:[#allocation3 + $0x78] sm:$0xf] %vm6824, 0
    %v6872 = vld [vmem:[#allocation3 + $0x7c] sm:$0x1]
    %v6873 = vsel %vm6829, 0, %v6872
    %6874 = vst [vmem:[#allocation3 + $0x7c] sm:$0x1] %v6873
    %6875 = vst.msk [vmem:[#allocation3 + $0x80] sm:$0xf] %vm6824, 0
    %6876 = vst.msk [vmem:[#allocation3 + $0x84] sm:$0xf] %vm6824, 0
    %6877 = vst.msk [vmem:[#allocation3 + $0x88] sm:$0xf] %vm6824, 0
    %v6878 = vld [vmem:[#allocation3 + $0x8c] sm:$0x1]
    %v6879 = vsel %vm6829, 0, %v6878
    %6880 = vst [vmem:[#allocation3 + $0x8c] sm:$0x1] %v6879
    %6881 = vst.msk [vmem:[#allocation3 + $0x90] sm:$0xf] %vm6824, 0
    %6882 = vst.msk [vmem:[#allocation3 + $0x94] sm:$0xf] %vm6824, 0
    %6883 = vst.msk [vmem:[#allocation3 + $0x98] sm:$0xf] %vm6824, 0
    %v6884 = vld [vmem:[#allocation3 + $0x9c] sm:$0x1]
    %v6885 = vsel %vm6829, 0, %v6884
    %6886 = vst [vmem:[#allocation3 + $0x9c] sm:$0x1] %v6885
    %6887 = vst.msk [vmem:[#allocation3 + $0xa0] sm:$0xf] %vm6824, 0
    %6888 = vst.msk [vmem:[#allocation3 + $0xa4] sm:$0xf] %vm6824, 0
    %6889 = vst.msk [vmem:[#allocation3 + $0xa8] sm:$0xf] %vm6824, 0
    %v6890 = vld [vmem:[#allocation3 + $0xac] sm:$0x1]
    %v6891 = vsel %vm6829, 0, %v6890
    %6892 = vst [vmem:[#allocation3 + $0xac] sm:$0x1] %v6891
    %6893 = vst.msk [vmem:[#allocation3 + $0xb0] sm:$0xf] %vm6824, 0
    %6894 = vst.msk [vmem:[#allocation3 + $0xb4] sm:$0xf] %vm6824, 0
    %6895 = vst.msk [vmem:[#allocation3 + $0xb8] sm:$0xf] %vm6824, 0
    %v6896 = vld [vmem:[#allocation3 + $0xbc] sm:$0x1]
    %v6897 = vsel %vm6829, 0, %v6896
    %6898 = vst [vmem:[#allocation3 + $0xbc] sm:$0x1] %v6897
    %6899 = vst.msk [vmem:[#allocation3 + $0xc0] sm:$0xf] %vm6824, 0
    %6900 = vst.msk [vmem:[#allocation3 + $0xc4] sm:$0xf] %vm6824, 0
    %6901 = vst.msk [vmem:[#allocation3 + $0xc8] sm:$0xf] %vm6824, 0
    %v6902 = vld [vmem:[#allocation3 + $0xcc] sm:$0x1]
    %v6903 = vsel %vm6829, 0, %v6902
    %6904 = vst [vmem:[#allocation3 + $0xcc] sm:$0x1] %v6903
    %6905 = vst.msk [vmem:[#allocation3 + $0xd0] sm:$0xf] %vm6824, 0
    %6906 = vst.msk [vmem:[#allocation3 + $0xd4] sm:$0xf] %vm6824, 0
    %6907 = vst.msk [vmem:[#allocation3 + $0xd8] sm:$0xf] %vm6824, 0
    %v6908 = vld [vmem:[#allocation3 + $0xdc] sm:$0x1]
    %v6909 = vsel %vm6829, 0, %v6908
    %6910 = vst [vmem:[#allocation3 + $0xdc] sm:$0x1] %v6909
    %6911 = vst.msk [vmem:[#allocation3 + $0xe0] sm:$0xf] %vm6824, 0
    %6912 = vst.msk [vmem:[#allocation3 + $0xe4] sm:$0xf] %vm6824, 0
    %6913 = vst.msk [vmem:[#allocation3 + $0xe8] sm:$0xf] %vm6824, 0
    %v6914 = vld [vmem:[#allocation3 + $0xec] sm:$0x1]
    %v6915 = vsel %vm6829, 0, %v6914
    %6916 = vst [vmem:[#allocation3 + $0xec] sm:$0x1] %v6915
    %6917 = vst.msk [vmem:[#allocation3 + $0xf0] sm:$0xf] %vm6824, 0
    %6918 = vst.msk [vmem:[#allocation3 + $0xf4] sm:$0xf] %vm6824, 0
    %6919 = vst.msk [vmem:[#allocation3 + $0xf8] sm:$0xf] %vm6824, 0
    %v6920 = vld [vmem:[#allocation3 + $0xfc] sm:$0x1]
    %v6921 = vsel %vm6829, 0, %v6920
    %6922 = vst [vmem:[#allocation3 + $0xfc] sm:$0x1] %v6921
    %6923 = vst.msk [vmem:[#allocation3 + $0x100] sm:$0xf] %vm6824, 0
    %6924 = vst.msk [vmem:[#allocation3 + $0x104] sm:$0xf] %vm6824, 0
    %6925 = vst.msk [vmem:[#allocation3 + $0x108] sm:$0xf] %vm6824, 0
    %v6926 = vld [vmem:[#allocation3 + $0x10c] sm:$0x1]
    %v6927 = vsel %vm6829, 0, %v6926
    %6928 = vst [vmem:[#allocation3 + $0x10c] sm:$0x1] %v6927
    %6929 = vst.msk [vmem:[#allocation3 + $0x110] sm:$0xf] %vm6824, 0
    %6930 = vst.msk [vmem:[#allocation3 + $0x114] sm:$0xf] %vm6824, 0
    %6931 = vst.msk [vmem:[#allocation3 + $0x118] sm:$0xf] %vm6824, 0
    %v6932 = vld [vmem:[#allocation3 + $0x11c] sm:$0x1]
    %v6933 = vsel %vm6829, 0, %v6932
    %6934 = vst [vmem:[#allocation3 + $0x11c] sm:$0x1] %v6933
    %6935 = vst.msk [vmem:[#allocation3 + $0x120] sm:$0xf] %vm6824, 0
    %6936 = vst.msk [vmem:[#allocation3 + $0x124] sm:$0xf] %vm6824, 0
    %6937 = vst.msk [vmem:[#allocation3 + $0x128] sm:$0xf] %vm6824, 0
    %v6938 = vld [vmem:[#allocation3 + $0x12c] sm:$0x1]
    %v6939 = vsel %vm6829, 0, %v6938
    %6940 = vst [vmem:[#allocation3 + $0x12c] sm:$0x1] %v6939
    %6941 = vst.msk [vmem:[#allocation3 + $0x130] sm:$0xf] %vm6824, 0
    %6942 = vst.msk [vmem:[#allocation3 + $0x134] sm:$0xf] %vm6824, 0
    %6943 = vst.msk [vmem:[#allocation3 + $0x138] sm:$0xf] %vm6824, 0
    %v6944 = vld [vmem:[#allocation3 + $0x13c] sm:$0x1]
    %v6945 = vsel %vm6829, 0, %v6944
    %6946 = vst [vmem:[#allocation3 + $0x13c] sm:$0x1] %v6945
    %6947 = vst.msk [vmem:[#allocation3 + $0x140] sm:$0xf] %vm6824, 0
    %6948 = vst.msk [vmem:[#allocation3 + $0x144] sm:$0xf] %vm6824, 0
    %6949 = vst.msk [vmem:[#allocation3 + $0x148] sm:$0xf] %vm6824, 0
    %v6950 = vld [vmem:[#allocation3 + $0x14c] sm:$0x1]
    %v6951 = vsel %vm6829, 0, %v6950
    %6952 = vst [vmem:[#allocation3 + $0x14c] sm:$0x1] %v6951
    %6953 = vst.msk [vmem:[#allocation3 + $0x150] sm:$0xf] %vm6824, 0
    %6954 = vst.msk [vmem:[#allocation3 + $0x154] sm:$0xf] %vm6824, 0
    %6955 = vst.msk [vmem:[#allocation3 + $0x158] sm:$0xf] %vm6824, 0
    %v6956 = vld [vmem:[#allocation3 + $0x15c] sm:$0x1]
    %v6957 = vsel %vm6829, 0, %v6956
    %6958 = vst [vmem:[#allocation3 + $0x15c] sm:$0x1] %v6957
    %6959 = vst.msk [vmem:[#allocation3 + $0x160] sm:$0xf] %vm6824, 0
    %6960 = vst.msk [vmem:[#allocation3 + $0x164] sm:$0xf] %vm6824, 0
    %6961 = vst.msk [vmem:[#allocation3 + $0x168] sm:$0xf] %vm6824, 0
    %v6962 = vld [vmem:[#allocation3 + $0x16c] sm:$0x1]
    %v6963 = vsel %vm6829, 0, %v6962
    %6964 = vst [vmem:[#allocation3 + $0x16c] sm:$0x1] %v6963
    %6965 = vst.msk [vmem:[#allocation3 + $0x170] sm:$0xf] %vm6824, 0
    %6966 = vst.msk [vmem:[#allocation3 + $0x174] sm:$0xf] %vm6824, 0
    %6967 = vst.msk [vmem:[#allocation3 + $0x178] sm:$0xf] %vm6824, 0
    %v6968 = vld [vmem:[#allocation3 + $0x17c] sm:$0x1]
    %v6969 = vsel %vm6829, 0, %v6968
    %6970 = vst [vmem:[#allocation3 + $0x17c] sm:$0x1] %v6969
    %6971 = vst.msk [vmem:[#allocation3 + $0x180] sm:$0xf] %vm6824, 0
    %6972 = vst.msk [vmem:[#allocation3 + $0x184] sm:$0xf] %vm6824, 0
    %6973 = vst.msk [vmem:[#allocation3 + $0x188] sm:$0xf] %vm6824, 0
    %v6974 = vld [vmem:[#allocation3 + $0x18c] sm:$0x1]
    %v6975 = vsel %vm6829, 0, %v6974
    %6976 = vst [vmem:[#allocation3 + $0x18c] sm:$0x1] %v6975
    %6977 = vst.msk [vmem:[#allocation3 + $0x190] sm:$0xf] %vm6824, 0
    %6978 = vst.msk [vmem:[#allocation3 + $0x194] sm:$0xf] %vm6824, 0
    %6979 = vst.msk [vmem:[#allocation3 + $0x198] sm:$0xf] %vm6824, 0
    %v6980 = vld [vmem:[#allocation3 + $0x19c] sm:$0x1]
    %v6981 = vsel %vm6829, 0, %v6980
    %6982 = vst [vmem:[#allocation3 + $0x19c] sm:$0x1] %v6981
    %6983 = vst.msk [vmem:[#allocation3 + $0x1a0] sm:$0xf] %vm6824, 0
    %6984 = vst.msk [vmem:[#allocation3 + $0x1a4] sm:$0xf] %vm6824, 0
    %6985 = vst.msk [vmem:[#allocation3 + $0x1a8] sm:$0xf] %vm6824, 0
    %v6986 = vld [vmem:[#allocation3 + $0x1ac] sm:$0x1]
    %v6987 = vsel %vm6829, 0, %v6986
    %6988 = vst [vmem:[#allocation3 + $0x1ac] sm:$0x1] %v6987
    %6989 = vst.msk [vmem:[#allocation3 + $0x1b0] sm:$0xf] %vm6824, 0
    %6990 = vst.msk [vmem:[#allocation3 + $0x1b4] sm:$0xf] %vm6824, 0
    %6991 = vst.msk [vmem:[#allocation3 + $0x1b8] sm:$0xf] %vm6824, 0
    %v6992 = vld [vmem:[#allocation3 + $0x1bc] sm:$0x1]
    %v6993 = vsel %vm6829, 0, %v6992
    %6994 = vst [vmem:[#allocation3 + $0x1bc] sm:$0x1] %v6993
    %6995 = vst.msk [vmem:[#allocation3 + $0x1c0] sm:$0xf] %vm6824, 0
    %6996 = vst.msk [vmem:[#allocation3 + $0x1c4] sm:$0xf] %vm6824, 0
    %6997 = vst.msk [vmem:[#allocation3 + $0x1c8] sm:$0xf] %vm6824, 0
    %v6998 = vld [vmem:[#allocation3 + $0x1cc] sm:$0x1]
    %v6999 = vsel %vm6829, 0, %v6998
    %7000 = vst [vmem:[#allocation3 + $0x1cc] sm:$0x1] %v6999
    %7001 = vst.msk [vmem:[#allocation3 + $0x1d0] sm:$0xf] %vm6824, 0
    %7002 = vst.msk [vmem:[#allocation3 + $0x1d4] sm:$0xf] %vm6824, 0
    %7003 = vst.msk [vmem:[#allocation3 + $0x1d8] sm:$0xf] %vm6824, 0
    %v7004 = vld [vmem:[#allocation3 + $0x1dc] sm:$0x1]
    %v7005 = vsel %vm6829, 0, %v7004
    %7006 = vst [vmem:[#allocation3 + $0x1dc] sm:$0x1] %v7005
    %7007 = vst.msk [vmem:[#allocation3 + $0x1e0] sm:$0xf] %vm6824, 0
    %7008 = vst.msk [vmem:[#allocation3 + $0x1e4] sm:$0xf] %vm6824, 0
    %7009 = vst.msk [vmem:[#allocation3 + $0x1e8] sm:$0xf] %vm6824, 0
    %v7010 = vld [vmem:[#allocation3 + $0x1ec] sm:$0x1]
    %v7011 = vsel %vm6829, 0, %v7010
    %7012 = vst [vmem:[#allocation3 + $0x1ec] sm:$0x1] %v7011
    %7013 = vst.msk [vmem:[#allocation3 + $0x1f0] sm:$0xf] %vm6824, 0
    %7014 = vst.msk [vmem:[#allocation3 + $0x1f4] sm:$0xf] %vm6824, 0
    %7015 = vst.msk [vmem:[#allocation3 + $0x1f8] sm:$0xf] %vm6824, 0
    %v7016 = vld [vmem:[#allocation3 + $0x1fc] sm:$0x1]
    %v7017 = vsel %vm6829, 0, %v7016
    %7018 = vst [vmem:[#allocation3 + $0x1fc] sm:$0x1] %v7017
    %7019 = vst.msk [vmem:[#allocation3 + $0x200] sm:$0xf] %vm6824, 0
    %7020 = vst.msk [vmem:[#allocation3 + $0x204] sm:$0xf] %vm6824, 0
    %7021 = vst.msk [vmem:[#allocation3 + $0x208] sm:$0xf] %vm6824, 0
    %v7022 = vld [vmem:[#allocation3 + $0x20c] sm:$0x1]
    %v7023 = vsel %vm6829, 0, %v7022
    %7024 = vst [vmem:[#allocation3 + $0x20c] sm:$0x1] %v7023
    %7025 = vst.msk [vmem:[#allocation3 + $0x210] sm:$0xf] %vm6824, 0
    %7026 = vst.msk [vmem:[#allocation3 + $0x214] sm:$0xf] %vm6824, 0
    %7027 = vst.msk [vmem:[#allocation3 + $0x218] sm:$0xf] %vm6824, 0
    %v7028 = vld [vmem:[#allocation3 + $0x21c] sm:$0x1]
    %v7029 = vsel %vm6829, 0, %v7028
    %7030 = vst [vmem:[#allocation3 + $0x21c] sm:$0x1] %v7029
    %7031 = vst.msk [vmem:[#allocation3 + $0x220] sm:$0xf] %vm6824, 0
    %7032 = vst.msk [vmem:[#allocation3 + $0x224] sm:$0xf] %vm6824, 0
    %7033 = vst.msk [vmem:[#allocation3 + $0x228] sm:$0xf] %vm6824, 0
    %v7034 = vld [vmem:[#allocation3 + $0x22c] sm:$0x1]
    %v7035 = vsel %vm6829, 0, %v7034
    %7036 = vst [vmem:[#allocation3 + $0x22c] sm:$0x1] %v7035
    %7037 = vst.msk [vmem:[#allocation3 + $0x230] sm:$0xf] %vm6824, 0
    %7038 = vst.msk [vmem:[#allocation3 + $0x234] sm:$0xf] %vm6824, 0
    %7039 = vst.msk [vmem:[#allocation3 + $0x238] sm:$0xf] %vm6824, 0
    %v7040 = vld [vmem:[#allocation3 + $0x23c] sm:$0x1]
    %v7041 = vsel %vm6829, 0, %v7040
    %7042 = vst [vmem:[#allocation3 + $0x23c] sm:$0x1] %v7041
    %v7075 = vunpack.c.l.b16 %v6792
    %v7076 = vunpack.c.h.b16 %v6792
    %v7077 = vunpack.c.l.b16 %v6793
    %v7078 = vunpack.c.h.b16 %v6793
    %v7079 = vunpack.c.l.b16 %v6794
    %v7080 = vunpack.c.h.b16 %v6794
    %v7081 = vunpack.c.l.b16 %v6795
    %v7082 = vunpack.c.h.b16 %v6795
    %v7083 = vunpack.c.l.b16 %v6796
    %v7084 = vunpack.c.h.b16 %v6796
    %v7085 = vunpack.c.l.b16 %v6797
    %v7086 = vunpack.c.h.b16 %v6797
    %v7087 = vunpack.c.l.b16 %v6798
    %v7088 = vunpack.c.h.b16 %v6798
    %v7089 = vunpack.c.l.b16 %v6799
    %v7090 = vunpack.c.h.b16 %v6799
    %v7091 = vunpack.c.l.b16 %v6800
    %v7092 = vunpack.c.h.b16 %v6800
    %v7093 = vunpack.c.l.b16 %v6801
    %v7094 = vunpack.c.h.b16 %v6801
    %v7095 = vunpack.c.l.b16 %v6802
    %v7096 = vunpack.c.h.b16 %v6802
    %v7097 = vunpack.c.l.b16 %v6803
    %v7098 = vunpack.c.h.b16 %v6803
    %v7099 = vunpack.c.l.b16 %v6804
    %v7100 = vunpack.c.h.b16 %v6804
    %v7101 = vunpack.c.l.b16 %v6805
    %v7102 = vunpack.c.h.b16 %v6805
    %v7103 = vunpack.c.l.b16 %v6806
    %v7104 = vunpack.c.h.b16 %v6806
    %v7105 = vunpack.c.l.b16 %v6807
    %v7106 = vunpack.c.h.b16 %v6807
    %v7107 = vunpack.c.l.b16 %v6808
    %v7108 = vunpack.c.h.b16 %v6808
    %v7109 = vunpack.c.l.b16 %v6809
    %v7110 = vunpack.c.h.b16 %v6809
    %v7111 = vunpack.c.l.b16 %v6810
    %v7112 = vunpack.c.h.b16 %v6810
    %v7113 = vunpack.c.l.b16 %v6811
    %v7114 = vunpack.c.h.b16 %v6811
    %v7115 = vunpack.c.l.b16 %v6812
    %v7116 = vunpack.c.h.b16 %v6812
    %v7117 = vunpack.c.l.b16 %v6813
    %v7118 = vunpack.c.h.b16 %v6813
    %v7119 = vunpack.c.l.b16 %v6814
    %v7120 = vunpack.c.h.b16 %v6814
    %v7121 = vunpack.c.l.b16 %v6815
    %v7122 = vunpack.c.h.b16 %v6815
    %v7123 = vunpack.c.l.b16 %v6816
    %v7124 = vunpack.c.h.b16 %v6816
    %v7125 = vunpack.c.l.b16 %v6817
    %v7126 = vunpack.c.h.b16 %v6817
    %v7127 = vunpack.c.l.b16 %v6818
    %v7128 = vunpack.c.h.b16 %v6818
    %v7129 = vunpack.c.l.b16 %v6819
    %v7130 = vunpack.c.h.b16 %v6819
    %v7131 = vunpack.c.l.b16 %v6820
    %v7132 = vunpack.c.h.b16 %v6820
    %v7133 = vunpack.c.l.b16 %v6821
    %v7134 = vunpack.c.h.b16 %v6821
    %v7135 = vunpack.c.l.b16 %v6822
    %v7136 = vunpack.c.h.b16 %v6822
    %v7137 = vunpack.c.l.b16 %v6823
    %v7138 = vunpack.c.h.b16 %v6823
    %v7139 = vpack.c.b16 %v7075, %v7075
    %v7140 = vpack.c.b16 %v7076, %v7076
    %v7141 = vpack.c.b16 %v7077, %v7077
    %v7142 = vpack.c.b16 %v7078, %v7078
    %v7143 = vpack.c.b16 %v7079, %v7079
    %v7144 = vpack.c.b16 %v7080, %v7080
    %v7145 = vpack.c.b16 %v7081, %v7081
    %v7146 = vpack.c.b16 %v7082, %v7082
    %v7147 = vpack.c.b16 %v7083, %v7083
    %v7148 = vpack.c.b16 %v7084, %v7084
    %v7149 = vpack.c.b16 %v7085, %v7085
    %v7150 = vpack.c.b16 %v7086, %v7086
    %v7151 = vpack.c.b16 %v7087, %v7087
    %v7152 = vpack.c.b16 %v7088, %v7088
    %v7153 = vpack.c.b16 %v7089, %v7089
    %v7154 = vpack.c.b16 %v7090, %v7090
    %v7155 = vpack.c.b16 %v7091, %v7091
    %v7156 = vpack.c.b16 %v7092, %v7092
    %v7157 = vpack.c.b16 %v7093, %v7093
    %v7158 = vpack.c.b16 %v7094, %v7094
    %v7159 = vpack.c.b16 %v7095, %v7095
    %v7160 = vpack.c.b16 %v7096, %v7096
    %v7161 = vpack.c.b16 %v7097, %v7097
    %v7162 = vpack.c.b16 %v7098, %v7098
    %v7163 = vpack.c.b16 %v7099, %v7099
    %v7164 = vpack.c.b16 %v7100, %v7100
    %v7165 = vpack.c.b16 %v7101, %v7101
    %v7166 = vpack.c.b16 %v7102, %v7102
    %v7167 = vpack.c.b16 %v7103, %v7103
    %v7168 = vpack.c.b16 %v7104, %v7104
    %v7169 = vpack.c.b16 %v7105, %v7105
    %v7170 = vpack.c.b16 %v7106, %v7106
    %v7171 = vpack.c.b16 %v7107, %v7107
    %v7172 = vpack.c.b16 %v7108, %v7108
    %v7173 = vpack.c.b16 %v7109, %v7109
    %v7174 = vpack.c.b16 %v7110, %v7110
    %v7175 = vpack.c.b16 %v7111, %v7111
    %v7176 = vpack.c.b16 %v7112, %v7112
    %v7177 = vpack.c.b16 %v7113, %v7113
    %v7178 = vpack.c.b16 %v7114, %v7114
    %v7179 = vpack.c.b16 %v7115, %v7115
    %v7180 = vpack.c.b16 %v7116, %v7116
    %v7181 = vpack.c.b16 %v7117, %v7117
    %v7182 = vpack.c.b16 %v7118, %v7118
    %v7183 = vpack.c.b16 %v7119, %v7119
    %v7184 = vpack.c.b16 %v7120, %v7120
    %v7185 = vpack.c.b16 %v7121, %v7121
    %v7186 = vpack.c.b16 %v7122, %v7122
    %v7187 = vpack.c.b16 %v7123, %v7123
    %v7188 = vpack.c.b16 %v7124, %v7124
    %v7189 = vpack.c.b16 %v7125, %v7125
    %v7190 = vpack.c.b16 %v7126, %v7126
    %v7191 = vpack.c.b16 %v7127, %v7127
    %v7192 = vpack.c.b16 %v7128, %v7128
    %v7193 = vpack.c.b16 %v7129, %v7129
    %v7194 = vpack.c.b16 %v7130, %v7130
    %v7195 = vpack.c.b16 %v7131, %v7131
    %v7196 = vpack.c.b16 %v7132, %v7132
    %v7197 = vpack.c.b16 %v7133, %v7133
    %v7198 = vpack.c.b16 %v7134, %v7134
    %v7199 = vpack.c.b16 %v7135, %v7135
    %v7200 = vpack.c.b16 %v7136, %v7136
    %v7201 = vpack.c.b16 %v7137, %v7137
    %v7202 = vpack.c.b16 %v7138, %v7138
    %s7267 = scalar_lea.vmem [#allocation3], 16
    %7268 = vst.msk [vmem:[%s7267 + $0x4] sm:$0xf] %vm6824, %v7139
    %7269 = vst.msk [vmem:[%s7267 + $0x8] sm:$0xf] %vm6824, %v7140
    %7270 = vst.msk [vmem:[%s7267 + $0x14] sm:$0xf] %vm6824, %v7141
    %7271 = vst.msk [vmem:[%s7267 + $0x18] sm:$0xf] %vm6824, %v7142
    %7272 = vst.msk [vmem:[%s7267 + $0x24] sm:$0xf] %vm6824, %v7143
    %7273 = vst.msk [vmem:[%s7267 + $0x28] sm:$0xf] %vm6824, %v7144
    %7274 = vst.msk [vmem:[%s7267 + $0x34] sm:$0xf] %vm6824, %v7145
    %7275 = vst.msk [vmem:[%s7267 + $0x38] sm:$0xf] %vm6824, %v7146
    %7276 = vst.msk [vmem:[%s7267 + $0x44] sm:$0xf] %vm6824, %v7147
    %7277 = vst.msk [vmem:[%s7267 + $0x48] sm:$0xf] %vm6824, %v7148
    %7278 = vst.msk [vmem:[%s7267 + $0x54] sm:$0xf] %vm6824, %v7149
    %7279 = vst.msk [vmem:[%s7267 + $0x58] sm:$0xf] %vm6824, %v7150
    %7280 = vst.msk [vmem:[%s7267 + $0x64] sm:$0xf] %vm6824, %v7151
    %7281 = vst.msk [vmem:[%s7267 + $0x68] sm:$0xf] %vm6824, %v7152
    %7282 = vst.msk [vmem:[%s7267 + $0x74] sm:$0xf] %vm6824, %v7153
    %7283 = vst.msk [vmem:[%s7267 + $0x78] sm:$0xf] %vm6824, %v7154
    %7284 = vst.msk [vmem:[%s7267 + $0x84] sm:$0xf] %vm6824, %v7155
    %7285 = vst.msk [vmem:[%s7267 + $0x88] sm:$0xf] %vm6824, %v7156
    %7286 = vst.msk [vmem:[%s7267 + $0x94] sm:$0xf] %vm6824, %v7157
    %7287 = vst.msk [vmem:[%s7267 + $0x98] sm:$0xf] %vm6824, %v7158
    %7288 = vst.msk [vmem:[%s7267 + $0xa4] sm:$0xf] %vm6824, %v7159
    %7289 = vst.msk [vmem:[%s7267 + $0xa8] sm:$0xf] %vm6824, %v7160
    %7290 = vst.msk [vmem:[%s7267 + $0xb4] sm:$0xf] %vm6824, %v7161
    %7291 = vst.msk [vmem:[%s7267 + $0xb8] sm:$0xf] %vm6824, %v7162
    %7292 = vst.msk [vmem:[%s7267 + $0xc4] sm:$0xf] %vm6824, %v7163
    %7293 = vst.msk [vmem:[%s7267 + $0xc8] sm:$0xf] %vm6824, %v7164
    %7294 = vst.msk [vmem:[%s7267 + $0xd4] sm:$0xf] %vm6824, %v7165
    %7295 = vst.msk [vmem:[%s7267 + $0xd8] sm:$0xf] %vm6824, %v7166
    %7296 = vst.msk [vmem:[%s7267 + $0xe4] sm:$0xf] %vm6824, %v7167
    %7297 = vst.msk [vmem:[%s7267 + $0xe8] sm:$0xf] %vm6824, %v7168
    %7298 = vst.msk [vmem:[%s7267 + $0xf4] sm:$0xf] %vm6824, %v7169
    %7299 = vst.msk [vmem:[%s7267 + $0xf8] sm:$0xf] %vm6824, %v7170
    %7300 = vst.msk [vmem:[%s7267 + $0x124] sm:$0xf] %vm6824, %v7171
    %7301 = vst.msk [vmem:[%s7267 + $0x128] sm:$0xf] %vm6824, %v7172
    %7302 = vst.msk [vmem:[%s7267 + $0x134] sm:$0xf] %vm6824, %v7173
    %7303 = vst.msk [vmem:[%s7267 + $0x138] sm:$0xf] %vm6824, %v7174
    %7304 = vst.msk [vmem:[%s7267 + $0x144] sm:$0xf] %vm6824, %v7175
    %7305 = vst.msk [vmem:[%s7267 + $0x148] sm:$0xf] %vm6824, %v7176
    %7306 = vst.msk [vmem:[%s7267 + $0x154] sm:$0xf] %vm6824, %v7177
    %7307 = vst.msk [vmem:[%s7267 + $0x158] sm:$0xf] %vm6824, %v7178
    %7308 = vst.msk [vmem:[%s7267 + $0x164] sm:$0xf] %vm6824, %v7179
    %7309 = vst.msk [vmem:[%s7267 + $0x168] sm:$0xf] %vm6824, %v7180
    %7310 = vst.msk [vmem:[%s7267 + $0x174] sm:$0xf] %vm6824, %v7181
    %7311 = vst.msk [vmem:[%s7267 + $0x178] sm:$0xf] %vm6824, %v7182
    %7312 = vst.msk [vmem:[%s7267 + $0x184] sm:$0xf] %vm6824, %v7183
    %7313 = vst.msk [vmem:[%s7267 + $0x188] sm:$0xf] %vm6824, %v7184
    %7314 = vst.msk [vmem:[%s7267 + $0x194] sm:$0xf] %vm6824, %v7185
    %7315 = vst.msk [vmem:[%s7267 + $0x198] sm:$0xf] %vm6824, %v7186
    %7316 = vst.msk [vmem:[%s7267 + $0x1a4] sm:$0xf] %vm6824, %v7187
    %7317 = vst.msk [vmem:[%s7267 + $0x1a8] sm:$0xf] %vm6824, %v7188
    %7318 = vst.msk [vmem:[%s7267 + $0x1b4] sm:$0xf] %vm6824, %v7189
    %7319 = vst.msk [vmem:[%s7267 + $0x1b8] sm:$0xf] %vm6824, %v7190
    %7320 = vst.msk [vmem:[%s7267 + $0x1c4] sm:$0xf] %vm6824, %v7191
    %7321 = vst.msk [vmem:[%s7267 + $0x1c8] sm:$0xf] %vm6824, %v7192
    %7322 = vst.msk [vmem:[%s7267 + $0x1d4] sm:$0xf] %vm6824, %v7193
    %7323 = vst.msk [vmem:[%s7267 + $0x1d8] sm:$0xf] %vm6824, %v7194
    %7324 = vst.msk [vmem:[%s7267 + $0x1e4] sm:$0xf] %vm6824, %v7195
    %7325 = vst.msk [vmem:[%s7267 + $0x1e8] sm:$0xf] %vm6824, %v7196
    %7326 = vst.msk [vmem:[%s7267 + $0x1f4] sm:$0xf] %vm6824, %v7197
    %7327 = vst.msk [vmem:[%s7267 + $0x1f8] sm:$0xf] %vm6824, %v7198
    %7328 = vst.msk [vmem:[%s7267 + $0x204] sm:$0xf] %vm6824, %v7199
    %7329 = vst.msk [vmem:[%s7267 + $0x208] sm:$0xf] %vm6824, %v7200
    %7330 = vst.msk [vmem:[%s7267 + $0x214] sm:$0xf] %vm6824, %v7201
    %7331 = vst.msk [vmem:[%s7267 + $0x218] sm:$0xf] %vm6824, %v7202
    %v7332 = vld [vmem:[#allocation3] sm:$0x8]
    %v7333 = vld [vmem:[#allocation3 + $0x4] sm:$0xf]
    %v7334 = vld [vmem:[#allocation3 + $0x8] sm:$0xf]
    %v7335 = vld [vmem:[#allocation3 + $0x10] sm:$0x8]
    %v7336 = vld [vmem:[#allocation3 + $0x14] sm:$0xf]
    %v7337 = vld [vmem:[#allocation3 + $0x18] sm:$0xf]
    %v7338 = vld [vmem:[#allocation3 + $0x20] sm:$0x8]
    %v7339 = vld [vmem:[#allocation3 + $0x24] sm:$0xf]
    %v7340 = vld [vmem:[#allocation3 + $0x28] sm:$0xf]
    %v7341 = vld [vmem:[#allocation3 + $0x30] sm:$0x8]
    %v7342 = vld [vmem:[#allocation3 + $0x34] sm:$0xf]
    %v7343 = vld [vmem:[#allocation3 + $0x38] sm:$0xf]
    %v7344 = vld [vmem:[#allocation3 + $0x40] sm:$0x8]
    %v7345 = vld [vmem:[#allocation3 + $0x44] sm:$0xf]
    %v7346 = vld [vmem:[#allocation3 + $0x48] sm:$0xf]
    %v7347 = vld [vmem:[#allocation3 + $0x50] sm:$0x8]
    %v7348 = vld [vmem:[#allocation3 + $0x54] sm:$0xf]
    %v7349 = vld [vmem:[#allocation3 + $0x58] sm:$0xf]
    %v7350 = vld [vmem:[#allocation3 + $0x60] sm:$0x8]
    %v7351 = vld [vmem:[#allocation3 + $0x64] sm:$0xf]
    %v7352 = vld [vmem:[#allocation3 + $0x68] sm:$0xf]
    %v7353 = vld [vmem:[#allocation3 + $0x70] sm:$0x8]
    %v7354 = vld [vmem:[#allocation3 + $0x74] sm:$0xf]
    %v7355 = vld [vmem:[#allocation3 + $0x78] sm:$0xf]
    %v7356 = vld [vmem:[#allocation3 + $0x80] sm:$0x8]
    %v7357 = vld [vmem:[#allocation3 + $0x84] sm:$0xf]
    %v7358 = vld [vmem:[#allocation3 + $0x88] sm:$0xf]
    %v7359 = vld [vmem:[#allocation3 + $0x90] sm:$0x8]
    %v7360 = vld [vmem:[#allocation3 + $0x94] sm:$0xf]
    %v7361 = vld [vmem:[#allocation3 + $0x98] sm:$0xf]
    %v7362 = vld [vmem:[#allocation3 + $0xa0] sm:$0x8]
    %v7363 = vld [vmem:[#allocation3 + $0xa4] sm:$0xf]
    %v7364 = vld [vmem:[#allocation3 + $0xa8] sm:$0xf]
    %v7365 = vld [vmem:[#allocation3 + $0xb0] sm:$0x8]
    %v7366 = vld [vmem:[#allocation3 + $0xb4] sm:$0xf]
    %v7367 = vld [vmem:[#allocation3 + $0xb8] sm:$0xf]
    %v7368 = vld [vmem:[#allocation3 + $0xc0] sm:$0x8]
    %v7369 = vld [vmem:[#allocation3 + $0xc4] sm:$0xf]
    %v7370 = vld [vmem:[#allocation3 + $0xc8] sm:$0xf]
    %v7371 = vld [vmem:[#allocation3 + $0xd0] sm:$0x8]
    %v7372 = vld [vmem:[#allocation3 + $0xd4] sm:$0xf]
    %v7373 = vld [vmem:[#allocation3 + $0xd8] sm:$0xf]
    %v7374 = vld [vmem:[#allocation3 + $0xe0] sm:$0x8]
    %v7375 = vld [vmem:[#allocation3 + $0xe4] sm:$0xf]
    %v7376 = vld [vmem:[#allocation3 + $0xe8] sm:$0xf]
    %v7377 = vld [vmem:[#allocation3 + $0xf0] sm:$0x8]
    %v7378 = vld [vmem:[#allocation3 + $0xf4] sm:$0xf]
    %v7379 = vld [vmem:[#allocation3 + $0xf8] sm:$0xf]
    %v7380 = vld [vmem:[#allocation3 + $0x120] sm:$0x8]
    %v7381 = vld [vmem:[#allocation3 + $0x124] sm:$0xf]
    %v7382 = vld [vmem:[#allocation3 + $0x128] sm:$0xf]
    %v7383 = vld [vmem:[#allocation3 + $0x130] sm:$0x8]
    %v7384 = vld [vmem:[#allocation3 + $0x134] sm:$0xf]
    %v7385 = vld [vmem:[#allocation3 + $0x138] sm:$0xf]
    %v7386 = vld [vmem:[#allocation3 + $0x140] sm:$0x8]
    %v7387 = vld [vmem:[#allocation3 + $0x144] sm:$0xf]
    %v7388 = vld [vmem:[#allocation3 + $0x148] sm:$0xf]
    %v7389 = vld [vmem:[#allocation3 + $0x150] sm:$0x8]
    %v7390 = vld [vmem:[#allocation3 + $0x154] sm:$0xf]
    %v7391 = vld [vmem:[#allocation3 + $0x158] sm:$0xf]
    %v7392 = vld [vmem:[#allocation3 + $0x160] sm:$0x8]
    %v7393 = vld [vmem:[#allocation3 + $0x164] sm:$0xf]
    %v7394 = vld [vmem:[#allocation3 + $0x168] sm:$0xf]
    %v7395 = vld [vmem:[#allocation3 + $0x170] sm:$0x8]
    %v7396 = vld [vmem:[#allocation3 + $0x174] sm:$0xf]
    %v7397 = vld [vmem:[#allocation3 + $0x178] sm:$0xf]
    %v7398 = vld [vmem:[#allocation3 + $0x180] sm:$0x8]
    %v7399 = vld [vmem:[#allocation3 + $0x184] sm:$0xf]
    %v7400 = vld [vmem:[#allocation3 + $0x188] sm:$0xf]
    %v7401 = vld [vmem:[#allocation3 + $0x190] sm:$0x8]
    %v7402 = vld [vmem:[#allocation3 + $0x194] sm:$0xf]
    %v7403 = vld [vmem:[#allocation3 + $0x198] sm:$0xf]
    %v7404 = vld [vmem:[#allocation3 + $0x1a0] sm:$0x8]
    %v7405 = vld [vmem:[#allocation3 + $0x1a4] sm:$0xf]
    %v7406 = vld [vmem:[#allocation3 + $0x1a8] sm:$0xf]
    %v7407 = vld [vmem:[#allocation3 + $0x1b0] sm:$0x8]
    %v7408 = vld [vmem:[#allocation3 + $0x1b4] sm:$0xf]
    %v7409 = vld [vmem:[#allocation3 + $0x1b8] sm:$0xf]
    %v7410 = vld [vmem:[#allocation3 + $0x1c0] sm:$0x8]
    %v7411 = vld [vmem:[#allocation3 + $0x1c4] sm:$0xf]
    %v7412 = vld [vmem:[#allocation3 + $0x1c8] sm:$0xf]
    %v7413 = vld [vmem:[#allocation3 + $0x1d0] sm:$0x8]
    %v7414 = vld [vmem:[#allocation3 + $0x1d4] sm:$0xf]
    %v7415 = vld [vmem:[#allocation3 + $0x1d8] sm:$0xf]
    %v7416 = vld [vmem:[#allocation3 + $0x1e0] sm:$0x8]
    %v7417 = vld [vmem:[#allocation3 + $0x1e4] sm:$0xf]
    %v7418 = vld [vmem:[#allocation3 + $0x1e8] sm:$0xf]
    %v7419 = vld [vmem:[#allocation3 + $0x1f0] sm:$0x8]
    %v7420 = vld [vmem:[#allocation3 + $0x1f4] sm:$0xf]
    %v7421 = vld [vmem:[#allocation3 + $0x1f8] sm:$0xf]
    %v7422 = vld [vmem:[#allocation3 + $0x200] sm:$0x8]
    %v7423 = vld [vmem:[#allocation3 + $0x204] sm:$0xf]
    %v7424 = vld [vmem:[#allocation3 + $0x208] sm:$0xf]
    %v7425 = vld [vmem:[#allocation3 + $0x210] sm:$0x8]
    %v7426 = vld [vmem:[#allocation3 + $0x214] sm:$0xf]
    %v7427 = vld [vmem:[#allocation3 + $0x218] sm:$0xf]
    %v7429 = vshrl.u32 %v7332, 16
    %v7431 = vrot.slane %v7429, 7
    %v7432 = vrot.slane %v7431, 4
    %v7434 = vshrl.u32 %v7333, 16
    %v7436 = vrot.slane %v7434, 7
    %v7437 = vshll.u32 %v7333, 16
    %v7439 = vor.u32 %v7436, %v7437
    %v7440 = vsel %vm474, %v7432, %v7439
    %v7441 = vrot.slane %v7436, 4
    %v7443 = vshrl.u32 %v7334, 16
    %v7445 = vrot.slane %v7443, 7
    %v7446 = vshll.u32 %v7334, 16
    %v7448 = vor.u32 %v7445, %v7446
    %v7449 = vsel %vm474, %v7441, %v7448
    %v7451 = vshrl.u32 %v7335, 16
    %v7453 = vrot.slane %v7451, 7
    %v7454 = vrot.slane %v7453, 4
    %v7456 = vshrl.u32 %v7336, 16
    %v7458 = vrot.slane %v7456, 7
    %v7459 = vshll.u32 %v7336, 16
    %v7461 = vor.u32 %v7458, %v7459
    %v7462 = vsel %vm474, %v7454, %v7461
    %v7463 = vrot.slane %v7458, 4
    %v7465 = vshrl.u32 %v7337, 16
    %v7467 = vrot.slane %v7465, 7
    %v7468 = vshll.u32 %v7337, 16
    %v7470 = vor.u32 %v7467, %v7468
    %v7471 = vsel %vm474, %v7463, %v7470
    %v7473 = vshrl.u32 %v7338, 16
    %v7475 = vrot.slane %v7473, 7
    %v7476 = vrot.slane %v7475, 4
    %v7478 = vshrl.u32 %v7339, 16
    %v7480 = vrot.slane %v7478, 7
    %v7481 = vshll.u32 %v7339, 16
    %v7483 = vor.u32 %v7480, %v7481
    %v7484 = vsel %vm474, %v7476, %v7483
    %v7485 = vrot.slane %v7480, 4
    %v7487 = vshrl.u32 %v7340, 16
    %v7489 = vrot.slane %v7487, 7
    %v7490 = vshll.u32 %v7340, 16
    %v7492 = vor.u32 %v7489, %v7490
    %v7493 = vsel %vm474, %v7485, %v7492
    %v7495 = vshrl.u32 %v7341, 16
    %v7497 = vrot.slane %v7495, 7
    %v7498 = vrot.slane %v7497, 4
    %v7500 = vshrl.u32 %v7342, 16
    %v7502 = vrot.slane %v7500, 7
    %v7503 = vshll.u32 %v7342, 16
    %v7505 = vor.u32 %v7502, %v7503
    %v7506 = vsel %vm474, %v7498, %v7505
    %v7507 = vrot.slane %v7502, 4
    %v7509 = vshrl.u32 %v7343, 16
    %v7511 = vrot.slane %v7509, 7
    %v7512 = vshll.u32 %v7343, 16
    %v7514 = vor.u32 %v7511, %v7512
    %v7515 = vsel %vm474, %v7507, %v7514
    %v7517 = vshrl.u32 %v7344, 16
    %v7519 = vrot.slane %v7517, 7
    %v7520 = vrot.slane %v7519, 4
    %v7522 = vshrl.u32 %v7345, 16
    %v7524 = vrot.slane %v7522, 7
    %v7525 = vshll.u32 %v7345, 16
    %v7527 = vor.u32 %v7524, %v7525
    %v7528 = vsel %vm474, %v7520, %v7527
    %v7529 = vrot.slane %v7524, 4
    %v7531 = vshrl.u32 %v7346, 16
    %v7533 = vrot.slane %v7531, 7
    %v7534 = vshll.u32 %v7346, 16
    %v7536 = vor.u32 %v7533, %v7534
    %v7537 = vsel %vm474, %v7529, %v7536
    %v7539 = vshrl.u32 %v7347, 16
    %v7541 = vrot.slane %v7539, 7
    %v7542 = vrot.slane %v7541, 4
    %v7544 = vshrl.u32 %v7348, 16
    %v7546 = vrot.slane %v7544, 7
    %v7547 = vshll.u32 %v7348, 16
    %v7549 = vor.u32 %v7546, %v7547
    %v7550 = vsel %vm474, %v7542, %v7549
    %v7551 = vrot.slane %v7546, 4
    %v7553 = vshrl.u32 %v7349, 16
    %v7555 = vrot.slane %v7553, 7
    %v7556 = vshll.u32 %v7349, 16
    %v7558 = vor.u32 %v7555, %v7556
    %v7559 = vsel %vm474, %v7551, %v7558
    %v7561 = vshrl.u32 %v7350, 16
    %v7563 = vrot.slane %v7561, 7
    %v7564 = vrot.slane %v7563, 4
    %v7566 = vshrl.u32 %v7351, 16
    %v7568 = vrot.slane %v7566, 7
    %v7569 = vshll.u32 %v7351, 16
    %v7571 = vor.u32 %v7568, %v7569
    %v7572 = vsel %vm474, %v7564, %v7571
    %v7573 = vrot.slane %v7568, 4
    %v7575 = vshrl.u32 %v7352, 16
    %v7577 = vrot.slane %v7575, 7
    %v7578 = vshll.u32 %v7352, 16
    %v7580 = vor.u32 %v7577, %v7578
    %v7581 = vsel %vm474, %v7573, %v7580
    %v7583 = vshrl.u32 %v7353, 16
    %v7585 = vrot.slane %v7583, 7
    %v7586 = vrot.slane %v7585, 4
    %v7588 = vshrl.u32 %v7354, 16
    %v7590 = vrot.slane %v7588, 7
    %v7591 = vshll.u32 %v7354, 16
    %v7593 = vor.u32 %v7590, %v7591
    %v7594 = vsel %vm474, %v7586, %v7593
    %v7595 = vrot.slane %v7590, 4
    %v7597 = vshrl.u32 %v7355, 16
    %v7599 = vrot.slane %v7597, 7
    %v7600 = vshll.u32 %v7355, 16
    %v7602 = vor.u32 %v7599, %v7600
    %v7603 = vsel %vm474, %v7595, %v7602
    %v7605 = vshrl.u32 %v7356, 16
    %v7607 = vrot.slane %v7605, 7
    %v7608 = vrot.slane %v7607, 4
    %v7610 = vshrl.u32 %v7357, 16
    %v7612 = vrot.slane %v7610, 7
    %v7613 = vshll.u32 %v7357, 16
    %v7615 = vor.u32 %v7612, %v7613
    %v7616 = vsel %vm474, %v7608, %v7615
    %v7617 = vrot.slane %v7612, 4
    %v7619 = vshrl.u32 %v7358, 16
    %v7621 = vrot.slane %v7619, 7
    %v7622 = vshll.u32 %v7358, 16
    %v7624 = vor.u32 %v7621, %v7622
    %v7625 = vsel %vm474, %v7617, %v7624
    %v7627 = vshrl.u32 %v7359, 16
    %v7629 = vrot.slane %v7627, 7
    %v7630 = vrot.slane %v7629, 4
    %v7632 = vshrl.u32 %v7360, 16
    %v7634 = vrot.slane %v7632, 7
    %v7635 = vshll.u32 %v7360, 16
    %v7637 = vor.u32 %v7634, %v7635
    %v7638 = vsel %vm474, %v7630, %v7637
    %v7639 = vrot.slane %v7634, 4
    %v7641 = vshrl.u32 %v7361, 16
    %v7643 = vrot.slane %v7641, 7
    %v7644 = vshll.u32 %v7361, 16
    %v7646 = vor.u32 %v7643, %v7644
    %v7647 = vsel %vm474, %v7639, %v7646
    %v7649 = vshrl.u32 %v7362, 16
    %v7651 = vrot.slane %v7649, 7
    %v7652 = vrot.slane %v7651, 4
    %v7654 = vshrl.u32 %v7363, 16
    %v7656 = vrot.slane %v7654, 7
    %v7657 = vshll.u32 %v7363, 16
    %v7659 = vor.u32 %v7656, %v7657
    %v7660 = vsel %vm474, %v7652, %v7659
    %v7661 = vrot.slane %v7656, 4
    %v7663 = vshrl.u32 %v7364, 16
    %v7665 = vrot.slane %v7663, 7
    %v7666 = vshll.u32 %v7364, 16
    %v7668 = vor.u32 %v7665, %v7666
    %v7669 = vsel %vm474, %v7661, %v7668
    %v7671 = vshrl.u32 %v7365, 16
    %v7673 = vrot.slane %v7671, 7
    %v7674 = vrot.slane %v7673, 4
    %v7676 = vshrl.u32 %v7366, 16
    %v7678 = vrot.slane %v7676, 7
    %v7679 = vshll.u32 %v7366, 16
    %v7681 = vor.u32 %v7678, %v7679
    %v7682 = vsel %vm474, %v7674, %v7681
    %v7683 = vrot.slane %v7678, 4
    %v7685 = vshrl.u32 %v7367, 16
    %v7687 = vrot.slane %v7685, 7
    %v7688 = vshll.u32 %v7367, 16
    %v7690 = vor.u32 %v7687, %v7688
    %v7691 = vsel %vm474, %v7683, %v7690
    %v7693 = vshrl.u32 %v7368, 16
    %v7695 = vrot.slane %v7693, 7
    %v7696 = vrot.slane %v7695, 4
    %v7698 = vshrl.u32 %v7369, 16
    %v7700 = vrot.slane %v7698, 7
    %v7701 = vshll.u32 %v7369, 16
    %v7703 = vor.u32 %v7700, %v7701
    %v7704 = vsel %vm474, %v7696, %v7703
    %v7705 = vrot.slane %v7700, 4
    %v7707 = vshrl.u32 %v7370, 16
    %v7709 = vrot.slane %v7707, 7
    %v7710 = vshll.u32 %v7370, 16
    %v7712 = vor.u32 %v7709, %v7710
    %v7713 = vsel %vm474, %v7705, %v7712
    %v7715 = vshrl.u32 %v7371, 16
    %v7717 = vrot.slane %v7715, 7
    %v7718 = vrot.slane %v7717, 4
    %v7720 = vshrl.u32 %v7372, 16
    %v7722 = vrot.slane %v7720, 7
    %v7723 = vshll.u32 %v7372, 16
    %v7725 = vor.u32 %v7722, %v7723
    %v7726 = vsel %vm474, %v7718, %v7725
    %v7727 = vrot.slane %v7722, 4
    %v7729 = vshrl.u32 %v7373, 16
    %v7731 = vrot.slane %v7729, 7
    %v7732 = vshll.u32 %v7373, 16
    %v7734 = vor.u32 %v7731, %v7732
    %v7735 = vsel %vm474, %v7727, %v7734
    %v7737 = vshrl.u32 %v7374, 16
    %v7739 = vrot.slane %v7737, 7
    %v7740 = vrot.slane %v7739, 4
    %v7742 = vshrl.u32 %v7375, 16
    %v7744 = vrot.slane %v7742, 7
    %v7745 = vshll.u32 %v7375, 16
    %v7747 = vor.u32 %v7744, %v7745
    %v7748 = vsel %vm474, %v7740, %v7747
    %v7749 = vrot.slane %v7744, 4
    %v7751 = vshrl.u32 %v7376, 16
    %v7753 = vrot.slane %v7751, 7
    %v7754 = vshll.u32 %v7376, 16
    %v7756 = vor.u32 %v7753, %v7754
    %v7757 = vsel %vm474, %v7749, %v7756
    %v7759 = vshrl.u32 %v7377, 16
    %v7761 = vrot.slane %v7759, 7
    %v7762 = vrot.slane %v7761, 4
    %v7764 = vshrl.u32 %v7378, 16
    %v7766 = vrot.slane %v7764, 7
    %v7767 = vshll.u32 %v7378, 16
    %v7769 = vor.u32 %v7766, %v7767
    %v7770 = vsel %vm474, %v7762, %v7769
    %v7771 = vrot.slane %v7766, 4
    %v7773 = vshrl.u32 %v7379, 16
    %v7775 = vrot.slane %v7773, 7
    %v7776 = vshll.u32 %v7379, 16
    %v7778 = vor.u32 %v7775, %v7776
    %v7779 = vsel %vm474, %v7771, %v7778
    %v7781 = vshrl.u32 %v7380, 16
    %v7783 = vrot.slane %v7781, 7
    %v7784 = vrot.slane %v7783, 4
    %v7786 = vshrl.u32 %v7381, 16
    %v7788 = vrot.slane %v7786, 7
    %v7789 = vshll.u32 %v7381, 16
    %v7791 = vor.u32 %v7788, %v7789
    %v7792 = vsel %vm474, %v7784, %v7791
    %v7793 = vrot.slane %v7788, 4
    %v7795 = vshrl.u32 %v7382, 16
    %v7797 = vrot.slane %v7795, 7
    %v7798 = vshll.u32 %v7382, 16
    %v7800 = vor.u32 %v7797, %v7798
    %v7801 = vsel %vm474, %v7793, %v7800
    %v7803 = vshrl.u32 %v7383, 16
    %v7805 = vrot.slane %v7803, 7
    %v7806 = vrot.slane %v7805, 4
    %v7808 = vshrl.u32 %v7384, 16
    %v7810 = vrot.slane %v7808, 7
    %v7811 = vshll.u32 %v7384, 16
    %v7813 = vor.u32 %v7810, %v7811
    %v7814 = vsel %vm474, %v7806, %v7813
    %v7815 = vrot.slane %v7810, 4
    %v7817 = vshrl.u32 %v7385, 16
    %v7819 = vrot.slane %v7817, 7
    %v7820 = vshll.u32 %v7385, 16
    %v7822 = vor.u32 %v7819, %v7820
    %v7823 = vsel %vm474, %v7815, %v7822
    %v7825 = vshrl.u32 %v7386, 16
    %v7827 = vrot.slane %v7825, 7
    %v7828 = vrot.slane %v7827, 4
    %v7830 = vshrl.u32 %v7387, 16
    %v7832 = vrot.slane %v7830, 7
    %v7833 = vshll.u32 %v7387, 16
    %v7835 = vor.u32 %v7832, %v7833
    %v7836 = vsel %vm474, %v7828, %v7835
    %v7837 = vrot.slane %v7832, 4
    %v7839 = vshrl.u32 %v7388, 16
    %v7841 = vrot.slane %v7839, 7
    %v7842 = vshll.u32 %v7388, 16
    %v7844 = vor.u32 %v7841, %v7842
    %v7845 = vsel %vm474, %v7837, %v7844
    %v7847 = vshrl.u32 %v7389, 16
    %v7849 = vrot.slane %v7847, 7
    %v7850 = vrot.slane %v7849, 4
    %v7852 = vshrl.u32 %v7390, 16
    %v7854 = vrot.slane %v7852, 7
    %v7855 = vshll.u32 %v7390, 16
    %v7857 = vor.u32 %v7854, %v7855
    %v7858 = vsel %vm474, %v7850, %v7857
    %v7859 = vrot.slane %v7854, 4
    %v7861 = vshrl.u32 %v7391, 16
    %v7863 = vrot.slane %v7861, 7
    %v7864 = vshll.u32 %v7391, 16
    %v7866 = vor.u32 %v7863, %v7864
    %v7867 = vsel %vm474, %v7859, %v7866
    %v7869 = vshrl.u32 %v7392, 16
    %v7871 = vrot.slane %v7869, 7
    %v7872 = vrot.slane %v7871, 4
    %v7874 = vshrl.u32 %v7393, 16
    %v7876 = vrot.slane %v7874, 7
    %v7877 = vshll.u32 %v7393, 16
    %v7879 = vor.u32 %v7876, %v7877
    %v7880 = vsel %vm474, %v7872, %v7879
    %v7881 = vrot.slane %v7876, 4
    %v7883 = vshrl.u32 %v7394, 16
    %v7885 = vrot.slane %v7883, 7
    %v7886 = vshll.u32 %v7394, 16
    %v7888 = vor.u32 %v7885, %v7886
    %v7889 = vsel %vm474, %v7881, %v7888
    %v7891 = vshrl.u32 %v7395, 16
    %v7893 = vrot.slane %v7891, 7
    %v7894 = vrot.slane %v7893, 4
    %v7896 = vshrl.u32 %v7396, 16
    %v7898 = vrot.slane %v7896, 7
    %v7899 = vshll.u32 %v7396, 16
    %v7901 = vor.u32 %v7898, %v7899
    %v7902 = vsel %vm474, %v7894, %v7901
    %v7903 = vrot.slane %v7898, 4
    %v7905 = vshrl.u32 %v7397, 16
    %v7907 = vrot.slane %v7905, 7
    %v7908 = vshll.u32 %v7397, 16
    %v7910 = vor.u32 %v7907, %v7908
    %v7911 = vsel %vm474, %v7903, %v7910
    %v7913 = vshrl.u32 %v7398, 16
    %v7915 = vrot.slane %v7913, 7
    %v7916 = vrot.slane %v7915, 4
    %v7918 = vshrl.u32 %v7399, 16
    %v7920 = vrot.slane %v7918, 7
    %v7921 = vshll.u32 %v7399, 16
    %v7923 = vor.u32 %v7920, %v7921
    %v7924 = vsel %vm474, %v7916, %v7923
    %v7925 = vrot.slane %v7920, 4
    %v7927 = vshrl.u32 %v7400, 16
    %v7929 = vrot.slane %v7927, 7
    %v7930 = vshll.u32 %v7400, 16
    %v7932 = vor.u32 %v7929, %v7930
    %v7933 = vsel %vm474, %v7925, %v7932
    %v7935 = vshrl.u32 %v7401, 16
    %v7937 = vrot.slane %v7935, 7
    %v7938 = vrot.slane %v7937, 4
    %v7940 = vshrl.u32 %v7402, 16
    %v7942 = vrot.slane %v7940, 7
    %v7943 = vshll.u32 %v7402, 16
    %v7945 = vor.u32 %v7942, %v7943
    %v7946 = vsel %vm474, %v7938, %v7945
    %v7947 = vrot.slane %v7942, 4
    %v7949 = vshrl.u32 %v7403, 16
    %v7951 = vrot.slane %v7949, 7
    %v7952 = vshll.u32 %v7403, 16
    %v7954 = vor.u32 %v7951, %v7952
    %v7955 = vsel %vm474, %v7947, %v7954
    %v7957 = vshrl.u32 %v7404, 16
    %v7959 = vrot.slane %v7957, 7
    %v7960 = vrot.slane %v7959, 4
    %v7962 = vshrl.u32 %v7405, 16
    %v7964 = vrot.slane %v7962, 7
    %v7965 = vshll.u32 %v7405, 16
    %v7967 = vor.u32 %v7964, %v7965
    %v7968 = vsel %vm474, %v7960, %v7967
    %v7969 = vrot.slane %v7964, 4
    %v7971 = vshrl.u32 %v7406, 16
    %v7973 = vrot.slane %v7971, 7
    %v7974 = vshll.u32 %v7406, 16
    %v7976 = vor.u32 %v7973, %v7974
    %v7977 = vsel %vm474, %v7969, %v7976
    %v7979 = vshrl.u32 %v7407, 16
    %v7981 = vrot.slane %v7979, 7
    %v7982 = vrot.slane %v7981, 4
    %v7984 = vshrl.u32 %v7408, 16
    %v7986 = vrot.slane %v7984, 7
    %v7987 = vshll.u32 %v7408, 16
    %v7989 = vor.u32 %v7986, %v7987
    %v7990 = vsel %vm474, %v7982, %v7989
    %v7991 = vrot.slane %v7986, 4
    %v7993 = vshrl.u32 %v7409, 16
    %v7995 = vrot.slane %v7993, 7
    %v7996 = vshll.u32 %v7409, 16
    %v7998 = vor.u32 %v7995, %v7996
    %v7999 = vsel %vm474, %v7991, %v7998
    %v8001 = vshrl.u32 %v7410, 16
    %v8003 = vrot.slane %v8001, 7
    %v8004 = vrot.slane %v8003, 4
    %v8006 = vshrl.u32 %v7411, 16
    %v8008 = vrot.slane %v8006, 7
    %v8009 = vshll.u32 %v7411, 16
    %v8011 = vor.u32 %v8008, %v8009
    %v8012 = vsel %vm474, %v8004, %v8011
    %v8013 = vrot.slane %v8008, 4
    %v8015 = vshrl.u32 %v7412, 16
    %v8017 = vrot.slane %v8015, 7
    %v8018 = vshll.u32 %v7412, 16
    %v8020 = vor.u32 %v8017, %v8018
    %v8021 = vsel %vm474, %v8013, %v8020
    %v8023 = vshrl.u32 %v7413, 16
    %v8025 = vrot.slane %v8023, 7
    %v8026 = vrot.slane %v8025, 4
    %v8028 = vshrl.u32 %v7414, 16
    %v8030 = vrot.slane %v8028, 7
    %v8031 = vshll.u32 %v7414, 16
    %v8033 = vor.u32 %v8030, %v8031
    %v8034 = vsel %vm474, %v8026, %v8033
    %v8035 = vrot.slane %v8030, 4
    %v8037 = vshrl.u32 %v7415, 16
    %v8039 = vrot.slane %v8037, 7
    %v8040 = vshll.u32 %v7415, 16
    %v8042 = vor.u32 %v8039, %v8040
    %v8043 = vsel %vm474, %v8035, %v8042
    %v8045 = vshrl.u32 %v7416, 16
    %v8047 = vrot.slane %v8045, 7
    %v8048 = vrot.slane %v8047, 4
    %v8050 = vshrl.u32 %v7417, 16
    %v8052 = vrot.slane %v8050, 7
    %v8053 = vshll.u32 %v7417, 16
    %v8055 = vor.u32 %v8052, %v8053
    %v8056 = vsel %vm474, %v8048, %v8055
    %v8057 = vrot.slane %v8052, 4
    %v8059 = vshrl.u32 %v7418, 16
    %v8061 = vrot.slane %v8059, 7
    %v8062 = vshll.u32 %v7418, 16
    %v8064 = vor.u32 %v8061, %v8062
    %v8065 = vsel %vm474, %v8057, %v8064
    %v8067 = vshrl.u32 %v7419, 16
    %v8069 = vrot.slane %v8067, 7
    %v8070 = vrot.slane %v8069, 4
    %v8072 = vshrl.u32 %v7420, 16
    %v8074 = vrot.slane %v8072, 7
    %v8075 = vshll.u32 %v7420, 16
    %v8077 = vor.u32 %v8074, %v8075
    %v8078 = vsel %vm474, %v8070, %v8077
    %v8079 = vrot.slane %v8074, 4
    %v8081 = vshrl.u32 %v7421, 16
    %v8083 = vrot.slane %v8081, 7
    %v8084 = vshll.u32 %v7421, 16
    %v8086 = vor.u32 %v8083, %v8084
    %v8087 = vsel %vm474, %v8079, %v8086
    %v8089 = vshrl.u32 %v7422, 16
    %v8091 = vrot.slane %v8089, 7
    %v8092 = vrot.slane %v8091, 4
    %v8094 = vshrl.u32 %v7423, 16
    %v8096 = vrot.slane %v8094, 7
    %v8097 = vshll.u32 %v7423, 16
    %v8099 = vor.u32 %v8096, %v8097
    %v8100 = vsel %vm474, %v8092, %v8099
    %v8101 = vrot.slane %v8096, 4
    %v8103 = vshrl.u32 %v7424, 16
    %v8105 = vrot.slane %v8103, 7
    %v8106 = vshll.u32 %v7424, 16
    %v8108 = vor.u32 %v8105, %v8106
    %v8109 = vsel %vm474, %v8101, %v8108
    %v8111 = vshrl.u32 %v7425, 16
    %v8113 = vrot.slane %v8111, 7
    %v8114 = vrot.slane %v8113, 4
    %v8116 = vshrl.u32 %v7426, 16
    %v8118 = vrot.slane %v8116, 7
    %v8119 = vshll.u32 %v7426, 16
    %v8121 = vor.u32 %v8118, %v8119
    %v8122 = vsel %vm474, %v8114, %v8121
    %v8123 = vrot.slane %v8118, 4
    %v8125 = vshrl.u32 %v7427, 16
    %v8127 = vrot.slane %v8125, 7
    %v8128 = vshll.u32 %v7427, 16
    %v8130 = vor.u32 %v8127, %v8128
    %v8131 = vsel %vm474, %v8123, %v8130
    %v8132 = vld [vmem:[#allocation3 + $0xc] sm:$0x1]
    %v8133 = vld [vmem:[#allocation3 + $0x1c] sm:$0x1]
    %v8134 = vld [vmem:[#allocation3 + $0x2c] sm:$0x1]
    %v8135 = vld [vmem:[#allocation3 + $0x3c] sm:$0x1]
    %v8136 = vld [vmem:[#allocation3 + $0x4c] sm:$0x1]
    %v8137 = vld [vmem:[#allocation3 + $0x5c] sm:$0x1]
    %v8138 = vld [vmem:[#allocation3 + $0x6c] sm:$0x1]
    %v8139 = vld [vmem:[#allocation3 + $0x7c] sm:$0x1]
    %v8140 = vld [vmem:[#allocation3 + $0x8c] sm:$0x1]
    %v8141 = vld [vmem:[#allocation3 + $0x9c] sm:$0x1]
    %v8142 = vld [vmem:[#allocation3 + $0xac] sm:$0x1]
    %v8143 = vld [vmem:[#allocation3 + $0xbc] sm:$0x1]
    %v8144 = vld [vmem:[#allocation3 + $0xcc] sm:$0x1]
    %v8145 = vld [vmem:[#allocation3 + $0xdc] sm:$0x1]
    %v8146 = vld [vmem:[#allocation3 + $0xec] sm:$0x1]
    %v8147 = vld [vmem:[#allocation3 + $0xfc] sm:$0x1]
    %v8148 = vld [vmem:[#allocation3 + $0x12c] sm:$0x1]
    %v8149 = vld [vmem:[#allocation3 + $0x13c] sm:$0x1]
    %v8150 = vld [vmem:[#allocation3 + $0x14c] sm:$0x1]
    %v8151 = vld [vmem:[#allocation3 + $0x15c] sm:$0x1]
    %v8152 = vld [vmem:[#allocation3 + $0x16c] sm:$0x1]
    %v8153 = vld [vmem:[#allocation3 + $0x17c] sm:$0x1]
    %v8154 = vld [vmem:[#allocation3 + $0x18c] sm:$0x1]
    %v8155 = vld [vmem:[#allocation3 + $0x19c] sm:$0x1]
    %v8156 = vld [vmem:[#allocation3 + $0x1ac] sm:$0x1]
    %v8157 = vld [vmem:[#allocation3 + $0x1bc] sm:$0x1]
    %v8158 = vld [vmem:[#allocation3 + $0x1cc] sm:$0x1]
    %v8159 = vld [vmem:[#allocation3 + $0x1dc] sm:$0x1]
    %v8160 = vld [vmem:[#allocation3 + $0x1ec] sm:$0x1]
    %v8161 = vld [vmem:[#allocation3 + $0x1fc] sm:$0x1]
    %v8162 = vld [vmem:[#allocation3 + $0x20c] sm:$0x1]
    %v8163 = vld [vmem:[#allocation3 + $0x21c] sm:$0x1]
    %v8164 = vrot.slane %v7434, 4
    %v8165 = vrot.slane %v7437, 5
    %v8166 = vor.u32 %v8164, %v8165
    %v8167 = vrot.slane %v8166, 4
    %v8168 = vrot.slane %v7446, 5
    %v8169 = vsel %vm1213, %v8167, %v8168
    %v8170 = vrot.slane %v7443, 4
    %v8171 = vor.u32 %v8170, %v8168
    %v8172 = vrot.slane %v8171, 4
    %v8174 = vshll.u32 %v8132, 16
    %v8176 = vrot.slane %v8174, 5
    %v8177 = vsel %vm1213, %v8172, %v8176
    %v8178 = vrot.slane %v7456, 4
    %v8179 = vrot.slane %v7459, 5
    %v8180 = vor.u32 %v8178, %v8179
    %v8181 = vrot.slane %v8180, 4
    %v8182 = vrot.slane %v7468, 5
    %v8183 = vsel %vm1213, %v8181, %v8182
    %v8184 = vrot.slane %v7465, 4
    %v8185 = vor.u32 %v8184, %v8182
    %v8186 = vrot.slane %v8185, 4
    %v8188 = vshll.u32 %v8133, 16
    %v8190 = vrot.slane %v8188, 5
    %v8191 = vsel %vm1213, %v8186, %v8190
    %v8192 = vrot.slane %v7478, 4
    %v8193 = vrot.slane %v7481, 5
    %v8194 = vor.u32 %v8192, %v8193
    %v8195 = vrot.slane %v8194, 4
    %v8196 = vrot.slane %v7490, 5
    %v8197 = vsel %vm1213, %v8195, %v8196
    %v8198 = vrot.slane %v7487, 4
    %v8199 = vor.u32 %v8198, %v8196
    %v8200 = vrot.slane %v8199, 4
    %v8202 = vshll.u32 %v8134, 16
    %v8204 = vrot.slane %v8202, 5
    %v8205 = vsel %vm1213, %v8200, %v8204
    %v8206 = vrot.slane %v7500, 4
    %v8207 = vrot.slane %v7503, 5
    %v8208 = vor.u32 %v8206, %v8207
    %v8209 = vrot.slane %v8208, 4
    %v8210 = vrot.slane %v7512, 5
    %v8211 = vsel %vm1213, %v8209, %v8210
    %v8212 = vrot.slane %v7509, 4
    %v8213 = vor.u32 %v8212, %v8210
    %v8214 = vrot.slane %v8213, 4
    %v8216 = vshll.u32 %v8135, 16
    %v8218 = vrot.slane %v8216, 5
    %v8219 = vsel %vm1213, %v8214, %v8218
    %v8220 = vrot.slane %v7522, 4
    %v8221 = vrot.slane %v7525, 5
    %v8222 = vor.u32 %v8220, %v8221
    %v8223 = vrot.slane %v8222, 4
    %v8224 = vrot.slane %v7534, 5
    %v8225 = vsel %vm1213, %v8223, %v8224
    %v8226 = vrot.slane %v7531, 4
    %v8227 = vor.u32 %v8226, %v8224
    %v8228 = vrot.slane %v8227, 4
    %v8230 = vshll.u32 %v8136, 16
    %v8232 = vrot.slane %v8230, 5
    %v8233 = vsel %vm1213, %v8228, %v8232
    %v8234 = vrot.slane %v7544, 4
    %v8235 = vrot.slane %v7547, 5
    %v8236 = vor.u32 %v8234, %v8235
    %v8237 = vrot.slane %v8236, 4
    %v8238 = vrot.slane %v7556, 5
    %v8239 = vsel %vm1213, %v8237, %v8238
    %v8240 = vrot.slane %v7553, 4
    %v8241 = vor.u32 %v8240, %v8238
    %v8242 = vrot.slane %v8241, 4
    %v8244 = vshll.u32 %v8137, 16
    %v8246 = vrot.slane %v8244, 5
    %v8247 = vsel %vm1213, %v8242, %v8246
    %v8248 = vrot.slane %v7566, 4
    %v8249 = vrot.slane %v7569, 5
    %v8250 = vor.u32 %v8248, %v8249
    %v8251 = vrot.slane %v8250, 4
    %v8252 = vrot.slane %v7578, 5
    %v8253 = vsel %vm1213, %v8251, %v8252
    %v8254 = vrot.slane %v7575, 4
    %v8255 = vor.u32 %v8254, %v8252
    %v8256 = vrot.slane %v8255, 4
    %v8258 = vshll.u32 %v8138, 16
    %v8260 = vrot.slane %v8258, 5
    %v8261 = vsel %vm1213, %v8256, %v8260
    %v8262 = vrot.slane %v7588, 4
    %v8263 = vrot.slane %v7591, 5
    %v8264 = vor.u32 %v8262, %v8263
    %v8265 = vrot.slane %v8264, 4
    %v8266 = vrot.slane %v7600, 5
    %v8267 = vsel %vm1213, %v8265, %v8266
    %v8268 = vrot.slane %v7597, 4
    %v8269 = vor.u32 %v8268, %v8266
    %v8270 = vrot.slane %v8269, 4
    %v8272 = vshll.u32 %v8139, 16
    %v8274 = vrot.slane %v8272, 5
    %v8275 = vsel %vm1213, %v8270, %v8274
    %v8276 = vrot.slane %v7610, 4
    %v8277 = vrot.slane %v7613, 5
    %v8278 = vor.u32 %v8276, %v8277
    %v8279 = vrot.slane %v8278, 4
    %v8280 = vrot.slane %v7622, 5
    %v8281 = vsel %vm1213, %v8279, %v8280
    %v8282 = vrot.slane %v7619, 4
    %v8283 = vor.u32 %v8282, %v8280
    %v8284 = vrot.slane %v8283, 4
    %v8286 = vshll.u32 %v8140, 16
    %v8288 = vrot.slane %v8286, 5
    %v8289 = vsel %vm1213, %v8284, %v8288
    %v8290 = vrot.slane %v7632, 4
    %v8291 = vrot.slane %v7635, 5
    %v8292 = vor.u32 %v8290, %v8291
    %v8293 = vrot.slane %v8292, 4
    %v8294 = vrot.slane %v7644, 5
    %v8295 = vsel %vm1213, %v8293, %v8294
    %v8296 = vrot.slane %v7641, 4
    %v8297 = vor.u32 %v8296, %v8294
    %v8298 = vrot.slane %v8297, 4
    %v8300 = vshll.u32 %v8141, 16
    %v8302 = vrot.slane %v8300, 5
    %v8303 = vsel %vm1213, %v8298, %v8302
    %v8304 = vrot.slane %v7654, 4
    %v8305 = vrot.slane %v7657, 5
    %v8306 = vor.u32 %v8304, %v8305
    %v8307 = vrot.slane %v8306, 4
    %v8308 = vrot.slane %v7666, 5
    %v8309 = vsel %vm1213, %v8307, %v8308
    %v8310 = vrot.slane %v7663, 4
    %v8311 = vor.u32 %v8310, %v8308
    %v8312 = vrot.slane %v8311, 4
    %v8314 = vshll.u32 %v8142, 16
    %v8316 = vrot.slane %v8314, 5
    %v8317 = vsel %vm1213, %v8312, %v8316
    %v8318 = vrot.slane %v7676, 4
    %v8319 = vrot.slane %v7679, 5
    %v8320 = vor.u32 %v8318, %v8319
    %v8321 = vrot.slane %v8320, 4
    %v8322 = vrot.slane %v7688, 5
    %v8323 = vsel %vm1213, %v8321, %v8322
    %v8324 = vrot.slane %v7685, 4
    %v8325 = vor.u32 %v8324, %v8322
    %v8326 = vrot.slane %v8325, 4
    %v8328 = vshll.u32 %v8143, 16
    %v8330 = vrot.slane %v8328, 5
    %v8331 = vsel %vm1213, %v8326, %v8330
    %v8332 = vrot.slane %v7698, 4
    %v8333 = vrot.slane %v7701, 5
    %v8334 = vor.u32 %v8332, %v8333
    %v8335 = vrot.slane %v8334, 4
    %v8336 = vrot.slane %v7710, 5
    %v8337 = vsel %vm1213, %v8335, %v8336
    %v8338 = vrot.slane %v7707, 4
    %v8339 = vor.u32 %v8338, %v8336
    %v8340 = vrot.slane %v8339, 4
    %v8342 = vshll.u32 %v8144, 16
    %v8344 = vrot.slane %v8342, 5
    %v8345 = vsel %vm1213, %v8340, %v8344
    %v8346 = vrot.slane %v7720, 4
    %v8347 = vrot.slane %v7723, 5
    %v8348 = vor.u32 %v8346, %v8347
    %v8349 = vrot.slane %v8348, 4
    %v8350 = vrot.slane %v7732, 5
    %v8351 = vsel %vm1213, %v8349, %v8350
    %v8352 = vrot.slane %v7729, 4
    %v8353 = vor.u32 %v8352, %v8350
    %v8354 = vrot.slane %v8353, 4
    %v8356 = vshll.u32 %v8145, 16
    %v8358 = vrot.slane %v8356, 5
    %v8359 = vsel %vm1213, %v8354, %v8358
    %v8360 = vrot.slane %v7742, 4
    %v8361 = vrot.slane %v7745, 5
    %v8362 = vor.u32 %v8360, %v8361
    %v8363 = vrot.slane %v8362, 4
    %v8364 = vrot.slane %v7754, 5
    %v8365 = vsel %vm1213, %v8363, %v8364
    %v8366 = vrot.slane %v7751, 4
    %v8367 = vor.u32 %v8366, %v8364
    %v8368 = vrot.slane %v8367, 4
    %v8370 = vshll.u32 %v8146, 16
    %v8372 = vrot.slane %v8370, 5
    %v8373 = vsel %vm1213, %v8368, %v8372
    %v8374 = vrot.slane %v7764, 4
    %v8375 = vrot.slane %v7767, 5
    %v8376 = vor.u32 %v8374, %v8375
    %v8377 = vrot.slane %v8376, 4
    %v8378 = vrot.slane %v7776, 5
    %v8379 = vsel %vm1213, %v8377, %v8378
    %v8380 = vrot.slane %v7773, 4
    %v8381 = vor.u32 %v8380, %v8378
    %v8382 = vrot.slane %v8381, 4
    %v8384 = vshll.u32 %v8147, 16
    %v8386 = vrot.slane %v8384, 5
    %v8387 = vsel %vm1213, %v8382, %v8386
    %v8388 = vrot.slane %v7786, 4
    %v8389 = vrot.slane %v7789, 5
    %v8390 = vor.u32 %v8388, %v8389
    %v8391 = vrot.slane %v8390, 4
    %v8392 = vrot.slane %v7798, 5
    %v8393 = vsel %vm1213, %v8391, %v8392
    %v8394 = vrot.slane %v7795, 4
    %v8395 = vor.u32 %v8394, %v8392
    %v8396 = vrot.slane %v8395, 4
    %v8398 = vshll.u32 %v8148, 16
    %v8400 = vrot.slane %v8398, 5
    %v8401 = vsel %vm1213, %v8396, %v8400
    %v8402 = vrot.slane %v7808, 4
    %v8403 = vrot.slane %v7811, 5
    %v8404 = vor.u32 %v8402, %v8403
    %v8405 = vrot.slane %v8404, 4
    %v8406 = vrot.slane %v7820, 5
    %v8407 = vsel %vm1213, %v8405, %v8406
    %v8408 = vrot.slane %v7817, 4
    %v8409 = vor.u32 %v8408, %v8406
    %v8410 = vrot.slane %v8409, 4
    %v8412 = vshll.u32 %v8149, 16
    %v8414 = vrot.slane %v8412, 5
    %v8415 = vsel %vm1213, %v8410, %v8414
    %v8416 = vrot.slane %v7830, 4
    %v8417 = vrot.slane %v7833, 5
    %v8418 = vor.u32 %v8416, %v8417
    %v8419 = vrot.slane %v8418, 4
    %v8420 = vrot.slane %v7842, 5
    %v8421 = vsel %vm1213, %v8419, %v8420
    %v8422 = vrot.slane %v7839, 4
    %v8423 = vor.u32 %v8422, %v8420
    %v8424 = vrot.slane %v8423, 4
    %v8426 = vshll.u32 %v8150, 16
    %v8428 = vrot.slane %v8426, 5
    %v8429 = vsel %vm1213, %v8424, %v8428
    %v8430 = vrot.slane %v7852, 4
    %v8431 = vrot.slane %v7855, 5
    %v8432 = vor.u32 %v8430, %v8431
    %v8433 = vrot.slane %v8432, 4
    %v8434 = vrot.slane %v7864, 5
    %v8435 = vsel %vm1213, %v8433, %v8434
    %v8436 = vrot.slane %v7861, 4
    %v8437 = vor.u32 %v8436, %v8434
    %v8438 = vrot.slane %v8437, 4
    %v8440 = vshll.u32 %v8151, 16
    %v8442 = vrot.slane %v8440, 5
    %v8443 = vsel %vm1213, %v8438, %v8442
    %v8444 = vrot.slane %v7874, 4
    %v8445 = vrot.slane %v7877, 5
    %v8446 = vor.u32 %v8444, %v8445
    %v8447 = vrot.slane %v8446, 4
    %v8448 = vrot.slane %v7886, 5
    %v8449 = vsel %vm1213, %v8447, %v8448
    %v8450 = vrot.slane %v7883, 4
    %v8451 = vor.u32 %v8450, %v8448
    %v8452 = vrot.slane %v8451, 4
    %v8454 = vshll.u32 %v8152, 16
    %v8456 = vrot.slane %v8454, 5
    %v8457 = vsel %vm1213, %v8452, %v8456
    %v8458 = vrot.slane %v7896, 4
    %v8459 = vrot.slane %v7899, 5
    %v8460 = vor.u32 %v8458, %v8459
    %v8461 = vrot.slane %v8460, 4
    %v8462 = vrot.slane %v7908, 5
    %v8463 = vsel %vm1213, %v8461, %v8462
    %v8464 = vrot.slane %v7905, 4
    %v8465 = vor.u32 %v8464, %v8462
    %v8466 = vrot.slane %v8465, 4
    %v8468 = vshll.u32 %v8153, 16
    %v8470 = vrot.slane %v8468, 5
    %v8471 = vsel %vm1213, %v8466, %v8470
    %v8472 = vrot.slane %v7918, 4
    %v8473 = vrot.slane %v7921, 5
    %v8474 = vor.u32 %v8472, %v8473
    %v8475 = vrot.slane %v8474, 4
    %v8476 = vrot.slane %v7930, 5
    %v8477 = vsel %vm1213, %v8475, %v8476
    %v8478 = vrot.slane %v7927, 4
    %v8479 = vor.u32 %v8478, %v8476
    %v8480 = vrot.slane %v8479, 4
    %v8482 = vshll.u32 %v8154, 16
    %v8484 = vrot.slane %v8482, 5
    %v8485 = vsel %vm1213, %v8480, %v8484
    %v8486 = vrot.slane %v7940, 4
    %v8487 = vrot.slane %v7943, 5
    %v8488 = vor.u32 %v8486, %v8487
    %v8489 = vrot.slane %v8488, 4
    %v8490 = vrot.slane %v7952, 5
    %v8491 = vsel %vm1213, %v8489, %v8490
    %v8492 = vrot.slane %v7949, 4
    %v8493 = vor.u32 %v8492, %v8490
    %v8494 = vrot.slane %v8493, 4
    %v8496 = vshll.u32 %v8155, 16
    %v8498 = vrot.slane %v8496, 5
    %v8499 = vsel %vm1213, %v8494, %v8498
    %v8500 = vrot.slane %v7962, 4
    %v8501 = vrot.slane %v7965, 5
    %v8502 = vor.u32 %v8500, %v8501
    %v8503 = vrot.slane %v8502, 4
    %v8504 = vrot.slane %v7974, 5
    %v8505 = vsel %vm1213, %v8503, %v8504
    %v8506 = vrot.slane %v7971, 4
    %v8507 = vor.u32 %v8506, %v8504
    %v8508 = vrot.slane %v8507, 4
    %v8510 = vshll.u32 %v8156, 16
    %v8512 = vrot.slane %v8510, 5
    %v8513 = vsel %vm1213, %v8508, %v8512
    %v8514 = vrot.slane %v7984, 4
    %v8515 = vrot.slane %v7987, 5
    %v8516 = vor.u32 %v8514, %v8515
    %v8517 = vrot.slane %v8516, 4
    %v8518 = vrot.slane %v7996, 5
    %v8519 = vsel %vm1213, %v8517, %v8518
    %v8520 = vrot.slane %v7993, 4
    %v8521 = vor.u32 %v8520, %v8518
    %v8522 = vrot.slane %v8521, 4
    %v8524 = vshll.u32 %v8157, 16
    %v8526 = vrot.slane %v8524, 5
    %v8527 = vsel %vm1213, %v8522, %v8526
    %v8528 = vrot.slane %v8006, 4
    %v8529 = vrot.slane %v8009, 5
    %v8530 = vor.u32 %v8528, %v8529
    %v8531 = vrot.slane %v8530, 4
    %v8532 = vrot.slane %v8018, 5
    %v8533 = vsel %vm1213, %v8531, %v8532
    %v8534 = vrot.slane %v8015, 4
    %v8535 = vor.u32 %v8534, %v8532
    %v8536 = vrot.slane %v8535, 4
    %v8538 = vshll.u32 %v8158, 16
    %v8540 = vrot.slane %v8538, 5
    %v8541 = vsel %vm1213, %v8536, %v8540
    %v8542 = vrot.slane %v8028, 4
    %v8543 = vrot.slane %v8031, 5
    %v8544 = vor.u32 %v8542, %v8543
    %v8545 = vrot.slane %v8544, 4
    %v8546 = vrot.slane %v8040, 5
    %v8547 = vsel %vm1213, %v8545, %v8546
    %v8548 = vrot.slane %v8037, 4
    %v8549 = vor.u32 %v8548, %v8546
    %v8550 = vrot.slane %v8549, 4
    %v8552 = vshll.u32 %v8159, 16
    %v8554 = vrot.slane %v8552, 5
    %v8555 = vsel %vm1213, %v8550, %v8554
    %v8556 = vrot.slane %v8050, 4
    %v8557 = vrot.slane %v8053, 5
    %v8558 = vor.u32 %v8556, %v8557
    %v8559 = vrot.slane %v8558, 4
    %v8560 = vrot.slane %v8062, 5
    %v8561 = vsel %vm1213, %v8559, %v8560
    %v8562 = vrot.slane %v8059, 4
    %v8563 = vor.u32 %v8562, %v8560
    %v8564 = vrot.slane %v8563, 4
    %v8566 = vshll.u32 %v8160, 16
    %v8568 = vrot.slane %v8566, 5
    %v8569 = vsel %vm1213, %v8564, %v8568
    %v8570 = vrot.slane %v8072, 4
    %v8571 = vrot.slane %v8075, 5
    %v8572 = vor.u32 %v8570, %v8571
    %v8573 = vrot.slane %v8572, 4
    %v8574 = vrot.slane %v8084, 5
    %v8575 = vsel %vm1213, %v8573, %v8574
    %v8576 = vrot.slane %v8081, 4
    %v8577 = vor.u32 %v8576, %v8574
    %v8578 = vrot.slane %v8577, 4
    %v8580 = vshll.u32 %v8161, 16
    %v8582 = vrot.slane %v8580, 5
    %v8583 = vsel %vm1213, %v8578, %v8582
    %v8584 = vrot.slane %v8094, 4
    %v8585 = vrot.slane %v8097, 5
    %v8586 = vor.u32 %v8584, %v8585
    %v8587 = vrot.slane %v8586, 4
    %v8588 = vrot.slane %v8106, 5
    %v8589 = vsel %vm1213, %v8587, %v8588
    %v8590 = vrot.slane %v8103, 4
    %v8591 = vor.u32 %v8590, %v8588
    %v8592 = vrot.slane %v8591, 4
    %v8594 = vshll.u32 %v8162, 16
    %v8596 = vrot.slane %v8594, 5
    %v8597 = vsel %vm1213, %v8592, %v8596
    %v8598 = vrot.slane %v8116, 4
    %v8599 = vrot.slane %v8119, 5
    %v8600 = vor.u32 %v8598, %v8599
    %v8601 = vrot.slane %v8600, 4
    %v8602 = vrot.slane %v8128, 5
    %v8603 = vsel %vm1213, %v8601, %v8602
    %v8604 = vrot.slane %v8125, 4
    %v8605 = vor.u32 %v8604, %v8602
    %v8606 = vrot.slane %v8605, 4
    %v8608 = vshll.u32 %v8163, 16
    %v8610 = vrot.slane %v8608, 5
    %v8611 = vsel %vm1213, %v8606, %v8610
    %v8612 = vld [vmem:[%s7267] sm:$0x8]
    %v8613 = vld [vmem:[%s7267 + $0x4] sm:$0xf]
    %v8614 = vld [vmem:[%s7267 + $0x8] sm:$0xf]
    %v8615 = vld [vmem:[%s7267 + $0x10] sm:$0x8]
    %v8616 = vld [vmem:[%s7267 + $0x14] sm:$0xf]
    %v8617 = vld [vmem:[%s7267 + $0x18] sm:$0xf]
    %v8618 = vld [vmem:[%s7267 + $0x20] sm:$0x8]
    %v8619 = vld [vmem:[%s7267 + $0x24] sm:$0xf]
    %v8620 = vld [vmem:[%s7267 + $0x28] sm:$0xf]
    %v8621 = vld [vmem:[%s7267 + $0x30] sm:$0x8]
    %v8622 = vld [vmem:[%s7267 + $0x34] sm:$0xf]
    %v8623 = vld [vmem:[%s7267 + $0x38] sm:$0xf]
    %v8624 = vld [vmem:[%s7267 + $0x40] sm:$0x8]
    %v8625 = vld [vmem:[%s7267 + $0x44] sm:$0xf]
    %v8626 = vld [vmem:[%s7267 + $0x48] sm:$0xf]
    %v8627 = vld [vmem:[%s7267 + $0x50] sm:$0x8]
    %v8628 = vld [vmem:[%s7267 + $0x54] sm:$0xf]
    %v8629 = vld [vmem:[%s7267 + $0x58] sm:$0xf]
    %v8630 = vld [vmem:[%s7267 + $0x60] sm:$0x8]
    %v8631 = vld [vmem:[%s7267 + $0x64] sm:$0xf]
    %v8632 = vld [vmem:[%s7267 + $0x68] sm:$0xf]
    %v8633 = vld [vmem:[%s7267 + $0x70] sm:$0x8]
    %v8634 = vld [vmem:[%s7267 + $0x74] sm:$0xf]
    %v8635 = vld [vmem:[%s7267 + $0x78] sm:$0xf]
    %v8636 = vld [vmem:[%s7267 + $0x80] sm:$0x8]
    %v8637 = vld [vmem:[%s7267 + $0x84] sm:$0xf]
    %v8638 = vld [vmem:[%s7267 + $0x88] sm:$0xf]
    %v8639 = vld [vmem:[%s7267 + $0x90] sm:$0x8]
    %v8640 = vld [vmem:[%s7267 + $0x94] sm:$0xf]
    %v8641 = vld [vmem:[%s7267 + $0x98] sm:$0xf]
    %v8642 = vld [vmem:[%s7267 + $0xa0] sm:$0x8]
    %v8643 = vld [vmem:[%s7267 + $0xa4] sm:$0xf]
    %v8644 = vld [vmem:[%s7267 + $0xa8] sm:$0xf]
    %v8645 = vld [vmem:[%s7267 + $0xb0] sm:$0x8]
    %v8646 = vld [vmem:[%s7267 + $0xb4] sm:$0xf]
    %v8647 = vld [vmem:[%s7267 + $0xb8] sm:$0xf]
    %v8648 = vld [vmem:[%s7267 + $0xc0] sm:$0x8]
    %v8649 = vld [vmem:[%s7267 + $0xc4] sm:$0xf]
    %v8650 = vld [vmem:[%s7267 + $0xc8] sm:$0xf]
    %v8651 = vld [vmem:[%s7267 + $0xd0] sm:$0x8]
    %v8652 = vld [vmem:[%s7267 + $0xd4] sm:$0xf]
    %v8653 = vld [vmem:[%s7267 + $0xd8] sm:$0xf]
    %v8654 = vld [vmem:[%s7267 + $0xe0] sm:$0x8]
    %v8655 = vld [vmem:[%s7267 + $0xe4] sm:$0xf]
    %v8656 = vld [vmem:[%s7267 + $0xe8] sm:$0xf]
    %v8657 = vld [vmem:[%s7267 + $0xf0] sm:$0x8]
    %v8658 = vld [vmem:[%s7267 + $0xf4] sm:$0xf]
    %v8659 = vld [vmem:[%s7267 + $0xf8] sm:$0xf]
    %v8660 = vld [vmem:[%s7267 + $0x120] sm:$0x8]
    %v8661 = vld [vmem:[%s7267 + $0x124] sm:$0xf]
    %v8662 = vld [vmem:[%s7267 + $0x128] sm:$0xf]
    %v8663 = vld [vmem:[%s7267 + $0x130] sm:$0x8]
    %v8664 = vld [vmem:[%s7267 + $0x134] sm:$0xf]
    %v8665 = vld [vmem:[%s7267 + $0x138] sm:$0xf]
    %v8666 = vld [vmem:[%s7267 + $0x140] sm:$0x8]
    %v8667 = vld [vmem:[%s7267 + $0x144] sm:$0xf]
    %v8668 = vld [vmem:[%s7267 + $0x148] sm:$0xf]
    %v8669 = vld [vmem:[%s7267 + $0x150] sm:$0x8]
    %v8670 = vld [vmem:[%s7267 + $0x154] sm:$0xf]
    %v8671 = vld [vmem:[%s7267 + $0x158] sm:$0xf]
    %v8672 = vld [vmem:[%s7267 + $0x160] sm:$0x8]
    %v8673 = vld [vmem:[%s7267 + $0x164] sm:$0xf]
    %v8674 = vld [vmem:[%s7267 + $0x168] sm:$0xf]
    %v8675 = vld [vmem:[%s7267 + $0x170] sm:$0x8]
    %v8676 = vld [vmem:[%s7267 + $0x174] sm:$0xf]
    %v8677 = vld [vmem:[%s7267 + $0x178] sm:$0xf]
    %v8678 = vld [vmem:[%s7267 + $0x180] sm:$0x8]
    %v8679 = vld [vmem:[%s7267 + $0x184] sm:$0xf]
    %v8680 = vld [vmem:[%s7267 + $0x188] sm:$0xf]
    %v8681 = vld [vmem:[%s7267 + $0x190] sm:$0x8]
    %v8682 = vld [vmem:[%s7267 + $0x194] sm:$0xf]
    %v8683 = vld [vmem:[%s7267 + $0x198] sm:$0xf]
    %v8684 = vld [vmem:[%s7267 + $0x1a0] sm:$0x8]
    %v8685 = vld [vmem:[%s7267 + $0x1a4] sm:$0xf]
    %v8686 = vld [vmem:[%s7267 + $0x1a8] sm:$0xf]
    %v8687 = vld [vmem:[%s7267 + $0x1b0] sm:$0x8]
    %v8688 = vld [vmem:[%s7267 + $0x1b4] sm:$0xf]
    %v8689 = vld [vmem:[%s7267 + $0x1b8] sm:$0xf]
    %v8690 = vld [vmem:[%s7267 + $0x1c0] sm:$0x8]
    %v8691 = vld [vmem:[%s7267 + $0x1c4] sm:$0xf]
    %v8692 = vld [vmem:[%s7267 + $0x1c8] sm:$0xf]
    %v8693 = vld [vmem:[%s7267 + $0x1d0] sm:$0x8]
    %v8694 = vld [vmem:[%s7267 + $0x1d4] sm:$0xf]
    %v8695 = vld [vmem:[%s7267 + $0x1d8] sm:$0xf]
    %v8696 = vld [vmem:[%s7267 + $0x1e0] sm:$0x8]
    %v8697 = vld [vmem:[%s7267 + $0x1e4] sm:$0xf]
    %v8698 = vld [vmem:[%s7267 + $0x1e8] sm:$0xf]
    %v8699 = vld [vmem:[%s7267 + $0x1f0] sm:$0x8]
    %v8700 = vld [vmem:[%s7267 + $0x1f4] sm:$0xf]
    %v8701 = vld [vmem:[%s7267 + $0x1f8] sm:$0xf]
    %v8702 = vld [vmem:[%s7267 + $0x200] sm:$0x8]
    %v8703 = vld [vmem:[%s7267 + $0x204] sm:$0xf]
    %v8704 = vld [vmem:[%s7267 + $0x208] sm:$0xf]
    %v8705 = vld [vmem:[%s7267 + $0x210] sm:$0x8]
    %v8706 = vld [vmem:[%s7267 + $0x214] sm:$0xf]
    %v8707 = vld [vmem:[%s7267 + $0x218] sm:$0xf]
    %v8709 = vshrl.u32 %v8612, 16
    %v8711 = vrot.slane %v8709, 7
    %v8712 = vrot.slane %v8711, 4
    %v8714 = vshrl.u32 %v8613, 16
    %v8716 = vrot.slane %v8714, 7
    %v8717 = vshll.u32 %v8613, 16
    %v8719 = vor.u32 %v8716, %v8717
    %v8720 = vsel %vm474, %v8712, %v8719
    %v8721 = vrot.slane %v8716, 4
    %v8723 = vshrl.u32 %v8614, 16
    %v8725 = vrot.slane %v8723, 7
    %v8726 = vshll.u32 %v8614, 16
    %v8728 = vor.u32 %v8725, %v8726
    %v8729 = vsel %vm474, %v8721, %v8728
    %v8731 = vshrl.u32 %v8615, 16
    %v8733 = vrot.slane %v8731, 7
    %v8734 = vrot.slane %v8733, 4
    %v8736 = vshrl.u32 %v8616, 16
    %v8738 = vrot.slane %v8736, 7
    %v8739 = vshll.u32 %v8616, 16
    %v8741 = vor.u32 %v8738, %v8739
    %v8742 = vsel %vm474, %v8734, %v8741
    %v8743 = vrot.slane %v8738, 4
    %v8745 = vshrl.u32 %v8617, 16
    %v8747 = vrot.slane %v8745, 7
    %v8748 = vshll.u32 %v8617, 16
    %v8750 = vor.u32 %v8747, %v8748
    %v8751 = vsel %vm474, %v8743, %v8750
    %v8753 = vshrl.u32 %v8618, 16
    %v8755 = vrot.slane %v8753, 7
    %v8756 = vrot.slane %v8755, 4
    %v8758 = vshrl.u32 %v8619, 16
    %v8760 = vrot.slane %v8758, 7
    %v8761 = vshll.u32 %v8619, 16
    %v8763 = vor.u32 %v8760, %v8761
    %v8764 = vsel %vm474, %v8756, %v8763
    %v8765 = vrot.slane %v8760, 4
    %v8767 = vshrl.u32 %v8620, 16
    %v8769 = vrot.slane %v8767, 7
    %v8770 = vshll.u32 %v8620, 16
    %v8772 = vor.u32 %v8769, %v8770
    %v8773 = vsel %vm474, %v8765, %v8772
    %v8775 = vshrl.u32 %v8621, 16
    %v8777 = vrot.slane %v8775, 7
    %v8778 = vrot.slane %v8777, 4
    %v8780 = vshrl.u32 %v8622, 16
    %v8782 = vrot.slane %v8780, 7
    %v8783 = vshll.u32 %v8622, 16
    %v8785 = vor.u32 %v8782, %v8783
    %v8786 = vsel %vm474, %v8778, %v8785
    %v8787 = vrot.slane %v8782, 4
    %v8789 = vshrl.u32 %v8623, 16
    %v8791 = vrot.slane %v8789, 7
    %v8792 = vshll.u32 %v8623, 16
    %v8794 = vor.u32 %v8791, %v8792
    %v8795 = vsel %vm474, %v8787, %v8794
    %v8797 = vshrl.u32 %v8624, 16
    %v8799 = vrot.slane %v8797, 7
    %v8800 = vrot.slane %v8799, 4
    %v8802 = vshrl.u32 %v8625, 16
    %v8804 = vrot.slane %v8802, 7
    %v8805 = vshll.u32 %v8625, 16
    %v8807 = vor.u32 %v8804, %v8805
    %v8808 = vsel %vm474, %v8800, %v8807
    %v8809 = vrot.slane %v8804, 4
    %v8811 = vshrl.u32 %v8626, 16
    %v8813 = vrot.slane %v8811, 7
    %v8814 = vshll.u32 %v8626, 16
    %v8816 = vor.u32 %v8813, %v8814
    %v8817 = vsel %vm474, %v8809, %v8816
    %v8819 = vshrl.u32 %v8627, 16
    %v8821 = vrot.slane %v8819, 7
    %v8822 = vrot.slane %v8821, 4
    %v8824 = vshrl.u32 %v8628, 16
    %v8826 = vrot.slane %v8824, 7
    %v8827 = vshll.u32 %v8628, 16
    %v8829 = vor.u32 %v8826, %v8827
    %v8830 = vsel %vm474, %v8822, %v8829
    %v8831 = vrot.slane %v8826, 4
    %v8833 = vshrl.u32 %v8629, 16
    %v8835 = vrot.slane %v8833, 7
    %v8836 = vshll.u32 %v8629, 16
    %v8838 = vor.u32 %v8835, %v8836
    %v8839 = vsel %vm474, %v8831, %v8838
    %v8841 = vshrl.u32 %v8630, 16
    %v8843 = vrot.slane %v8841, 7
    %v8844 = vrot.slane %v8843, 4
    %v8846 = vshrl.u32 %v8631, 16
    %v8848 = vrot.slane %v8846, 7
    %v8849 = vshll.u32 %v8631, 16
    %v8851 = vor.u32 %v8848, %v8849
    %v8852 = vsel %vm474, %v8844, %v8851
    %v8853 = vrot.slane %v8848, 4
    %v8855 = vshrl.u32 %v8632, 16
    %v8857 = vrot.slane %v8855, 7
    %v8858 = vshll.u32 %v8632, 16
    %v8860 = vor.u32 %v8857, %v8858
    %v8861 = vsel %vm474, %v8853, %v8860
    %v8863 = vshrl.u32 %v8633, 16
    %v8865 = vrot.slane %v8863, 7
    %v8866 = vrot.slane %v8865, 4
    %v8868 = vshrl.u32 %v8634, 16
    %v8870 = vrot.slane %v8868, 7
    %v8871 = vshll.u32 %v8634, 16
    %v8873 = vor.u32 %v8870, %v8871
    %v8874 = vsel %vm474, %v8866, %v8873
    %v8875 = vrot.slane %v8870, 4
    %v8877 = vshrl.u32 %v8635, 16
    %v8879 = vrot.slane %v8877, 7
    %v8880 = vshll.u32 %v8635, 16
    %v8882 = vor.u32 %v8879, %v8880
    %v8883 = vsel %vm474, %v8875, %v8882
    %v8885 = vshrl.u32 %v8636, 16
    %v8887 = vrot.slane %v8885, 7
    %v8888 = vrot.slane %v8887, 4
    %v8890 = vshrl.u32 %v8637, 16
    %v8892 = vrot.slane %v8890, 7
    %v8893 = vshll.u32 %v8637, 16
    %v8895 = vor.u32 %v8892, %v8893
    %v8896 = vsel %vm474, %v8888, %v8895
    %v8897 = vrot.slane %v8892, 4
    %v8899 = vshrl.u32 %v8638, 16
    %v8901 = vrot.slane %v8899, 7
    %v8902 = vshll.u32 %v8638, 16
    %v8904 = vor.u32 %v8901, %v8902
    %v8905 = vsel %vm474, %v8897, %v8904
    %v8907 = vshrl.u32 %v8639, 16
    %v8909 = vrot.slane %v8907, 7
    %v8910 = vrot.slane %v8909, 4
    %v8912 = vshrl.u32 %v8640, 16
    %v8914 = vrot.slane %v8912, 7
    %v8915 = vshll.u32 %v8640, 16
    %v8917 = vor.u32 %v8914, %v8915
    %v8918 = vsel %vm474, %v8910, %v8917
    %v8919 = vrot.slane %v8914, 4
    %v8921 = vshrl.u32 %v8641, 16
    %v8923 = vrot.slane %v8921, 7
    %v8924 = vshll.u32 %v8641, 16
    %v8926 = vor.u32 %v8923, %v8924
    %v8927 = vsel %vm474, %v8919, %v8926
    %v8929 = vshrl.u32 %v8642, 16
    %v8931 = vrot.slane %v8929, 7
    %v8932 = vrot.slane %v8931, 4
    %v8934 = vshrl.u32 %v8643, 16
    %v8936 = vrot.slane %v8934, 7
    %v8937 = vshll.u32 %v8643, 16
    %v8939 = vor.u32 %v8936, %v8937
    %v8940 = vsel %vm474, %v8932, %v8939
    %v8941 = vrot.slane %v8936, 4
    %v8943 = vshrl.u32 %v8644, 16
    %v8945 = vrot.slane %v8943, 7
    %v8946 = vshll.u32 %v8644, 16
    %v8948 = vor.u32 %v8945, %v8946
    %v8949 = vsel %vm474, %v8941, %v8948
    %v8951 = vshrl.u32 %v8645, 16
    %v8953 = vrot.slane %v8951, 7
    %v8954 = vrot.slane %v8953, 4
    %v8956 = vshrl.u32 %v8646, 16
    %v8958 = vrot.slane %v8956, 7
    %v8959 = vshll.u32 %v8646, 16
    %v8961 = vor.u32 %v8958, %v8959
    %v8962 = vsel %vm474, %v8954, %v8961
    %v8963 = vrot.slane %v8958, 4
    %v8965 = vshrl.u32 %v8647, 16
    %v8967 = vrot.slane %v8965, 7
    %v8968 = vshll.u32 %v8647, 16
    %v8970 = vor.u32 %v8967, %v8968
    %v8971 = vsel %vm474, %v8963, %v8970
    %v8973 = vshrl.u32 %v8648, 16
    %v8975 = vrot.slane %v8973, 7
    %v8976 = vrot.slane %v8975, 4
    %v8978 = vshrl.u32 %v8649, 16
    %v8980 = vrot.slane %v8978, 7
    %v8981 = vshll.u32 %v8649, 16
    %v8983 = vor.u32 %v8980, %v8981
    %v8984 = vsel %vm474, %v8976, %v8983
    %v8985 = vrot.slane %v8980, 4
    %v8987 = vshrl.u32 %v8650, 16
    %v8989 = vrot.slane %v8987, 7
    %v8990 = vshll.u32 %v8650, 16
    %v8992 = vor.u32 %v8989, %v8990
    %v8993 = vsel %vm474, %v8985, %v8992
    %v8995 = vshrl.u32 %v8651, 16
    %v8997 = vrot.slane %v8995, 7
    %v8998 = vrot.slane %v8997, 4
    %v9000 = vshrl.u32 %v8652, 16
    %v9002 = vrot.slane %v9000, 7
    %v9003 = vshll.u32 %v8652, 16
    %v9005 = vor.u32 %v9002, %v9003
    %v9006 = vsel %vm474, %v8998, %v9005
    %v9007 = vrot.slane %v9002, 4
    %v9009 = vshrl.u32 %v8653, 16
    %v9011 = vrot.slane %v9009, 7
    %v9012 = vshll.u32 %v8653, 16
    %v9014 = vor.u32 %v9011, %v9012
    %v9015 = vsel %vm474, %v9007, %v9014
    %v9017 = vshrl.u32 %v8654, 16
    %v9019 = vrot.slane %v9017, 7
    %v9020 = vrot.slane %v9019, 4
    %v9022 = vshrl.u32 %v8655, 16
    %v9024 = vrot.slane %v9022, 7
    %v9025 = vshll.u32 %v8655, 16
    %v9027 = vor.u32 %v9024, %v9025
    %v9028 = vsel %vm474, %v9020, %v9027
    %v9029 = vrot.slane %v9024, 4
    %v9031 = vshrl.u32 %v8656, 16
    %v9033 = vrot.slane %v9031, 7
    %v9034 = vshll.u32 %v8656, 16
    %v9036 = vor.u32 %v9033, %v9034
    %v9037 = vsel %vm474, %v9029, %v9036
    %v9039 = vshrl.u32 %v8657, 16
    %v9041 = vrot.slane %v9039, 7
    %v9042 = vrot.slane %v9041, 4
    %v9044 = vshrl.u32 %v8658, 16
    %v9046 = vrot.slane %v9044, 7
    %v9047 = vshll.u32 %v8658, 16
    %v9049 = vor.u32 %v9046, %v9047
    %v9050 = vsel %vm474, %v9042, %v9049
    %v9051 = vrot.slane %v9046, 4
    %v9053 = vshrl.u32 %v8659, 16
    %v9055 = vrot.slane %v9053, 7
    %v9056 = vshll.u32 %v8659, 16
    %v9058 = vor.u32 %v9055, %v9056
    %v9059 = vsel %vm474, %v9051, %v9058
    %v9061 = vshrl.u32 %v8660, 16
    %v9063 = vrot.slane %v9061, 7
    %v9064 = vrot.slane %v9063, 4
    %v9066 = vshrl.u32 %v8661, 16
    %v9068 = vrot.slane %v9066, 7
    %v9069 = vshll.u32 %v8661, 16
    %v9071 = vor.u32 %v9068, %v9069
    %v9072 = vsel %vm474, %v9064, %v9071
    %v9073 = vrot.slane %v9068, 4
    %v9075 = vshrl.u32 %v8662, 16
    %v9077 = vrot.slane %v9075, 7
    %v9078 = vshll.u32 %v8662, 16
    %v9080 = vor.u32 %v9077, %v9078
    %v9081 = vsel %vm474, %v9073, %v9080
    %v9083 = vshrl.u32 %v8663, 16
    %v9085 = vrot.slane %v9083, 7
    %v9086 = vrot.slane %v9085, 4
    %v9088 = vshrl.u32 %v8664, 16
    %v9090 = vrot.slane %v9088, 7
    %v9091 = vshll.u32 %v8664, 16
    %v9093 = vor.u32 %v9090, %v9091
    %v9094 = vsel %vm474, %v9086, %v9093
    %v9095 = vrot.slane %v9090, 4
    %v9097 = vshrl.u32 %v8665, 16
    %v9099 = vrot.slane %v9097, 7
    %v9100 = vshll.u32 %v8665, 16
    %v9102 = vor.u32 %v9099, %v9100
    %v9103 = vsel %vm474, %v9095, %v9102
    %v9105 = vshrl.u32 %v8666, 16
    %v9107 = vrot.slane %v9105, 7
    %v9108 = vrot.slane %v9107, 4
    %v9110 = vshrl.u32 %v8667, 16
    %v9112 = vrot.slane %v9110, 7
    %v9113 = vshll.u32 %v8667, 16
    %v9115 = vor.u32 %v9112, %v9113
    %v9116 = vsel %vm474, %v9108, %v9115
    %v9117 = vrot.slane %v9112, 4
    %v9119 = vshrl.u32 %v8668, 16
    %v9121 = vrot.slane %v9119, 7
    %v9122 = vshll.u32 %v8668, 16
    %v9124 = vor.u32 %v9121, %v9122
    %v9125 = vsel %vm474, %v9117, %v9124
    %v9127 = vshrl.u32 %v8669, 16
    %v9129 = vrot.slane %v9127, 7
    %v9130 = vrot.slane %v9129, 4
    %v9132 = vshrl.u32 %v8670, 16
    %v9134 = vrot.slane %v9132, 7
    %v9135 = vshll.u32 %v8670, 16
    %v9137 = vor.u32 %v9134, %v9135
    %v9138 = vsel %vm474, %v9130, %v9137
    %v9139 = vrot.slane %v9134, 4
    %v9141 = vshrl.u32 %v8671, 16
    %v9143 = vrot.slane %v9141, 7
    %v9144 = vshll.u32 %v8671, 16
    %v9146 = vor.u32 %v9143, %v9144
    %v9147 = vsel %vm474, %v9139, %v9146
    %v9149 = vshrl.u32 %v8672, 16
    %v9151 = vrot.slane %v9149, 7
    %v9152 = vrot.slane %v9151, 4
    %v9154 = vshrl.u32 %v8673, 16
    %v9156 = vrot.slane %v9154, 7
    %v9157 = vshll.u32 %v8673, 16
    %v9159 = vor.u32 %v9156, %v9157
    %v9160 = vsel %vm474, %v9152, %v9159
    %v9161 = vrot.slane %v9156, 4
    %v9163 = vshrl.u32 %v8674, 16
    %v9165 = vrot.slane %v9163, 7
    %v9166 = vshll.u32 %v8674, 16
    %v9168 = vor.u32 %v9165, %v9166
    %v9169 = vsel %vm474, %v9161, %v9168
    %v9171 = vshrl.u32 %v8675, 16
    %v9173 = vrot.slane %v9171, 7
    %v9174 = vrot.slane %v9173, 4
    %v9176 = vshrl.u32 %v8676, 16
    %v9178 = vrot.slane %v9176, 7
    %v9179 = vshll.u32 %v8676, 16
    %v9181 = vor.u32 %v9178, %v9179
    %v9182 = vsel %vm474, %v9174, %v9181
    %v9183 = vrot.slane %v9178, 4
    %v9185 = vshrl.u32 %v8677, 16
    %v9187 = vrot.slane %v9185, 7
    %v9188 = vshll.u32 %v8677, 16
    %v9190 = vor.u32 %v9187, %v9188
    %v9191 = vsel %vm474, %v9183, %v9190
    %v9193 = vshrl.u32 %v8678, 16
    %v9195 = vrot.slane %v9193, 7
    %v9196 = vrot.slane %v9195, 4
    %v9198 = vshrl.u32 %v8679, 16
    %v9200 = vrot.slane %v9198, 7
    %v9201 = vshll.u32 %v8679, 16
    %v9203 = vor.u32 %v9200, %v9201
    %v9204 = vsel %vm474, %v9196, %v9203
    %v9205 = vrot.slane %v9200, 4
    %v9207 = vshrl.u32 %v8680, 16
    %v9209 = vrot.slane %v9207, 7
    %v9210 = vshll.u32 %v8680, 16
    %v9212 = vor.u32 %v9209, %v9210
    %v9213 = vsel %vm474, %v9205, %v9212
    %v9215 = vshrl.u32 %v8681, 16
    %v9217 = vrot.slane %v9215, 7
    %v9218 = vrot.slane %v9217, 4
    %v9220 = vshrl.u32 %v8682, 16
    %v9222 = vrot.slane %v9220, 7
    %v9223 = vshll.u32 %v8682, 16
    %v9225 = vor.u32 %v9222, %v9223
    %v9226 = vsel %vm474, %v9218, %v9225
    %v9227 = vrot.slane %v9222, 4
    %v9229 = vshrl.u32 %v8683, 16
    %v9231 = vrot.slane %v9229, 7
    %v9232 = vshll.u32 %v8683, 16
    %v9234 = vor.u32 %v9231, %v9232
    %v9235 = vsel %vm474, %v9227, %v9234
    %v9237 = vshrl.u32 %v8684, 16
    %v9239 = vrot.slane %v9237, 7
    %v9240 = vrot.slane %v9239, 4
    %v9242 = vshrl.u32 %v8685, 16
    %v9244 = vrot.slane %v9242, 7
    %v9245 = vshll.u32 %v8685, 16
    %v9247 = vor.u32 %v9244, %v9245
    %v9248 = vsel %vm474, %v9240, %v9247
    %v9249 = vrot.slane %v9244, 4
    %v9251 = vshrl.u32 %v8686, 16
    %v9253 = vrot.slane %v9251, 7
    %v9254 = vshll.u32 %v8686, 16
    %v9256 = vor.u32 %v9253, %v9254
    %v9257 = vsel %vm474, %v9249, %v9256
    %v9259 = vshrl.u32 %v8687, 16
    %v9261 = vrot.slane %v9259, 7
    %v9262 = vrot.slane %v9261, 4
    %v9264 = vshrl.u32 %v8688, 16
    %v9266 = vrot.slane %v9264, 7
    %v9267 = vshll.u32 %v8688, 16
    %v9269 = vor.u32 %v9266, %v9267
    %v9270 = vsel %vm474, %v9262, %v9269
    %v9271 = vrot.slane %v9266, 4
    %v9273 = vshrl.u32 %v8689, 16
    %v9275 = vrot.slane %v9273, 7
    %v9276 = vshll.u32 %v8689, 16
    %v9278 = vor.u32 %v9275, %v9276
    %v9279 = vsel %vm474, %v9271, %v9278
    %v9281 = vshrl.u32 %v8690, 16
    %v9283 = vrot.slane %v9281, 7
    %v9284 = vrot.slane %v9283, 4
    %v9286 = vshrl.u32 %v8691, 16
    %v9288 = vrot.slane %v9286, 7
    %v9289 = vshll.u32 %v8691, 16
    %v9291 = vor.u32 %v9288, %v9289
    %v9292 = vsel %vm474, %v9284, %v9291
    %v9293 = vrot.slane %v9288, 4
    %v9295 = vshrl.u32 %v8692, 16
    %v9297 = vrot.slane %v9295, 7
    %v9298 = vshll.u32 %v8692, 16
    %v9300 = vor.u32 %v9297, %v9298
    %v9301 = vsel %vm474, %v9293, %v9300
    %v9303 = vshrl.u32 %v8693, 16
    %v9305 = vrot.slane %v9303, 7
    %v9306 = vrot.slane %v9305, 4
    %v9308 = vshrl.u32 %v8694, 16
    %v9310 = vrot.slane %v9308, 7
    %v9311 = vshll.u32 %v8694, 16
    %v9313 = vor.u32 %v9310, %v9311
    %v9314 = vsel %vm474, %v9306, %v9313
    %v9315 = vrot.slane %v9310, 4
    %v9317 = vshrl.u32 %v8695, 16
    %v9319 = vrot.slane %v9317, 7
    %v9320 = vshll.u32 %v8695, 16
    %v9322 = vor.u32 %v9319, %v9320
    %v9323 = vsel %vm474, %v9315, %v9322
    %v9325 = vshrl.u32 %v8696, 16
    %v9327 = vrot.slane %v9325, 7
    %v9328 = vrot.slane %v9327, 4
    %v9330 = vshrl.u32 %v8697, 16
    %v9332 = vrot.slane %v9330, 7
    %v9333 = vshll.u32 %v8697, 16
    %v9335 = vor.u32 %v9332, %v9333
    %v9336 = vsel %vm474, %v9328, %v9335
    %v9337 = vrot.slane %v9332, 4
    %v9339 = vshrl.u32 %v8698, 16
    %v9341 = vrot.slane %v9339, 7
    %v9342 = vshll.u32 %v8698, 16
    %v9344 = vor.u32 %v9341, %v9342
    %v9345 = vsel %vm474, %v9337, %v9344
    %v9347 = vshrl.u32 %v8699, 16
    %v9349 = vrot.slane %v9347, 7
    %v9350 = vrot.slane %v9349, 4
    %v9352 = vshrl.u32 %v8700, 16
    %v9354 = vrot.slane %v9352, 7
    %v9355 = vshll.u32 %v8700, 16
    %v9357 = vor.u32 %v9354, %v9355
    %v9358 = vsel %vm474, %v9350, %v9357
    %v9359 = vrot.slane %v9354, 4
    %v9361 = vshrl.u32 %v8701, 16
    %v9363 = vrot.slane %v9361, 7
    %v9364 = vshll.u32 %v8701, 16
    %v9366 = vor.u32 %v9363, %v9364
    %v9367 = vsel %vm474, %v9359, %v9366
    %v9369 = vshrl.u32 %v8702, 16
    %v9371 = vrot.slane %v9369, 7
    %v9372 = vrot.slane %v9371, 4
    %v9374 = vshrl.u32 %v8703, 16
    %v9376 = vrot.slane %v9374, 7
    %v9377 = vshll.u32 %v8703, 16
    %v9379 = vor.u32 %v9376, %v9377
    %v9380 = vsel %vm474, %v9372, %v9379
    %v9381 = vrot.slane %v9376, 4
    %v9383 = vshrl.u32 %v8704, 16
    %v9385 = vrot.slane %v9383, 7
    %v9386 = vshll.u32 %v8704, 16
    %v9388 = vor.u32 %v9385, %v9386
    %v9389 = vsel %vm474, %v9381, %v9388
    %v9391 = vshrl.u32 %v8705, 16
    %v9393 = vrot.slane %v9391, 7
    %v9394 = vrot.slane %v9393, 4
    %v9396 = vshrl.u32 %v8706, 16
    %v9398 = vrot.slane %v9396, 7
    %v9399 = vshll.u32 %v8706, 16
    %v9401 = vor.u32 %v9398, %v9399
    %v9402 = vsel %vm474, %v9394, %v9401
    %v9403 = vrot.slane %v9398, 4
    %v9405 = vshrl.u32 %v8707, 16
    %v9407 = vrot.slane %v9405, 7
    %v9408 = vshll.u32 %v8707, 16
    %v9410 = vor.u32 %v9407, %v9408
    %v9411 = vsel %vm474, %v9403, %v9410
    %v9412 = vld [vmem:[%s7267 + $0xc] sm:$0x1]
    %v9413 = vld [vmem:[%s7267 + $0x1c] sm:$0x1]
    %v9414 = vld [vmem:[%s7267 + $0x2c] sm:$0x1]
    %v9415 = vld [vmem:[%s7267 + $0x3c] sm:$0x1]
    %v9416 = vld [vmem:[%s7267 + $0x4c] sm:$0x1]
    %v9417 = vld [vmem:[%s7267 + $0x5c] sm:$0x1]
    %v9418 = vld [vmem:[%s7267 + $0x6c] sm:$0x1]
    %v9419 = vld [vmem:[%s7267 + $0x7c] sm:$0x1]
    %v9420 = vld [vmem:[%s7267 + $0x8c] sm:$0x1]
    %v9421 = vld [vmem:[%s7267 + $0x9c] sm:$0x1]
    %v9422 = vld [vmem:[%s7267 + $0xac] sm:$0x1]
    %v9423 = vld [vmem:[%s7267 + $0xbc] sm:$0x1]
    %v9424 = vld [vmem:[%s7267 + $0xcc] sm:$0x1]
    %v9425 = vld [vmem:[%s7267 + $0xdc] sm:$0x1]
    %v9426 = vld [vmem:[%s7267 + $0xec] sm:$0x1]
    %v9427 = vld [vmem:[%s7267 + $0xfc] sm:$0x1]
    %v9428 = vld [vmem:[%s7267 + $0x12c] sm:$0x1]
    %v9429 = vld [vmem:[%s7267 + $0x13c] sm:$0x1]
    %v9430 = vld [vmem:[%s7267 + $0x14c] sm:$0x1]
    %v9431 = vld [vmem:[%s7267 + $0x15c] sm:$0x1]
    %v9432 = vld [vmem:[%s7267 + $0x16c] sm:$0x1]
    %v9433 = vld [vmem:[%s7267 + $0x17c] sm:$0x1]
    %v9434 = vld [vmem:[%s7267 + $0x18c] sm:$0x1]
    %v9435 = vld [vmem:[%s7267 + $0x19c] sm:$0x1]
    %v9436 = vld [vmem:[%s7267 + $0x1ac] sm:$0x1]
    %v9437 = vld [vmem:[%s7267 + $0x1bc] sm:$0x1]
    %v9438 = vld [vmem:[%s7267 + $0x1cc] sm:$0x1]
    %v9439 = vld [vmem:[%s7267 + $0x1dc] sm:$0x1]
    %v9440 = vld [vmem:[%s7267 + $0x1ec] sm:$0x1]
    %v9441 = vld [vmem:[%s7267 + $0x1fc] sm:$0x1]
    %v9442 = vld [vmem:[%s7267 + $0x20c] sm:$0x1]
    %v9443 = vld [vmem:[%s7267 + $0x21c] sm:$0x1]
    %v9444 = vrot.slane %v8714, 4
    %v9445 = vrot.slane %v8717, 5
    %v9446 = vor.u32 %v9444, %v9445
    %v9447 = vrot.slane %v9446, 4
    %v9448 = vrot.slane %v8726, 5
    %v9449 = vsel %vm1213, %v9447, %v9448
    %v9450 = vrot.slane %v8723, 4
    %v9451 = vor.u32 %v9450, %v9448
    %v9452 = vrot.slane %v9451, 4
    %v9454 = vshll.u32 %v9412, 16
    %v9456 = vrot.slane %v9454, 5
    %v9457 = vsel %vm1213, %v9452, %v9456
    %v9458 = vrot.slane %v8736, 4
    %v9459 = vrot.slane %v8739, 5
    %v9460 = vor.u32 %v9458, %v9459
    %v9461 = vrot.slane %v9460, 4
    %v9462 = vrot.slane %v8748, 5
    %v9463 = vsel %vm1213, %v9461, %v9462
    %v9464 = vrot.slane %v8745, 4
    %v9465 = vor.u32 %v9464, %v9462
    %v9466 = vrot.slane %v9465, 4
    %v9468 = vshll.u32 %v9413, 16
    %v9470 = vrot.slane %v9468, 5
    %v9471 = vsel %vm1213, %v9466, %v9470
    %v9472 = vrot.slane %v8758, 4
    %v9473 = vrot.slane %v8761, 5
    %v9474 = vor.u32 %v9472, %v9473
    %v9475 = vrot.slane %v9474, 4
    %v9476 = vrot.slane %v8770, 5
    %v9477 = vsel %vm1213, %v9475, %v9476
    %v9478 = vrot.slane %v8767, 4
    %v9479 = vor.u32 %v9478, %v9476
    %v9480 = vrot.slane %v9479, 4
    %v9482 = vshll.u32 %v9414, 16
    %v9484 = vrot.slane %v9482, 5
    %v9485 = vsel %vm1213, %v9480, %v9484
    %v9486 = vrot.slane %v8780, 4
    %v9487 = vrot.slane %v8783, 5
    %v9488 = vor.u32 %v9486, %v9487
    %v9489 = vrot.slane %v9488, 4
    %v9490 = vrot.slane %v8792, 5
    %v9491 = vsel %vm1213, %v9489, %v9490
    %v9492 = vrot.slane %v8789, 4
    %v9493 = vor.u32 %v9492, %v9490
    %v9494 = vrot.slane %v9493, 4
    %v9496 = vshll.u32 %v9415, 16
    %v9498 = vrot.slane %v9496, 5
    %v9499 = vsel %vm1213, %v9494, %v9498
    %v9500 = vrot.slane %v8802, 4
    %v9501 = vrot.slane %v8805, 5
    %v9502 = vor.u32 %v9500, %v9501
    %v9503 = vrot.slane %v9502, 4
    %v9504 = vrot.slane %v8814, 5
    %v9505 = vsel %vm1213, %v9503, %v9504
    %v9506 = vrot.slane %v8811, 4
    %v9507 = vor.u32 %v9506, %v9504
    %v9508 = vrot.slane %v9507, 4
    %v9510 = vshll.u32 %v9416, 16
    %v9512 = vrot.slane %v9510, 5
    %v9513 = vsel %vm1213, %v9508, %v9512
    %v9514 = vrot.slane %v8824, 4
    %v9515 = vrot.slane %v8827, 5
    %v9516 = vor.u32 %v9514, %v9515
    %v9517 = vrot.slane %v9516, 4
    %v9518 = vrot.slane %v8836, 5
    %v9519 = vsel %vm1213, %v9517, %v9518
    %v9520 = vrot.slane %v8833, 4
    %v9521 = vor.u32 %v9520, %v9518
    %v9522 = vrot.slane %v9521, 4
    %v9524 = vshll.u32 %v9417, 16
    %v9526 = vrot.slane %v9524, 5
    %v9527 = vsel %vm1213, %v9522, %v9526
    %v9528 = vrot.slane %v8846, 4
    %v9529 = vrot.slane %v8849, 5
    %v9530 = vor.u32 %v9528, %v9529
    %v9531 = vrot.slane %v9530, 4
    %v9532 = vrot.slane %v8858, 5
    %v9533 = vsel %vm1213, %v9531, %v9532
    %v9534 = vrot.slane %v8855, 4
    %v9535 = vor.u32 %v9534, %v9532
    %v9536 = vrot.slane %v9535, 4
    %v9538 = vshll.u32 %v9418, 16
    %v9540 = vrot.slane %v9538, 5
    %v9541 = vsel %vm1213, %v9536, %v9540
    %v9542 = vrot.slane %v8868, 4
    %v9543 = vrot.slane %v8871, 5
    %v9544 = vor.u32 %v9542, %v9543
    %v9545 = vrot.slane %v9544, 4
    %v9546 = vrot.slane %v8880, 5
    %v9547 = vsel %vm1213, %v9545, %v9546
    %v9548 = vrot.slane %v8877, 4
    %v9549 = vor.u32 %v9548, %v9546
    %v9550 = vrot.slane %v9549, 4
    %v9552 = vshll.u32 %v9419, 16
    %v9554 = vrot.slane %v9552, 5
    %v9555 = vsel %vm1213, %v9550, %v9554
    %v9556 = vrot.slane %v8890, 4
    %v9557 = vrot.slane %v8893, 5
    %v9558 = vor.u32 %v9556, %v9557
    %v9559 = vrot.slane %v9558, 4
    %v9560 = vrot.slane %v8902, 5
    %v9561 = vsel %vm1213, %v9559, %v9560
    %v9562 = vrot.slane %v8899, 4
    %v9563 = vor.u32 %v9562, %v9560
    %v9564 = vrot.slane %v9563, 4
    %v9566 = vshll.u32 %v9420, 16
    %v9568 = vrot.slane %v9566, 5
    %v9569 = vsel %vm1213, %v9564, %v9568
    %v9570 = vrot.slane %v8912, 4
    %v9571 = vrot.slane %v8915, 5
    %v9572 = vor.u32 %v9570, %v9571
    %v9573 = vrot.slane %v9572, 4
    %v9574 = vrot.slane %v8924, 5
    %v9575 = vsel %vm1213, %v9573, %v9574
    %v9576 = vrot.slane %v8921, 4
    %v9577 = vor.u32 %v9576, %v9574
    %v9578 = vrot.slane %v9577, 4
    %v9580 = vshll.u32 %v9421, 16
    %v9582 = vrot.slane %v9580, 5
    %v9583 = vsel %vm1213, %v9578, %v9582
    %v9584 = vrot.slane %v8934, 4
    %v9585 = vrot.slane %v8937, 5
    %v9586 = vor.u32 %v9584, %v9585
    %v9587 = vrot.slane %v9586, 4
    %v9588 = vrot.slane %v8946, 5
    %v9589 = vsel %vm1213, %v9587, %v9588
    %v9590 = vrot.slane %v8943, 4
    %v9591 = vor.u32 %v9590, %v9588
    %v9592 = vrot.slane %v9591, 4
    %v9594 = vshll.u32 %v9422, 16
    %v9596 = vrot.slane %v9594, 5
    %v9597 = vsel %vm1213, %v9592, %v9596
    %v9598 = vrot.slane %v8956, 4
    %v9599 = vrot.slane %v8959, 5
    %v9600 = vor.u32 %v9598, %v9599
    %v9601 = vrot.slane %v9600, 4
    %v9602 = vrot.slane %v8968, 5
    %v9603 = vsel %vm1213, %v9601, %v9602
    %v9604 = vrot.slane %v8965, 4
    %v9605 = vor.u32 %v9604, %v9602
    %v9606 = vrot.slane %v9605, 4
    %v9608 = vshll.u32 %v9423, 16
    %v9610 = vrot.slane %v9608, 5
    %v9611 = vsel %vm1213, %v9606, %v9610
    %v9612 = vrot.slane %v8978, 4
    %v9613 = vrot.slane %v8981, 5
    %v9614 = vor.u32 %v9612, %v9613
    %v9615 = vrot.slane %v9614, 4
    %v9616 = vrot.slane %v8990, 5
    %v9617 = vsel %vm1213, %v9615, %v9616
    %v9618 = vrot.slane %v8987, 4
    %v9619 = vor.u32 %v9618, %v9616
    %v9620 = vrot.slane %v9619, 4
    %v9622 = vshll.u32 %v9424, 16
    %v9624 = vrot.slane %v9622, 5
    %v9625 = vsel %vm1213, %v9620, %v9624
    %v9626 = vrot.slane %v9000, 4
    %v9627 = vrot.slane %v9003, 5
    %v9628 = vor.u32 %v9626, %v9627
    %v9629 = vrot.slane %v9628, 4
    %v9630 = vrot.slane %v9012, 5
    %v9631 = vsel %vm1213, %v9629, %v9630
    %v9632 = vrot.slane %v9009, 4
    %v9633 = vor.u32 %v9632, %v9630
    %v9634 = vrot.slane %v9633, 4
    %v9636 = vshll.u32 %v9425, 16
    %v9638 = vrot.slane %v9636, 5
    %v9639 = vsel %vm1213, %v9634, %v9638
    %v9640 = vrot.slane %v9022, 4
    %v9641 = vrot.slane %v9025, 5
    %v9642 = vor.u32 %v9640, %v9641
    %v9643 = vrot.slane %v9642, 4
    %v9644 = vrot.slane %v9034, 5
    %v9645 = vsel %vm1213, %v9643, %v9644
    %v9646 = vrot.slane %v9031, 4
    %v9647 = vor.u32 %v9646, %v9644
    %v9648 = vrot.slane %v9647, 4
    %v9650 = vshll.u32 %v9426, 16
    %v9652 = vrot.slane %v9650, 5
    %v9653 = vsel %vm1213, %v9648, %v9652
    %v9654 = vrot.slane %v9044, 4
    %v9655 = vrot.slane %v9047, 5
    %v9656 = vor.u32 %v9654, %v9655
    %v9657 = vrot.slane %v9656, 4
    %v9658 = vrot.slane %v9056, 5
    %v9659 = vsel %vm1213, %v9657, %v9658
    %v9660 = vrot.slane %v9053, 4
    %v9661 = vor.u32 %v9660, %v9658
    %v9662 = vrot.slane %v9661, 4
    %v9664 = vshll.u32 %v9427, 16
    %v9666 = vrot.slane %v9664, 5
    %v9667 = vsel %vm1213, %v9662, %v9666
    %v9668 = vrot.slane %v9066, 4
    %v9669 = vrot.slane %v9069, 5
    %v9670 = vor.u32 %v9668, %v9669
    %v9671 = vrot.slane %v9670, 4
    %v9672 = vrot.slane %v9078, 5
    %v9673 = vsel %vm1213, %v9671, %v9672
    %v9674 = vrot.slane %v9075, 4
    %v9675 = vor.u32 %v9674, %v9672
    %v9676 = vrot.slane %v9675, 4
    %v9678 = vshll.u32 %v9428, 16
    %v9680 = vrot.slane %v9678, 5
    %v9681 = vsel %vm1213, %v9676, %v9680
    %v9682 = vrot.slane %v9088, 4
    %v9683 = vrot.slane %v9091, 5
    %v9684 = vor.u32 %v9682, %v9683
    %v9685 = vrot.slane %v9684, 4
    %v9686 = vrot.slane %v9100, 5
    %v9687 = vsel %vm1213, %v9685, %v9686
    %v9688 = vrot.slane %v9097, 4
    %v9689 = vor.u32 %v9688, %v9686
    %v9690 = vrot.slane %v9689, 4
    %v9692 = vshll.u32 %v9429, 16
    %v9694 = vrot.slane %v9692, 5
    %v9695 = vsel %vm1213, %v9690, %v9694
    %v9696 = vrot.slane %v9110, 4
    %v9697 = vrot.slane %v9113, 5
    %v9698 = vor.u32 %v9696, %v9697
    %v9699 = vrot.slane %v9698, 4
    %v9700 = vrot.slane %v9122, 5
    %v9701 = vsel %vm1213, %v9699, %v9700
    %v9702 = vrot.slane %v9119, 4
    %v9703 = vor.u32 %v9702, %v9700
    %v9704 = vrot.slane %v9703, 4
    %v9706 = vshll.u32 %v9430, 16
    %v9708 = vrot.slane %v9706, 5
    %v9709 = vsel %vm1213, %v9704, %v9708
    %v9710 = vrot.slane %v9132, 4
    %v9711 = vrot.slane %v9135, 5
    %v9712 = vor.u32 %v9710, %v9711
    %v9713 = vrot.slane %v9712, 4
    %v9714 = vrot.slane %v9144, 5
    %v9715 = vsel %vm1213, %v9713, %v9714
    %v9716 = vrot.slane %v9141, 4
    %v9717 = vor.u32 %v9716, %v9714
    %v9718 = vrot.slane %v9717, 4
    %v9720 = vshll.u32 %v9431, 16
    %v9722 = vrot.slane %v9720, 5
    %v9723 = vsel %vm1213, %v9718, %v9722
    %v9724 = vrot.slane %v9154, 4
    %v9725 = vrot.slane %v9157, 5
    %v9726 = vor.u32 %v9724, %v9725
    %v9727 = vrot.slane %v9726, 4
    %v9728 = vrot.slane %v9166, 5
    %v9729 = vsel %vm1213, %v9727, %v9728
    %v9730 = vrot.slane %v9163, 4
    %v9731 = vor.u32 %v9730, %v9728
    %v9732 = vrot.slane %v9731, 4
    %v9734 = vshll.u32 %v9432, 16
    %v9736 = vrot.slane %v9734, 5
    %v9737 = vsel %vm1213, %v9732, %v9736
    %v9738 = vrot.slane %v9176, 4
    %v9739 = vrot.slane %v9179, 5
    %v9740 = vor.u32 %v9738, %v9739
    %v9741 = vrot.slane %v9740, 4
    %v9742 = vrot.slane %v9188, 5
    %v9743 = vsel %vm1213, %v9741, %v9742
    %v9744 = vrot.slane %v9185, 4
    %v9745 = vor.u32 %v9744, %v9742
    %v9746 = vrot.slane %v9745, 4
    %v9748 = vshll.u32 %v9433, 16
    %v9750 = vrot.slane %v9748, 5
    %v9751 = vsel %vm1213, %v9746, %v9750
    %v9752 = vrot.slane %v9198, 4
    %v9753 = vrot.slane %v9201, 5
    %v9754 = vor.u32 %v9752, %v9753
    %v9755 = vrot.slane %v9754, 4
    %v9756 = vrot.slane %v9210, 5
    %v9757 = vsel %vm1213, %v9755, %v9756
    %v9758 = vrot.slane %v9207, 4
    %v9759 = vor.u32 %v9758, %v9756
    %v9760 = vrot.slane %v9759, 4
    %v9762 = vshll.u32 %v9434, 16
    %v9764 = vrot.slane %v9762, 5
    %v9765 = vsel %vm1213, %v9760, %v9764
    %v9766 = vrot.slane %v9220, 4
    %v9767 = vrot.slane %v9223, 5
    %v9768 = vor.u32 %v9766, %v9767
    %v9769 = vrot.slane %v9768, 4
    %v9770 = vrot.slane %v9232, 5
    %v9771 = vsel %vm1213, %v9769, %v9770
    %v9772 = vrot.slane %v9229, 4
    %v9773 = vor.u32 %v9772, %v9770
    %v9774 = vrot.slane %v9773, 4
    %v9776 = vshll.u32 %v9435, 16
    %v9778 = vrot.slane %v9776, 5
    %v9779 = vsel %vm1213, %v9774, %v9778
    %v9780 = vrot.slane %v9242, 4
    %v9781 = vrot.slane %v9245, 5
    %v9782 = vor.u32 %v9780, %v9781
    %v9783 = vrot.slane %v9782, 4
    %v9784 = vrot.slane %v9254, 5
    %v9785 = vsel %vm1213, %v9783, %v9784
    %v9786 = vrot.slane %v9251, 4
    %v9787 = vor.u32 %v9786, %v9784
    %v9788 = vrot.slane %v9787, 4
    %v9790 = vshll.u32 %v9436, 16
    %v9792 = vrot.slane %v9790, 5
    %v9793 = vsel %vm1213, %v9788, %v9792
    %v9794 = vrot.slane %v9264, 4
    %v9795 = vrot.slane %v9267, 5
    %v9796 = vor.u32 %v9794, %v9795
    %v9797 = vrot.slane %v9796, 4
    %v9798 = vrot.slane %v9276, 5
    %v9799 = vsel %vm1213, %v9797, %v9798
    %v9800 = vrot.slane %v9273, 4
    %v9801 = vor.u32 %v9800, %v9798
    %v9802 = vrot.slane %v9801, 4
    %v9804 = vshll.u32 %v9437, 16
    %v9806 = vrot.slane %v9804, 5
    %v9807 = vsel %vm1213, %v9802, %v9806
    %v9808 = vrot.slane %v9286, 4
    %v9809 = vrot.slane %v9289, 5
    %v9810 = vor.u32 %v9808, %v9809
    %v9811 = vrot.slane %v9810, 4
    %v9812 = vrot.slane %v9298, 5
    %v9813 = vsel %vm1213, %v9811, %v9812
    %v9814 = vrot.slane %v9295, 4
    %v9815 = vor.u32 %v9814, %v9812
    %v9816 = vrot.slane %v9815, 4
    %v9818 = vshll.u32 %v9438, 16
    %v9820 = vrot.slane %v9818, 5
    %v9821 = vsel %vm1213, %v9816, %v9820
    %v9822 = vrot.slane %v9308, 4
    %v9823 = vrot.slane %v9311, 5
    %v9824 = vor.u32 %v9822, %v9823
    %v9825 = vrot.slane %v9824, 4
    %v9826 = vrot.slane %v9320, 5
    %v9827 = vsel %vm1213, %v9825, %v9826
    %v9828 = vrot.slane %v9317, 4
    %v9829 = vor.u32 %v9828, %v9826
    %v9830 = vrot.slane %v9829, 4
    %v9832 = vshll.u32 %v9439, 16
    %v9834 = vrot.slane %v9832, 5
    %v9835 = vsel %vm1213, %v9830, %v9834
    %v9836 = vrot.slane %v9330, 4
    %v9837 = vrot.slane %v9333, 5
    %v9838 = vor.u32 %v9836, %v9837
    %v9839 = vrot.slane %v9838, 4
    %v9840 = vrot.slane %v9342, 5
    %v9841 = vsel %vm1213, %v9839, %v9840
    %v9842 = vrot.slane %v9339, 4
    %v9843 = vor.u32 %v9842, %v9840
    %v9844 = vrot.slane %v9843, 4
    %v9846 = vshll.u32 %v9440, 16
    %v9848 = vrot.slane %v9846, 5
    %v9849 = vsel %vm1213, %v9844, %v9848
    %v9850 = vrot.slane %v9352, 4
    %v9851 = vrot.slane %v9355, 5
    %v9852 = vor.u32 %v9850, %v9851
    %v9853 = vrot.slane %v9852, 4
    %v9854 = vrot.slane %v9364, 5
    %v9855 = vsel %vm1213, %v9853, %v9854
    %v9856 = vrot.slane %v9361, 4
    %v9857 = vor.u32 %v9856, %v9854
    %v9858 = vrot.slane %v9857, 4
    %v9860 = vshll.u32 %v9441, 16
    %v9862 = vrot.slane %v9860, 5
    %v9863 = vsel %vm1213, %v9858, %v9862
    %v9864 = vrot.slane %v9374, 4
    %v9865 = vrot.slane %v9377, 5
    %v9866 = vor.u32 %v9864, %v9865
    %v9867 = vrot.slane %v9866, 4
    %v9868 = vrot.slane %v9386, 5
    %v9869 = vsel %vm1213, %v9867, %v9868
    %v9870 = vrot.slane %v9383, 4
    %v9871 = vor.u32 %v9870, %v9868
    %v9872 = vrot.slane %v9871, 4
    %v9874 = vshll.u32 %v9442, 16
    %v9876 = vrot.slane %v9874, 5
    %v9877 = vsel %vm1213, %v9872, %v9876
    %v9878 = vrot.slane %v9396, 4
    %v9879 = vrot.slane %v9399, 5
    %v9880 = vor.u32 %v9878, %v9879
    %v9881 = vrot.slane %v9880, 4
    %v9882 = vrot.slane %v9408, 5
    %v9883 = vsel %vm1213, %v9881, %v9882
    %v9884 = vrot.slane %v9405, 4
    %v9885 = vor.u32 %v9884, %v9882
    %v9886 = vrot.slane %v9885, 4
    %v9888 = vshll.u32 %v9443, 16
    %v9890 = vrot.slane %v9888, 5
    %v9891 = vsel %vm1213, %v9886, %v9890
    %s9892 = scalar_lea.vmem [#allocation3], 32
    %v9893 = vld [vmem:[%s9892] sm:$0x8]
    %v9894 = vld [vmem:[%s9892 + $0x4] sm:$0xf]
    %v9895 = vld [vmem:[%s9892 + $0x8] sm:$0xf]
    %v9896 = vld [vmem:[%s9892 + $0x10] sm:$0x8]
    %v9897 = vld [vmem:[%s9892 + $0x14] sm:$0xf]
    %v9898 = vld [vmem:[%s9892 + $0x18] sm:$0xf]
    %v9899 = vld [vmem:[%s9892 + $0x20] sm:$0x8]
    %v9900 = vld [vmem:[%s9892 + $0x24] sm:$0xf]
    %v9901 = vld [vmem:[%s9892 + $0x28] sm:$0xf]
    %v9902 = vld [vmem:[%s9892 + $0x30] sm:$0x8]
    %v9903 = vld [vmem:[%s9892 + $0x34] sm:$0xf]
    %v9904 = vld [vmem:[%s9892 + $0x38] sm:$0xf]
    %v9905 = vld [vmem:[%s9892 + $0x40] sm:$0x8]
    %v9906 = vld [vmem:[%s9892 + $0x44] sm:$0xf]
    %v9907 = vld [vmem:[%s9892 + $0x48] sm:$0xf]
    %v9908 = vld [vmem:[%s9892 + $0x50] sm:$0x8]
    %v9909 = vld [vmem:[%s9892 + $0x54] sm:$0xf]
    %v9910 = vld [vmem:[%s9892 + $0x58] sm:$0xf]
    %v9911 = vld [vmem:[%s9892 + $0x60] sm:$0x8]
    %v9912 = vld [vmem:[%s9892 + $0x64] sm:$0xf]
    %v9913 = vld [vmem:[%s9892 + $0x68] sm:$0xf]
    %v9914 = vld [vmem:[%s9892 + $0x70] sm:$0x8]
    %v9915 = vld [vmem:[%s9892 + $0x74] sm:$0xf]
    %v9916 = vld [vmem:[%s9892 + $0x78] sm:$0xf]
    %v9917 = vld [vmem:[%s9892 + $0x80] sm:$0x8]
    %v9918 = vld [vmem:[%s9892 + $0x84] sm:$0xf]
    %v9919 = vld [vmem:[%s9892 + $0x88] sm:$0xf]
    %v9920 = vld [vmem:[%s9892 + $0x90] sm:$0x8]
    %v9921 = vld [vmem:[%s9892 + $0x94] sm:$0xf]
    %v9922 = vld [vmem:[%s9892 + $0x98] sm:$0xf]
    %v9923 = vld [vmem:[%s9892 + $0xa0] sm:$0x8]
    %v9924 = vld [vmem:[%s9892 + $0xa4] sm:$0xf]
    %v9925 = vld [vmem:[%s9892 + $0xa8] sm:$0xf]
    %v9926 = vld [vmem:[%s9892 + $0xb0] sm:$0x8]
    %v9927 = vld [vmem:[%s9892 + $0xb4] sm:$0xf]
    %v9928 = vld [vmem:[%s9892 + $0xb8] sm:$0xf]
    %v9929 = vld [vmem:[%s9892 + $0xc0] sm:$0x8]
    %v9930 = vld [vmem:[%s9892 + $0xc4] sm:$0xf]
    %v9931 = vld [vmem:[%s9892 + $0xc8] sm:$0xf]
    %v9932 = vld [vmem:[%s9892 + $0xd0] sm:$0x8]
    %v9933 = vld [vmem:[%s9892 + $0xd4] sm:$0xf]
    %v9934 = vld [vmem:[%s9892 + $0xd8] sm:$0xf]
    %v9935 = vld [vmem:[%s9892 + $0xe0] sm:$0x8]
    %v9936 = vld [vmem:[%s9892 + $0xe4] sm:$0xf]
    %v9937 = vld [vmem:[%s9892 + $0xe8] sm:$0xf]
    %v9938 = vld [vmem:[%s9892 + $0xf0] sm:$0x8]
    %v9939 = vld [vmem:[%s9892 + $0xf4] sm:$0xf]
    %v9940 = vld [vmem:[%s9892 + $0xf8] sm:$0xf]
    %v9941 = vld [vmem:[%s9892 + $0x120] sm:$0x8]
    %v9942 = vld [vmem:[%s9892 + $0x124] sm:$0xf]
    %v9943 = vld [vmem:[%s9892 + $0x128] sm:$0xf]
    %v9944 = vld [vmem:[%s9892 + $0x130] sm:$0x8]
    %v9945 = vld [vmem:[%s9892 + $0x134] sm:$0xf]
    %v9946 = vld [vmem:[%s9892 + $0x138] sm:$0xf]
    %v9947 = vld [vmem:[%s9892 + $0x140] sm:$0x8]
    %v9948 = vld [vmem:[%s9892 + $0x144] sm:$0xf]
    %v9949 = vld [vmem:[%s9892 + $0x148] sm:$0xf]
    %v9950 = vld [vmem:[%s9892 + $0x150] sm:$0x8]
    %v9951 = vld [vmem:[%s9892 + $0x154] sm:$0xf]
    %v9952 = vld [vmem:[%s9892 + $0x158] sm:$0xf]
    %v9953 = vld [vmem:[%s9892 + $0x160] sm:$0x8]
    %v9954 = vld [vmem:[%s9892 + $0x164] sm:$0xf]
    %v9955 = vld [vmem:[%s9892 + $0x168] sm:$0xf]
    %v9956 = vld [vmem:[%s9892 + $0x170] sm:$0x8]
    %v9957 = vld [vmem:[%s9892 + $0x174] sm:$0xf]
    %v9958 = vld [vmem:[%s9892 + $0x178] sm:$0xf]
    %v9959 = vld [vmem:[%s9892 + $0x180] sm:$0x8]
    %v9960 = vld [vmem:[%s9892 + $0x184] sm:$0xf]
    %v9961 = vld [vmem:[%s9892 + $0x188] sm:$0xf]
    %v9962 = vld [vmem:[%s9892 + $0x190] sm:$0x8]
    %v9963 = vld [vmem:[%s9892 + $0x194] sm:$0xf]
    %v9964 = vld [vmem:[%s9892 + $0x198] sm:$0xf]
    %v9965 = vld [vmem:[%s9892 + $0x1a0] sm:$0x8]
    %v9966 = vld [vmem:[%s9892 + $0x1a4] sm:$0xf]
    %v9967 = vld [vmem:[%s9892 + $0x1a8] sm:$0xf]
    %v9968 = vld [vmem:[%s9892 + $0x1b0] sm:$0x8]
    %v9969 = vld [vmem:[%s9892 + $0x1b4] sm:$0xf]
    %v9970 = vld [vmem:[%s9892 + $0x1b8] sm:$0xf]
    %v9971 = vld [vmem:[%s9892 + $0x1c0] sm:$0x8]
    %v9972 = vld [vmem:[%s9892 + $0x1c4] sm:$0xf]
    %v9973 = vld [vmem:[%s9892 + $0x1c8] sm:$0xf]
    %v9974 = vld [vmem:[%s9892 + $0x1d0] sm:$0x8]
    %v9975 = vld [vmem:[%s9892 + $0x1d4] sm:$0xf]
    %v9976 = vld [vmem:[%s9892 + $0x1d8] sm:$0xf]
    %v9977 = vld [vmem:[%s9892 + $0x1e0] sm:$0x8]
    %v9978 = vld [vmem:[%s9892 + $0x1e4] sm:$0xf]
    %v9979 = vld [vmem:[%s9892 + $0x1e8] sm:$0xf]
    %v9980 = vld [vmem:[%s9892 + $0x1f0] sm:$0x8]
    %v9981 = vld [vmem:[%s9892 + $0x1f4] sm:$0xf]
    %v9982 = vld [vmem:[%s9892 + $0x1f8] sm:$0xf]
    %v9983 = vld [vmem:[%s9892 + $0x200] sm:$0x8]
    %v9984 = vld [vmem:[%s9892 + $0x204] sm:$0xf]
    %v9985 = vld [vmem:[%s9892 + $0x208] sm:$0xf]
    %v9986 = vld [vmem:[%s9892 + $0x210] sm:$0x8]
    %v9987 = vld [vmem:[%s9892 + $0x214] sm:$0xf]
    %v9988 = vld [vmem:[%s9892 + $0x218] sm:$0xf]
    %v9990 = vshrl.u32 %v9893, 16
    %v9992 = vrot.slane %v9990, 7
    %v9993 = vrot.slane %v9992, 4
    %v9995 = vshrl.u32 %v9894, 16
    %v9997 = vrot.slane %v9995, 7
    %v9998 = vshll.u32 %v9894, 16
    %v10000 = vor.u32 %v9997, %v9998
    %v10001 = vsel %vm474, %v9993, %v10000
    %v10002 = vrot.slane %v9997, 4
    %v10004 = vshrl.u32 %v9895, 16
    %v10006 = vrot.slane %v10004, 7
    %v10007 = vshll.u32 %v9895, 16
    %v10009 = vor.u32 %v10006, %v10007
    %v10010 = vsel %vm474, %v10002, %v10009
    %v10012 = vshrl.u32 %v9896, 16
    %v10014 = vrot.slane %v10012, 7
    %v10015 = vrot.slane %v10014, 4
    %v10017 = vshrl.u32 %v9897, 16
    %v10019 = vrot.slane %v10017, 7
    %v10020 = vshll.u32 %v9897, 16
    %v10022 = vor.u32 %v10019, %v10020
    %v10023 = vsel %vm474, %v10015, %v10022
    %v10024 = vrot.slane %v10019, 4
    %v10026 = vshrl.u32 %v9898, 16
    %v10028 = vrot.slane %v10026, 7
    %v10029 = vshll.u32 %v9898, 16
    %v10031 = vor.u32 %v10028, %v10029
    %v10032 = vsel %vm474, %v10024, %v10031
    %v10034 = vshrl.u32 %v9899, 16
    %v10036 = vrot.slane %v10034, 7
    %v10037 = vrot.slane %v10036, 4
    %v10039 = vshrl.u32 %v9900, 16
    %v10041 = vrot.slane %v10039, 7
    %v10042 = vshll.u32 %v9900, 16
    %v10044 = vor.u32 %v10041, %v10042
    %v10045 = vsel %vm474, %v10037, %v10044
    %v10046 = vrot.slane %v10041, 4
    %v10048 = vshrl.u32 %v9901, 16
    %v10050 = vrot.slane %v10048, 7
    %v10051 = vshll.u32 %v9901, 16
    %v10053 = vor.u32 %v10050, %v10051
    %v10054 = vsel %vm474, %v10046, %v10053
    %v10056 = vshrl.u32 %v9902, 16
    %v10058 = vrot.slane %v10056, 7
    %v10059 = vrot.slane %v10058, 4
    %v10061 = vshrl.u32 %v9903, 16
    %v10063 = vrot.slane %v10061, 7
    %v10064 = vshll.u32 %v9903, 16
    %v10066 = vor.u32 %v10063, %v10064
    %v10067 = vsel %vm474, %v10059, %v10066
    %v10068 = vrot.slane %v10063, 4
    %v10070 = vshrl.u32 %v9904, 16
    %v10072 = vrot.slane %v10070, 7
    %v10073 = vshll.u32 %v9904, 16
    %v10075 = vor.u32 %v10072, %v10073
    %v10076 = vsel %vm474, %v10068, %v10075
    %v10078 = vshrl.u32 %v9905, 16
    %v10080 = vrot.slane %v10078, 7
    %v10081 = vrot.slane %v10080, 4
    %v10083 = vshrl.u32 %v9906, 16
    %v10085 = vrot.slane %v10083, 7
    %v10086 = vshll.u32 %v9906, 16
    %v10088 = vor.u32 %v10085, %v10086
    %v10089 = vsel %vm474, %v10081, %v10088
    %v10090 = vrot.slane %v10085, 4
    %v10092 = vshrl.u32 %v9907, 16
    %v10094 = vrot.slane %v10092, 7
    %v10095 = vshll.u32 %v9907, 16
    %v10097 = vor.u32 %v10094, %v10095
    %v10098 = vsel %vm474, %v10090, %v10097
    %v10100 = vshrl.u32 %v9908, 16
    %v10102 = vrot.slane %v10100, 7
    %v10103 = vrot.slane %v10102, 4
    %v10105 = vshrl.u32 %v9909, 16
    %v10107 = vrot.slane %v10105, 7
    %v10108 = vshll.u32 %v9909, 16
    %v10110 = vor.u32 %v10107, %v10108
    %v10111 = vsel %vm474, %v10103, %v10110
    %v10112 = vrot.slane %v10107, 4
    %v10114 = vshrl.u32 %v9910, 16
    %v10116 = vrot.slane %v10114, 7
    %v10117 = vshll.u32 %v9910, 16
    %v10119 = vor.u32 %v10116, %v10117
    %v10120 = vsel %vm474, %v10112, %v10119
    %v10122 = vshrl.u32 %v9911, 16
    %v10124 = vrot.slane %v10122, 7
    %v10125 = vrot.slane %v10124, 4
    %v10127 = vshrl.u32 %v9912, 16
    %v10129 = vrot.slane %v10127, 7
    %v10130 = vshll.u32 %v9912, 16
    %v10132 = vor.u32 %v10129, %v10130
    %v10133 = vsel %vm474, %v10125, %v10132
    %v10134 = vrot.slane %v10129, 4
    %v10136 = vshrl.u32 %v9913, 16
    %v10138 = vrot.slane %v10136, 7
    %v10139 = vshll.u32 %v9913, 16
    %v10141 = vor.u32 %v10138, %v10139
    %v10142 = vsel %vm474, %v10134, %v10141
    %v10144 = vshrl.u32 %v9914, 16
    %v10146 = vrot.slane %v10144, 7
    %v10147 = vrot.slane %v10146, 4
    %v10149 = vshrl.u32 %v9915, 16
    %v10151 = vrot.slane %v10149, 7
    %v10152 = vshll.u32 %v9915, 16
    %v10154 = vor.u32 %v10151, %v10152
    %v10155 = vsel %vm474, %v10147, %v10154
    %v10156 = vrot.slane %v10151, 4
    %v10158 = vshrl.u32 %v9916, 16
    %v10160 = vrot.slane %v10158, 7
    %v10161 = vshll.u32 %v9916, 16
    %v10163 = vor.u32 %v10160, %v10161
    %v10164 = vsel %vm474, %v10156, %v10163
    %v10166 = vshrl.u32 %v9917, 16
    %v10168 = vrot.slane %v10166, 7
    %v10169 = vrot.slane %v10168, 4
    %v10171 = vshrl.u32 %v9918, 16
    %v10173 = vrot.slane %v10171, 7
    %v10174 = vshll.u32 %v9918, 16
    %v10176 = vor.u32 %v10173, %v10174
    %v10177 = vsel %vm474, %v10169, %v10176
    %v10178 = vrot.slane %v10173, 4
    %v10180 = vshrl.u32 %v9919, 16
    %v10182 = vrot.slane %v10180, 7
    %v10183 = vshll.u32 %v9919, 16
    %v10185 = vor.u32 %v10182, %v10183
    %v10186 = vsel %vm474, %v10178, %v10185
    %v10188 = vshrl.u32 %v9920, 16
    %v10190 = vrot.slane %v10188, 7
    %v10191 = vrot.slane %v10190, 4
    %v10193 = vshrl.u32 %v9921, 16
    %v10195 = vrot.slane %v10193, 7
    %v10196 = vshll.u32 %v9921, 16
    %v10198 = vor.u32 %v10195, %v10196
    %v10199 = vsel %vm474, %v10191, %v10198
    %v10200 = vrot.slane %v10195, 4
    %v10202 = vshrl.u32 %v9922, 16
    %v10204 = vrot.slane %v10202, 7
    %v10205 = vshll.u32 %v9922, 16
    %v10207 = vor.u32 %v10204, %v10205
    %v10208 = vsel %vm474, %v10200, %v10207
    %v10210 = vshrl.u32 %v9923, 16
    %v10212 = vrot.slane %v10210, 7
    %v10213 = vrot.slane %v10212, 4
    %v10215 = vshrl.u32 %v9924, 16
    %v10217 = vrot.slane %v10215, 7
    %v10218 = vshll.u32 %v9924, 16
    %v10220 = vor.u32 %v10217, %v10218
    %v10221 = vsel %vm474, %v10213, %v10220
    %v10222 = vrot.slane %v10217, 4
    %v10224 = vshrl.u32 %v9925, 16
    %v10226 = vrot.slane %v10224, 7
    %v10227 = vshll.u32 %v9925, 16
    %v10229 = vor.u32 %v10226, %v10227
    %v10230 = vsel %vm474, %v10222, %v10229
    %v10232 = vshrl.u32 %v9926, 16
    %v10234 = vrot.slane %v10232, 7
    %v10235 = vrot.slane %v10234, 4
    %v10237 = vshrl.u32 %v9927, 16
    %v10239 = vrot.slane %v10237, 7
    %v10240 = vshll.u32 %v9927, 16
    %v10242 = vor.u32 %v10239, %v10240
    %v10243 = vsel %vm474, %v10235, %v10242
    %v10244 = vrot.slane %v10239, 4
    %v10246 = vshrl.u32 %v9928, 16
    %v10248 = vrot.slane %v10246, 7
    %v10249 = vshll.u32 %v9928, 16
    %v10251 = vor.u32 %v10248, %v10249
    %v10252 = vsel %vm474, %v10244, %v10251
    %v10254 = vshrl.u32 %v9929, 16
    %v10256 = vrot.slane %v10254, 7
    %v10257 = vrot.slane %v10256, 4
    %v10259 = vshrl.u32 %v9930, 16
    %v10261 = vrot.slane %v10259, 7
    %v10262 = vshll.u32 %v9930, 16
    %v10264 = vor.u32 %v10261, %v10262
    %v10265 = vsel %vm474, %v10257, %v10264
    %v10266 = vrot.slane %v10261, 4
    %v10268 = vshrl.u32 %v9931, 16
    %v10270 = vrot.slane %v10268, 7
    %v10271 = vshll.u32 %v9931, 16
    %v10273 = vor.u32 %v10270, %v10271
    %v10274 = vsel %vm474, %v10266, %v10273
    %v10276 = vshrl.u32 %v9932, 16
    %v10278 = vrot.slane %v10276, 7
    %v10279 = vrot.slane %v10278, 4
    %v10281 = vshrl.u32 %v9933, 16
    %v10283 = vrot.slane %v10281, 7
    %v10284 = vshll.u32 %v9933, 16
    %v10286 = vor.u32 %v10283, %v10284
    %v10287 = vsel %vm474, %v10279, %v10286
    %v10288 = vrot.slane %v10283, 4
    %v10290 = vshrl.u32 %v9934, 16
    %v10292 = vrot.slane %v10290, 7
    %v10293 = vshll.u32 %v9934, 16
    %v10295 = vor.u32 %v10292, %v10293
    %v10296 = vsel %vm474, %v10288, %v10295
    %v10298 = vshrl.u32 %v9935, 16
    %v10300 = vrot.slane %v10298, 7
    %v10301 = vrot.slane %v10300, 4
    %v10303 = vshrl.u32 %v9936, 16
    %v10305 = vrot.slane %v10303, 7
    %v10306 = vshll.u32 %v9936, 16
    %v10308 = vor.u32 %v10305, %v10306
    %v10309 = vsel %vm474, %v10301, %v10308
    %v10310 = vrot.slane %v10305, 4
    %v10312 = vshrl.u32 %v9937, 16
    %v10314 = vrot.slane %v10312, 7
    %v10315 = vshll.u32 %v9937, 16
    %v10317 = vor.u32 %v10314, %v10315
    %v10318 = vsel %vm474, %v10310, %v10317
    %v10320 = vshrl.u32 %v9938, 16
    %v10322 = vrot.slane %v10320, 7
    %v10323 = vrot.slane %v10322, 4
    %v10325 = vshrl.u32 %v9939, 16
    %v10327 = vrot.slane %v10325, 7
    %v10328 = vshll.u32 %v9939, 16
    %v10330 = vor.u32 %v10327, %v10328
    %v10331 = vsel %vm474, %v10323, %v10330
    %v10332 = vrot.slane %v10327, 4
    %v10334 = vshrl.u32 %v9940, 16
    %v10336 = vrot.slane %v10334, 7
    %v10337 = vshll.u32 %v9940, 16
    %v10339 = vor.u32 %v10336, %v10337
    %v10340 = vsel %vm474, %v10332, %v10339
    %v10342 = vshrl.u32 %v9941, 16
    %v10344 = vrot.slane %v10342, 7
    %v10345 = vrot.slane %v10344, 4
    %v10347 = vshrl.u32 %v9942, 16
    %v10349 = vrot.slane %v10347, 7
    %v10350 = vshll.u32 %v9942, 16
    %v10352 = vor.u32 %v10349, %v10350
    %v10353 = vsel %vm474, %v10345, %v10352
    %v10354 = vrot.slane %v10349, 4
    %v10356 = vshrl.u32 %v9943, 16
    %v10358 = vrot.slane %v10356, 7
    %v10359 = vshll.u32 %v9943, 16
    %v10361 = vor.u32 %v10358, %v10359
    %v10362 = vsel %vm474, %v10354, %v10361
    %v10364 = vshrl.u32 %v9944, 16
    %v10366 = vrot.slane %v10364, 7
    %v10367 = vrot.slane %v10366, 4
    %v10369 = vshrl.u32 %v9945, 16
    %v10371 = vrot.slane %v10369, 7
    %v10372 = vshll.u32 %v9945, 16
    %v10374 = vor.u32 %v10371, %v10372
    %v10375 = vsel %vm474, %v10367, %v10374
    %v10376 = vrot.slane %v10371, 4
    %v10378 = vshrl.u32 %v9946, 16
    %v10380 = vrot.slane %v10378, 7
    %v10381 = vshll.u32 %v9946, 16
    %v10383 = vor.u32 %v10380, %v10381
    %v10384 = vsel %vm474, %v10376, %v10383
    %v10386 = vshrl.u32 %v9947, 16
    %v10388 = vrot.slane %v10386, 7
    %v10389 = vrot.slane %v10388, 4
    %v10391 = vshrl.u32 %v9948, 16
    %v10393 = vrot.slane %v10391, 7
    %v10394 = vshll.u32 %v9948, 16
    %v10396 = vor.u32 %v10393, %v10394
    %v10397 = vsel %vm474, %v10389, %v10396
    %v10398 = vrot.slane %v10393, 4
    %v10400 = vshrl.u32 %v9949, 16
    %v10402 = vrot.slane %v10400, 7
    %v10403 = vshll.u32 %v9949, 16
    %v10405 = vor.u32 %v10402, %v10403
    %v10406 = vsel %vm474, %v10398, %v10405
    %v10408 = vshrl.u32 %v9950, 16
    %v10410 = vrot.slane %v10408, 7
    %v10411 = vrot.slane %v10410, 4
    %v10413 = vshrl.u32 %v9951, 16
    %v10415 = vrot.slane %v10413, 7
    %v10416 = vshll.u32 %v9951, 16
    %v10418 = vor.u32 %v10415, %v10416
    %v10419 = vsel %vm474, %v10411, %v10418
    %v10420 = vrot.slane %v10415, 4
    %v10422 = vshrl.u32 %v9952, 16
    %v10424 = vrot.slane %v10422, 7
    %v10425 = vshll.u32 %v9952, 16
    %v10427 = vor.u32 %v10424, %v10425
    %v10428 = vsel %vm474, %v10420, %v10427
    %v10430 = vshrl.u32 %v9953, 16
    %v10432 = vrot.slane %v10430, 7
    %v10433 = vrot.slane %v10432, 4
    %v10435 = vshrl.u32 %v9954, 16
    %v10437 = vrot.slane %v10435, 7
    %v10438 = vshll.u32 %v9954, 16
    %v10440 = vor.u32 %v10437, %v10438
    %v10441 = vsel %vm474, %v10433, %v10440
    %v10442 = vrot.slane %v10437, 4
    %v10444 = vshrl.u32 %v9955, 16
    %v10446 = vrot.slane %v10444, 7
    %v10447 = vshll.u32 %v9955, 16
    %v10449 = vor.u32 %v10446, %v10447
    %v10450 = vsel %vm474, %v10442, %v10449
    %v10452 = vshrl.u32 %v9956, 16
    %v10454 = vrot.slane %v10452, 7
    %v10455 = vrot.slane %v10454, 4
    %v10457 = vshrl.u32 %v9957, 16
    %v10459 = vrot.slane %v10457, 7
    %v10460 = vshll.u32 %v9957, 16
    %v10462 = vor.u32 %v10459, %v10460
    %v10463 = vsel %vm474, %v10455, %v10462
    %v10464 = vrot.slane %v10459, 4
    %v10466 = vshrl.u32 %v9958, 16
    %v10468 = vrot.slane %v10466, 7
    %v10469 = vshll.u32 %v9958, 16
    %v10471 = vor.u32 %v10468, %v10469
    %v10472 = vsel %vm474, %v10464, %v10471
    %v10474 = vshrl.u32 %v9959, 16
    %v10476 = vrot.slane %v10474, 7
    %v10477 = vrot.slane %v10476, 4
    %v10479 = vshrl.u32 %v9960, 16
    %v10481 = vrot.slane %v10479, 7
    %v10482 = vshll.u32 %v9960, 16
    %v10484 = vor.u32 %v10481, %v10482
    %v10485 = vsel %vm474, %v10477, %v10484
    %v10486 = vrot.slane %v10481, 4
    %v10488 = vshrl.u32 %v9961, 16
    %v10490 = vrot.slane %v10488, 7
    %v10491 = vshll.u32 %v9961, 16
    %v10493 = vor.u32 %v10490, %v10491
    %v10494 = vsel %vm474, %v10486, %v10493
    %v10496 = vshrl.u32 %v9962, 16
    %v10498 = vrot.slane %v10496, 7
    %v10499 = vrot.slane %v10498, 4
    %v10501 = vshrl.u32 %v9963, 16
    %v10503 = vrot.slane %v10501, 7
    %v10504 = vshll.u32 %v9963, 16
    %v10506 = vor.u32 %v10503, %v10504
    %v10507 = vsel %vm474, %v10499, %v10506
    %v10508 = vrot.slane %v10503, 4
    %v10510 = vshrl.u32 %v9964, 16
    %v10512 = vrot.slane %v10510, 7
    %v10513 = vshll.u32 %v9964, 16
    %v10515 = vor.u32 %v10512, %v10513
    %v10516 = vsel %vm474, %v10508, %v10515
    %v10518 = vshrl.u32 %v9965, 16
    %v10520 = vrot.slane %v10518, 7
    %v10521 = vrot.slane %v10520, 4
    %v10523 = vshrl.u32 %v9966, 16
    %v10525 = vrot.slane %v10523, 7
    %v10526 = vshll.u32 %v9966, 16
    %v10528 = vor.u32 %v10525, %v10526
    %v10529 = vsel %vm474, %v10521, %v10528
    %v10530 = vrot.slane %v10525, 4
    %v10532 = vshrl.u32 %v9967, 16
    %v10534 = vrot.slane %v10532, 7
    %v10535 = vshll.u32 %v9967, 16
    %v10537 = vor.u32 %v10534, %v10535
    %v10538 = vsel %vm474, %v10530, %v10537
    %v10540 = vshrl.u32 %v9968, 16
    %v10542 = vrot.slane %v10540, 7
    %v10543 = vrot.slane %v10542, 4
    %v10545 = vshrl.u32 %v9969, 16
    %v10547 = vrot.slane %v10545, 7
    %v10548 = vshll.u32 %v9969, 16
    %v10550 = vor.u32 %v10547, %v10548
    %v10551 = vsel %vm474, %v10543, %v10550
    %v10552 = vrot.slane %v10547, 4
    %v10554 = vshrl.u32 %v9970, 16
    %v10556 = vrot.slane %v10554, 7
    %v10557 = vshll.u32 %v9970, 16
    %v10559 = vor.u32 %v10556, %v10557
    %v10560 = vsel %vm474, %v10552, %v10559
    %v10562 = vshrl.u32 %v9971, 16
    %v10564 = vrot.slane %v10562, 7
    %v10565 = vrot.slane %v10564, 4
    %v10567 = vshrl.u32 %v9972, 16
    %v10569 = vrot.slane %v10567, 7
    %v10570 = vshll.u32 %v9972, 16
    %v10572 = vor.u32 %v10569, %v10570
    %v10573 = vsel %vm474, %v10565, %v10572
    %v10574 = vrot.slane %v10569, 4
    %v10576 = vshrl.u32 %v9973, 16
    %v10578 = vrot.slane %v10576, 7
    %v10579 = vshll.u32 %v9973, 16
    %v10581 = vor.u32 %v10578, %v10579
    %v10582 = vsel %vm474, %v10574, %v10581
    %v10584 = vshrl.u32 %v9974, 16
    %v10586 = vrot.slane %v10584, 7
    %v10587 = vrot.slane %v10586, 4
    %v10589 = vshrl.u32 %v9975, 16
    %v10591 = vrot.slane %v10589, 7
    %v10592 = vshll.u32 %v9975, 16
    %v10594 = vor.u32 %v10591, %v10592
    %v10595 = vsel %vm474, %v10587, %v10594
    %v10596 = vrot.slane %v10591, 4
    %v10598 = vshrl.u32 %v9976, 16
    %v10600 = vrot.slane %v10598, 7
    %v10601 = vshll.u32 %v9976, 16
    %v10603 = vor.u32 %v10600, %v10601
    %v10604 = vsel %vm474, %v10596, %v10603
    %v10606 = vshrl.u32 %v9977, 16
    %v10608 = vrot.slane %v10606, 7
    %v10609 = vrot.slane %v10608, 4
    %v10611 = vshrl.u32 %v9978, 16
    %v10613 = vrot.slane %v10611, 7
    %v10614 = vshll.u32 %v9978, 16
    %v10616 = vor.u32 %v10613, %v10614
    %v10617 = vsel %vm474, %v10609, %v10616
    %v10618 = vrot.slane %v10613, 4
    %v10620 = vshrl.u32 %v9979, 16
    %v10622 = vrot.slane %v10620, 7
    %v10623 = vshll.u32 %v9979, 16
    %v10625 = vor.u32 %v10622, %v10623
    %v10626 = vsel %vm474, %v10618, %v10625
    %v10628 = vshrl.u32 %v9980, 16
    %v10630 = vrot.slane %v10628, 7
    %v10631 = vrot.slane %v10630, 4
    %v10633 = vshrl.u32 %v9981, 16
    %v10635 = vrot.slane %v10633, 7
    %v10636 = vshll.u32 %v9981, 16
    %v10638 = vor.u32 %v10635, %v10636
    %v10639 = vsel %vm474, %v10631, %v10638
    %v10640 = vrot.slane %v10635, 4
    %v10642 = vshrl.u32 %v9982, 16
    %v10644 = vrot.slane %v10642, 7
    %v10645 = vshll.u32 %v9982, 16
    %v10647 = vor.u32 %v10644, %v10645
    %v10648 = vsel %vm474, %v10640, %v10647
    %v10650 = vshrl.u32 %v9983, 16
    %v10652 = vrot.slane %v10650, 7
    %v10653 = vrot.slane %v10652, 4
    %v10655 = vshrl.u32 %v9984, 16
    %v10657 = vrot.slane %v10655, 7
    %v10658 = vshll.u32 %v9984, 16
    %v10660 = vor.u32 %v10657, %v10658
    %v10661 = vsel %vm474, %v10653, %v10660
    %v10662 = vrot.slane %v10657, 4
    %v10664 = vshrl.u32 %v9985, 16
    %v10666 = vrot.slane %v10664, 7
    %v10667 = vshll.u32 %v9985, 16
    %v10669 = vor.u32 %v10666, %v10667
    %v10670 = vsel %vm474, %v10662, %v10669
    %v10672 = vshrl.u32 %v9986, 16
    %v10674 = vrot.slane %v10672, 7
    %v10675 = vrot.slane %v10674, 4
    %v10677 = vshrl.u32 %v9987, 16
    %v10679 = vrot.slane %v10677, 7
    %v10680 = vshll.u32 %v9987, 16
    %v10682 = vor.u32 %v10679, %v10680
    %v10683 = vsel %vm474, %v10675, %v10682
    %v10684 = vrot.slane %v10679, 4
    %v10686 = vshrl.u32 %v9988, 16
    %v10688 = vrot.slane %v10686, 7
    %v10689 = vshll.u32 %v9988, 16
    %v10691 = vor.u32 %v10688, %v10689
    %v10692 = vsel %vm474, %v10684, %v10691
    %v10693 = vld [vmem:[%s9892 + $0xc] sm:$0x1]
    %v10694 = vld [vmem:[%s9892 + $0x1c] sm:$0x1]
    %v10695 = vld [vmem:[%s9892 + $0x2c] sm:$0x1]
    %v10696 = vld [vmem:[%s9892 + $0x3c] sm:$0x1]
    %v10697 = vld [vmem:[%s9892 + $0x4c] sm:$0x1]
    %v10698 = vld [vmem:[%s9892 + $0x5c] sm:$0x1]
    %v10699 = vld [vmem:[%s9892 + $0x6c] sm:$0x1]
    %v10700 = vld [vmem:[%s9892 + $0x7c] sm:$0x1]
    %v10701 = vld [vmem:[%s9892 + $0x8c] sm:$0x1]
    %v10702 = vld [vmem:[%s9892 + $0x9c] sm:$0x1]
    %v10703 = vld [vmem:[%s9892 + $0xac] sm:$0x1]
    %v10704 = vld [vmem:[%s9892 + $0xbc] sm:$0x1]
    %v10705 = vld [vmem:[%s9892 + $0xcc] sm:$0x1]
    %v10706 = vld [vmem:[%s9892 + $0xdc] sm:$0x1]
    %v10707 = vld [vmem:[%s9892 + $0xec] sm:$0x1]
    %v10708 = vld [vmem:[%s9892 + $0xfc] sm:$0x1]
    %v10709 = vld [vmem:[%s9892 + $0x12c] sm:$0x1]
    %v10710 = vld [vmem:[%s9892 + $0x13c] sm:$0x1]
    %v10711 = vld [vmem:[%s9892 + $0x14c] sm:$0x1]
    %v10712 = vld [vmem:[%s9892 + $0x15c] sm:$0x1]
    %v10713 = vld [vmem:[%s9892 + $0x16c] sm:$0x1]
    %v10714 = vld [vmem:[%s9892 + $0x17c] sm:$0x1]
    %v10715 = vld [vmem:[%s9892 + $0x18c] sm:$0x1]
    %v10716 = vld [vmem:[%s9892 + $0x19c] sm:$0x1]
    %v10717 = vld [vmem:[%s9892 + $0x1ac] sm:$0x1]
    %v10718 = vld [vmem:[%s9892 + $0x1bc] sm:$0x1]
    %v10719 = vld [vmem:[%s9892 + $0x1cc] sm:$0x1]
    %v10720 = vld [vmem:[%s9892 + $0x1dc] sm:$0x1]
    %v10721 = vld [vmem:[%s9892 + $0x1ec] sm:$0x1]
    %v10722 = vld [vmem:[%s9892 + $0x1fc] sm:$0x1]
    %v10723 = vld [vmem:[%s9892 + $0x20c] sm:$0x1]
    %v10724 = vld [vmem:[%s9892 + $0x21c] sm:$0x1]
    %v10725 = vrot.slane %v9995, 4
    %v10726 = vrot.slane %v9998, 5
    %v10727 = vor.u32 %v10725, %v10726
    %v10728 = vrot.slane %v10727, 4
    %v10729 = vrot.slane %v10007, 5
    %v10730 = vsel %vm1213, %v10728, %v10729
    %v10731 = vrot.slane %v10004, 4
    %v10732 = vor.u32 %v10731, %v10729
    %v10733 = vrot.slane %v10732, 4
    %v10735 = vshll.u32 %v10693, 16
    %v10737 = vrot.slane %v10735, 5
    %v10738 = vsel %vm1213, %v10733, %v10737
    %v10739 = vrot.slane %v10017, 4
    %v10740 = vrot.slane %v10020, 5
    %v10741 = vor.u32 %v10739, %v10740
    %v10742 = vrot.slane %v10741, 4
    %v10743 = vrot.slane %v10029, 5
    %v10744 = vsel %vm1213, %v10742, %v10743
    %v10745 = vrot.slane %v10026, 4
    %v10746 = vor.u32 %v10745, %v10743
    %v10747 = vrot.slane %v10746, 4
    %v10749 = vshll.u32 %v10694, 16
    %v10751 = vrot.slane %v10749, 5
    %v10752 = vsel %vm1213, %v10747, %v10751
    %v10753 = vrot.slane %v10039, 4
    %v10754 = vrot.slane %v10042, 5
    %v10755 = vor.u32 %v10753, %v10754
    %v10756 = vrot.slane %v10755, 4
    %v10757 = vrot.slane %v10051, 5
    %v10758 = vsel %vm1213, %v10756, %v10757
    %v10759 = vrot.slane %v10048, 4
    %v10760 = vor.u32 %v10759, %v10757
    %v10761 = vrot.slane %v10760, 4
    %v10763 = vshll.u32 %v10695, 16
    %v10765 = vrot.slane %v10763, 5
    %v10766 = vsel %vm1213, %v10761, %v10765
    %v10767 = vrot.slane %v10061, 4
    %v10768 = vrot.slane %v10064, 5
    %v10769 = vor.u32 %v10767, %v10768
    %v10770 = vrot.slane %v10769, 4
    %v10771 = vrot.slane %v10073, 5
    %v10772 = vsel %vm1213, %v10770, %v10771
    %v10773 = vrot.slane %v10070, 4
    %v10774 = vor.u32 %v10773, %v10771
    %v10775 = vrot.slane %v10774, 4
    %v10777 = vshll.u32 %v10696, 16
    %v10779 = vrot.slane %v10777, 5
    %v10780 = vsel %vm1213, %v10775, %v10779
    %v10781 = vrot.slane %v10083, 4
    %v10782 = vrot.slane %v10086, 5
    %v10783 = vor.u32 %v10781, %v10782
    %v10784 = vrot.slane %v10783, 4
    %v10785 = vrot.slane %v10095, 5
    %v10786 = vsel %vm1213, %v10784, %v10785
    %v10787 = vrot.slane %v10092, 4
    %v10788 = vor.u32 %v10787, %v10785
    %v10789 = vrot.slane %v10788, 4
    %v10791 = vshll.u32 %v10697, 16
    %v10793 = vrot.slane %v10791, 5
    %v10794 = vsel %vm1213, %v10789, %v10793
    %v10795 = vrot.slane %v10105, 4
    %v10796 = vrot.slane %v10108, 5
    %v10797 = vor.u32 %v10795, %v10796
    %v10798 = vrot.slane %v10797, 4
    %v10799 = vrot.slane %v10117, 5
    %v10800 = vsel %vm1213, %v10798, %v10799
    %v10801 = vrot.slane %v10114, 4
    %v10802 = vor.u32 %v10801, %v10799
    %v10803 = vrot.slane %v10802, 4
    %v10805 = vshll.u32 %v10698, 16
    %v10807 = vrot.slane %v10805, 5
    %v10808 = vsel %vm1213, %v10803, %v10807
    %v10809 = vrot.slane %v10127, 4
    %v10810 = vrot.slane %v10130, 5
    %v10811 = vor.u32 %v10809, %v10810
    %v10812 = vrot.slane %v10811, 4
    %v10813 = vrot.slane %v10139, 5
    %v10814 = vsel %vm1213, %v10812, %v10813
    %v10815 = vrot.slane %v10136, 4
    %v10816 = vor.u32 %v10815, %v10813
    %v10817 = vrot.slane %v10816, 4
    %v10819 = vshll.u32 %v10699, 16
    %v10821 = vrot.slane %v10819, 5
    %v10822 = vsel %vm1213, %v10817, %v10821
    %v10823 = vrot.slane %v10149, 4
    %v10824 = vrot.slane %v10152, 5
    %v10825 = vor.u32 %v10823, %v10824
    %v10826 = vrot.slane %v10825, 4
    %v10827 = vrot.slane %v10161, 5
    %v10828 = vsel %vm1213, %v10826, %v10827
    %v10829 = vrot.slane %v10158, 4
    %v10830 = vor.u32 %v10829, %v10827
    %v10831 = vrot.slane %v10830, 4
    %v10833 = vshll.u32 %v10700, 16
    %v10835 = vrot.slane %v10833, 5
    %v10836 = vsel %vm1213, %v10831, %v10835
    %v10837 = vrot.slane %v10171, 4
    %v10838 = vrot.slane %v10174, 5
    %v10839 = vor.u32 %v10837, %v10838
    %v10840 = vrot.slane %v10839, 4
    %v10841 = vrot.slane %v10183, 5
    %v10842 = vsel %vm1213, %v10840, %v10841
    %v10843 = vrot.slane %v10180, 4
    %v10844 = vor.u32 %v10843, %v10841
    %v10845 = vrot.slane %v10844, 4
    %v10847 = vshll.u32 %v10701, 16
    %v10849 = vrot.slane %v10847, 5
    %v10850 = vsel %vm1213, %v10845, %v10849
    %v10851 = vrot.slane %v10193, 4
    %v10852 = vrot.slane %v10196, 5
    %v10853 = vor.u32 %v10851, %v10852
    %v10854 = vrot.slane %v10853, 4
    %v10855 = vrot.slane %v10205, 5
    %v10856 = vsel %vm1213, %v10854, %v10855
    %v10857 = vrot.slane %v10202, 4
    %v10858 = vor.u32 %v10857, %v10855
    %v10859 = vrot.slane %v10858, 4
    %v10861 = vshll.u32 %v10702, 16
    %v10863 = vrot.slane %v10861, 5
    %v10864 = vsel %vm1213, %v10859, %v10863
    %v10865 = vrot.slane %v10215, 4
    %v10866 = vrot.slane %v10218, 5
    %v10867 = vor.u32 %v10865, %v10866
    %v10868 = vrot.slane %v10867, 4
    %v10869 = vrot.slane %v10227, 5
    %v10870 = vsel %vm1213, %v10868, %v10869
    %v10871 = vrot.slane %v10224, 4
    %v10872 = vor.u32 %v10871, %v10869
    %v10873 = vrot.slane %v10872, 4
    %v10875 = vshll.u32 %v10703, 16
    %v10877 = vrot.slane %v10875, 5
    %v10878 = vsel %vm1213, %v10873, %v10877
    %v10879 = vrot.slane %v10237, 4
    %v10880 = vrot.slane %v10240, 5
    %v10881 = vor.u32 %v10879, %v10880
    %v10882 = vrot.slane %v10881, 4
    %v10883 = vrot.slane %v10249, 5
    %v10884 = vsel %vm1213, %v10882, %v10883
    %v10885 = vrot.slane %v10246, 4
    %v10886 = vor.u32 %v10885, %v10883
    %v10887 = vrot.slane %v10886, 4
    %v10889 = vshll.u32 %v10704, 16
    %v10891 = vrot.slane %v10889, 5
    %v10892 = vsel %vm1213, %v10887, %v10891
    %v10893 = vrot.slane %v10259, 4
    %v10894 = vrot.slane %v10262, 5
    %v10895 = vor.u32 %v10893, %v10894
    %v10896 = vrot.slane %v10895, 4
    %v10897 = vrot.slane %v10271, 5
    %v10898 = vsel %vm1213, %v10896, %v10897
    %v10899 = vrot.slane %v10268, 4
    %v10900 = vor.u32 %v10899, %v10897
    %v10901 = vrot.slane %v10900, 4
    %v10903 = vshll.u32 %v10705, 16
    %v10905 = vrot.slane %v10903, 5
    %v10906 = vsel %vm1213, %v10901, %v10905
    %v10907 = vrot.slane %v10281, 4
    %v10908 = vrot.slane %v10284, 5
    %v10909 = vor.u32 %v10907, %v10908
    %v10910 = vrot.slane %v10909, 4
    %v10911 = vrot.slane %v10293, 5
    %v10912 = vsel %vm1213, %v10910, %v10911
    %v10913 = vrot.slane %v10290, 4
    %v10914 = vor.u32 %v10913, %v10911
    %v10915 = vrot.slane %v10914, 4
    %v10917 = vshll.u32 %v10706, 16
    %v10919 = vrot.slane %v10917, 5
    %v10920 = vsel %vm1213, %v10915, %v10919
    %v10921 = vrot.slane %v10303, 4
    %v10922 = vrot.slane %v10306, 5
    %v10923 = vor.u32 %v10921, %v10922
    %v10924 = vrot.slane %v10923, 4
    %v10925 = vrot.slane %v10315, 5
    %v10926 = vsel %vm1213, %v10924, %v10925
    %v10927 = vrot.slane %v10312, 4
    %v10928 = vor.u32 %v10927, %v10925
    %v10929 = vrot.slane %v10928, 4
    %v10931 = vshll.u32 %v10707, 16
    %v10933 = vrot.slane %v10931, 5
    %v10934 = vsel %vm1213, %v10929, %v10933
    %v10935 = vrot.slane %v10325, 4
    %v10936 = vrot.slane %v10328, 5
    %v10937 = vor.u32 %v10935, %v10936
    %v10938 = vrot.slane %v10937, 4
    %v10939 = vrot.slane %v10337, 5
    %v10940 = vsel %vm1213, %v10938, %v10939
    %v10941 = vrot.slane %v10334, 4
    %v10942 = vor.u32 %v10941, %v10939
    %v10943 = vrot.slane %v10942, 4
    %v10945 = vshll.u32 %v10708, 16
    %v10947 = vrot.slane %v10945, 5
    %v10948 = vsel %vm1213, %v10943, %v10947
    %v10949 = vrot.slane %v10347, 4
    %v10950 = vrot.slane %v10350, 5
    %v10951 = vor.u32 %v10949, %v10950
    %v10952 = vrot.slane %v10951, 4
    %v10953 = vrot.slane %v10359, 5
    %v10954 = vsel %vm1213, %v10952, %v10953
    %v10955 = vrot.slane %v10356, 4
    %v10956 = vor.u32 %v10955, %v10953
    %v10957 = vrot.slane %v10956, 4
    %v10959 = vshll.u32 %v10709, 16
    %v10961 = vrot.slane %v10959, 5
    %v10962 = vsel %vm1213, %v10957, %v10961
    %v10963 = vrot.slane %v10369, 4
    %v10964 = vrot.slane %v10372, 5
    %v10965 = vor.u32 %v10963, %v10964
    %v10966 = vrot.slane %v10965, 4
    %v10967 = vrot.slane %v10381, 5
    %v10968 = vsel %vm1213, %v10966, %v10967
    %v10969 = vrot.slane %v10378, 4
    %v10970 = vor.u32 %v10969, %v10967
    %v10971 = vrot.slane %v10970, 4
    %v10973 = vshll.u32 %v10710, 16
    %v10975 = vrot.slane %v10973, 5
    %v10976 = vsel %vm1213, %v10971, %v10975
    %v10977 = vrot.slane %v10391, 4
    %v10978 = vrot.slane %v10394, 5
    %v10979 = vor.u32 %v10977, %v10978
    %v10980 = vrot.slane %v10979, 4
    %v10981 = vrot.slane %v10403, 5
    %v10982 = vsel %vm1213, %v10980, %v10981
    %v10983 = vrot.slane %v10400, 4
    %v10984 = vor.u32 %v10983, %v10981
    %v10985 = vrot.slane %v10984, 4
    %v10987 = vshll.u32 %v10711, 16
    %v10989 = vrot.slane %v10987, 5
    %v10990 = vsel %vm1213, %v10985, %v10989
    %v10991 = vrot.slane %v10413, 4
    %v10992 = vrot.slane %v10416, 5
    %v10993 = vor.u32 %v10991, %v10992
    %v10994 = vrot.slane %v10993, 4
    %v10995 = vrot.slane %v10425, 5
    %v10996 = vsel %vm1213, %v10994, %v10995
    %v10997 = vrot.slane %v10422, 4
    %v10998 = vor.u32 %v10997, %v10995
    %v10999 = vrot.slane %v10998, 4
    %v11001 = vshll.u32 %v10712, 16
    %v11003 = vrot.slane %v11001, 5
    %v11004 = vsel %vm1213, %v10999, %v11003
    %v11005 = vrot.slane %v10435, 4
    %v11006 = vrot.slane %v10438, 5
    %v11007 = vor.u32 %v11005, %v11006
    %v11008 = vrot.slane %v11007, 4
    %v11009 = vrot.slane %v10447, 5
    %v11010 = vsel %vm1213, %v11008, %v11009
    %v11011 = vrot.slane %v10444, 4
    %v11012 = vor.u32 %v11011, %v11009
    %v11013 = vrot.slane %v11012, 4
    %v11015 = vshll.u32 %v10713, 16
    %v11017 = vrot.slane %v11015, 5
    %v11018 = vsel %vm1213, %v11013, %v11017
    %v11019 = vrot.slane %v10457, 4
    %v11020 = vrot.slane %v10460, 5
    %v11021 = vor.u32 %v11019, %v11020
    %v11022 = vrot.slane %v11021, 4
    %v11023 = vrot.slane %v10469, 5
    %v11024 = vsel %vm1213, %v11022, %v11023
    %v11025 = vrot.slane %v10466, 4
    %v11026 = vor.u32 %v11025, %v11023
    %v11027 = vrot.slane %v11026, 4
    %v11029 = vshll.u32 %v10714, 16
    %v11031 = vrot.slane %v11029, 5
    %v11032 = vsel %vm1213, %v11027, %v11031
    %v11033 = vrot.slane %v10479, 4
    %v11034 = vrot.slane %v10482, 5
    %v11035 = vor.u32 %v11033, %v11034
    %v11036 = vrot.slane %v11035, 4
    %v11037 = vrot.slane %v10491, 5
    %v11038 = vsel %vm1213, %v11036, %v11037
    %v11039 = vrot.slane %v10488, 4
    %v11040 = vor.u32 %v11039, %v11037
    %v11041 = vrot.slane %v11040, 4
    %v11043 = vshll.u32 %v10715, 16
    %v11045 = vrot.slane %v11043, 5
    %v11046 = vsel %vm1213, %v11041, %v11045
    %v11047 = vrot.slane %v10501, 4
    %v11048 = vrot.slane %v10504, 5
    %v11049 = vor.u32 %v11047, %v11048
    %v11050 = vrot.slane %v11049, 4
    %v11051 = vrot.slane %v10513, 5
    %v11052 = vsel %vm1213, %v11050, %v11051
    %v11053 = vrot.slane %v10510, 4
    %v11054 = vor.u32 %v11053, %v11051
    %v11055 = vrot.slane %v11054, 4
    %v11057 = vshll.u32 %v10716, 16
    %v11059 = vrot.slane %v11057, 5
    %v11060 = vsel %vm1213, %v11055, %v11059
    %v11061 = vrot.slane %v10523, 4
    %v11062 = vrot.slane %v10526, 5
    %v11063 = vor.u32 %v11061, %v11062
    %v11064 = vrot.slane %v11063, 4
    %v11065 = vrot.slane %v10535, 5
    %v11066 = vsel %vm1213, %v11064, %v11065
    %v11067 = vrot.slane %v10532, 4
    %v11068 = vor.u32 %v11067, %v11065
    %v11069 = vrot.slane %v11068, 4
    %v11071 = vshll.u32 %v10717, 16
    %v11073 = vrot.slane %v11071, 5
    %v11074 = vsel %vm1213, %v11069, %v11073
    %v11075 = vrot.slane %v10545, 4
    %v11076 = vrot.slane %v10548, 5
    %v11077 = vor.u32 %v11075, %v11076
    %v11078 = vrot.slane %v11077, 4
    %v11079 = vrot.slane %v10557, 5
    %v11080 = vsel %vm1213, %v11078, %v11079
    %v11081 = vrot.slane %v10554, 4
    %v11082 = vor.u32 %v11081, %v11079
    %v11083 = vrot.slane %v11082, 4
    %v11085 = vshll.u32 %v10718, 16
    %v11087 = vrot.slane %v11085, 5
    %v11088 = vsel %vm1213, %v11083, %v11087
    %v11089 = vrot.slane %v10567, 4
    %v11090 = vrot.slane %v10570, 5
    %v11091 = vor.u32 %v11089, %v11090
    %v11092 = vrot.slane %v11091, 4
    %v11093 = vrot.slane %v10579, 5
    %v11094 = vsel %vm1213, %v11092, %v11093
    %v11095 = vrot.slane %v10576, 4
    %v11096 = vor.u32 %v11095, %v11093
    %v11097 = vrot.slane %v11096, 4
    %v11099 = vshll.u32 %v10719, 16
    %v11101 = vrot.slane %v11099, 5
    %v11102 = vsel %vm1213, %v11097, %v11101
    %v11103 = vrot.slane %v10589, 4
    %v11104 = vrot.slane %v10592, 5
    %v11105 = vor.u32 %v11103, %v11104
    %v11106 = vrot.slane %v11105, 4
    %v11107 = vrot.slane %v10601, 5
    %v11108 = vsel %vm1213, %v11106, %v11107
    %v11109 = vrot.slane %v10598, 4
    %v11110 = vor.u32 %v11109, %v11107
    %v11111 = vrot.slane %v11110, 4
    %v11113 = vshll.u32 %v10720, 16
    %v11115 = vrot.slane %v11113, 5
    %v11116 = vsel %vm1213, %v11111, %v11115
    %v11117 = vrot.slane %v10611, 4
    %v11118 = vrot.slane %v10614, 5
    %v11119 = vor.u32 %v11117, %v11118
    %v11120 = vrot.slane %v11119, 4
    %v11121 = vrot.slane %v10623, 5
    %v11122 = vsel %vm1213, %v11120, %v11121
    %v11123 = vrot.slane %v10620, 4
    %v11124 = vor.u32 %v11123, %v11121
    %v11125 = vrot.slane %v11124, 4
    %v11127 = vshll.u32 %v10721, 16
    %v11129 = vrot.slane %v11127, 5
    %v11130 = vsel %vm1213, %v11125, %v11129
    %v11131 = vrot.slane %v10633, 4
    %v11132 = vrot.slane %v10636, 5
    %v11133 = vor.u32 %v11131, %v11132
    %v11134 = vrot.slane %v11133, 4
    %v11135 = vrot.slane %v10645, 5
    %v11136 = vsel %vm1213, %v11134, %v11135
    %v11137 = vrot.slane %v10642, 4
    %v11138 = vor.u32 %v11137, %v11135
    %v11139 = vrot.slane %v11138, 4
    %v11141 = vshll.u32 %v10722, 16
    %v11143 = vrot.slane %v11141, 5
    %v11144 = vsel %vm1213, %v11139, %v11143
    %v11145 = vrot.slane %v10655, 4
    %v11146 = vrot.slane %v10658, 5
    %v11147 = vor.u32 %v11145, %v11146
    %v11148 = vrot.slane %v11147, 4
    %v11149 = vrot.slane %v10667, 5
    %v11150 = vsel %vm1213, %v11148, %v11149
    %v11151 = vrot.slane %v10664, 4
    %v11152 = vor.u32 %v11151, %v11149
    %v11153 = vrot.slane %v11152, 4
    %v11155 = vshll.u32 %v10723, 16
    %v11157 = vrot.slane %v11155, 5
    %v11158 = vsel %vm1213, %v11153, %v11157
    %v11159 = vrot.slane %v10677, 4
    %v11160 = vrot.slane %v10680, 5
    %v11161 = vor.u32 %v11159, %v11160
    %v11162 = vrot.slane %v11161, 4
    %v11163 = vrot.slane %v10689, 5
    %v11164 = vsel %vm1213, %v11162, %v11163
    %v11165 = vrot.slane %v10686, 4
    %v11166 = vor.u32 %v11165, %v11163
    %v11167 = vrot.slane %v11166, 4
    %v11169 = vshll.u32 %v10724, 16
    %v11171 = vrot.slane %v11169, 5
    %v11172 = vsel %vm1213, %v11167, %v11171
    %v11173 = vunpack.c.l.b16 %v7440
    %v11174 = vunpack.c.l.b16 %v7449
    %v11175 = vunpack.c.l.b16 %v7462
    %v11176 = vunpack.c.l.b16 %v7471
    %v11177 = vunpack.c.l.b16 %v7484
    %v11178 = vunpack.c.l.b16 %v7493
    %v11179 = vunpack.c.l.b16 %v7506
    %v11180 = vunpack.c.l.b16 %v7515
    %v11181 = vunpack.c.l.b16 %v7528
    %v11182 = vunpack.c.l.b16 %v7537
    %v11183 = vunpack.c.l.b16 %v7550
    %v11184 = vunpack.c.l.b16 %v7559
    %v11185 = vunpack.c.l.b16 %v7572
    %v11186 = vunpack.c.l.b16 %v7581
    %v11187 = vunpack.c.l.b16 %v7594
    %v11188 = vunpack.c.l.b16 %v7603
    %v11189 = vunpack.c.l.b16 %v7616
    %v11190 = vunpack.c.l.b16 %v7625
    %v11191 = vunpack.c.l.b16 %v7638
    %v11192 = vunpack.c.l.b16 %v7647
    %v11193 = vunpack.c.l.b16 %v7660
    %v11194 = vunpack.c.l.b16 %v7669
    %v11195 = vunpack.c.l.b16 %v7682
    %v11196 = vunpack.c.l.b16 %v7691
    %v11197 = vunpack.c.l.b16 %v7704
    %v11198 = vunpack.c.l.b16 %v7713
    %v11199 = vunpack.c.l.b16 %v7726
    %v11200 = vunpack.c.l.b16 %v7735
    %v11201 = vunpack.c.l.b16 %v7748
    %v11202 = vunpack.c.l.b16 %v7757
    %v11203 = vunpack.c.l.b16 %v7770
    %v11204 = vunpack.c.l.b16 %v7779
    %v11205 = vunpack.c.l.b16 %v7792
    %v11206 = vunpack.c.l.b16 %v7801
    %v11207 = vunpack.c.l.b16 %v7814
    %v11208 = vunpack.c.l.b16 %v7823
    %v11209 = vunpack.c.l.b16 %v7836
    %v11210 = vunpack.c.l.b16 %v7845
    %v11211 = vunpack.c.l.b16 %v7858
    %v11212 = vunpack.c.l.b16 %v7867
    %v11213 = vunpack.c.l.b16 %v7880
    %v11214 = vunpack.c.l.b16 %v7889
    %v11215 = vunpack.c.l.b16 %v7902
    %v11216 = vunpack.c.l.b16 %v7911
    %v11217 = vunpack.c.l.b16 %v7924
    %v11218 = vunpack.c.l.b16 %v7933
    %v11219 = vunpack.c.l.b16 %v7946
    %v11220 = vunpack.c.l.b16 %v7955
    %v11221 = vunpack.c.l.b16 %v7968
    %v11222 = vunpack.c.l.b16 %v7977
    %v11223 = vunpack.c.l.b16 %v7990
    %v11224 = vunpack.c.l.b16 %v7999
    %v11225 = vunpack.c.l.b16 %v8012
    %v11226 = vunpack.c.l.b16 %v8021
    %v11227 = vunpack.c.l.b16 %v8034
    %v11228 = vunpack.c.l.b16 %v8043
    %v11229 = vunpack.c.l.b16 %v8056
    %v11230 = vunpack.c.l.b16 %v8065
    %v11231 = vunpack.c.l.b16 %v8078
    %v11232 = vunpack.c.l.b16 %v8087
    %v11233 = vunpack.c.l.b16 %v8100
    %v11234 = vunpack.c.l.b16 %v8109
    %v11235 = vunpack.c.l.b16 %v8122
    %v11236 = vunpack.c.l.b16 %v8131
    %v11237 = vpack.c.b16 %v11174, %v11173
    %v11238 = vpack.c.b16 %v11176, %v11175
    %v11239 = vpack.c.b16 %v11178, %v11177
    %v11240 = vpack.c.b16 %v11180, %v11179
    %v11241 = vpack.c.b16 %v11182, %v11181
    %v11242 = vpack.c.b16 %v11184, %v11183
    %v11243 = vpack.c.b16 %v11186, %v11185
    %v11244 = vpack.c.b16 %v11188, %v11187
    %v11245 = vpack.c.b16 %v11190, %v11189
    %v11246 = vpack.c.b16 %v11192, %v11191
    %v11247 = vpack.c.b16 %v11194, %v11193
    %v11248 = vpack.c.b16 %v11196, %v11195
    %v11249 = vpack.c.b16 %v11198, %v11197
    %v11250 = vpack.c.b16 %v11200, %v11199
    %v11251 = vpack.c.b16 %v11202, %v11201
    %v11252 = vpack.c.b16 %v11204, %v11203
    %v11253 = vpack.c.b16 %v11206, %v11205
    %v11254 = vpack.c.b16 %v11208, %v11207
    %v11255 = vpack.c.b16 %v11210, %v11209
    %v11256 = vpack.c.b16 %v11212, %v11211
    %v11257 = vpack.c.b16 %v11214, %v11213
    %v11258 = vpack.c.b16 %v11216, %v11215
    %v11259 = vpack.c.b16 %v11218, %v11217
    %v11260 = vpack.c.b16 %v11220, %v11219
    %v11261 = vpack.c.b16 %v11222, %v11221
    %v11262 = vpack.c.b16 %v11224, %v11223
    %v11263 = vpack.c.b16 %v11226, %v11225
    %v11264 = vpack.c.b16 %v11228, %v11227
    %v11265 = vpack.c.b16 %v11230, %v11229
    %v11266 = vpack.c.b16 %v11232, %v11231
    %v11267 = vpack.c.b16 %v11234, %v11233
    %v11268 = vpack.c.b16 %v11236, %v11235
    %v11333 = vunpack.c.l.b16 %v7333
    %v11334 = vunpack.c.l.b16 %v7334
    %v11335 = vunpack.c.l.b16 %v7336
    %v11336 = vunpack.c.l.b16 %v7337
    %v11337 = vunpack.c.l.b16 %v7339
    %v11338 = vunpack.c.l.b16 %v7340
    %v11339 = vunpack.c.l.b16 %v7342
    %v11340 = vunpack.c.l.b16 %v7343
    %v11341 = vunpack.c.l.b16 %v7345
    %v11342 = vunpack.c.l.b16 %v7346
    %v11343 = vunpack.c.l.b16 %v7348
    %v11344 = vunpack.c.l.b16 %v7349
    %v11345 = vunpack.c.l.b16 %v7351
    %v11346 = vunpack.c.l.b16 %v7352
    %v11347 = vunpack.c.l.b16 %v7354
    %v11348 = vunpack.c.l.b16 %v7355
    %v11349 = vunpack.c.l.b16 %v7357
    %v11350 = vunpack.c.l.b16 %v7358
    %v11351 = vunpack.c.l.b16 %v7360
    %v11352 = vunpack.c.l.b16 %v7361
    %v11353 = vunpack.c.l.b16 %v7363
    %v11354 = vunpack.c.l.b16 %v7364
    %v11355 = vunpack.c.l.b16 %v7366
    %v11356 = vunpack.c.l.b16 %v7367
    %v11357 = vunpack.c.l.b16 %v7369
    %v11358 = vunpack.c.l.b16 %v7370
    %v11359 = vunpack.c.l.b16 %v7372
    %v11360 = vunpack.c.l.b16 %v7373
    %v11361 = vunpack.c.l.b16 %v7375
    %v11362 = vunpack.c.l.b16 %v7376
    %v11363 = vunpack.c.l.b16 %v7378
    %v11364 = vunpack.c.l.b16 %v7379
    %v11365 = vunpack.c.l.b16 %v7381
    %v11366 = vunpack.c.l.b16 %v7382
    %v11367 = vunpack.c.l.b16 %v7384
    %v11368 = vunpack.c.l.b16 %v7385
    %v11369 = vunpack.c.l.b16 %v7387
    %v11370 = vunpack.c.l.b16 %v7388
    %v11371 = vunpack.c.l.b16 %v7390
    %v11372 = vunpack.c.l.b16 %v7391
    %v11373 = vunpack.c.l.b16 %v7393
    %v11374 = vunpack.c.l.b16 %v7394
    %v11375 = vunpack.c.l.b16 %v7396
    %v11376 = vunpack.c.l.b16 %v7397
    %v11377 = vunpack.c.l.b16 %v7399
    %v11378 = vunpack.c.l.b16 %v7400
    %v11379 = vunpack.c.l.b16 %v7402
    %v11380 = vunpack.c.l.b16 %v7403
    %v11381 = vunpack.c.l.b16 %v7405
    %v11382 = vunpack.c.l.b16 %v7406
    %v11383 = vunpack.c.l.b16 %v7408
    %v11384 = vunpack.c.l.b16 %v7409
    %v11385 = vunpack.c.l.b16 %v7411
    %v11386 = vunpack.c.l.b16 %v7412
    %v11387 = vunpack.c.l.b16 %v7414
    %v11388 = vunpack.c.l.b16 %v7415
    %v11389 = vunpack.c.l.b16 %v7417
    %v11390 = vunpack.c.l.b16 %v7418
    %v11391 = vunpack.c.l.b16 %v7420
    %v11392 = vunpack.c.l.b16 %v7421
    %v11393 = vunpack.c.l.b16 %v7423
    %v11394 = vunpack.c.l.b16 %v7424
    %v11395 = vunpack.c.l.b16 %v7426
    %v11396 = vunpack.c.l.b16 %v7427
    %v11397 = vpack.c.b16 %v11334, %v11333
    %v11398 = vpack.c.b16 %v11336, %v11335
    %v11399 = vpack.c.b16 %v11338, %v11337
    %v11400 = vpack.c.b16 %v11340, %v11339
    %v11401 = vpack.c.b16 %v11342, %v11341
    %v11402 = vpack.c.b16 %v11344, %v11343
    %v11403 = vpack.c.b16 %v11346, %v11345
    %v11404 = vpack.c.b16 %v11348, %v11347
    %v11405 = vpack.c.b16 %v11350, %v11349
    %v11406 = vpack.c.b16 %v11352, %v11351
    %v11407 = vpack.c.b16 %v11354, %v11353
    %v11408 = vpack.c.b16 %v11356, %v11355
    %v11409 = vpack.c.b16 %v11358, %v11357
    %v11410 = vpack.c.b16 %v11360, %v11359
    %v11411 = vpack.c.b16 %v11362, %v11361
    %v11412 = vpack.c.b16 %v11364, %v11363
    %v11413 = vpack.c.b16 %v11366, %v11365
    %v11414 = vpack.c.b16 %v11368, %v11367
    %v11415 = vpack.c.b16 %v11370, %v11369
    %v11416 = vpack.c.b16 %v11372, %v11371
    %v11417 = vpack.c.b16 %v11374, %v11373
    %v11418 = vpack.c.b16 %v11376, %v11375
    %v11419 = vpack.c.b16 %v11378, %v11377
    %v11420 = vpack.c.b16 %v11380, %v11379
    %v11421 = vpack.c.b16 %v11382, %v11381
    %v11422 = vpack.c.b16 %v11384, %v11383
    %v11423 = vpack.c.b16 %v11386, %v11385
    %v11424 = vpack.c.b16 %v11388, %v11387
    %v11425 = vpack.c.b16 %v11390, %v11389
    %v11426 = vpack.c.b16 %v11392, %v11391
    %v11427 = vpack.c.b16 %v11394, %v11393
    %v11428 = vpack.c.b16 %v11396, %v11395
    %11429 = vrot.lane.b32.xlu0 %v11397, 8
    %v11430 = vpop.permute.xlu0 %11429
    %11431 = vrot.lane.b32.xlu0 %v11398, 8
    %v11432 = vpop.permute.xlu0 %11431
    %11433 = vrot.lane.b32.xlu0 %v11399, 8
    %v11434 = vpop.permute.xlu0 %11433
    %11435 = vrot.lane.b32.xlu0 %v11400, 8
    %v11436 = vpop.permute.xlu0 %11435
    %11437 = vrot.lane.b32.xlu0 %v11401, 8
    %v11438 = vpop.permute.xlu0 %11437
    %11439 = vrot.lane.b32.xlu0 %v11402, 8
    %v11440 = vpop.permute.xlu0 %11439
    %11441 = vrot.lane.b32.xlu0 %v11403, 8
    %v11442 = vpop.permute.xlu0 %11441
    %11443 = vrot.lane.b32.xlu0 %v11404, 8
    %v11444 = vpop.permute.xlu0 %11443
    %11445 = vrot.lane.b32.xlu0 %v11405, 8
    %v11446 = vpop.permute.xlu0 %11445
    %11447 = vrot.lane.b32.xlu0 %v11406, 8
    %v11448 = vpop.permute.xlu0 %11447
    %11449 = vrot.lane.b32.xlu0 %v11407, 8
    %v11450 = vpop.permute.xlu0 %11449
    %11451 = vrot.lane.b32.xlu0 %v11408, 8
    %v11452 = vpop.permute.xlu0 %11451
    %11453 = vrot.lane.b32.xlu0 %v11409, 8
    %v11454 = vpop.permute.xlu0 %11453
    %11455 = vrot.lane.b32.xlu0 %v11410, 8
    %v11456 = vpop.permute.xlu0 %11455
    %11457 = vrot.lane.b32.xlu0 %v11411, 8
    %v11458 = vpop.permute.xlu0 %11457
    %11459 = vrot.lane.b32.xlu0 %v11412, 8
    %v11460 = vpop.permute.xlu0 %11459
    %11461 = vrot.lane.b32.xlu0 %v11413, 8
    %v11462 = vpop.permute.xlu0 %11461
    %11463 = vrot.lane.b32.xlu0 %v11414, 8
    %v11464 = vpop.permute.xlu0 %11463
    %11465 = vrot.lane.b32.xlu0 %v11415, 8
    %v11466 = vpop.permute.xlu0 %11465
    %11467 = vrot.lane.b32.xlu0 %v11416, 8
    %v11468 = vpop.permute.xlu0 %11467
    %11469 = vrot.lane.b32.xlu0 %v11417, 8
    %v11470 = vpop.permute.xlu0 %11469
    %11471 = vrot.lane.b32.xlu0 %v11418, 8
    %v11472 = vpop.permute.xlu0 %11471
    %11473 = vrot.lane.b32.xlu0 %v11419, 8
    %v11474 = vpop.permute.xlu0 %11473
    %11475 = vrot.lane.b32.xlu0 %v11420, 8
    %v11476 = vpop.permute.xlu0 %11475
    %11477 = vrot.lane.b32.xlu0 %v11421, 8
    %v11478 = vpop.permute.xlu0 %11477
    %11479 = vrot.lane.b32.xlu0 %v11422, 8
    %v11480 = vpop.permute.xlu0 %11479
    %11481 = vrot.lane.b32.xlu0 %v11423, 8
    %v11482 = vpop.permute.xlu0 %11481
    %11483 = vrot.lane.b32.xlu0 %v11424, 8
    %v11484 = vpop.permute.xlu0 %11483
    %11485 = vrot.lane.b32.xlu0 %v11425, 8
    %v11486 = vpop.permute.xlu0 %11485
    %11487 = vrot.lane.b32.xlu0 %v11426, 8
    %v11488 = vpop.permute.xlu0 %11487
    %11489 = vrot.lane.b32.xlu0 %v11427, 8
    %v11490 = vpop.permute.xlu0 %11489
    %11491 = vrot.lane.b32.xlu0 %v11428, 8
    %v11492 = vpop.permute.xlu0 %11491
    %v11493 = vunpack.c.l.b16 %v8169
    %v11494 = vunpack.c.l.b16 %v8177
    %v11495 = vunpack.c.l.b16 %v8183
    %v11496 = vunpack.c.l.b16 %v8191
    %v11497 = vunpack.c.l.b16 %v8197
    %v11498 = vunpack.c.l.b16 %v8205
    %v11499 = vunpack.c.l.b16 %v8211
    %v11500 = vunpack.c.l.b16 %v8219
    %v11501 = vunpack.c.l.b16 %v8225
    %v11502 = vunpack.c.l.b16 %v8233
    %v11503 = vunpack.c.l.b16 %v8239
    %v11504 = vunpack.c.l.b16 %v8247
    %v11505 = vunpack.c.l.b16 %v8253
    %v11506 = vunpack.c.l.b16 %v8261
    %v11507 = vunpack.c.l.b16 %v8267
    %v11508 = vunpack.c.l.b16 %v8275
    %v11509 = vunpack.c.l.b16 %v8281
    %v11510 = vunpack.c.l.b16 %v8289
    %v11511 = vunpack.c.l.b16 %v8295
    %v11512 = vunpack.c.l.b16 %v8303
    %v11513 = vunpack.c.l.b16 %v8309
    %v11514 = vunpack.c.l.b16 %v8317
    %v11515 = vunpack.c.l.b16 %v8323
    %v11516 = vunpack.c.l.b16 %v8331
    %v11517 = vunpack.c.l.b16 %v8337
    %v11518 = vunpack.c.l.b16 %v8345
    %v11519 = vunpack.c.l.b16 %v8351
    %v11520 = vunpack.c.l.b16 %v8359
    %v11521 = vunpack.c.l.b16 %v8365
    %v11522 = vunpack.c.l.b16 %v8373
    %v11523 = vunpack.c.l.b16 %v8379
    %v11524 = vunpack.c.l.b16 %v8387
    %v11525 = vunpack.c.l.b16 %v8393
    %v11526 = vunpack.c.l.b16 %v8401
    %v11527 = vunpack.c.l.b16 %v8407
    %v11528 = vunpack.c.l.b16 %v8415
    %v11529 = vunpack.c.l.b16 %v8421
    %v11530 = vunpack.c.l.b16 %v8429
    %v11531 = vunpack.c.l.b16 %v8435
    %v11532 = vunpack.c.l.b16 %v8443
    %v11533 = vunpack.c.l.b16 %v8449
    %v11534 = vunpack.c.l.b16 %v8457
    %v11535 = vunpack.c.l.b16 %v8463
    %v11536 = vunpack.c.l.b16 %v8471
    %v11537 = vunpack.c.l.b16 %v8477
    %v11538 = vunpack.c.l.b16 %v8485
    %v11539 = vunpack.c.l.b16 %v8491
    %v11540 = vunpack.c.l.b16 %v8499
    %v11541 = vunpack.c.l.b16 %v8505
    %v11542 = vunpack.c.l.b16 %v8513
    %v11543 = vunpack.c.l.b16 %v8519
    %v11544 = vunpack.c.l.b16 %v8527
    %v11545 = vunpack.c.l.b16 %v8533
    %v11546 = vunpack.c.l.b16 %v8541
    %v11547 = vunpack.c.l.b16 %v8547
    %v11548 = vunpack.c.l.b16 %v8555
    %v11549 = vunpack.c.l.b16 %v8561
    %v11550 = vunpack.c.l.b16 %v8569
    %v11551 = vunpack.c.l.b16 %v8575
    %v11552 = vunpack.c.l.b16 %v8583
    %v11553 = vunpack.c.l.b16 %v8589
    %v11554 = vunpack.c.l.b16 %v8597
    %v11555 = vunpack.c.l.b16 %v8603
    %v11556 = vunpack.c.l.b16 %v8611
    %v11557 = vpack.c.b16 %v11494, %v11493
    %v11558 = vpack.c.b16 %v11496, %v11495
    %v11559 = vpack.c.b16 %v11498, %v11497
    %v11560 = vpack.c.b16 %v11500, %v11499
    %v11561 = vpack.c.b16 %v11502, %v11501
    %v11562 = vpack.c.b16 %v11504, %v11503
    %v11563 = vpack.c.b16 %v11506, %v11505
    %v11564 = vpack.c.b16 %v11508, %v11507
    %v11565 = vpack.c.b16 %v11510, %v11509
    %v11566 = vpack.c.b16 %v11512, %v11511
    %v11567 = vpack.c.b16 %v11514, %v11513
    %v11568 = vpack.c.b16 %v11516, %v11515
    %v11569 = vpack.c.b16 %v11518, %v11517
    %v11570 = vpack.c.b16 %v11520, %v11519
    %v11571 = vpack.c.b16 %v11522, %v11521
    %v11572 = vpack.c.b16 %v11524, %v11523
    %v11573 = vpack.c.b16 %v11526, %v11525
    %v11574 = vpack.c.b16 %v11528, %v11527
    %v11575 = vpack.c.b16 %v11530, %v11529
    %v11576 = vpack.c.b16 %v11532, %v11531
    %v11577 = vpack.c.b16 %v11534, %v11533
    %v11578 = vpack.c.b16 %v11536, %v11535
    %v11579 = vpack.c.b16 %v11538, %v11537
    %v11580 = vpack.c.b16 %v11540, %v11539
    %v11581 = vpack.c.b16 %v11542, %v11541
    %v11582 = vpack.c.b16 %v11544, %v11543
    %v11583 = vpack.c.b16 %v11546, %v11545
    %v11584 = vpack.c.b16 %v11548, %v11547
    %v11585 = vpack.c.b16 %v11550, %v11549
    %v11586 = vpack.c.b16 %v11552, %v11551
    %v11587 = vpack.c.b16 %v11554, %v11553
    %v11588 = vpack.c.b16 %v11556, %v11555
    %11589 = vrot.lane.b32.xlu0 %v11557, 16
    %v11590 = vpop.permute.xlu0 %11589
    %11591 = vrot.lane.b32.xlu0 %v11558, 16
    %v11592 = vpop.permute.xlu0 %11591
    %11593 = vrot.lane.b32.xlu0 %v11559, 16
    %v11594 = vpop.permute.xlu0 %11593
    %11595 = vrot.lane.b32.xlu0 %v11560, 16
    %v11596 = vpop.permute.xlu0 %11595
    %11597 = vrot.lane.b32.xlu0 %v11561, 16
    %v11598 = vpop.permute.xlu0 %11597
    %11599 = vrot.lane.b32.xlu0 %v11562, 16
    %v11600 = vpop.permute.xlu0 %11599
    %11601 = vrot.lane.b32.xlu0 %v11563, 16
    %v11602 = vpop.permute.xlu0 %11601
    %11603 = vrot.lane.b32.xlu0 %v11564, 16
    %v11604 = vpop.permute.xlu0 %11603
    %11605 = vrot.lane.b32.xlu0 %v11565, 16
    %v11606 = vpop.permute.xlu0 %11605
    %11607 = vrot.lane.b32.xlu0 %v11566, 16
    %v11608 = vpop.permute.xlu0 %11607
    %11609 = vrot.lane.b32.xlu0 %v11567, 16
    %v11610 = vpop.permute.xlu0 %11609
    %11611 = vrot.lane.b32.xlu0 %v11568, 16
    %v11612 = vpop.permute.xlu0 %11611
    %11613 = vrot.lane.b32.xlu0 %v11569, 16
    %v11614 = vpop.permute.xlu0 %11613
    %11615 = vrot.lane.b32.xlu0 %v11570, 16
    %v11616 = vpop.permute.xlu0 %11615
    %11617 = vrot.lane.b32.xlu0 %v11571, 16
    %v11618 = vpop.permute.xlu0 %11617
    %11619 = vrot.lane.b32.xlu0 %v11572, 16
    %v11620 = vpop.permute.xlu0 %11619
    %11621 = vrot.lane.b32.xlu0 %v11573, 16
    %v11622 = vpop.permute.xlu0 %11621
    %11623 = vrot.lane.b32.xlu0 %v11574, 16
    %v11624 = vpop.permute.xlu0 %11623
    %11625 = vrot.lane.b32.xlu0 %v11575, 16
    %v11626 = vpop.permute.xlu0 %11625
    %11627 = vrot.lane.b32.xlu0 %v11576, 16
    %v11628 = vpop.permute.xlu0 %11627
    %11629 = vrot.lane.b32.xlu0 %v11577, 16
    %v11630 = vpop.permute.xlu0 %11629
    %11631 = vrot.lane.b32.xlu0 %v11578, 16
    %v11632 = vpop.permute.xlu0 %11631
    %11633 = vrot.lane.b32.xlu0 %v11579, 16
    %v11634 = vpop.permute.xlu0 %11633
    %11635 = vrot.lane.b32.xlu0 %v11580, 16
    %v11636 = vpop.permute.xlu0 %11635
    %11637 = vrot.lane.b32.xlu0 %v11581, 16
    %v11638 = vpop.permute.xlu0 %11637
    %11639 = vrot.lane.b32.xlu0 %v11582, 16
    %v11640 = vpop.permute.xlu0 %11639
    %11641 = vrot.lane.b32.xlu0 %v11583, 16
    %v11642 = vpop.permute.xlu0 %11641
    %11643 = vrot.lane.b32.xlu0 %v11584, 16
    %v11644 = vpop.permute.xlu0 %11643
    %11645 = vrot.lane.b32.xlu0 %v11585, 16
    %v11646 = vpop.permute.xlu0 %11645
    %11647 = vrot.lane.b32.xlu0 %v11586, 16
    %v11648 = vpop.permute.xlu0 %11647
    %11649 = vrot.lane.b32.xlu0 %v11587, 16
    %v11650 = vpop.permute.xlu0 %11649
    %11651 = vrot.lane.b32.xlu0 %v11588, 16
    %v11652 = vpop.permute.xlu0 %11651
    %v11653 = vunpack.c.l.b16 %v8720
    %v11654 = vunpack.c.l.b16 %v8729
    %v11655 = vunpack.c.l.b16 %v8742
    %v11656 = vunpack.c.l.b16 %v8751
    %v11657 = vunpack.c.l.b16 %v8764
    %v11658 = vunpack.c.l.b16 %v8773
    %v11659 = vunpack.c.l.b16 %v8786
    %v11660 = vunpack.c.l.b16 %v8795
    %v11661 = vunpack.c.l.b16 %v8808
    %v11662 = vunpack.c.l.b16 %v8817
    %v11663 = vunpack.c.l.b16 %v8830
    %v11664 = vunpack.c.l.b16 %v8839
    %v11665 = vunpack.c.l.b16 %v8852
    %v11666 = vunpack.c.l.b16 %v8861
    %v11667 = vunpack.c.l.b16 %v8874
    %v11668 = vunpack.c.l.b16 %v8883
    %v11669 = vunpack.c.l.b16 %v8896
    %v11670 = vunpack.c.l.b16 %v8905
    %v11671 = vunpack.c.l.b16 %v8918
    %v11672 = vunpack.c.l.b16 %v8927
    %v11673 = vunpack.c.l.b16 %v8940
    %v11674 = vunpack.c.l.b16 %v8949
    %v11675 = vunpack.c.l.b16 %v8962
    %v11676 = vunpack.c.l.b16 %v8971
    %v11677 = vunpack.c.l.b16 %v8984
    %v11678 = vunpack.c.l.b16 %v8993
    %v11679 = vunpack.c.l.b16 %v9006
    %v11680 = vunpack.c.l.b16 %v9015
    %v11681 = vunpack.c.l.b16 %v9028
    %v11682 = vunpack.c.l.b16 %v9037
    %v11683 = vunpack.c.l.b16 %v9050
    %v11684 = vunpack.c.l.b16 %v9059
    %v11685 = vunpack.c.l.b16 %v9072
    %v11686 = vunpack.c.l.b16 %v9081
    %v11687 = vunpack.c.l.b16 %v9094
    %v11688 = vunpack.c.l.b16 %v9103
    %v11689 = vunpack.c.l.b16 %v9116
    %v11690 = vunpack.c.l.b16 %v9125
    %v11691 = vunpack.c.l.b16 %v9138
    %v11692 = vunpack.c.l.b16 %v9147
    %v11693 = vunpack.c.l.b16 %v9160
    %v11694 = vunpack.c.l.b16 %v9169
    %v11695 = vunpack.c.l.b16 %v9182
    %v11696 = vunpack.c.l.b16 %v9191
    %v11697 = vunpack.c.l.b16 %v9204
    %v11698 = vunpack.c.l.b16 %v9213
    %v11699 = vunpack.c.l.b16 %v9226
    %v11700 = vunpack.c.l.b16 %v9235
    %v11701 = vunpack.c.l.b16 %v9248
    %v11702 = vunpack.c.l.b16 %v9257
    %v11703 = vunpack.c.l.b16 %v9270
    %v11704 = vunpack.c.l.b16 %v9279
    %v11705 = vunpack.c.l.b16 %v9292
    %v11706 = vunpack.c.l.b16 %v9301
    %v11707 = vunpack.c.l.b16 %v9314
    %v11708 = vunpack.c.l.b16 %v9323
    %v11709 = vunpack.c.l.b16 %v9336
    %v11710 = vunpack.c.l.b16 %v9345
    %v11711 = vunpack.c.l.b16 %v9358
    %v11712 = vunpack.c.l.b16 %v9367
    %v11713 = vunpack.c.l.b16 %v9380
    %v11714 = vunpack.c.l.b16 %v9389
    %v11715 = vunpack.c.l.b16 %v9402
    %v11716 = vunpack.c.l.b16 %v9411
    %v11717 = vpack.c.b16 %v11654, %v11653
    %v11718 = vpack.c.b16 %v11656, %v11655
    %v11719 = vpack.c.b16 %v11658, %v11657
    %v11720 = vpack.c.b16 %v11660, %v11659
    %v11721 = vpack.c.b16 %v11662, %v11661
    %v11722 = vpack.c.b16 %v11664, %v11663
    %v11723 = vpack.c.b16 %v11666, %v11665
    %v11724 = vpack.c.b16 %v11668, %v11667
    %v11725 = vpack.c.b16 %v11670, %v11669
    %v11726 = vpack.c.b16 %v11672, %v11671
    %v11727 = vpack.c.b16 %v11674, %v11673
    %v11728 = vpack.c.b16 %v11676, %v11675
    %v11729 = vpack.c.b16 %v11678, %v11677
    %v11730 = vpack.c.b16 %v11680, %v11679
    %v11731 = vpack.c.b16 %v11682, %v11681
    %v11732 = vpack.c.b16 %v11684, %v11683
    %v11733 = vpack.c.b16 %v11686, %v11685
    %v11734 = vpack.c.b16 %v11688, %v11687
    %v11735 = vpack.c.b16 %v11690, %v11689
    %v11736 = vpack.c.b16 %v11692, %v11691
    %v11737 = vpack.c.b16 %v11694, %v11693
    %v11738 = vpack.c.b16 %v11696, %v11695
    %v11739 = vpack.c.b16 %v11698, %v11697
    %v11740 = vpack.c.b16 %v11700, %v11699
    %v11741 = vpack.c.b16 %v11702, %v11701
    %v11742 = vpack.c.b16 %v11704, %v11703
    %v11743 = vpack.c.b16 %v11706, %v11705
    %v11744 = vpack.c.b16 %v11708, %v11707
    %v11745 = vpack.c.b16 %v11710, %v11709
    %v11746 = vpack.c.b16 %v11712, %v11711
    %v11747 = vpack.c.b16 %v11714, %v11713
    %v11748 = vpack.c.b16 %v11716, %v11715
    %11749 = vrot.lane.b32.xlu0 %v11717, 24
    %v11750 = vpop.permute.xlu0 %11749
    %11751 = vrot.lane.b32.xlu0 %v11718, 24
    %v11752 = vpop.permute.xlu0 %11751
    %11753 = vrot.lane.b32.xlu0 %v11719, 24
    %v11754 = vpop.permute.xlu0 %11753
    %11755 = vrot.lane.b32.xlu0 %v11720, 24
    %v11756 = vpop.permute.xlu0 %11755
    %11757 = vrot.lane.b32.xlu0 %v11721, 24
    %v11758 = vpop.permute.xlu0 %11757
    %11759 = vrot.lane.b32.xlu0 %v11722, 24
    %v11760 = vpop.permute.xlu0 %11759
    %11761 = vrot.lane.b32.xlu0 %v11723, 24
    %v11762 = vpop.permute.xlu0 %11761
    %11763 = vrot.lane.b32.xlu0 %v11724, 24
    %v11764 = vpop.permute.xlu0 %11763
    %11765 = vrot.lane.b32.xlu0 %v11725, 24
    %v11766 = vpop.permute.xlu0 %11765
    %11767 = vrot.lane.b32.xlu0 %v11726, 24
    %v11768 = vpop.permute.xlu0 %11767
    %11769 = vrot.lane.b32.xlu0 %v11727, 24
    %v11770 = vpop.permute.xlu0 %11769
    %11771 = vrot.lane.b32.xlu0 %v11728, 24
    %v11772 = vpop.permute.xlu0 %11771
    %11773 = vrot.lane.b32.xlu0 %v11729, 24
    %v11774 = vpop.permute.xlu0 %11773
    %11775 = vrot.lane.b32.xlu0 %v11730, 24
    %v11776 = vpop.permute.xlu0 %11775
    %11777 = vrot.lane.b32.xlu0 %v11731, 24
    %v11778 = vpop.permute.xlu0 %11777
    %11779 = vrot.lane.b32.xlu0 %v11732, 24
    %v11780 = vpop.permute.xlu0 %11779
    %11781 = vrot.lane.b32.xlu0 %v11733, 24
    %v11782 = vpop.permute.xlu0 %11781
    %11783 = vrot.lane.b32.xlu0 %v11734, 24
    %v11784 = vpop.permute.xlu0 %11783
    %11785 = vrot.lane.b32.xlu0 %v11735, 24
    %v11786 = vpop.permute.xlu0 %11785
    %11787 = vrot.lane.b32.xlu0 %v11736, 24
    %v11788 = vpop.permute.xlu0 %11787
    %11789 = vrot.lane.b32.xlu0 %v11737, 24
    %v11790 = vpop.permute.xlu0 %11789
    %11791 = vrot.lane.b32.xlu0 %v11738, 24
    %v11792 = vpop.permute.xlu0 %11791
    %11793 = vrot.lane.b32.xlu0 %v11739, 24
    %v11794 = vpop.permute.xlu0 %11793
    %11795 = vrot.lane.b32.xlu0 %v11740, 24
    %v11796 = vpop.permute.xlu0 %11795
    %11797 = vrot.lane.b32.xlu0 %v11741, 24
    %v11798 = vpop.permute.xlu0 %11797
    %11799 = vrot.lane.b32.xlu0 %v11742, 24
    %v11800 = vpop.permute.xlu0 %11799
    %11801 = vrot.lane.b32.xlu0 %v11743, 24
    %v11802 = vpop.permute.xlu0 %11801
    %11803 = vrot.lane.b32.xlu0 %v11744, 24
    %v11804 = vpop.permute.xlu0 %11803
    %11805 = vrot.lane.b32.xlu0 %v11745, 24
    %v11806 = vpop.permute.xlu0 %11805
    %11807 = vrot.lane.b32.xlu0 %v11746, 24
    %v11808 = vpop.permute.xlu0 %11807
    %11809 = vrot.lane.b32.xlu0 %v11747, 24
    %v11810 = vpop.permute.xlu0 %11809
    %11811 = vrot.lane.b32.xlu0 %v11748, 24
    %v11812 = vpop.permute.xlu0 %11811
    %v11877 = vunpack.c.l.b16 %v8613
    %v11878 = vunpack.c.l.b16 %v8614
    %v11879 = vunpack.c.l.b16 %v8616
    %v11880 = vunpack.c.l.b16 %v8617
    %v11881 = vunpack.c.l.b16 %v8619
    %v11882 = vunpack.c.l.b16 %v8620
    %v11883 = vunpack.c.l.b16 %v8622
    %v11884 = vunpack.c.l.b16 %v8623
    %v11885 = vunpack.c.l.b16 %v8625
    %v11886 = vunpack.c.l.b16 %v8626
    %v11887 = vunpack.c.l.b16 %v8628
    %v11888 = vunpack.c.l.b16 %v8629
    %v11889 = vunpack.c.l.b16 %v8631
    %v11890 = vunpack.c.l.b16 %v8632
    %v11891 = vunpack.c.l.b16 %v8634
    %v11892 = vunpack.c.l.b16 %v8635
    %v11893 = vunpack.c.l.b16 %v8637
    %v11894 = vunpack.c.l.b16 %v8638
    %v11895 = vunpack.c.l.b16 %v8640
    %v11896 = vunpack.c.l.b16 %v8641
    %v11897 = vunpack.c.l.b16 %v8643
    %v11898 = vunpack.c.l.b16 %v8644
    %v11899 = vunpack.c.l.b16 %v8646
    %v11900 = vunpack.c.l.b16 %v8647
    %v11901 = vunpack.c.l.b16 %v8649
    %v11902 = vunpack.c.l.b16 %v8650
    %v11903 = vunpack.c.l.b16 %v8652
    %v11904 = vunpack.c.l.b16 %v8653
    %v11905 = vunpack.c.l.b16 %v8655
    %v11906 = vunpack.c.l.b16 %v8656
    %v11907 = vunpack.c.l.b16 %v8658
    %v11908 = vunpack.c.l.b16 %v8659
    %v11909 = vunpack.c.l.b16 %v8661
    %v11910 = vunpack.c.l.b16 %v8662
    %v11911 = vunpack.c.l.b16 %v8664
    %v11912 = vunpack.c.l.b16 %v8665
    %v11913 = vunpack.c.l.b16 %v8667
    %v11914 = vunpack.c.l.b16 %v8668
    %v11915 = vunpack.c.l.b16 %v8670
    %v11916 = vunpack.c.l.b16 %v8671
    %v11917 = vunpack.c.l.b16 %v8673
    %v11918 = vunpack.c.l.b16 %v8674
    %v11919 = vunpack.c.l.b16 %v8676
    %v11920 = vunpack.c.l.b16 %v8677
    %v11921 = vunpack.c.l.b16 %v8679
    %v11922 = vunpack.c.l.b16 %v8680
    %v11923 = vunpack.c.l.b16 %v8682
    %v11924 = vunpack.c.l.b16 %v8683
    %v11925 = vunpack.c.l.b16 %v8685
    %v11926 = vunpack.c.l.b16 %v8686
    %v11927 = vunpack.c.l.b16 %v8688
    %v11928 = vunpack.c.l.b16 %v8689
    %v11929 = vunpack.c.l.b16 %v8691
    %v11930 = vunpack.c.l.b16 %v8692
    %v11931 = vunpack.c.l.b16 %v8694
    %v11932 = vunpack.c.l.b16 %v8695
    %v11933 = vunpack.c.l.b16 %v8697
    %v11934 = vunpack.c.l.b16 %v8698
    %v11935 = vunpack.c.l.b16 %v8700
    %v11936 = vunpack.c.l.b16 %v8701
    %v11937 = vunpack.c.l.b16 %v8703
    %v11938 = vunpack.c.l.b16 %v8704
    %v11939 = vunpack.c.l.b16 %v8706
    %v11940 = vunpack.c.l.b16 %v8707
    %v11941 = vpack.c.b16 %v11878, %v11877
    %v11942 = vpack.c.b16 %v11880, %v11879
    %v11943 = vpack.c.b16 %v11882, %v11881
    %v11944 = vpack.c.b16 %v11884, %v11883
    %v11945 = vpack.c.b16 %v11886, %v11885
    %v11946 = vpack.c.b16 %v11888, %v11887
    %v11947 = vpack.c.b16 %v11890, %v11889
    %v11948 = vpack.c.b16 %v11892, %v11891
    %v11949 = vpack.c.b16 %v11894, %v11893
    %v11950 = vpack.c.b16 %v11896, %v11895
    %v11951 = vpack.c.b16 %v11898, %v11897
    %v11952 = vpack.c.b16 %v11900, %v11899
    %v11953 = vpack.c.b16 %v11902, %v11901
    %v11954 = vpack.c.b16 %v11904, %v11903
    %v11955 = vpack.c.b16 %v11906, %v11905
    %v11956 = vpack.c.b16 %v11908, %v11907
    %v11957 = vpack.c.b16 %v11910, %v11909
    %v11958 = vpack.c.b16 %v11912, %v11911
    %v11959 = vpack.c.b16 %v11914, %v11913
    %v11960 = vpack.c.b16 %v11916, %v11915
    %v11961 = vpack.c.b16 %v11918, %v11917
    %v11962 = vpack.c.b16 %v11920, %v11919
    %v11963 = vpack.c.b16 %v11922, %v11921
    %v11964 = vpack.c.b16 %v11924, %v11923
    %v11965 = vpack.c.b16 %v11926, %v11925
    %v11966 = vpack.c.b16 %v11928, %v11927
    %v11967 = vpack.c.b16 %v11930, %v11929
    %v11968 = vpack.c.b16 %v11932, %v11931
    %v11969 = vpack.c.b16 %v11934, %v11933
    %v11970 = vpack.c.b16 %v11936, %v11935
    %v11971 = vpack.c.b16 %v11938, %v11937
    %v11972 = vpack.c.b16 %v11940, %v11939
    %11973 = vrot.lane.b32.xlu0 %v11941, 32
    %v11974 = vpop.permute.xlu0 %11973
    %11975 = vrot.lane.b32.xlu0 %v11942, 32
    %v11976 = vpop.permute.xlu0 %11975
    %11977 = vrot.lane.b32.xlu0 %v11943, 32
    %v11978 = vpop.permute.xlu0 %11977
    %11979 = vrot.lane.b32.xlu0 %v11944, 32
    %v11980 = vpop.permute.xlu0 %11979
    %11981 = vrot.lane.b32.xlu0 %v11945, 32
    %v11982 = vpop.permute.xlu0 %11981
    %11983 = vrot.lane.b32.xlu0 %v11946, 32
    %v11984 = vpop.permute.xlu0 %11983
    %11985 = vrot.lane.b32.xlu0 %v11947, 32
    %v11986 = vpop.permute.xlu0 %11985
    %11987 = vrot.lane.b32.xlu0 %v11948, 32
    %v11988 = vpop.permute.xlu0 %11987
    %11989 = vrot.lane.b32.xlu0 %v11949, 32
    %v11990 = vpop.permute.xlu0 %11989
    %11991 = vrot.lane.b32.xlu0 %v11950, 32
    %v11992 = vpop.permute.xlu0 %11991
    %11993 = vrot.lane.b32.xlu0 %v11951, 32
    %v11994 = vpop.permute.xlu0 %11993
    %11995 = vrot.lane.b32.xlu0 %v11952, 32
    %v11996 = vpop.permute.xlu0 %11995
    %11997 = vrot.lane.b32.xlu0 %v11953, 32
    %v11998 = vpop.permute.xlu0 %11997
    %11999 = vrot.lane.b32.xlu0 %v11954, 32
    %v12000 = vpop.permute.xlu0 %11999
    %12001 = vrot.lane.b32.xlu0 %v11955, 32
    %v12002 = vpop.permute.xlu0 %12001
    %12003 = vrot.lane.b32.xlu0 %v11956, 32
    %v12004 = vpop.permute.xlu0 %12003
    %12005 = vrot.lane.b32.xlu0 %v11957, 32
    %v12006 = vpop.permute.xlu0 %12005
    %12007 = vrot.lane.b32.xlu0 %v11958, 32
    %v12008 = vpop.permute.xlu0 %12007
    %12009 = vrot.lane.b32.xlu0 %v11959, 32
    %v12010 = vpop.permute.xlu0 %12009
    %12011 = vrot.lane.b32.xlu0 %v11960, 32
    %v12012 = vpop.permute.xlu0 %12011
    %12013 = vrot.lane.b32.xlu0 %v11961, 32
    %v12014 = vpop.permute.xlu0 %12013
    %12015 = vrot.lane.b32.xlu0 %v11962, 32
    %v12016 = vpop.permute.xlu0 %12015
    %12017 = vrot.lane.b32.xlu0 %v11963, 32
    %v12018 = vpop.permute.xlu0 %12017
    %12019 = vrot.lane.b32.xlu0 %v11964, 32
    %v12020 = vpop.permute.xlu0 %12019
    %12021 = vrot.lane.b32.xlu0 %v11965, 32
    %v12022 = vpop.permute.xlu0 %12021
    %12023 = vrot.lane.b32.xlu0 %v11966, 32
    %v12024 = vpop.permute.xlu0 %12023
    %12025 = vrot.lane.b32.xlu0 %v11967, 32
    %v12026 = vpop.permute.xlu0 %12025
    %12027 = vrot.lane.b32.xlu0 %v11968, 32
    %v12028 = vpop.permute.xlu0 %12027
    %12029 = vrot.lane.b32.xlu0 %v11969, 32
    %v12030 = vpop.permute.xlu0 %12029
    %12031 = vrot.lane.b32.xlu0 %v11970, 32
    %v12032 = vpop.permute.xlu0 %12031
    %12033 = vrot.lane.b32.xlu0 %v11971, 32
    %v12034 = vpop.permute.xlu0 %12033
    %12035 = vrot.lane.b32.xlu0 %v11972, 32
    %v12036 = vpop.permute.xlu0 %12035
    %v12037 = vunpack.c.l.b16 %v9449
    %v12038 = vunpack.c.l.b16 %v9457
    %v12039 = vunpack.c.l.b16 %v9463
    %v12040 = vunpack.c.l.b16 %v9471
    %v12041 = vunpack.c.l.b16 %v9477
    %v12042 = vunpack.c.l.b16 %v9485
    %v12043 = vunpack.c.l.b16 %v9491
    %v12044 = vunpack.c.l.b16 %v9499
    %v12045 = vunpack.c.l.b16 %v9505
    %v12046 = vunpack.c.l.b16 %v9513
    %v12047 = vunpack.c.l.b16 %v9519
    %v12048 = vunpack.c.l.b16 %v9527
    %v12049 = vunpack.c.l.b16 %v9533
    %v12050 = vunpack.c.l.b16 %v9541
    %v12051 = vunpack.c.l.b16 %v9547
    %v12052 = vunpack.c.l.b16 %v9555
    %v12053 = vunpack.c.l.b16 %v9561
    %v12054 = vunpack.c.l.b16 %v9569
    %v12055 = vunpack.c.l.b16 %v9575
    %v12056 = vunpack.c.l.b16 %v9583
    %v12057 = vunpack.c.l.b16 %v9589
    %v12058 = vunpack.c.l.b16 %v9597
    %v12059 = vunpack.c.l.b16 %v9603
    %v12060 = vunpack.c.l.b16 %v9611
    %v12061 = vunpack.c.l.b16 %v9617
    %v12062 = vunpack.c.l.b16 %v9625
    %v12063 = vunpack.c.l.b16 %v9631
    %v12064 = vunpack.c.l.b16 %v9639
    %v12065 = vunpack.c.l.b16 %v9645
    %v12066 = vunpack.c.l.b16 %v9653
    %v12067 = vunpack.c.l.b16 %v9659
    %v12068 = vunpack.c.l.b16 %v9667
    %v12069 = vunpack.c.l.b16 %v9673
    %v12070 = vunpack.c.l.b16 %v9681
    %v12071 = vunpack.c.l.b16 %v9687
    %v12072 = vunpack.c.l.b16 %v9695
    %v12073 = vunpack.c.l.b16 %v9701
    %v12074 = vunpack.c.l.b16 %v9709
    %v12075 = vunpack.c.l.b16 %v9715
    %v12076 = vunpack.c.l.b16 %v9723
    %v12077 = vunpack.c.l.b16 %v9729
    %v12078 = vunpack.c.l.b16 %v9737
    %v12079 = vunpack.c.l.b16 %v9743
    %v12080 = vunpack.c.l.b16 %v9751
    %v12081 = vunpack.c.l.b16 %v9757
    %v12082 = vunpack.c.l.b16 %v9765
    %v12083 = vunpack.c.l.b16 %v9771
    %v12084 = vunpack.c.l.b16 %v9779
    %v12085 = vunpack.c.l.b16 %v9785
    %v12086 = vunpack.c.l.b16 %v9793
    %v12087 = vunpack.c.l.b16 %v9799
    %v12088 = vunpack.c.l.b16 %v9807
    %v12089 = vunpack.c.l.b16 %v9813
    %v12090 = vunpack.c.l.b16 %v9821
    %v12091 = vunpack.c.l.b16 %v9827
    %v12092 = vunpack.c.l.b16 %v9835
    %v12093 = vunpack.c.l.b16 %v9841
    %v12094 = vunpack.c.l.b16 %v9849
    %v12095 = vunpack.c.l.b16 %v9855
    %v12096 = vunpack.c.l.b16 %v9863
    %v12097 = vunpack.c.l.b16 %v9869
    %v12098 = vunpack.c.l.b16 %v9877
    %v12099 = vunpack.c.l.b16 %v9883
    %v12100 = vunpack.c.l.b16 %v9891
    %v12101 = vpack.c.b16 %v12038, %v12037
    %v12102 = vpack.c.b16 %v12040, %v12039
    %v12103 = vpack.c.b16 %v12042, %v12041
    %v12104 = vpack.c.b16 %v12044, %v12043
    %v12105 = vpack.c.b16 %v12046, %v12045
    %v12106 = vpack.c.b16 %v12048, %v12047
    %v12107 = vpack.c.b16 %v12050, %v12049
    %v12108 = vpack.c.b16 %v12052, %v12051
    %v12109 = vpack.c.b16 %v12054, %v12053
    %v12110 = vpack.c.b16 %v12056, %v12055
    %v12111 = vpack.c.b16 %v12058, %v12057
    %v12112 = vpack.c.b16 %v12060, %v12059
    %v12113 = vpack.c.b16 %v12062, %v12061
    %v12114 = vpack.c.b16 %v12064, %v12063
    %v12115 = vpack.c.b16 %v12066, %v12065
    %v12116 = vpack.c.b16 %v12068, %v12067
    %v12117 = vpack.c.b16 %v12070, %v12069
    %v12118 = vpack.c.b16 %v12072, %v12071
    %v12119 = vpack.c.b16 %v12074, %v12073
    %v12120 = vpack.c.b16 %v12076, %v12075
    %v12121 = vpack.c.b16 %v12078, %v12077
    %v12122 = vpack.c.b16 %v12080, %v12079
    %v12123 = vpack.c.b16 %v12082, %v12081
    %v12124 = vpack.c.b16 %v12084, %v12083
    %v12125 = vpack.c.b16 %v12086, %v12085
    %v12126 = vpack.c.b16 %v12088, %v12087
    %v12127 = vpack.c.b16 %v12090, %v12089
    %v12128 = vpack.c.b16 %v12092, %v12091
    %v12129 = vpack.c.b16 %v12094, %v12093
    %v12130 = vpack.c.b16 %v12096, %v12095
    %v12131 = vpack.c.b16 %v12098, %v12097
    %v12132 = vpack.c.b16 %v12100, %v12099
    %12133 = vrot.lane.b32.xlu0 %v12101, 40
    %v12134 = vpop.permute.xlu0 %12133
    %12135 = vrot.lane.b32.xlu0 %v12102, 40
    %v12136 = vpop.permute.xlu0 %12135
    %12137 = vrot.lane.b32.xlu0 %v12103, 40
    %v12138 = vpop.permute.xlu0 %12137
    %12139 = vrot.lane.b32.xlu0 %v12104, 40
    %v12140 = vpop.permute.xlu0 %12139
    %12141 = vrot.lane.b32.xlu0 %v12105, 40
    %v12142 = vpop.permute.xlu0 %12141
    %12143 = vrot.lane.b32.xlu0 %v12106, 40
    %v12144 = vpop.permute.xlu0 %12143
    %12145 = vrot.lane.b32.xlu0 %v12107, 40
    %v12146 = vpop.permute.xlu0 %12145
    %12147 = vrot.lane.b32.xlu0 %v12108, 40
    %v12148 = vpop.permute.xlu0 %12147
    %12149 = vrot.lane.b32.xlu0 %v12109, 40
    %v12150 = vpop.permute.xlu0 %12149
    %12151 = vrot.lane.b32.xlu0 %v12110, 40
    %v12152 = vpop.permute.xlu0 %12151
    %12153 = vrot.lane.b32.xlu0 %v12111, 40
    %v12154 = vpop.permute.xlu0 %12153
    %12155 = vrot.lane.b32.xlu0 %v12112, 40
    %v12156 = vpop.permute.xlu0 %12155
    %12157 = vrot.lane.b32.xlu0 %v12113, 40
    %v12158 = vpop.permute.xlu0 %12157
    %12159 = vrot.lane.b32.xlu0 %v12114, 40
    %v12160 = vpop.permute.xlu0 %12159
    %12161 = vrot.lane.b32.xlu0 %v12115, 40
    %v12162 = vpop.permute.xlu0 %12161
    %12163 = vrot.lane.b32.xlu0 %v12116, 40
    %v12164 = vpop.permute.xlu0 %12163
    %12165 = vrot.lane.b32.xlu0 %v12117, 40
    %v12166 = vpop.permute.xlu0 %12165
    %12167 = vrot.lane.b32.xlu0 %v12118, 40
    %v12168 = vpop.permute.xlu0 %12167
    %12169 = vrot.lane.b32.xlu0 %v12119, 40
    %v12170 = vpop.permute.xlu0 %12169
    %12171 = vrot.lane.b32.xlu0 %v12120, 40
    %v12172 = vpop.permute.xlu0 %12171
    %12173 = vrot.lane.b32.xlu0 %v12121, 40
    %v12174 = vpop.permute.xlu0 %12173
    %12175 = vrot.lane.b32.xlu0 %v12122, 40
    %v12176 = vpop.permute.xlu0 %12175
    %12177 = vrot.lane.b32.xlu0 %v12123, 40
    %v12178 = vpop.permute.xlu0 %12177
    %12179 = vrot.lane.b32.xlu0 %v12124, 40
    %v12180 = vpop.permute.xlu0 %12179
    %12181 = vrot.lane.b32.xlu0 %v12125, 40
    %v12182 = vpop.permute.xlu0 %12181
    %12183 = vrot.lane.b32.xlu0 %v12126, 40
    %v12184 = vpop.permute.xlu0 %12183
    %12185 = vrot.lane.b32.xlu0 %v12127, 40
    %v12186 = vpop.permute.xlu0 %12185
    %12187 = vrot.lane.b32.xlu0 %v12128, 40
    %v12188 = vpop.permute.xlu0 %12187
    %12189 = vrot.lane.b32.xlu0 %v12129, 40
    %v12190 = vpop.permute.xlu0 %12189
    %12191 = vrot.lane.b32.xlu0 %v12130, 40
    %v12192 = vpop.permute.xlu0 %12191
    %12193 = vrot.lane.b32.xlu0 %v12131, 40
    %v12194 = vpop.permute.xlu0 %12193
    %12195 = vrot.lane.b32.xlu0 %v12132, 40
    %v12196 = vpop.permute.xlu0 %12195
    %v12197 = vunpack.c.l.b16 %v10001
    %v12198 = vunpack.c.l.b16 %v10010
    %v12199 = vunpack.c.l.b16 %v10023
    %v12200 = vunpack.c.l.b16 %v10032
    %v12201 = vunpack.c.l.b16 %v10045
    %v12202 = vunpack.c.l.b16 %v10054
    %v12203 = vunpack.c.l.b16 %v10067
    %v12204 = vunpack.c.l.b16 %v10076
    %v12205 = vunpack.c.l.b16 %v10089
    %v12206 = vunpack.c.l.b16 %v10098
    %v12207 = vunpack.c.l.b16 %v10111
    %v12208 = vunpack.c.l.b16 %v10120
    %v12209 = vunpack.c.l.b16 %v10133
    %v12210 = vunpack.c.l.b16 %v10142
    %v12211 = vunpack.c.l.b16 %v10155
    %v12212 = vunpack.c.l.b16 %v10164
    %v12213 = vunpack.c.l.b16 %v10177
    %v12214 = vunpack.c.l.b16 %v10186
    %v12215 = vunpack.c.l.b16 %v10199
    %v12216 = vunpack.c.l.b16 %v10208
    %v12217 = vunpack.c.l.b16 %v10221
    %v12218 = vunpack.c.l.b16 %v10230
    %v12219 = vunpack.c.l.b16 %v10243
    %v12220 = vunpack.c.l.b16 %v10252
    %v12221 = vunpack.c.l.b16 %v10265
    %v12222 = vunpack.c.l.b16 %v10274
    %v12223 = vunpack.c.l.b16 %v10287
    %v12224 = vunpack.c.l.b16 %v10296
    %v12225 = vunpack.c.l.b16 %v10309
    %v12226 = vunpack.c.l.b16 %v10318
    %v12227 = vunpack.c.l.b16 %v10331
    %v12228 = vunpack.c.l.b16 %v10340
    %v12229 = vunpack.c.l.b16 %v10353
    %v12230 = vunpack.c.l.b16 %v10362
    %v12231 = vunpack.c.l.b16 %v10375
    %v12232 = vunpack.c.l.b16 %v10384
    %v12233 = vunpack.c.l.b16 %v10397
    %v12234 = vunpack.c.l.b16 %v10406
    %v12235 = vunpack.c.l.b16 %v10419
    %v12236 = vunpack.c.l.b16 %v10428
    %v12237 = vunpack.c.l.b16 %v10441
    %v12238 = vunpack.c.l.b16 %v10450
    %v12239 = vunpack.c.l.b16 %v10463
    %v12240 = vunpack.c.l.b16 %v10472
    %v12241 = vunpack.c.l.b16 %v10485
    %v12242 = vunpack.c.l.b16 %v10494
    %v12243 = vunpack.c.l.b16 %v10507
    %v12244 = vunpack.c.l.b16 %v10516
    %v12245 = vunpack.c.l.b16 %v10529
    %v12246 = vunpack.c.l.b16 %v10538
    %v12247 = vunpack.c.l.b16 %v10551
    %v12248 = vunpack.c.l.b16 %v10560
    %v12249 = vunpack.c.l.b16 %v10573
    %v12250 = vunpack.c.l.b16 %v10582
    %v12251 = vunpack.c.l.b16 %v10595
    %v12252 = vunpack.c.l.b16 %v10604
    %v12253 = vunpack.c.l.b16 %v10617
    %v12254 = vunpack.c.l.b16 %v10626
    %v12255 = vunpack.c.l.b16 %v10639
    %v12256 = vunpack.c.l.b16 %v10648
    %v12257 = vunpack.c.l.b16 %v10661
    %v12258 = vunpack.c.l.b16 %v10670
    %v12259 = vunpack.c.l.b16 %v10683
    %v12260 = vunpack.c.l.b16 %v10692
    %v12261 = vpack.c.b16 %v12198, %v12197
    %v12262 = vpack.c.b16 %v12200, %v12199
    %v12263 = vpack.c.b16 %v12202, %v12201
    %v12264 = vpack.c.b16 %v12204, %v12203
    %v12265 = vpack.c.b16 %v12206, %v12205
    %v12266 = vpack.c.b16 %v12208, %v12207
    %v12267 = vpack.c.b16 %v12210, %v12209
    %v12268 = vpack.c.b16 %v12212, %v12211
    %v12269 = vpack.c.b16 %v12214, %v12213
    %v12270 = vpack.c.b16 %v12216, %v12215
    %v12271 = vpack.c.b16 %v12218, %v12217
    %v12272 = vpack.c.b16 %v12220, %v12219
    %v12273 = vpack.c.b16 %v12222, %v12221
    %v12274 = vpack.c.b16 %v12224, %v12223
    %v12275 = vpack.c.b16 %v12226, %v12225
    %v12276 = vpack.c.b16 %v12228, %v12227
    %v12277 = vpack.c.b16 %v12230, %v12229
    %v12278 = vpack.c.b16 %v12232, %v12231
    %v12279 = vpack.c.b16 %v12234, %v12233
    %v12280 = vpack.c.b16 %v12236, %v12235
    %v12281 = vpack.c.b16 %v12238, %v12237
    %v12282 = vpack.c.b16 %v12240, %v12239
    %v12283 = vpack.c.b16 %v12242, %v12241
    %v12284 = vpack.c.b16 %v12244, %v12243
    %v12285 = vpack.c.b16 %v12246, %v12245
    %v12286 = vpack.c.b16 %v12248, %v12247
    %v12287 = vpack.c.b16 %v12250, %v12249
    %v12288 = vpack.c.b16 %v12252, %v12251
    %v12289 = vpack.c.b16 %v12254, %v12253
    %v12290 = vpack.c.b16 %v12256, %v12255
    %v12291 = vpack.c.b16 %v12258, %v12257
    %v12292 = vpack.c.b16 %v12260, %v12259
    %12293 = vrot.lane.b32.xlu0 %v12261, 48
    %v12294 = vpop.permute.xlu0 %12293
    %12295 = vrot.lane.b32.xlu0 %v12262, 48
    %v12296 = vpop.permute.xlu0 %12295
    %12297 = vrot.lane.b32.xlu0 %v12263, 48
    %v12298 = vpop.permute.xlu0 %12297
    %12299 = vrot.lane.b32.xlu0 %v12264, 48
    %v12300 = vpop.permute.xlu0 %12299
    %12301 = vrot.lane.b32.xlu0 %v12265, 48
    %v12302 = vpop.permute.xlu0 %12301
    %12303 = vrot.lane.b32.xlu0 %v12266, 48
    %v12304 = vpop.permute.xlu0 %12303
    %12305 = vrot.lane.b32.xlu0 %v12267, 48
    %v12306 = vpop.permute.xlu0 %12305
    %12307 = vrot.lane.b32.xlu0 %v12268, 48
    %v12308 = vpop.permute.xlu0 %12307
    %12309 = vrot.lane.b32.xlu0 %v12269, 48
    %v12310 = vpop.permute.xlu0 %12309
    %12311 = vrot.lane.b32.xlu0 %v12270, 48
    %v12312 = vpop.permute.xlu0 %12311
    %12313 = vrot.lane.b32.xlu0 %v12271, 48
    %v12314 = vpop.permute.xlu0 %12313
    %12315 = vrot.lane.b32.xlu0 %v12272, 48
    %v12316 = vpop.permute.xlu0 %12315
    %12317 = vrot.lane.b32.xlu0 %v12273, 48
    %v12318 = vpop.permute.xlu0 %12317
    %12319 = vrot.lane.b32.xlu0 %v12274, 48
    %v12320 = vpop.permute.xlu0 %12319
    %12321 = vrot.lane.b32.xlu0 %v12275, 48
    %v12322 = vpop.permute.xlu0 %12321
    %12323 = vrot.lane.b32.xlu0 %v12276, 48
    %v12324 = vpop.permute.xlu0 %12323
    %12325 = vrot.lane.b32.xlu0 %v12277, 48
    %v12326 = vpop.permute.xlu0 %12325
    %12327 = vrot.lane.b32.xlu0 %v12278, 48
    %v12328 = vpop.permute.xlu0 %12327
    %12329 = vrot.lane.b32.xlu0 %v12279, 48
    %v12330 = vpop.permute.xlu0 %12329
    %12331 = vrot.lane.b32.xlu0 %v12280, 48
    %v12332 = vpop.permute.xlu0 %12331
    %12333 = vrot.lane.b32.xlu0 %v12281, 48
    %v12334 = vpop.permute.xlu0 %12333
    %12335 = vrot.lane.b32.xlu0 %v12282, 48
    %v12336 = vpop.permute.xlu0 %12335
    %12337 = vrot.lane.b32.xlu0 %v12283, 48
    %v12338 = vpop.permute.xlu0 %12337
    %12339 = vrot.lane.b32.xlu0 %v12284, 48
    %v12340 = vpop.permute.xlu0 %12339
    %12341 = vrot.lane.b32.xlu0 %v12285, 48
    %v12342 = vpop.permute.xlu0 %12341
    %12343 = vrot.lane.b32.xlu0 %v12286, 48
    %v12344 = vpop.permute.xlu0 %12343
    %12345 = vrot.lane.b32.xlu0 %v12287, 48
    %v12346 = vpop.permute.xlu0 %12345
    %12347 = vrot.lane.b32.xlu0 %v12288, 48
    %v12348 = vpop.permute.xlu0 %12347
    %12349 = vrot.lane.b32.xlu0 %v12289, 48
    %v12350 = vpop.permute.xlu0 %12349
    %12351 = vrot.lane.b32.xlu0 %v12290, 48
    %v12352 = vpop.permute.xlu0 %12351
    %12353 = vrot.lane.b32.xlu0 %v12291, 48
    %v12354 = vpop.permute.xlu0 %12353
    %12355 = vrot.lane.b32.xlu0 %v12292, 48
    %v12356 = vpop.permute.xlu0 %12355
    %v12421 = vunpack.c.l.b16 %v9894
    %v12422 = vunpack.c.l.b16 %v9895
    %v12423 = vunpack.c.l.b16 %v9897
    %v12424 = vunpack.c.l.b16 %v9898
    %v12425 = vunpack.c.l.b16 %v9900
    %v12426 = vunpack.c.l.b16 %v9901
    %v12427 = vunpack.c.l.b16 %v9903
    %v12428 = vunpack.c.l.b16 %v9904
    %v12429 = vunpack.c.l.b16 %v9906
    %v12430 = vunpack.c.l.b16 %v9907
    %v12431 = vunpack.c.l.b16 %v9909
    %v12432 = vunpack.c.l.b16 %v9910
    %v12433 = vunpack.c.l.b16 %v9912
    %v12434 = vunpack.c.l.b16 %v9913
    %v12435 = vunpack.c.l.b16 %v9915
    %v12436 = vunpack.c.l.b16 %v9916
    %v12437 = vunpack.c.l.b16 %v9918
    %v12438 = vunpack.c.l.b16 %v9919
    %v12439 = vunpack.c.l.b16 %v9921
    %v12440 = vunpack.c.l.b16 %v9922
    %v12441 = vunpack.c.l.b16 %v9924
    %v12442 = vunpack.c.l.b16 %v9925
    %v12443 = vunpack.c.l.b16 %v9927
    %v12444 = vunpack.c.l.b16 %v9928
    %v12445 = vunpack.c.l.b16 %v9930
    %v12446 = vunpack.c.l.b16 %v9931
    %v12447 = vunpack.c.l.b16 %v9933
    %v12448 = vunpack.c.l.b16 %v9934
    %v12449 = vunpack.c.l.b16 %v9936
    %v12450 = vunpack.c.l.b16 %v9937
    %v12451 = vunpack.c.l.b16 %v9939
    %v12452 = vunpack.c.l.b16 %v9940
    %v12453 = vunpack.c.l.b16 %v9942
    %v12454 = vunpack.c.l.b16 %v9943
    %v12455 = vunpack.c.l.b16 %v9945
    %v12456 = vunpack.c.l.b16 %v9946
    %v12457 = vunpack.c.l.b16 %v9948
    %v12458 = vunpack.c.l.b16 %v9949
    %v12459 = vunpack.c.l.b16 %v9951
    %v12460 = vunpack.c.l.b16 %v9952
    %v12461 = vunpack.c.l.b16 %v9954
    %v12462 = vunpack.c.l.b16 %v9955
    %v12463 = vunpack.c.l.b16 %v9957
    %v12464 = vunpack.c.l.b16 %v9958
    %v12465 = vunpack.c.l.b16 %v9960
    %v12466 = vunpack.c.l.b16 %v9961
    %v12467 = vunpack.c.l.b16 %v9963
    %v12468 = vunpack.c.l.b16 %v9964
    %v12469 = vunpack.c.l.b16 %v9966
    %v12470 = vunpack.c.l.b16 %v9967
    %v12471 = vunpack.c.l.b16 %v9969
    %v12472 = vunpack.c.l.b16 %v9970
    %v12473 = vunpack.c.l.b16 %v9972
    %v12474 = vunpack.c.l.b16 %v9973
    %v12475 = vunpack.c.l.b16 %v9975
    %v12476 = vunpack.c.l.b16 %v9976
    %v12477 = vunpack.c.l.b16 %v9978
    %v12478 = vunpack.c.l.b16 %v9979
    %v12479 = vunpack.c.l.b16 %v9981
    %v12480 = vunpack.c.l.b16 %v9982
    %v12481 = vunpack.c.l.b16 %v9984
    %v12482 = vunpack.c.l.b16 %v9985
    %v12483 = vunpack.c.l.b16 %v9987
    %v12484 = vunpack.c.l.b16 %v9988
    %v12485 = vpack.c.b16 %v12422, %v12421
    %v12486 = vpack.c.b16 %v12424, %v12423
    %v12487 = vpack.c.b16 %v12426, %v12425
    %v12488 = vpack.c.b16 %v12428, %v12427
    %v12489 = vpack.c.b16 %v12430, %v12429
    %v12490 = vpack.c.b16 %v12432, %v12431
    %v12491 = vpack.c.b16 %v12434, %v12433
    %v12492 = vpack.c.b16 %v12436, %v12435
    %v12493 = vpack.c.b16 %v12438, %v12437
    %v12494 = vpack.c.b16 %v12440, %v12439
    %v12495 = vpack.c.b16 %v12442, %v12441
    %v12496 = vpack.c.b16 %v12444, %v12443
    %v12497 = vpack.c.b16 %v12446, %v12445
    %v12498 = vpack.c.b16 %v12448, %v12447
    %v12499 = vpack.c.b16 %v12450, %v12449
    %v12500 = vpack.c.b16 %v12452, %v12451
    %v12501 = vpack.c.b16 %v12454, %v12453
    %v12502 = vpack.c.b16 %v12456, %v12455
    %v12503 = vpack.c.b16 %v12458, %v12457
    %v12504 = vpack.c.b16 %v12460, %v12459
    %v12505 = vpack.c.b16 %v12462, %v12461
    %v12506 = vpack.c.b16 %v12464, %v12463
    %v12507 = vpack.c.b16 %v12466, %v12465
    %v12508 = vpack.c.b16 %v12468, %v12467
    %v12509 = vpack.c.b16 %v12470, %v12469
    %v12510 = vpack.c.b16 %v12472, %v12471
    %v12511 = vpack.c.b16 %v12474, %v12473
    %v12512 = vpack.c.b16 %v12476, %v12475
    %v12513 = vpack.c.b16 %v12478, %v12477
    %v12514 = vpack.c.b16 %v12480, %v12479
    %v12515 = vpack.c.b16 %v12482, %v12481
    %v12516 = vpack.c.b16 %v12484, %v12483
    %12517 = vrot.lane.b32.xlu0 %v12485, 56
    %v12518 = vpop.permute.xlu0 %12517
    %12519 = vrot.lane.b32.xlu0 %v12486, 56
    %v12520 = vpop.permute.xlu0 %12519
    %12521 = vrot.lane.b32.xlu0 %v12487, 56
    %v12522 = vpop.permute.xlu0 %12521
    %12523 = vrot.lane.b32.xlu0 %v12488, 56
    %v12524 = vpop.permute.xlu0 %12523
    %12525 = vrot.lane.b32.xlu0 %v12489, 56
    %v12526 = vpop.permute.xlu0 %12525
    %12527 = vrot.lane.b32.xlu0 %v12490, 56
    %v12528 = vpop.permute.xlu0 %12527
    %12529 = vrot.lane.b32.xlu0 %v12491, 56
    %v12530 = vpop.permute.xlu0 %12529
    %12531 = vrot.lane.b32.xlu0 %v12492, 56
    %v12532 = vpop.permute.xlu0 %12531
    %12533 = vrot.lane.b32.xlu0 %v12493, 56
    %v12534 = vpop.permute.xlu0 %12533
    %12535 = vrot.lane.b32.xlu0 %v12494, 56
    %v12536 = vpop.permute.xlu0 %12535
    %12537 = vrot.lane.b32.xlu0 %v12495, 56
    %v12538 = vpop.permute.xlu0 %12537
    %12539 = vrot.lane.b32.xlu0 %v12496, 56
    %v12540 = vpop.permute.xlu0 %12539
    %12541 = vrot.lane.b32.xlu0 %v12497, 56
    %v12542 = vpop.permute.xlu0 %12541
    %12543 = vrot.lane.b32.xlu0 %v12498, 56
    %v12544 = vpop.permute.xlu0 %12543
    %12545 = vrot.lane.b32.xlu0 %v12499, 56
    %v12546 = vpop.permute.xlu0 %12545
    %12547 = vrot.lane.b32.xlu0 %v12500, 56
    %v12548 = vpop.permute.xlu0 %12547
    %12549 = vrot.lane.b32.xlu0 %v12501, 56
    %v12550 = vpop.permute.xlu0 %12549
    %12551 = vrot.lane.b32.xlu0 %v12502, 56
    %v12552 = vpop.permute.xlu0 %12551
    %12553 = vrot.lane.b32.xlu0 %v12503, 56
    %v12554 = vpop.permute.xlu0 %12553
    %12555 = vrot.lane.b32.xlu0 %v12504, 56
    %v12556 = vpop.permute.xlu0 %12555
    %12557 = vrot.lane.b32.xlu0 %v12505, 56
    %v12558 = vpop.permute.xlu0 %12557
    %12559 = vrot.lane.b32.xlu0 %v12506, 56
    %v12560 = vpop.permute.xlu0 %12559
    %12561 = vrot.lane.b32.xlu0 %v12507, 56
    %v12562 = vpop.permute.xlu0 %12561
    %12563 = vrot.lane.b32.xlu0 %v12508, 56
    %v12564 = vpop.permute.xlu0 %12563
    %12565 = vrot.lane.b32.xlu0 %v12509, 56
    %v12566 = vpop.permute.xlu0 %12565
    %12567 = vrot.lane.b32.xlu0 %v12510, 56
    %v12568 = vpop.permute.xlu0 %12567
    %12569 = vrot.lane.b32.xlu0 %v12511, 56
    %v12570 = vpop.permute.xlu0 %12569
    %12571 = vrot.lane.b32.xlu0 %v12512, 56
    %v12572 = vpop.permute.xlu0 %12571
    %12573 = vrot.lane.b32.xlu0 %v12513, 56
    %v12574 = vpop.permute.xlu0 %12573
    %12575 = vrot.lane.b32.xlu0 %v12514, 56
    %v12576 = vpop.permute.xlu0 %12575
    %12577 = vrot.lane.b32.xlu0 %v12515, 56
    %v12578 = vpop.permute.xlu0 %12577
    %12579 = vrot.lane.b32.xlu0 %v12516, 56
    %v12580 = vpop.permute.xlu0 %12579
    %v12581 = vunpack.c.l.b16 %v10730
    %v12582 = vunpack.c.l.b16 %v10738
    %v12583 = vunpack.c.l.b16 %v10744
    %v12584 = vunpack.c.l.b16 %v10752
    %v12585 = vunpack.c.l.b16 %v10758
    %v12586 = vunpack.c.l.b16 %v10766
    %v12587 = vunpack.c.l.b16 %v10772
    %v12588 = vunpack.c.l.b16 %v10780
    %v12589 = vunpack.c.l.b16 %v10786
    %v12590 = vunpack.c.l.b16 %v10794
    %v12591 = vunpack.c.l.b16 %v10800
    %v12592 = vunpack.c.l.b16 %v10808
    %v12593 = vunpack.c.l.b16 %v10814
    %v12594 = vunpack.c.l.b16 %v10822
    %v12595 = vunpack.c.l.b16 %v10828
    %v12596 = vunpack.c.l.b16 %v10836
    %v12597 = vunpack.c.l.b16 %v10842
    %v12598 = vunpack.c.l.b16 %v10850
    %v12599 = vunpack.c.l.b16 %v10856
    %v12600 = vunpack.c.l.b16 %v10864
    %v12601 = vunpack.c.l.b16 %v10870
    %v12602 = vunpack.c.l.b16 %v10878
    %v12603 = vunpack.c.l.b16 %v10884
    %v12604 = vunpack.c.l.b16 %v10892
    %v12605 = vunpack.c.l.b16 %v10898
    %v12606 = vunpack.c.l.b16 %v10906
    %v12607 = vunpack.c.l.b16 %v10912
    %v12608 = vunpack.c.l.b16 %v10920
    %v12609 = vunpack.c.l.b16 %v10926
    %v12610 = vunpack.c.l.b16 %v10934
    %v12611 = vunpack.c.l.b16 %v10940
    %v12612 = vunpack.c.l.b16 %v10948
    %v12613 = vunpack.c.l.b16 %v10954
    %v12614 = vunpack.c.l.b16 %v10962
    %v12615 = vunpack.c.l.b16 %v10968
    %v12616 = vunpack.c.l.b16 %v10976
    %v12617 = vunpack.c.l.b16 %v10982
    %v12618 = vunpack.c.l.b16 %v10990
    %v12619 = vunpack.c.l.b16 %v10996
    %v12620 = vunpack.c.l.b16 %v11004
    %v12621 = vunpack.c.l.b16 %v11010
    %v12622 = vunpack.c.l.b16 %v11018
    %v12623 = vunpack.c.l.b16 %v11024
    %v12624 = vunpack.c.l.b16 %v11032
    %v12625 = vunpack.c.l.b16 %v11038
    %v12626 = vunpack.c.l.b16 %v11046
    %v12627 = vunpack.c.l.b16 %v11052
    %v12628 = vunpack.c.l.b16 %v11060
    %v12629 = vunpack.c.l.b16 %v11066
    %v12630 = vunpack.c.l.b16 %v11074
    %v12631 = vunpack.c.l.b16 %v11080
    %v12632 = vunpack.c.l.b16 %v11088
    %v12633 = vunpack.c.l.b16 %v11094
    %v12634 = vunpack.c.l.b16 %v11102
    %v12635 = vunpack.c.l.b16 %v11108
    %v12636 = vunpack.c.l.b16 %v11116
    %v12637 = vunpack.c.l.b16 %v11122
    %v12638 = vunpack.c.l.b16 %v11130
    %v12639 = vunpack.c.l.b16 %v11136
    %v12640 = vunpack.c.l.b16 %v11144
    %v12641 = vunpack.c.l.b16 %v11150
    %v12642 = vunpack.c.l.b16 %v11158
    %v12643 = vunpack.c.l.b16 %v11164
    %v12644 = vunpack.c.l.b16 %v11172
    %v12645 = vpack.c.b16 %v12582, %v12581
    %v12646 = vpack.c.b16 %v12584, %v12583
    %v12647 = vpack.c.b16 %v12586, %v12585
    %v12648 = vpack.c.b16 %v12588, %v12587
    %v12649 = vpack.c.b16 %v12590, %v12589
    %v12650 = vpack.c.b16 %v12592, %v12591
    %v12651 = vpack.c.b16 %v12594, %v12593
    %v12652 = vpack.c.b16 %v12596, %v12595
    %v12653 = vpack.c.b16 %v12598, %v12597
    %v12654 = vpack.c.b16 %v12600, %v12599
    %v12655 = vpack.c.b16 %v12602, %v12601
    %v12656 = vpack.c.b16 %v12604, %v12603
    %v12657 = vpack.c.b16 %v12606, %v12605
    %v12658 = vpack.c.b16 %v12608, %v12607
    %v12659 = vpack.c.b16 %v12610, %v12609
    %v12660 = vpack.c.b16 %v12612, %v12611
    %v12661 = vpack.c.b16 %v12614, %v12613
    %v12662 = vpack.c.b16 %v12616, %v12615
    %v12663 = vpack.c.b16 %v12618, %v12617
    %v12664 = vpack.c.b16 %v12620, %v12619
    %v12665 = vpack.c.b16 %v12622, %v12621
    %v12666 = vpack.c.b16 %v12624, %v12623
    %v12667 = vpack.c.b16 %v12626, %v12625
    %v12668 = vpack.c.b16 %v12628, %v12627
    %v12669 = vpack.c.b16 %v12630, %v12629
    %v12670 = vpack.c.b16 %v12632, %v12631
    %v12671 = vpack.c.b16 %v12634, %v12633
    %v12672 = vpack.c.b16 %v12636, %v12635
    %v12673 = vpack.c.b16 %v12638, %v12637
    %v12674 = vpack.c.b16 %v12640, %v12639
    %v12675 = vpack.c.b16 %v12642, %v12641
    %v12676 = vpack.c.b16 %v12644, %v12643
    %12677 = vrot.lane.b32.xlu0 %v12645, 64
    %v12678 = vpop.permute.xlu0 %12677
    %12679 = vrot.lane.b32.xlu0 %v12646, 64
    %v12680 = vpop.permute.xlu0 %12679
    %12681 = vrot.lane.b32.xlu0 %v12647, 64
    %v12682 = vpop.permute.xlu0 %12681
    %12683 = vrot.lane.b32.xlu0 %v12648, 64
    %v12684 = vpop.permute.xlu0 %12683
    %12685 = vrot.lane.b32.xlu0 %v12649, 64
    %v12686 = vpop.permute.xlu0 %12685
    %12687 = vrot.lane.b32.xlu0 %v12650, 64
    %v12688 = vpop.permute.xlu0 %12687
    %12689 = vrot.lane.b32.xlu0 %v12651, 64
    %v12690 = vpop.permute.xlu0 %12689
    %12691 = vrot.lane.b32.xlu0 %v12652, 64
    %v12692 = vpop.permute.xlu0 %12691
    %12693 = vrot.lane.b32.xlu0 %v12653, 64
    %v12694 = vpop.permute.xlu0 %12693
    %12695 = vrot.lane.b32.xlu0 %v12654, 64
    %v12696 = vpop.permute.xlu0 %12695
    %12697 = vrot.lane.b32.xlu0 %v12655, 64
    %v12698 = vpop.permute.xlu0 %12697
    %12699 = vrot.lane.b32.xlu0 %v12656, 64
    %v12700 = vpop.permute.xlu0 %12699
    %12701 = vrot.lane.b32.xlu0 %v12657, 64
    %v12702 = vpop.permute.xlu0 %12701
    %12703 = vrot.lane.b32.xlu0 %v12658, 64
    %v12704 = vpop.permute.xlu0 %12703
    %12705 = vrot.lane.b32.xlu0 %v12659, 64
    %v12706 = vpop.permute.xlu0 %12705
    %12707 = vrot.lane.b32.xlu0 %v12660, 64
    %v12708 = vpop.permute.xlu0 %12707
    %12709 = vrot.lane.b32.xlu0 %v12661, 64
    %v12710 = vpop.permute.xlu0 %12709
    %12711 = vrot.lane.b32.xlu0 %v12662, 64
    %v12712 = vpop.permute.xlu0 %12711
    %12713 = vrot.lane.b32.xlu0 %v12663, 64
    %v12714 = vpop.permute.xlu0 %12713
    %12715 = vrot.lane.b32.xlu0 %v12664, 64
    %v12716 = vpop.permute.xlu0 %12715
    %12717 = vrot.lane.b32.xlu0 %v12665, 64
    %v12718 = vpop.permute.xlu0 %12717
    %12719 = vrot.lane.b32.xlu0 %v12666, 64
    %v12720 = vpop.permute.xlu0 %12719
    %12721 = vrot.lane.b32.xlu0 %v12667, 64
    %v12722 = vpop.permute.xlu0 %12721
    %12723 = vrot.lane.b32.xlu0 %v12668, 64
    %v12724 = vpop.permute.xlu0 %12723
    %12725 = vrot.lane.b32.xlu0 %v12669, 64
    %v12726 = vpop.permute.xlu0 %12725
    %12727 = vrot.lane.b32.xlu0 %v12670, 64
    %v12728 = vpop.permute.xlu0 %12727
    %12729 = vrot.lane.b32.xlu0 %v12671, 64
    %v12730 = vpop.permute.xlu0 %12729
    %12731 = vrot.lane.b32.xlu0 %v12672, 64
    %v12732 = vpop.permute.xlu0 %12731
    %12733 = vrot.lane.b32.xlu0 %v12673, 64
    %v12734 = vpop.permute.xlu0 %12733
    %12735 = vrot.lane.b32.xlu0 %v12674, 64
    %v12736 = vpop.permute.xlu0 %12735
    %12737 = vrot.lane.b32.xlu0 %v12675, 64
    %v12738 = vpop.permute.xlu0 %12737
    %12739 = vrot.lane.b32.xlu0 %v12676, 64
    %v12740 = vpop.permute.xlu0 %12739
    %v12743 = vsel %vm5888, %v11237, %v11430
    %v12746 = vsel %vm5888, %v11238, %v11432
    %v12749 = vsel %vm5888, %v11239, %v11434
    %v12752 = vsel %vm5888, %v11240, %v11436
    %v12755 = vsel %vm5888, %v11241, %v11438
    %v12758 = vsel %vm5888, %v11242, %v11440
    %v12761 = vsel %vm5888, %v11243, %v11442
    %v12764 = vsel %vm5888, %v11244, %v11444
    %v12767 = vsel %vm5888, %v11245, %v11446
    %v12770 = vsel %vm5888, %v11246, %v11448
    %v12773 = vsel %vm5888, %v11247, %v11450
    %v12776 = vsel %vm5888, %v11248, %v11452
    %v12779 = vsel %vm5888, %v11249, %v11454
    %v12782 = vsel %vm5888, %v11250, %v11456
    %v12785 = vsel %vm5888, %v11251, %v11458
    %v12788 = vsel %vm5888, %v11252, %v11460
    %v12791 = vsel %vm5888, %v11253, %v11462
    %v12794 = vsel %vm5888, %v11254, %v11464
    %v12797 = vsel %vm5888, %v11255, %v11466
    %v12800 = vsel %vm5888, %v11256, %v11468
    %v12803 = vsel %vm5888, %v11257, %v11470
    %v12806 = vsel %vm5888, %v11258, %v11472
    %v12809 = vsel %vm5888, %v11259, %v11474
    %v12812 = vsel %vm5888, %v11260, %v11476
    %v12815 = vsel %vm5888, %v11261, %v11478
    %v12818 = vsel %vm5888, %v11262, %v11480
    %v12821 = vsel %vm5888, %v11263, %v11482
    %v12824 = vsel %vm5888, %v11264, %v11484
    %v12827 = vsel %vm5888, %v11265, %v11486
    %v12830 = vsel %vm5888, %v11266, %v11488
    %v12833 = vsel %vm5888, %v11267, %v11490
    %v12836 = vsel %vm5888, %v11268, %v11492
    %v12838 = vsel %vm6018, %v12743, %v11590
    %v12840 = vsel %vm6018, %v12746, %v11592
    %v12842 = vsel %vm6018, %v12749, %v11594
    %v12844 = vsel %vm6018, %v12752, %v11596
    %v12846 = vsel %vm6018, %v12755, %v11598
    %v12848 = vsel %vm6018, %v12758, %v11600
    %v12850 = vsel %vm6018, %v12761, %v11602
    %v12852 = vsel %vm6018, %v12764, %v11604
    %v12854 = vsel %vm6018, %v12767, %v11606
    %v12856 = vsel %vm6018, %v12770, %v11608
    %v12858 = vsel %vm6018, %v12773, %v11610
    %v12860 = vsel %vm6018, %v12776, %v11612
    %v12862 = vsel %vm6018, %v12779, %v11614
    %v12864 = vsel %vm6018, %v12782, %v11616
    %v12866 = vsel %vm6018, %v12785, %v11618
    %v12868 = vsel %vm6018, %v12788, %v11620
    %v12870 = vsel %vm6018, %v12791, %v11622
    %v12872 = vsel %vm6018, %v12794, %v11624
    %v12874 = vsel %vm6018, %v12797, %v11626
    %v12876 = vsel %vm6018, %v12800, %v11628
    %v12878 = vsel %vm6018, %v12803, %v11630
    %v12880 = vsel %vm6018, %v12806, %v11632
    %v12882 = vsel %vm6018, %v12809, %v11634
    %v12884 = vsel %vm6018, %v12812, %v11636
    %v12886 = vsel %vm6018, %v12815, %v11638
    %v12888 = vsel %vm6018, %v12818, %v11640
    %v12890 = vsel %vm6018, %v12821, %v11642
    %v12892 = vsel %vm6018, %v12824, %v11644
    %v12894 = vsel %vm6018, %v12827, %v11646
    %v12896 = vsel %vm6018, %v12830, %v11648
    %v12898 = vsel %vm6018, %v12833, %v11650
    %v12900 = vsel %vm6018, %v12836, %v11652
    %v12902 = vsel %vm6148, %v12838, %v11750
    %v12904 = vsel %vm6148, %v12840, %v11752
    %v12906 = vsel %vm6148, %v12842, %v11754
    %v12908 = vsel %vm6148, %v12844, %v11756
    %v12910 = vsel %vm6148, %v12846, %v11758
    %v12912 = vsel %vm6148, %v12848, %v11760
    %v12914 = vsel %vm6148, %v12850, %v11762
    %v12916 = vsel %vm6148, %v12852, %v11764
    %v12918 = vsel %vm6148, %v12854, %v11766
    %v12920 = vsel %vm6148, %v12856, %v11768
    %v12922 = vsel %vm6148, %v12858, %v11770
    %v12924 = vsel %vm6148, %v12860, %v11772
    %v12926 = vsel %vm6148, %v12862, %v11774
    %v12928 = vsel %vm6148, %v12864, %v11776
    %v12930 = vsel %vm6148, %v12866, %v11778
    %v12932 = vsel %vm6148, %v12868, %v11780
    %v12934 = vsel %vm6148, %v12870, %v11782
    %v12936 = vsel %vm6148, %v12872, %v11784
    %v12938 = vsel %vm6148, %v12874, %v11786
    %v12940 = vsel %vm6148, %v12876, %v11788
    %v12942 = vsel %vm6148, %v12878, %v11790
    %v12944 = vsel %vm6148, %v12880, %v11792
    %v12946 = vsel %vm6148, %v12882, %v11794
    %v12948 = vsel %vm6148, %v12884, %v11796
    %v12950 = vsel %vm6148, %v12886, %v11798
    %v12952 = vsel %vm6148, %v12888, %v11800
    %v12954 = vsel %vm6148, %v12890, %v11802
    %v12956 = vsel %vm6148, %v12892, %v11804
    %v12958 = vsel %vm6148, %v12894, %v11806
    %v12960 = vsel %vm6148, %v12896, %v11808
    %v12962 = vsel %vm6148, %v12898, %v11810
    %v12964 = vsel %vm6148, %v12900, %v11812
    %v12966 = vsel %vm6278, %v12902, %v11974
    %v12968 = vsel %vm6278, %v12904, %v11976
    %v12970 = vsel %vm6278, %v12906, %v11978
    %v12972 = vsel %vm6278, %v12908, %v11980
    %v12974 = vsel %vm6278, %v12910, %v11982
    %v12976 = vsel %vm6278, %v12912, %v11984
    %v12978 = vsel %vm6278, %v12914, %v11986
    %v12980 = vsel %vm6278, %v12916, %v11988
    %v12982 = vsel %vm6278, %v12918, %v11990
    %v12984 = vsel %vm6278, %v12920, %v11992
    %v12986 = vsel %vm6278, %v12922, %v11994
    %v12988 = vsel %vm6278, %v12924, %v11996
    %v12990 = vsel %vm6278, %v12926, %v11998
    %v12992 = vsel %vm6278, %v12928, %v12000
    %v12994 = vsel %vm6278, %v12930, %v12002
    %v12996 = vsel %vm6278, %v12932, %v12004
    %v12998 = vsel %vm6278, %v12934, %v12006
    %v13000 = vsel %vm6278, %v12936, %v12008
    %v13002 = vsel %vm6278, %v12938, %v12010
    %v13004 = vsel %vm6278, %v12940, %v12012
    %v13006 = vsel %vm6278, %v12942, %v12014
    %v13008 = vsel %vm6278, %v12944, %v12016
    %v13010 = vsel %vm6278, %v12946, %v12018
    %v13012 = vsel %vm6278, %v12948, %v12020
    %v13014 = vsel %vm6278, %v12950, %v12022
    %v13016 = vsel %vm6278, %v12952, %v12024
    %v13018 = vsel %vm6278, %v12954, %v12026
    %v13020 = vsel %vm6278, %v12956, %v12028
    %v13022 = vsel %vm6278, %v12958, %v12030
    %v13024 = vsel %vm6278, %v12960, %v12032
    %v13026 = vsel %vm6278, %v12962, %v12034
    %v13028 = vsel %vm6278, %v12964, %v12036
    %vm13029 = vcmask 326656
    %v13031 = vsel %vm13029, %v12966, %v12134
    %v13033 = vsel %vm13029, %v12968, %v12136
    %v13035 = vsel %vm13029, %v12970, %v12138
    %v13037 = vsel %vm13029, %v12972, %v12140
    %v13039 = vsel %vm13029, %v12974, %v12142
    %v13041 = vsel %vm13029, %v12976, %v12144
    %v13043 = vsel %vm13029, %v12978, %v12146
    %v13045 = vsel %vm13029, %v12980, %v12148
    %v13047 = vsel %vm13029, %v12982, %v12150
    %v13049 = vsel %vm13029, %v12984, %v12152
    %v13051 = vsel %vm13029, %v12986, %v12154
    %v13053 = vsel %vm13029, %v12988, %v12156
    %v13055 = vsel %vm13029, %v12990, %v12158
    %v13057 = vsel %vm13029, %v12992, %v12160
    %v13059 = vsel %vm13029, %v12994, %v12162
    %v13061 = vsel %vm13029, %v12996, %v12164
    %v13063 = vsel %vm13029, %v12998, %v12166
    %v13065 = vsel %vm13029, %v13000, %v12168
    %v13067 = vsel %vm13029, %v13002, %v12170
    %v13069 = vsel %vm13029, %v13004, %v12172
    %v13071 = vsel %vm13029, %v13006, %v12174
    %v13073 = vsel %vm13029, %v13008, %v12176
    %v13075 = vsel %vm13029, %v13010, %v12178
    %v13077 = vsel %vm13029, %v13012, %v12180
    %v13079 = vsel %vm13029, %v13014, %v12182
    %v13081 = vsel %vm13029, %v13016, %v12184
    %v13083 = vsel %vm13029, %v13018, %v12186
    %v13085 = vsel %vm13029, %v13020, %v12188
    %v13087 = vsel %vm13029, %v13022, %v12190
    %v13089 = vsel %vm13029, %v13024, %v12192
    %v13091 = vsel %vm13029, %v13026, %v12194
    %v13093 = vsel %vm13029, %v13028, %v12196
    %vm13094 = vcmask 392192
    %v13096 = vsel %vm13094, %v13031, %v12294
    %v13098 = vsel %vm13094, %v13033, %v12296
    %v13100 = vsel %vm13094, %v13035, %v12298
    %v13102 = vsel %vm13094, %v13037, %v12300
    %v13104 = vsel %vm13094, %v13039, %v12302
    %v13106 = vsel %vm13094, %v13041, %v12304
    %v13108 = vsel %vm13094, %v13043, %v12306
    %v13110 = vsel %vm13094, %v13045, %v12308
    %v13112 = vsel %vm13094, %v13047, %v12310
    %v13114 = vsel %vm13094, %v13049, %v12312
    %v13116 = vsel %vm13094, %v13051, %v12314
    %v13118 = vsel %vm13094, %v13053, %v12316
    %v13120 = vsel %vm13094, %v13055, %v12318
    %v13122 = vsel %vm13094, %v13057, %v12320
    %v13124 = vsel %vm13094, %v13059, %v12322
    %v13126 = vsel %vm13094, %v13061, %v12324
    %v13128 = vsel %vm13094, %v13063, %v12326
    %v13130 = vsel %vm13094, %v13065, %v12328
    %v13132 = vsel %vm13094, %v13067, %v12330
    %v13134 = vsel %vm13094, %v13069, %v12332
    %v13136 = vsel %vm13094, %v13071, %v12334
    %v13138 = vsel %vm13094, %v13073, %v12336
    %v13140 = vsel %vm13094, %v13075, %v12338
    %v13142 = vsel %vm13094, %v13077, %v12340
    %v13144 = vsel %vm13094, %v13079, %v12342
    %v13146 = vsel %vm13094, %v13081, %v12344
    %v13148 = vsel %vm13094, %v13083, %v12346
    %v13150 = vsel %vm13094, %v13085, %v12348
    %v13152 = vsel %vm13094, %v13087, %v12350
    %v13154 = vsel %vm13094, %v13089, %v12352
    %v13156 = vsel %vm13094, %v13091, %v12354
    %v13158 = vsel %vm13094, %v13093, %v12356
    %vm13159 = vcmask 457728
    %v13161 = vsel %vm13159, %v13096, %v12518
    %v13163 = vsel %vm13159, %v13098, %v12520
    %v13165 = vsel %vm13159, %v13100, %v12522
    %v13167 = vsel %vm13159, %v13102, %v12524
    %v13169 = vsel %vm13159, %v13104, %v12526
    %v13171 = vsel %vm13159, %v13106, %v12528
    %v13173 = vsel %vm13159, %v13108, %v12530
    %v13175 = vsel %vm13159, %v13110, %v12532
    %v13177 = vsel %vm13159, %v13112, %v12534
    %v13179 = vsel %vm13159, %v13114, %v12536
    %v13181 = vsel %vm13159, %v13116, %v12538
    %v13183 = vsel %vm13159, %v13118, %v12540
    %v13185 = vsel %vm13159, %v13120, %v12542
    %v13187 = vsel %vm13159, %v13122, %v12544
    %v13189 = vsel %vm13159, %v13124, %v12546
    %v13191 = vsel %vm13159, %v13126, %v12548
    %v13193 = vsel %vm13159, %v13128, %v12550
    %v13195 = vsel %vm13159, %v13130, %v12552
    %v13197 = vsel %vm13159, %v13132, %v12554
    %v13199 = vsel %vm13159, %v13134, %v12556
    %v13201 = vsel %vm13159, %v13136, %v12558
    %v13203 = vsel %vm13159, %v13138, %v12560
    %v13205 = vsel %vm13159, %v13140, %v12562
    %v13207 = vsel %vm13159, %v13142, %v12564
    %v13209 = vsel %vm13159, %v13144, %v12566
    %v13211 = vsel %vm13159, %v13146, %v12568
    %v13213 = vsel %vm13159, %v13148, %v12570
    %v13215 = vsel %vm13159, %v13150, %v12572
    %v13217 = vsel %vm13159, %v13152, %v12574
    %v13219 = vsel %vm13159, %v13154, %v12576
    %v13221 = vsel %vm13159, %v13156, %v12578
    %v13223 = vsel %vm13159, %v13158, %v12580
    %vm13224 = vcmask 523264
    %v13226 = vsel %vm13224, %v13161, %v12678
    %v13228 = vsel %vm13224, %v13163, %v12680
    %v13230 = vsel %vm13224, %v13165, %v12682
    %v13232 = vsel %vm13224, %v13167, %v12684
    %v13234 = vsel %vm13224, %v13169, %v12686
    %v13236 = vsel %vm13224, %v13171, %v12688
    %v13238 = vsel %vm13224, %v13173, %v12690
    %v13240 = vsel %vm13224, %v13175, %v12692
    %v13242 = vsel %vm13224, %v13177, %v12694
    %v13244 = vsel %vm13224, %v13179, %v12696
    %v13246 = vsel %vm13224, %v13181, %v12698
    %v13248 = vsel %vm13224, %v13183, %v12700
    %v13250 = vsel %vm13224, %v13185, %v12702
    %v13252 = vsel %vm13224, %v13187, %v12704
    %v13254 = vsel %vm13224, %v13189, %v12706
    %v13256 = vsel %vm13224, %v13191, %v12708
    %v13258 = vsel %vm13224, %v13193, %v12710
    %v13260 = vsel %vm13224, %v13195, %v12712
    %v13262 = vsel %vm13224, %v13197, %v12714
    %v13264 = vsel %vm13224, %v13199, %v12716
    %v13266 = vsel %vm13224, %v13201, %v12718
    %v13268 = vsel %vm13224, %v13203, %v12720
    %v13270 = vsel %vm13224, %v13205, %v12722
    %v13272 = vsel %vm13224, %v13207, %v12724
    %v13274 = vsel %vm13224, %v13209, %v12726
    %v13276 = vsel %vm13224, %v13211, %v12728
    %v13278 = vsel %vm13224, %v13213, %v12730
    %v13280 = vsel %vm13224, %v13215, %v12732
    %v13282 = vsel %vm13224, %v13217, %v12734
    %v13284 = vsel %vm13224, %v13219, %v12736
    %v13286 = vsel %vm13224, %v13221, %v12738
    %v13288 = vsel %vm13224, %v13223, %v12740
    %v13289 = vld [vmem:[%s3] sm:$0xf]
    %v13290 = vld [vmem:[%s3 + $0x4] sm:$0xf]
    %v13291 = vld [vmem:[%s3 + $0x8] sm:$0xf]
    %v13292 = vld [vmem:[%s3 + $0xc] sm:$0xf]
    %v13293 = vld [vmem:[%s3 + $0x10] sm:$0xf]
    %v13294 = vld [vmem:[%s3 + $0x14] sm:$0xf]
    %v13295 = vld [vmem:[%s3 + $0x18] sm:$0xf]
    %v13296 = vld [vmem:[%s3 + $0x1c] sm:$0xf]
    %v13297 = vld [vmem:[%s3 + $0x20] sm:$0xf]
    %v13298 = vld [vmem:[%s4] sm:$0x1]
    %v13300 = vlaneseq
    %v13301 = vshrl.u32 %v13300, 7
    %v13302 = vsub.s32 0, %v13301
    %v13303 = vrot.slane %v13298, %v13302
    %v13314 = vunpack.c.l.b16 %v13289
    %v13315 = vunpack.c.l.b16 %v13290
    %v13316 = vunpack.c.l.b16 %v13291
    %v13317 = vunpack.c.l.b16 %v13292
    %v13318 = vunpack.c.l.b16 %v13293
    %v13319 = vunpack.c.l.b16 %v13294
    %v13320 = vunpack.c.l.b16 %v13295
    %v13321 = vunpack.c.l.b16 %v13296
    %v13322 = vunpack.c.l.b16 %v13297
    %v13323 = vpack.c.b16 %v13315, %v13314
    %v13324 = vpack.c.b16 %v13317, %v13316
    %v13325 = vpack.c.b16 %v13319, %v13318
    %v13326 = vpack.c.b16 %v13321, %v13320
    %v13327 = vpack.c.b16 %v13322, %v13322
    %vm13332 = vcmask 588800
    %v13333 = vsel %vm13332, %v13226, 0
    %v13335 = vsel %vm13332, %v13228, 0
    %v13337 = vsel %vm13332, %v13230, 0
    %v13339 = vsel %vm13332, %v13232, 0
    %v13341 = vsel %vm13332, %v13234, 0
    %v13343 = vsel %vm13332, %v13236, 0
    %v13345 = vsel %vm13332, %v13238, 0
    %v13347 = vsel %vm13332, %v13240, 0
    %v13349 = vsel %vm13332, %v13242, 0
    %v13351 = vsel %vm13332, %v13244, 0
    %v13353 = vsel %vm13332, %v13246, 0
    %v13355 = vsel %vm13332, %v13248, 0
    %v13357 = vsel %vm13332, %v13250, 0
    %v13359 = vsel %vm13332, %v13252, 0
    %v13361 = vsel %vm13332, %v13254, 0
    %v13363 = vsel %vm13332, %v13256, 0
    %v13365 = vsel %vm13332, %v13258, 0
    %v13367 = vsel %vm13332, %v13260, 0
    %v13369 = vsel %vm13332, %v13262, 0
    %v13371 = vsel %vm13332, %v13264, 0
    %v13373 = vsel %vm13332, %v13266, 0
    %v13375 = vsel %vm13332, %v13268, 0
    %v13377 = vsel %vm13332, %v13270, 0
    %v13379 = vsel %vm13332, %v13272, 0
    %v13381 = vsel %vm13332, %v13274, 0
    %v13383 = vsel %vm13332, %v13276, 0
    %v13385 = vsel %vm13332, %v13278, 0
    %v13387 = vsel %vm13332, %v13280, 0
    %v13389 = vsel %vm13332, %v13282, 0
    %v13391 = vsel %vm13332, %v13284, 0
    %v13393 = vsel %vm13332, %v13286, 0
    %v13395 = vsel %vm13332, %v13288, 0
    %vm13397 = vcmask 1043456
    %v13399 = vsel %vm13397, %v13327, 0
    %13401 = vmatprep.subr.bf16.mxu0 0
    %13402 = vmatpush1.bf16.msra.mxu0 0
    %13403 = vmatprep.subr.bf16.mxu0 0
    %13404 = vmatpush1.bf16.msra.mxu0 0
    %13405 = vmatprep.subr.bf16.mxu0 0
    %13406 = vmatpush1.bf16.msra.mxu0 0
    %13407 = vmatprep.subr.bf16.mxu0 0
    %13408 = vmatpush1.bf16.msra.mxu0 %v13399
    %13409 = vmatprep.subr.bf16.mxu0 0
    %13410 = vmatpush1.bf16.msra.mxu0 %v13326
    %13411 = vmatprep.subr.bf16.mxu0 0
    %13412 = vmatpush1.bf16.msra.mxu0 %v13325
    %13413 = vmatprep.subr.bf16.mxu0 0
    %13414 = vmatpush1.bf16.msra.mxu0 %v13324
    %13415 = vmatprep.subr.bf16.mxu0 0
    %13416 = vmatpush1.bf16.msra.mxu0 %v13323
    %13417 = vmatprep.subr.bf16.mxu0 0
    %13418 = vmatpush2.bf16.msra.mxu0 0
    %13419 = vmatprep.subr.bf16.mxu0 0
    %13420 = vmatpush2.bf16.msra.mxu0 0
    %13421 = vmatprep.subr.bf16.mxu0 0
    %13422 = vmatpush2.bf16.msra.mxu0 0
    %13423 = vmatprep.subr.bf16.mxu0 0
    %13424 = vmatpush2.bf16.msra.mxu0 0
    %13425 = vmatprep.subr.bf16.mxu0 0
    %13426 = vmatpush2.bf16.msra.mxu0 0
    %13427 = vmatprep.subr.bf16.mxu0 0
    %13428 = vmatpush2.bf16.msra.mxu0 0
    %13429 = vmatprep.subr.bf16.mxu0 0
    %13430 = vmatpush2.bf16.msra.mxu0 0
    %13431 = vmatprep.subr.bf16.mxu0 0
    %13432 = vmatpush2.bf16.msra.mxu0 0
    %13433 = vmatprep.mubr.bf16.mxu0 0
    %13434 = vmatmul.mubr.bf16.gmra.mxu0 %v13333
    %v13435 = vpop.f32.mrf.mxu0
    %v13436 = vadd.f32 %v13303, %v13435
    %v13437 = vpop.f32.mrf.mxu0
    %v13438 = vpop.f32.mrf.mxu0
    %v13439 = vadd.f32 %v13303, %v13438
    %v13440 = vpop.f32.mrf.mxu0
    %13441 = vmatprep.mubr.bf16.mxu0 0
    %13442 = vmatmul.mubr.bf16.gmra.mxu0 %v13335
    %v13443 = vpop.f32.mrf.mxu0
    %v13444 = vadd.f32 %v13303, %v13443
    %v13445 = vpop.f32.mrf.mxu0
    %v13446 = vpop.f32.mrf.mxu0
    %v13447 = vadd.f32 %v13303, %v13446
    %v13448 = vpop.f32.mrf.mxu0
    %13449 = vmatprep.mubr.bf16.mxu0 0
    %13450 = vmatmul.mubr.bf16.gmra.mxu0 %v13337
    %v13451 = vpop.f32.mrf.mxu0
    %v13452 = vadd.f32 %v13303, %v13451
    %v13453 = vpop.f32.mrf.mxu0
    %v13454 = vpop.f32.mrf.mxu0
    %v13455 = vadd.f32 %v13303, %v13454
    %v13456 = vpop.f32.mrf.mxu0
    %13457 = vmatprep.mubr.bf16.mxu0 0
    %13458 = vmatmul.mubr.bf16.gmra.mxu0 %v13339
    %v13459 = vpop.f32.mrf.mxu0
    %v13460 = vadd.f32 %v13303, %v13459
    %v13461 = vpop.f32.mrf.mxu0
    %v13462 = vpop.f32.mrf.mxu0
    %v13463 = vadd.f32 %v13303, %v13462
    %v13464 = vpop.f32.mrf.mxu0
    %13465 = vmatprep.mubr.bf16.mxu0 0
    %13466 = vmatmul.mubr.bf16.gmra.mxu0 %v13341
    %v13467 = vpop.f32.mrf.mxu0
    %v13468 = vadd.f32 %v13303, %v13467
    %v13469 = vpop.f32.mrf.mxu0
    %v13470 = vpop.f32.mrf.mxu0
    %v13471 = vadd.f32 %v13303, %v13470
    %v13472 = vpop.f32.mrf.mxu0
    %13473 = vmatprep.mubr.bf16.mxu0 0
    %13474 = vmatmul.mubr.bf16.gmra.mxu0 %v13343
    %v13475 = vpop.f32.mrf.mxu0
    %v13476 = vadd.f32 %v13303, %v13475
    %v13477 = vpop.f32.mrf.mxu0
    %v13478 = vpop.f32.mrf.mxu0
    %v13479 = vadd.f32 %v13303, %v13478
    %v13480 = vpop.f32.mrf.mxu0
    %13481 = vmatprep.mubr.bf16.mxu0 0
    %13482 = vmatmul.mubr.bf16.gmra.mxu0 %v13345
    %v13483 = vpop.f32.mrf.mxu0
    %v13484 = vadd.f32 %v13303, %v13483
    %v13485 = vpop.f32.mrf.mxu0
    %v13486 = vpop.f32.mrf.mxu0
    %v13487 = vadd.f32 %v13303, %v13486
    %v13488 = vpop.f32.mrf.mxu0
    %13489 = vmatprep.mubr.bf16.mxu0 0
    %13490 = vmatmul.mubr.bf16.gmra.mxu0 %v13347
    %v13491 = vpop.f32.mrf.mxu0
    %v13492 = vadd.f32 %v13303, %v13491
    %v13493 = vpop.f32.mrf.mxu0
    %v13494 = vpop.f32.mrf.mxu0
    %v13495 = vadd.f32 %v13303, %v13494
    %v13496 = vpop.f32.mrf.mxu0
    %13497 = vmatprep.mubr.bf16.mxu0 0
    %13498 = vmatmul.mubr.bf16.gmra.mxu0 %v13349
    %v13499 = vpop.f32.mrf.mxu0
    %v13500 = vadd.f32 %v13303, %v13499
    %v13501 = vpop.f32.mrf.mxu0
    %v13502 = vpop.f32.mrf.mxu0
    %v13503 = vadd.f32 %v13303, %v13502
    %v13504 = vpop.f32.mrf.mxu0
    %13505 = vmatprep.mubr.bf16.mxu0 0
    %13506 = vmatmul.mubr.bf16.gmra.mxu0 %v13351
    %v13507 = vpop.f32.mrf.mxu0
    %v13508 = vadd.f32 %v13303, %v13507
    %v13509 = vpop.f32.mrf.mxu0
    %v13510 = vpop.f32.mrf.mxu0
    %v13511 = vadd.f32 %v13303, %v13510
    %v13512 = vpop.f32.mrf.mxu0
    %13513 = vmatprep.mubr.bf16.mxu0 0
    %13514 = vmatmul.mubr.bf16.gmra.mxu0 %v13353
    %v13515 = vpop.f32.mrf.mxu0
    %v13516 = vadd.f32 %v13303, %v13515
    %v13517 = vpop.f32.mrf.mxu0
    %v13518 = vpop.f32.mrf.mxu0
    %v13519 = vadd.f32 %v13303, %v13518
    %v13520 = vpop.f32.mrf.mxu0
    %13521 = vmatprep.mubr.bf16.mxu0 0
    %13522 = vmatmul.mubr.bf16.gmra.mxu0 %v13355
    %v13523 = vpop.f32.mrf.mxu0
    %v13524 = vadd.f32 %v13303, %v13523
    %v13525 = vpop.f32.mrf.mxu0
    %v13526 = vpop.f32.mrf.mxu0
    %v13527 = vadd.f32 %v13303, %v13526
    %v13528 = vpop.f32.mrf.mxu0
    %13529 = vmatprep.mubr.bf16.mxu0 0
    %13530 = vmatmul.mubr.bf16.gmra.mxu0 %v13357
    %v13531 = vpop.f32.mrf.mxu0
    %v13532 = vadd.f32 %v13303, %v13531
    %v13533 = vpop.f32.mrf.mxu0
    %v13534 = vpop.f32.mrf.mxu0
    %v13535 = vadd.f32 %v13303, %v13534
    %v13536 = vpop.f32.mrf.mxu0
    %13537 = vmatprep.mubr.bf16.mxu0 0
    %13538 = vmatmul.mubr.bf16.gmra.mxu0 %v13359
    %v13539 = vpop.f32.mrf.mxu0
    %v13540 = vadd.f32 %v13303, %v13539
    %v13541 = vpop.f32.mrf.mxu0
    %v13542 = vpop.f32.mrf.mxu0
    %v13543 = vadd.f32 %v13303, %v13542
    %v13544 = vpop.f32.mrf.mxu0
    %13545 = vmatprep.mubr.bf16.mxu0 0
    %13546 = vmatmul.mubr.bf16.gmra.mxu0 %v13361
    %v13547 = vpop.f32.mrf.mxu0
    %v13548 = vadd.f32 %v13303, %v13547
    %v13549 = vpop.f32.mrf.mxu0
    %v13550 = vpop.f32.mrf.mxu0
    %v13551 = vadd.f32 %v13303, %v13550
    %v13552 = vpop.f32.mrf.mxu0
    %13553 = vmatprep.mubr.bf16.mxu0 0
    %13554 = vmatmul.mubr.bf16.gmra.mxu0 %v13363
    %v13555 = vpop.f32.mrf.mxu0
    %v13556 = vadd.f32 %v13303, %v13555
    %v13557 = vpop.f32.mrf.mxu0
    %v13558 = vpop.f32.mrf.mxu0
    %v13559 = vadd.f32 %v13303, %v13558
    %v13560 = vpop.f32.mrf.mxu0
    %13561 = vmatprep.mubr.bf16.mxu0 0
    %13562 = vmatmul.mubr.bf16.gmra.mxu0 %v13365
    %v13563 = vpop.f32.mrf.mxu0
    %v13564 = vadd.f32 %v13303, %v13563
    %v13565 = vpop.f32.mrf.mxu0
    %v13566 = vpop.f32.mrf.mxu0
    %v13567 = vadd.f32 %v13303, %v13566
    %v13568 = vpop.f32.mrf.mxu0
    %13569 = vmatprep.mubr.bf16.mxu0 0
    %13570 = vmatmul.mubr.bf16.gmra.mxu0 %v13367
    %v13571 = vpop.f32.mrf.mxu0
    %v13572 = vadd.f32 %v13303, %v13571
    %v13573 = vpop.f32.mrf.mxu0
    %v13574 = vpop.f32.mrf.mxu0
    %v13575 = vadd.f32 %v13303, %v13574
    %v13576 = vpop.f32.mrf.mxu0
    %13577 = vmatprep.mubr.bf16.mxu0 0
    %13578 = vmatmul.mubr.bf16.gmra.mxu0 %v13369
    %v13579 = vpop.f32.mrf.mxu0
    %v13580 = vadd.f32 %v13303, %v13579
    %v13581 = vpop.f32.mrf.mxu0
    %v13582 = vpop.f32.mrf.mxu0
    %v13583 = vadd.f32 %v13303, %v13582
    %v13584 = vpop.f32.mrf.mxu0
    %13585 = vmatprep.mubr.bf16.mxu0 0
    %13586 = vmatmul.mubr.bf16.gmra.mxu0 %v13371
    %v13587 = vpop.f32.mrf.mxu0
    %v13588 = vadd.f32 %v13303, %v13587
    %v13589 = vpop.f32.mrf.mxu0
    %v13590 = vpop.f32.mrf.mxu0
    %v13591 = vadd.f32 %v13303, %v13590
    %v13592 = vpop.f32.mrf.mxu0
    %13593 = vmatprep.mubr.bf16.mxu0 0
    %13594 = vmatmul.mubr.bf16.gmra.mxu0 %v13373
    %v13595 = vpop.f32.mrf.mxu0
    %v13596 = vadd.f32 %v13303, %v13595
    %v13597 = vpop.f32.mrf.mxu0
    %v13598 = vpop.f32.mrf.mxu0
    %v13599 = vadd.f32 %v13303, %v13598
    %v13600 = vpop.f32.mrf.mxu0
    %13601 = vmatprep.mubr.bf16.mxu0 0
    %13602 = vmatmul.mubr.bf16.gmra.mxu0 %v13375
    %v13603 = vpop.f32.mrf.mxu0
    %v13604 = vadd.f32 %v13303, %v13603
    %v13605 = vpop.f32.mrf.mxu0
    %v13606 = vpop.f32.mrf.mxu0
    %v13607 = vadd.f32 %v13303, %v13606
    %v13608 = vpop.f32.mrf.mxu0
    %13609 = vmatprep.mubr.bf16.mxu0 0
    %13610 = vmatmul.mubr.bf16.gmra.mxu0 %v13377
    %v13611 = vpop.f32.mrf.mxu0
    %v13612 = vadd.f32 %v13303, %v13611
    %v13613 = vpop.f32.mrf.mxu0
    %v13614 = vpop.f32.mrf.mxu0
    %v13615 = vadd.f32 %v13303, %v13614
    %v13616 = vpop.f32.mrf.mxu0
    %13617 = vmatprep.mubr.bf16.mxu0 0
    %13618 = vmatmul.mubr.bf16.gmra.mxu0 %v13379
    %v13619 = vpop.f32.mrf.mxu0
    %v13620 = vadd.f32 %v13303, %v13619
    %v13621 = vpop.f32.mrf.mxu0
    %v13622 = vpop.f32.mrf.mxu0
    %v13623 = vadd.f32 %v13303, %v13622
    %v13624 = vpop.f32.mrf.mxu0
    %13625 = vmatprep.mubr.bf16.mxu0 0
    %13626 = vmatmul.mubr.bf16.gmra.mxu0 %v13381
    %v13627 = vpop.f32.mrf.mxu0
    %v13628 = vadd.f32 %v13303, %v13627
    %v13629 = vpop.f32.mrf.mxu0
    %v13630 = vpop.f32.mrf.mxu0
    %v13631 = vadd.f32 %v13303, %v13630
    %v13632 = vpop.f32.mrf.mxu0
    %13633 = vmatprep.mubr.bf16.mxu0 0
    %13634 = vmatmul.mubr.bf16.gmra.mxu0 %v13383
    %v13635 = vpop.f32.mrf.mxu0
    %v13636 = vadd.f32 %v13303, %v13635
    %v13637 = vpop.f32.mrf.mxu0
    %v13638 = vpop.f32.mrf.mxu0
    %v13639 = vadd.f32 %v13303, %v13638
    %v13640 = vpop.f32.mrf.mxu0
    %13641 = vmatprep.mubr.bf16.mxu0 0
    %13642 = vmatmul.mubr.bf16.gmra.mxu0 %v13385
    %v13643 = vpop.f32.mrf.mxu0
    %v13644 = vadd.f32 %v13303, %v13643
    %v13645 = vpop.f32.mrf.mxu0
    %v13646 = vpop.f32.mrf.mxu0
    %v13647 = vadd.f32 %v13303, %v13646
    %v13648 = vpop.f32.mrf.mxu0
    %13649 = vmatprep.mubr.bf16.mxu0 0
    %13650 = vmatmul.mubr.bf16.gmra.mxu0 %v13387
    %v13651 = vpop.f32.mrf.mxu0
    %v13652 = vadd.f32 %v13303, %v13651
    %v13653 = vpop.f32.mrf.mxu0
    %v13654 = vpop.f32.mrf.mxu0
    %v13655 = vadd.f32 %v13303, %v13654
    %v13656 = vpop.f32.mrf.mxu0
    %13657 = vmatprep.mubr.bf16.mxu0 0
    %13658 = vmatmul.mubr.bf16.gmra.mxu0 %v13389
    %v13659 = vpop.f32.mrf.mxu0
    %v13660 = vadd.f32 %v13303, %v13659
    %v13661 = vpop.f32.mrf.mxu0
    %v13662 = vpop.f32.mrf.mxu0
    %v13663 = vadd.f32 %v13303, %v13662
    %v13664 = vpop.f32.mrf.mxu0
    %13665 = vmatprep.mubr.bf16.mxu0 0
    %13666 = vmatmul.mubr.bf16.gmra.mxu0 %v13391
    %v13667 = vpop.f32.mrf.mxu0
    %v13668 = vadd.f32 %v13303, %v13667
    %v13669 = vpop.f32.mrf.mxu0
    %v13670 = vpop.f32.mrf.mxu0
    %v13671 = vadd.f32 %v13303, %v13670
    %v13672 = vpop.f32.mrf.mxu0
    %13673 = vmatprep.mubr.bf16.mxu0 0
    %13674 = vmatmul.mubr.bf16.gmra.mxu0 %v13393
    %v13675 = vpop.f32.mrf.mxu0
    %v13676 = vadd.f32 %v13303, %v13675
    %v13677 = vpop.f32.mrf.mxu0
    %v13678 = vpop.f32.mrf.mxu0
    %v13679 = vadd.f32 %v13303, %v13678
    %v13680 = vpop.f32.mrf.mxu0
    %13681 = vmatprep.mubr.bf16.mxu0 0
    %13682 = vmatmul.mubr.bf16.gmra.mxu0 %v13395
    %v13683 = vpop.f32.mrf.mxu0
    %v13684 = vadd.f32 %v13303, %v13683
    %v13685 = vpop.f32.mrf.mxu0
    %v13686 = vpop.f32.mrf.mxu0
    %v13687 = vadd.f32 %v13303, %v13686
    %v13688 = vpop.f32.mrf.mxu0
    %13689 = vdwg.mxu0
    %v13690 = vmax.f32 %v13436, 0.0
    %v13691 = vmax.f32 %v13439, 0.0
    %v13692 = vmax.f32 %v13444, 0.0
    %v13693 = vmax.f32 %v13447, 0.0
    %v13694 = vmax.f32 %v13452, 0.0
    %v13695 = vmax.f32 %v13455, 0.0
    %v13696 = vmax.f32 %v13460, 0.0
    %v13697 = vmax.f32 %v13463, 0.0
    %v13698 = vmax.f32 %v13468, 0.0
    %v13699 = vmax.f32 %v13471, 0.0
    %v13700 = vmax.f32 %v13476, 0.0
    %v13701 = vmax.f32 %v13479, 0.0
    %v13702 = vmax.f32 %v13484, 0.0
    %v13703 = vmax.f32 %v13487, 0.0
    %v13704 = vmax.f32 %v13492, 0.0
    %v13705 = vmax.f32 %v13495, 0.0
    %v13706 = vmax.f32 %v13500, 0.0
    %v13707 = vmax.f32 %v13503, 0.0
    %v13708 = vmax.f32 %v13508, 0.0
    %v13709 = vmax.f32 %v13511, 0.0
    %v13710 = vmax.f32 %v13516, 0.0
    %v13711 = vmax.f32 %v13519, 0.0
    %v13712 = vmax.f32 %v13524, 0.0
    %v13713 = vmax.f32 %v13527, 0.0
    %v13714 = vmax.f32 %v13532, 0.0
    %v13715 = vmax.f32 %v13535, 0.0
    %v13716 = vmax.f32 %v13540, 0.0
    %v13717 = vmax.f32 %v13543, 0.0
    %v13718 = vmax.f32 %v13548, 0.0
    %v13719 = vmax.f32 %v13551, 0.0
    %v13720 = vmax.f32 %v13556, 0.0
    %v13721 = vmax.f32 %v13559, 0.0
    %v13722 = vmax.f32 %v13564, 0.0
    %v13723 = vmax.f32 %v13567, 0.0
    %v13724 = vmax.f32 %v13572, 0.0
    %v13725 = vmax.f32 %v13575, 0.0
    %v13726 = vmax.f32 %v13580, 0.0
    %v13727 = vmax.f32 %v13583, 0.0
    %v13728 = vmax.f32 %v13588, 0.0
    %v13729 = vmax.f32 %v13591, 0.0
    %v13730 = vmax.f32 %v13596, 0.0
    %v13731 = vmax.f32 %v13599, 0.0
    %v13732 = vmax.f32 %v13604, 0.0
    %v13733 = vmax.f32 %v13607, 0.0
    %v13734 = vmax.f32 %v13612, 0.0
    %v13735 = vmax.f32 %v13615, 0.0
    %v13736 = vmax.f32 %v13620, 0.0
    %v13737 = vmax.f32 %v13623, 0.0
    %v13738 = vmax.f32 %v13628, 0.0
    %v13739 = vmax.f32 %v13631, 0.0
    %v13740 = vmax.f32 %v13636, 0.0
    %v13741 = vmax.f32 %v13639, 0.0
    %v13742 = vmax.f32 %v13644, 0.0
    %v13743 = vmax.f32 %v13647, 0.0
    %v13744 = vmax.f32 %v13652, 0.0
    %v13745 = vmax.f32 %v13655, 0.0
    %v13746 = vmax.f32 %v13660, 0.0
    %v13747 = vmax.f32 %v13663, 0.0
    %v13748 = vmax.f32 %v13668, 0.0
    %v13749 = vmax.f32 %v13671, 0.0
    %v13750 = vmax.f32 %v13676, 0.0
    %v13751 = vmax.f32 %v13679, 0.0
    %v13752 = vmax.f32 %v13684, 0.0
    %v13753 = vmax.f32 %v13687, 0.0
    %v13754 = vsel %vm6018, %v13690, 0.0
    %v13755 = vsel %vm6018, %v13691, 0.0
    %v13756 = vadd.f32 %v13754, %v13755
    %v13757 = vsel %vm6018, %v13692, 0.0
    %v13758 = vadd.f32 %v13756, %v13757
    %v13759 = vsel %vm6018, %v13693, 0.0
    %v13760 = vadd.f32 %v13758, %v13759
    %v13761 = vsel %vm6018, %v13694, 0.0
    %v13762 = vadd.f32 %v13760, %v13761
    %v13763 = vsel %vm6018, %v13695, 0.0
    %v13764 = vadd.f32 %v13762, %v13763
    %v13765 = vsel %vm6018, %v13696, 0.0
    %v13766 = vadd.f32 %v13764, %v13765
    %v13767 = vsel %vm6018, %v13697, 0.0
    %v13768 = vadd.f32 %v13766, %v13767
    %v13769 = vsel %vm6018, %v13698, 0.0
    %v13770 = vadd.f32 %v13768, %v13769
    %v13771 = vsel %vm6018, %v13699, 0.0
    %v13772 = vadd.f32 %v13770, %v13771
    %v13773 = vsel %vm6018, %v13700, 0.0
    %v13774 = vadd.f32 %v13772, %v13773
    %v13775 = vsel %vm6018, %v13701, 0.0
    %v13776 = vadd.f32 %v13774, %v13775
    %v13777 = vsel %vm6018, %v13702, 0.0
    %v13778 = vadd.f32 %v13776, %v13777
    %v13779 = vsel %vm6018, %v13703, 0.0
    %v13780 = vadd.f32 %v13778, %v13779
    %v13781 = vsel %vm6018, %v13704, 0.0
    %v13782 = vadd.f32 %v13780, %v13781
    %v13783 = vsel %vm6018, %v13705, 0.0
    %v13784 = vadd.f32 %v13782, %v13783
    %v13785 = vsel %vm6018, %v13706, 0.0
    %v13786 = vadd.f32 %v13784, %v13785
    %v13787 = vsel %vm6018, %v13707, 0.0
    %v13788 = vadd.f32 %v13786, %v13787
    %v13789 = vsel %vm6018, %v13708, 0.0
    %v13790 = vadd.f32 %v13788, %v13789
    %v13791 = vsel %vm6018, %v13709, 0.0
    %v13792 = vadd.f32 %v13790, %v13791
    %v13793 = vsel %vm6018, %v13710, 0.0
    %v13794 = vadd.f32 %v13792, %v13793
    %v13795 = vsel %vm6018, %v13711, 0.0
    %v13796 = vadd.f32 %v13794, %v13795
    %v13797 = vsel %vm6018, %v13712, 0.0
    %v13798 = vadd.f32 %v13796, %v13797
    %v13799 = vsel %vm6018, %v13713, 0.0
    %v13800 = vadd.f32 %v13798, %v13799
    %v13801 = vsel %vm6018, %v13714, 0.0
    %v13802 = vadd.f32 %v13800, %v13801
    %v13803 = vsel %vm6018, %v13715, 0.0
    %v13804 = vadd.f32 %v13802, %v13803
    %v13805 = vsel %vm6018, %v13716, 0.0
    %v13806 = vadd.f32 %v13804, %v13805
    %v13807 = vsel %vm6018, %v13717, 0.0
    %v13808 = vadd.f32 %v13806, %v13807
    %v13809 = vsel %vm6018, %v13718, 0.0
    %v13810 = vadd.f32 %v13808, %v13809
    %v13811 = vsel %vm6018, %v13719, 0.0
    %v13812 = vadd.f32 %v13810, %v13811
    %v13813 = vsel %vm6018, %v13720, 0.0
    %v13814 = vadd.f32 %v13812, %v13813
    %v13815 = vsel %vm6018, %v13721, 0.0
    %v13816 = vadd.f32 %v13814, %v13815
    %v13817 = vrot.slane %v13816, 4
    %v13818 = vadd.f32 %v13816, %v13817
    %v13819 = vrot.slane %v13818, 2
    %v13820 = vadd.f32 %v13818, %v13819
    %v13821 = vrot.slane %v13820, 1
    %v13822 = vadd.f32 %v13820, %v13821
    %v13823 = vsel %vm6018, %v13722, 0.0
    %v13824 = vsel %vm6018, %v13723, 0.0
    %v13825 = vadd.f32 %v13823, %v13824
    %v13826 = vsel %vm6018, %v13724, 0.0
    %v13827 = vadd.f32 %v13825, %v13826
    %v13828 = vsel %vm6018, %v13725, 0.0
    %v13829 = vadd.f32 %v13827, %v13828
    %v13830 = vsel %vm6018, %v13726, 0.0
    %v13831 = vadd.f32 %v13829, %v13830
    %v13832 = vsel %vm6018, %v13727, 0.0
    %v13833 = vadd.f32 %v13831, %v13832
    %v13834 = vsel %vm6018, %v13728, 0.0
    %v13835 = vadd.f32 %v13833, %v13834
    %v13836 = vsel %vm6018, %v13729, 0.0
    %v13837 = vadd.f32 %v13835, %v13836
    %v13838 = vsel %vm6018, %v13730, 0.0
    %v13839 = vadd.f32 %v13837, %v13838
    %v13840 = vsel %vm6018, %v13731, 0.0
    %v13841 = vadd.f32 %v13839, %v13840
    %v13842 = vsel %vm6018, %v13732, 0.0
    %v13843 = vadd.f32 %v13841, %v13842
    %v13844 = vsel %vm6018, %v13733, 0.0
    %v13845 = vadd.f32 %v13843, %v13844
    %v13846 = vsel %vm6018, %v13734, 0.0
    %v13847 = vadd.f32 %v13845, %v13846
    %v13848 = vsel %vm6018, %v13735, 0.0
    %v13849 = vadd.f32 %v13847, %v13848
    %v13850 = vsel %vm6018, %v13736, 0.0
    %v13851 = vadd.f32 %v13849, %v13850
    %v13852 = vsel %vm6018, %v13737, 0.0
    %v13853 = vadd.f32 %v13851, %v13852
    %v13854 = vsel %vm6018, %v13738, 0.0
    %v13855 = vadd.f32 %v13853, %v13854
    %v13856 = vsel %vm6018, %v13739, 0.0
    %v13857 = vadd.f32 %v13855, %v13856
    %v13858 = vsel %vm6018, %v13740, 0.0
    %v13859 = vadd.f32 %v13857, %v13858
    %v13860 = vsel %vm6018, %v13741, 0.0
    %v13861 = vadd.f32 %v13859, %v13860
    %v13862 = vsel %vm6018, %v13742, 0.0
    %v13863 = vadd.f32 %v13861, %v13862
    %v13864 = vsel %vm6018, %v13743, 0.0
    %v13865 = vadd.f32 %v13863, %v13864
    %v13866 = vsel %vm6018, %v13744, 0.0
    %v13867 = vadd.f32 %v13865, %v13866
    %v13868 = vsel %vm6018, %v13745, 0.0
    %v13869 = vadd.f32 %v13867, %v13868
    %v13870 = vsel %vm6018, %v13746, 0.0
    %v13871 = vadd.f32 %v13869, %v13870
    %v13872 = vsel %vm6018, %v13747, 0.0
    %v13873 = vadd.f32 %v13871, %v13872
    %v13874 = vsel %vm6018, %v13748, 0.0
    %v13875 = vadd.f32 %v13873, %v13874
    %v13876 = vsel %vm6018, %v13749, 0.0
    %v13877 = vadd.f32 %v13875, %v13876
    %v13878 = vsel %vm6018, %v13750, 0.0
    %v13879 = vadd.f32 %v13877, %v13878
    %v13880 = vsel %vm6018, %v13751, 0.0
    %v13881 = vadd.f32 %v13879, %v13880
    %v13882 = vsel %vm6018, %v13752, 0.0
    %v13883 = vadd.f32 %v13881, %v13882
    %v13884 = vsel %vm6018, %v13753, 0.0
    %v13885 = vadd.f32 %v13883, %v13884
    %v13886 = vrot.slane %v13885, 4
    %v13887 = vadd.f32 %v13885, %v13886
    %v13888 = vrot.slane %v13887, 2
    %v13889 = vadd.f32 %v13887, %v13888
    %v13890 = vrot.slane %v13889, 1
    %v13891 = vadd.f32 %v13889, %v13890
    %v13892 = vrcp.pop 256.0
    %v13893 = vmul.f32 %v13822, %v13892
    %v13894 = vmul.f32 %v13891, %v13892
    %v13895 = vpack.c.bf16 %v13893, %v13893
    %v13896 = vpack.c.bf16 %v13894, %v13894
    %v13897 = vld [vmem:[%s5] sm:$0xf]
    %v13898 = vld [vmem:[%s5 + $0x4] sm:$0xf]
    %v13899 = vld [vmem:[%s6] sm:$0x1]
    %v13901 = vlaneseq
    %v13902 = vshrl.u32 %v13901, 7
    %v13903 = vsub.s32 0, %v13902
    %v13904 = vrot.slane %v13899, %v13903
    %v13908 = vunpack.c.l.b16 %v13895
    %v13909 = vunpack.c.l.b16 %v13896
    %vm13910 = vcmask 1041409
    %v13911 = vsel %vm13910, %v13909, %v13908
    %v13912 = vpack.c.b16 %v13911, %v13911
    %v13915 = vunpack.c.l.b16 %v13897
    %v13916 = vunpack.c.l.b16 %v13898
    %v13917 = vpack.c.b16 %v13916, %v13915
    %v13920 = vsel %vm6018, %v13912, 0
    %13922 = vmatprep.subr.bf16.mxu0 0
    %13923 = vmatpush1.bf16.msra.mxu0 0
    %13924 = vmatprep.subr.bf16.mxu0 0
    %13925 = vmatpush1.bf16.msra.mxu0 0
    %13926 = vmatprep.subr.bf16.mxu0 0
    %13927 = vmatpush1.bf16.msra.mxu0 0
    %13928 = vmatprep.subr.bf16.mxu0 0
    %13929 = vmatpush1.bf16.msra.mxu0 0
    %13930 = vmatprep.subr.bf16.mxu0 0
    %13931 = vmatpush1.bf16.msra.mxu0 0
    %13932 = vmatprep.subr.bf16.mxu0 0
    %13933 = vmatpush1.bf16.msra.mxu0 0
    %13934 = vmatprep.subr.bf16.mxu0 0
    %13935 = vmatpush1.bf16.msra.mxu0 0
    %13936 = vmatprep.subr.bf16.mxu0 0
    %13937 = vmatpush1.bf16.msra.mxu0 %v13917
    %13938 = vmatprep.subr.bf16.mxu0 0
    %13939 = vmatpush2.bf16.msra.mxu0 0
    %13940 = vmatprep.subr.bf16.mxu0 0
    %13941 = vmatpush2.bf16.msra.mxu0 0
    %13942 = vmatprep.subr.bf16.mxu0 0
    %13943 = vmatpush2.bf16.msra.mxu0 0
    %13944 = vmatprep.subr.bf16.mxu0 0
    %13945 = vmatpush2.bf16.msra.mxu0 0
    %13946 = vmatprep.subr.bf16.mxu0 0
    %13947 = vmatpush2.bf16.msra.mxu0 0
    %13948 = vmatprep.subr.bf16.mxu0 0
    %13949 = vmatpush2.bf16.msra.mxu0 0
    %13950 = vmatprep.subr.bf16.mxu0 0
    %13951 = vmatpush2.bf16.msra.mxu0 0
    %13952 = vmatprep.subr.bf16.mxu0 0
    %13953 = vmatpush2.bf16.msra.mxu0 0
    %13954 = vmatprep.mubr.bf16.mxu0 0
    %13955 = vmatmul.mubr.bf16.gmra.mxu0 %v13920
    %v13956 = vpop.f32.mrf.mxu0
    %v13957 = vadd.f32 %v13904, %v13956
    %v13958 = vpop.f32.mrf.mxu0
    %v13959 = vpop.f32.mrf.mxu0
    %v13960 = vpop.f32.mrf.mxu0
    %13961 = vdwg.mxu0
    %v13962 = vtanh.pop %v13957
    %13963 = vst [vmem:[#allocation4] sm:$0x3] %v13962
    // Predicated region
    $region30: #{tpu_custom_call.1} parent=1 // pred_check
      _
    $region31: #{tpu_custom_call.1} parent=1 // pred_check_branch
      %13965 = sbr.rel (0) target = $region33
    $region32: #{tpu_custom_call.1} parent=1 // pred_region
      %s13967 = ssub.s32 32, 32
      %13968 = vsyncadd [#allocation5], %s13967
      %s13970 = sshll.u32 [#allocation4], 4
      %s13971 = int_to_ptr.vmem [resolvable:$true] %s13970
      %13973 = dma.vmem_to_hbm [thread:$0]  %s13971, 32, %s7, [#allocation5]
    $region33: #{tpu_custom_call.1} parent=1 // pred_fallthru
      _
    // Predicated region
    $region34: #{tpu_custom_call.1} parent=1 // pred_check
      _
    $region35: #{tpu_custom_call.1} parent=1 // pred_check_branch
      %13975 = sbr.rel (0) target = $region37
    $region36: #{tpu_custom_call.1} parent=1 // pred_region
      %13976 = dma.done [#allocation5], 32
    $region37: #{tpu_custom_call.1} parent=1 // pred_fallthru
      _
    %13977 = vsyncpa [#allocation5], 1

</llo_original>
